<compile_context>
chip_gen: v7x
topology: tpu7x:2x2x1
jax: 0.10.0
libtpu: 0.0.40
codegen_flags: <defaults>
</compile_context>

<pallas_src>
import functools

import jax
import jax.numpy as jnp
from jax.experimental import pallas as pl
from jax.experimental.pallas import tpu as pltpu


# ----------------------------------------------------------------------------
# Per-generation tiling budget.
# ----------------------------------------------------------------------------
@functools.lru_cache(maxsize=1)
def _tpu_gen_config():
    kind = ""
    try:
        kind = jax.devices()[0].device_kind.lower()
    except Exception:
        pass
    if "v7" in kind:
        # v7x: 64 MiB VMEM per TensorCore; keep tn=512 so both TCs stream
        # disjoint weight halves of the classifier.
        return {"vmem_limit": 48 * 1024 * 1024, "lin_tk_cap": 2560, "lin_tn_cap": 512}
    # v5e / v6e: 128 MiB physical VMEM -> bigger weight tiles, fewer grid steps.
    return {"vmem_limit": 96 * 1024 * 1024, "lin_tk_cap": 3200, "lin_tn_cap": 1024}


def _choose_div_tile(n, cap, align=128):
    # Largest divisor of n that is <= cap and a multiple of `align`
    # (falls back to the full dim, i.e. no tiling).
    if n <= cap:
        return n
    start = cap - cap % align
    for t in range(start, align - 1, -align):
        if n % t == 0:
            return t
    return n


def _choose_conv_tco(cout):
    if cout <= 256:
        return cout
    for t in (256, 128):
        if cout % t == 0:
            return t
    return cout


# ----------------------------------------------------------------------------
# Conv3x3(pad=1) + BatchNorm(eval) + ReLU: 9-tap accumulation of contiguous
# slices of the flattened, spatially padded input (no im2col in HBM).
# ----------------------------------------------------------------------------
def _conv_bn_relu_kernel(x_ref, w_ref, scale_ref, shift_ref, o_ref, acc_ref,
                         *, lw, taps_off):
    # x_ref:    ((H+3)*(W+2), Cin)   flattened zero-padded input (bf16)
    # w_ref:    (9, Cin, Tco)        per-tap weight matrices (bf16)
    # scale/shift: (1, Tco)          folded conv-bias + eval-BN affine (f32)
    # o_ref:    (H*(W+2), Tco)       "wide" output (2 wrap columns dropped in glue)
    # acc_ref:  (H*(W+2), Tco)       f32 accumulator scratch
    acc_ref[...] = jnp.zeros_like(acc_ref)
    for t, off in enumerate(taps_off):          # statically unrolled 9 taps
        acc_ref[...] += jnp.dot(x_ref[off:off + lw, :], w_ref[t],
                                preferred_element_type=jnp.float32)
    y = acc_ref[...] * scale_ref[...] + shift_ref[...]
    o_ref[...] = jnp.maximum(y, 0.0).astype(o_ref.dtype)


def conv3x3_bn_relu(x, w9, scale, shift):
    # x: (N, H, W, Cin) bf16; w9: (9, Cin, Cout) bf16; scale/shift: (1, Cout) f32.
    n, h, w, cin = x.shape
    _, _, cout = w9.shape
    cfg = _tpu_gen_config()

    wp = w + 2                      # padded width (left 1, right 1)
    lp = (h + 3) * wp               # top 1, bottom 2 (+1 extra row so every tap
                                    # slice of length H*(W+2) stays in bounds)
    lw = h * wp
    xp = jnp.pad(x, ((0, 0), (1, 2), (1, 1), (0, 0))).reshape(n, lp, cin)
    taps_off = tuple(dy * wp + dx for dy in range(3) for dx in range(3))

    tco = _choose_conv_tco(cout)
    n_co = cout // tco
    kernel = functools.partial(_conv_bn_relu_kernel, lw=lw, taps_off=taps_off)

    # TODO(synk): for large spatial maps (e.g. 224x224), row-tile the image with
    # manual halo DMAs so the whole feature map need not be VMEM-resident.
    out = pl.pallas_call(
        kernel,
        out_shape=jax.ShapeDtypeStruct((n, lw, cout), jnp.bfloat16),
        grid_spec=pltpu.PrefetchScalarGridSpec(
            num_scalar_prefetch=0,
            grid=(n, n_co),
            in_specs=[
                pl.BlockSpec((None, lp, cin), lambda b, co: (b, 0, 0)),
                pl.BlockSpec((9, cin, tco), lambda b, co: (0, 0, co)),
                pl.BlockSpec((1, tco), lambda b, co: (0, co)),
                pl.BlockSpec((1, tco), lambda b, co: (0, co)),
            ],
            out_specs=pl.BlockSpec((None, lw, tco), lambda b, co: (b, 0, co)),
            scratch_shapes=[pltpu.VMEM((lw, tco), jnp.float32)],
        ),
        compiler_params=pltpu.CompilerParams(
            dimension_semantics=("parallel", "parallel"),
            vmem_limit_bytes=cfg["vmem_limit"]),
    )(xp, w9, scale, shift)

    # Drop the 2 wrap columns of the wide layout.
    return out.reshape(n, h, wp, cout)[:, :, :w, :]


# ----------------------------------------------------------------------------
# MaxPool2d(2,2): 2x2 selectors moved to leading dims so blocks stay
# lane/sublane dense; elementwise max in-kernel, no relayout reshapes.
# TODO(synk): fuse the 2x2 max into the conv epilogue for pooled stages.
# ----------------------------------------------------------------------------
def _maxpool2x2_kernel(x_ref, o_ref):
    x = x_ref[...]                                   # (2, 2, Ho, Wo, C)
    o_ref[...] = jnp.maximum(jnp.maximum(x[0, 0], x[0, 1]),
                             jnp.maximum(x[1, 0], x[1, 1]))


def maxpool2x2(x):
    n, h, w, c = x.shape
    assert h % 2 == 0 and w % 2 == 0
    ho, wo = h // 2, w // 2
    xt = x.reshape(n, ho, 2, wo, 2, c).transpose(0, 2, 4, 1, 3, 5)  # (n,2,2,ho,wo,c)
    return pl.pallas_call(
        _maxpool2x2_kernel,
        out_shape=jax.ShapeDtypeStruct((n, ho, wo, c), x.dtype),
        grid_spec=pltpu.PrefetchScalarGridSpec(
            num_scalar_prefetch=0,
            grid=(n,),
            in_specs=[pl.BlockSpec((None, 2, 2, ho, wo, c),
                                   lambda b: (b, 0, 0, 0, 0, 0))],
            out_specs=pl.BlockSpec((None, ho, wo, c), lambda b: (b, 0, 0, 0)),
        ),
        compiler_params=pltpu.CompilerParams(dimension_semantics=("parallel",)),
    )(xt)


# ----------------------------------------------------------------------------
# AdaptiveAvgPool2d((5,5)) -- general PyTorch bins (divisible or not),
# statically unrolled over the 25 output positions.
# ----------------------------------------------------------------------------
def _adaptive_avgpool_kernel(x_ref, o_ref, *, h, w, oh_n, ow_n):
    x = x_ref[...].astype(jnp.float32)               # (H, W, C)
    for oh in range(oh_n):
        hs = (oh * h) // oh_n
        he = -(-((oh + 1) * h) // oh_n)
        for ow in range(ow_n):
            ws = (ow * w) // ow_n
            we = -(-((ow + 1) * w) // ow_n)
            patch = x[hs:he, ws:we, :]
            val = jnp.sum(patch, axis=(0, 1), keepdims=True)
            val = val * (1.0 / float((he - hs) * (we - ws)))
            o_ref[oh:oh + 1, ow:ow + 1, :] = val.astype(o_ref.dtype)


def adaptive_avgpool_5x5(x):
    n, h, w, c = x.shape
    kernel = functools.partial(_adaptive_avgpool_kernel, h=h, w=w, oh_n=5, ow_n=5)
    return pl.pallas_call(
        kernel,
        out_shape=jax.ShapeDtypeStruct((n, 5, 5, c), x.dtype),
        grid_spec=pltpu.PrefetchScalarGridSpec(
            num_scalar_prefetch=0,
            grid=(n,),
            in_specs=[pl.BlockSpec((None, h, w, c), lambda b: (b, 0, 0, 0))],
            out_specs=pl.BlockSpec((None, 5, 5, c), lambda b: (b, 0, 0, 0)),
        ),
        compiler_params=pltpu.CompilerParams(dimension_semantics=("parallel",)),
    )(x)


# ----------------------------------------------------------------------------
# Linear (+ optional fused ReLU): (Nout tiles x K tiles) grid, bf16 weights,
# f32 accumulation on the MXU.  K axis "arbitrary", Nout axis "parallel".
# ----------------------------------------------------------------------------
def _linear_kernel(x_ref, w_ref, b_ref, o_ref, acc_ref, *, relu):
    k = pl.program_id(1)

    @pl.when(k == 0)
    def _():
        acc_ref[...] = jnp.zeros_like(acc_ref)

    acc_ref[...] += jnp.dot(x_ref[...], w_ref[...],
                            preferred_element_type=jnp.float32)

    @pl.when(k == pl.num_programs(1) - 1)
    def _():
        y = acc_ref[...] + b_ref[...]
        if relu:
            y = jnp.maximum(y, 0.0)
        o_ref[...] = y.astype(o_ref.dtype)


def linear(x, w, b, *, relu=False, out_dtype=jnp.bfloat16):
    bsz, kdim = x.shape
    kw_, nout = w.shape
    assert kdim == kw_
    cfg = _tpu_gen_config()
    tk = _choose_div_tile(kdim, cfg["lin_tk_cap"])
    tn = _choose_div_tile(nout, cfg["lin_tn_cap"])
    nn, nk = nout // tn, kdim // tk
    kernel = functools.partial(_linear_kernel, relu=relu)
    return pl.pallas_call(
        kernel,
        out_shape=jax.ShapeDtypeStruct((bsz, nout), out_dtype),
        grid_spec=pltpu.PrefetchScalarGridSpec(
            num_scalar_prefetch=0,
            grid=(nn, nk),
            in_specs=[
                pl.BlockSpec((bsz, tk), lambda j, k: (0, k)),
                pl.BlockSpec((tk, tn), lambda j, k: (k, j)),
                pl.BlockSpec((1, tn), lambda j, k: (0, j)),
            ],
            out_specs=pl.BlockSpec((bsz, tn), lambda j, k: (0, j)),
            scratch_shapes=[pltpu.VMEM((bsz, tn), jnp.float32)],
        ),
        compiler_params=pltpu.CompilerParams(
            dimension_semantics=("parallel", "arbitrary"),
            vmem_limit_bytes=cfg["vmem_limit"]),
    )(x, w, b.reshape(1, nout))


# ----------------------------------------------------------------------------
# Parameter init (deterministic, synthetic) and full forward pass.
# TODO(synk): load_weights()/torch.load pretrained loading is replaced with
# deterministic synthetic parameters (no file I/O allowed here).
# ----------------------------------------------------------------------------
def init_params(key, backbone_cfg, num_classes):
    eps = 1e-5
    params = {"features": []}
    in_c = 3
    for v in backbone_cfg:
        if v == "M":
            params["features"].append({"type": "M"})
            continue
        key, k1, k2, k3, k4, k5, k6 = jax.random.split(key, 7)
        w = 0.1 * jax.random.normal(k1, (3, 3, in_c, v), jnp.float32)   # HWIO
        conv_b = 0.1 * jax.random.normal(k2, (v,), jnp.float32)
        gamma = 1.0 + 0.1 * jax.random.normal(k3, (v,), jnp.float32)
        beta = 0.1 * jax.random.normal(k4, (v,), jnp.float32)
        run_mean = 0.1 * jax.random.normal(k5, (v,), jnp.float32)
        run_var = 1.0 + 0.1 * jnp.abs(jax.random.normal(k6, (v,), jnp.float32))
        # Fold conv bias + eval-mode BN into a per-channel affine.
        scale = gamma / jnp.sqrt(run_var + eps)
        shift = (conv_b - run_mean) * scale + beta
        params["features"].append({
            "type": "conv",
            "w": w.reshape(9, in_c, v).astype(jnp.bfloat16),   # (dy,dx)-major taps
            "scale": scale.reshape(1, v),
            "shift": shift.reshape(1, v),
        })
        in_c = v

    feat_dim = 512 * 5 * 5          # classifier input dim is hard-coded in the module
    key, k1, k2, k3, k4, k5, k6 = jax.random.split(key, 7)
    # fc1 rows are generated directly in NHWC (h, w, c) flatten order, i.e. the
    # PyTorch (C,H,W)-flatten permutation is folded into the weight layout.
    params["fc1_w"] = (jax.random.normal(k1, (feat_dim, 1024), jnp.float32)
                       / jnp.sqrt(feat_dim)).astype(jnp.bfloat16)
    params["fc1_b"] = 0.01 * jax.random.normal(k2, (1024,), jnp.float32)
    params["fc2_w"] = (jax.random.normal(k3, (1024, 1024), jnp.float32)
                       / jnp.sqrt(1024.0)).astype(jnp.bfloat16)
    params["fc2_b"] = 0.01 * jax.random.normal(k4, (1024,), jnp.float32)
    params["fc3_w"] = (jax.random.normal(k5, (1024, num_classes), jnp.float32)
                       / jnp.sqrt(1024.0)).astype(jnp.bfloat16)
    params["fc3_b"] = 0.01 * jax.random.normal(k6, (num_classes,), jnp.float32)
    return params


def pretrained_vgg_forward(x_nchw, params):
    # x_nchw: (N, 3, H, W) -- PyTorch layout; convert to NHWC bf16 for kernels.
    x = jnp.transpose(x_nchw, (0, 2, 3, 1)).astype(jnp.bfloat16)

    # self.features: [Conv3x3 -> BN(eval) -> ReLU] / MaxPool2d(2,2) per cfg entry.
    for layer in params["features"]:
        if layer["type"] == "M":
            x = maxpool2x2(x)
        else:
            x = conv3x3_bn_relu(x, layer["w"], layer["scale"], layer["shift"])

    # self.avgpool = AdaptiveAvgPool2d((5, 5))
    x = adaptive_avgpool_5x5(x)

    # torch.flatten(x, 1): the (C,H,W) flatten order is folded into fc1_w's row
    # ordering, so the NHWC output flattens directly (metadata-only reshape).
    n = x.shape[0]
    x = x.reshape(n, -1)

    # classifier: Linear -> ReLU -> Dropout -> Linear -> ReLU -> Dropout -> Linear
    # TODO(synk): Dropout(p=0.6) is identity in eval/inference mode; not applied.
    x = linear(x, params["fc1_w"], params["fc1_b"], relu=True)
    x = linear(x, params["fc2_w"], params["fc2_b"], relu=True)
    x = linear(x, params["fc3_w"], params["fc3_b"], relu=False, out_dtype=jnp.float32)
    return x


if __name__ == "__main__":
    # Small synthetic config: the last conv must output 512 channels because the
    # classifier input dim is hard-coded to 512*5*5.  Spatial 20 -> (M) 10 ->
    # (M) 5, so AdaptiveAvgPool2d((5,5)) sees a 5x5 map.
    backbone_cfg = [8, "M", 16, "M", 512]
    num_classes = 10

    key = jax.random.PRNGKey(0)
    key, pkey, xkey = jax.random.split(key, 3)
    params = init_params(pkey, backbone_cfg, num_classes)
    x = jax.random.normal(xkey, (2, 3, 20, 20), jnp.float32)  # NCHW like PyTorch

    out = pretrained_vgg_forward(x, params)
    out = jax.block_until_ready(out)
    assert out.shape == (2, num_classes), out.shape
    assert bool(jnp.all(jnp.isfinite(out)))
    print("KERNEL_OK")
</pallas_src>

<mosaic_0001>
module attributes {stable_mosaic.version = 11 : i64} {
  func.func @_conv_bn_relu_kernel(%arg0: i32, %arg1: i32, %arg2: memref<1x506x3xbf16, #tpu.memory_space<vmem>>, %arg3: memref<9x3x8xbf16, #tpu.memory_space<vmem>>, %arg4: memref<1x8xf32, #tpu.memory_space<vmem>>, %arg5: memref<1x8xf32, #tpu.memory_space<vmem>>, %arg6: memref<1x440x8xbf16, #tpu.memory_space<vmem>>, %arg7: memref<440x8xf32, #tpu.memory_space<vmem>>) attributes {dimension_semantics = [#tpu.dimension_semantics<parallel>, #tpu.dimension_semantics<parallel>], iteration_bounds = array<i64: 2, 1>, scalar_prefetch = 0 : i64, scratch_operands = 1 : i64, tpu.core_type = #tpu.core_type<tc>, window_params = [{transform_indices = @transform_0, window_bounds = array<i64: 1, 506, 3>}, {transform_indices = @transform_1, window_bounds = array<i64: 9, 3, 8>}, {transform_indices = @transform_2, window_bounds = array<i64: 1, 8>}, {transform_indices = @transform_3, window_bounds = array<i64: 1, 8>}, {transform_indices = @transform_4, window_bounds = array<i64: 1, 440, 8>}]} {
    %cst = arith.constant 0.000000e+00 : f32
    %0 = vector.broadcast %cst : f32 to vector<440x8xf32>
    %c0 = arith.constant 0 : index
    %c0_0 = arith.constant 0 : index
    %1 = vector.load %arg7[%c0, %c0_0] : memref<440x8xf32, #tpu.memory_space<vmem>>, vector<440x8xf32>
    tpu.vector_store %arg7[%c0, %c0_0], %0 {strides = array<i32>} : memref<440x8xf32, #tpu.memory_space<vmem>>, vector<440x8xf32>,
    %c0_1 = arith.constant 0 : index
    %c0_2 = arith.constant 0 : index
    %2 = vector.load %arg7[%c0_1, %c0_2] : memref<440x8xf32, #tpu.memory_space<vmem>>, vector<440x8xf32>
    %c0_3 = arith.constant 0 : index
    %c0_4 = arith.constant 0 : index
    %c0_5 = arith.constant 0 : index
    %3 = vector.load %arg2[%c0_3, %c0_4, %c0_5] : memref<1x506x3xbf16, #tpu.memory_space<vmem>>, vector<1x440x3xbf16>
    %4 = vector.shape_cast %3 : vector<1x440x3xbf16> to vector<440x3xbf16>
    %c0_6 = arith.constant 0 : index
    %c0_7 = arith.constant 0 : index
    %c0_8 = arith.constant 0 : index
    %5 = vector.load %arg3[%c0_6, %c0_7, %c0_8] : memref<9x3x8xbf16, #tpu.memory_space<vmem>>, vector<1x3x8xbf16>
    %6 = vector.shape_cast %5 : vector<1x3x8xbf16> to vector<3x8xbf16>
    %cst_9 = arith.constant dense<0.000000e+00> : vector<440x8xf32>
    %7 = tpu.matmul %4, %6, %cst_9 {dimension_numbers = #tpu.dot_dimension_numbers<[1], [0], [0], [1], [0, 0, 1, 1], [], []>} : vector<440x3xbf16>, vector<3x8xbf16>, vector<440x8xf32> -> vector<440x8xf32>
    %8 = arith.addf %2, %7 : vector<440x8xf32>
    %c0_10 = arith.constant 0 : index
    %c0_11 = arith.constant 0 : index
    %9 = vector.load %arg7[%c0_10, %c0_11] : memref<440x8xf32, #tpu.memory_space<vmem>>, vector<440x8xf32>
    tpu.vector_store %arg7[%c0_10, %c0_11], %8 {strides = array<i32>} : memref<440x8xf32, #tpu.memory_space<vmem>>, vector<440x8xf32>,
    %c0_12 = arith.constant 0 : index
    %c0_13 = arith.constant 0 : index
    %10 = vector.load %arg7[%c0_12, %c0_13] : memref<440x8xf32, #tpu.memory_space<vmem>>, vector<440x8xf32>
    %c0_14 = arith.constant 0 : index
    %c1 = arith.constant 1 : index
    %c0_15 = arith.constant 0 : index
    %11 = vector.load %arg2[%c0_14, %c1, %c0_15] : memref<1x506x3xbf16, #tpu.memory_space<vmem>>, vector<1x440x3xbf16>
    %12 = vector.shape_cast %11 : vector<1x440x3xbf16> to vector<440x3xbf16>
    %c1_16 = arith.constant 1 : index
    %c0_17 = arith.constant 0 : index
    %c0_18 = arith.constant 0 : index
    %13 = vector.load %arg3[%c1_16, %c0_17, %c0_18] : memref<9x3x8xbf16, #tpu.memory_space<vmem>>, vector<1x3x8xbf16>
    %14 = vector.shape_cast %13 : vector<1x3x8xbf16> to vector<3x8xbf16>
    %cst_19 = arith.constant dense<0.000000e+00> : vector<440x8xf32>
    %15 = tpu.matmul %12, %14, %cst_19 {dimension_numbers = #tpu.dot_dimension_numbers<[1], [0], [0], [1], [0, 0, 1, 1], [], []>} : vector<440x3xbf16>, vector<3x8xbf16>, vector<440x8xf32> -> vector<440x8xf32>
    %16 = arith.addf %10, %15 : vector<440x8xf32>
    %c0_20 = arith.constant 0 : index
    %c0_21 = arith.constant 0 : index
    %17 = vector.load %arg7[%c0_20, %c0_21] : memref<440x8xf32, #tpu.memory_space<vmem>>, vector<440x8xf32>
    tpu.vector_store %arg7[%c0_20, %c0_21], %16 {strides = array<i32>} : memref<440x8xf32, #tpu.memory_space<vmem>>, vector<440x8xf32>,
    %c0_22 = arith.constant 0 : index
    %c0_23 = arith.constant 0 : index
    %18 = vector.load %arg7[%c0_22, %c0_23] : memref<440x8xf32, #tpu.memory_space<vmem>>, vector<440x8xf32>
    %c0_24 = arith.constant 0 : index
    %c2 = arith.constant 2 : index
    %c0_25 = arith.constant 0 : index
    %19 = vector.load %arg2[%c0_24, %c2, %c0_25] : memref<1x506x3xbf16, #tpu.memory_space<vmem>>, vector<1x440x3xbf16>
    %20 = vector.shape_cast %19 : vector<1x440x3xbf16> to vector<440x3xbf16>
    %c2_26 = arith.constant 2 : index
    %c0_27 = arith.constant 0 : index
    %c0_28 = arith.constant 0 : index
    %21 = vector.load %arg3[%c2_26, %c0_27, %c0_28] : memref<9x3x8xbf16, #tpu.memory_space<vmem>>, vector<1x3x8xbf16>
    %22 = vector.shape_cast %21 : vector<1x3x8xbf16> to vector<3x8xbf16>
    %cst_29 = arith.constant dense<0.000000e+00> : vector<440x8xf32>
    %23 = tpu.matmul %20, %22, %cst_29 {dimension_numbers = #tpu.dot_dimension_numbers<[1], [0], [0], [1], [0, 0, 1, 1], [], []>} : vector<440x3xbf16>, vector<3x8xbf16>, vector<440x8xf32> -> vector<440x8xf32>
    %24 = arith.addf %18, %23 : vector<440x8xf32>
    %c0_30 = arith.constant 0 : index
    %c0_31 = arith.constant 0 : index
    %25 = vector.load %arg7[%c0_30, %c0_31] : memref<440x8xf32, #tpu.memory_space<vmem>>, vector<440x8xf32>
    tpu.vector_store %arg7[%c0_30, %c0_31], %24 {strides = array<i32>} : memref<440x8xf32, #tpu.memory_space<vmem>>, vector<440x8xf32>,
    %c0_32 = arith.constant 0 : index
    %c0_33 = arith.constant 0 : index
    %26 = vector.load %arg7[%c0_32, %c0_33] : memref<440x8xf32, #tpu.memory_space<vmem>>, vector<440x8xf32>
    %c0_34 = arith.constant 0 : index
    %c22 = arith.constant 22 : index
    %c0_35 = arith.constant 0 : index
    %27 = vector.load %arg2[%c0_34, %c22, %c0_35] : memref<1x506x3xbf16, #tpu.memory_space<vmem>>, vector<1x440x3xbf16>
    %28 = vector.shape_cast %27 : vector<1x440x3xbf16> to vector<440x3xbf16>
    %c3 = arith.constant 3 : index
    %c0_36 = arith.constant 0 : index
    %c0_37 = arith.constant 0 : index
    %29 = vector.load %arg3[%c3, %c0_36, %c0_37] : memref<9x3x8xbf16, #tpu.memory_space<vmem>>, vector<1x3x8xbf16>
    %30 = vector.shape_cast %29 : vector<1x3x8xbf16> to vector<3x8xbf16>
    %cst_38 = arith.constant dense<0.000000e+00> : vector<440x8xf32>
    %31 = tpu.matmul %28, %30, %cst_38 {dimension_numbers = #tpu.dot_dimension_numbers<[1], [0], [0], [1], [0, 0, 1, 1], [], []>} : vector<440x3xbf16>, vector<3x8xbf16>, vector<440x8xf32> -> vector<440x8xf32>
    %32 = arith.addf %26, %31 : vector<440x8xf32>
    %c0_39 = arith.constant 0 : index
    %c0_40 = arith.constant 0 : index
    %33 = vector.load %arg7[%c0_39, %c0_40] : memref<440x8xf32, #tpu.memory_space<vmem>>, vector<440x8xf32>
    tpu.vector_store %arg7[%c0_39, %c0_40], %32 {strides = array<i32>} : memref<440x8xf32, #tpu.memory_space<vmem>>, vector<440x8xf32>,
    %c0_41 = arith.constant 0 : index
    %c0_42 = arith.constant 0 : index
    %34 = vector.load %arg7[%c0_41, %c0_42] : memref<440x8xf32, #tpu.memory_space<vmem>>, vector<440x8xf32>
    %c0_43 = arith.constant 0 : index
    %c23 = arith.constant 23 : index
    %c0_44 = arith.constant 0 : index
    %35 = vector.load %arg2[%c0_43, %c23, %c0_44] : memref<1x506x3xbf16, #tpu.memory_space<vmem>>, vector<1x440x3xbf16>
    %36 = vector.shape_cast %35 : vector<1x440x3xbf16> to vector<440x3xbf16>
    %c4 = arith.constant 4 : index
    %c0_45 = arith.constant 0 : index
    %c0_46 = arith.constant 0 : index
    %37 = vector.load %arg3[%c4, %c0_45, %c0_46] : memref<9x3x8xbf16, #tpu.memory_space<vmem>>, vector<1x3x8xbf16>
    %38 = vector.shape_cast %37 : vector<1x3x8xbf16> to vector<3x8xbf16>
    %cst_47 = arith.constant dense<0.000000e+00> : vector<440x8xf32>
    %39 = tpu.matmul %36, %38, %cst_47 {dimension_numbers = #tpu.dot_dimension_numbers<[1], [0], [0], [1], [0, 0, 1, 1], [], []>} : vector<440x3xbf16>, vector<3x8xbf16>, vector<440x8xf32> -> vector<440x8xf32>
    %40 = arith.addf %34, %39 : vector<440x8xf32>
    %c0_48 = arith.constant 0 : index
    %c0_49 = arith.constant 0 : index
    %41 = vector.load %arg7[%c0_48, %c0_49] : memref<440x8xf32, #tpu.memory_space<vmem>>, vector<440x8xf32>
    tpu.vector_store %arg7[%c0_48, %c0_49], %40 {strides = array<i32>} : memref<440x8xf32, #tpu.memory_space<vmem>>, vector<440x8xf32>,
    %c0_50 = arith.constant 0 : index
    %c0_51 = arith.constant 0 : index
    %42 = vector.load %arg7[%c0_50, %c0_51] : memref<440x8xf32, #tpu.memory_space<vmem>>, vector<440x8xf32>
    %c0_52 = arith.constant 0 : index
    %c24 = arith.constant 24 : index
    %c0_53 = arith.constant 0 : index
    %43 = vector.load %arg2[%c0_52, %c24, %c0_53] : memref<1x506x3xbf16, #tpu.memory_space<vmem>>, vector<1x440x3xbf16>
    %44 = vector.shape_cast %43 : vector<1x440x3xbf16> to vector<440x3xbf16>
    %c5 = arith.constant 5 : index
    %c0_54 = arith.constant 0 : index
    %c0_55 = arith.constant 0 : index
    %45 = vector.load %arg3[%c5, %c0_54, %c0_55] : memref<9x3x8xbf16, #tpu.memory_space<vmem>>, vector<1x3x8xbf16>
    %46 = vector.shape_cast %45 : vector<1x3x8xbf16> to vector<3x8xbf16>
    %cst_56 = arith.constant dense<0.000000e+00> : vector<440x8xf32>
    %47 = tpu.matmul %44, %46, %cst_56 {dimension_numbers = #tpu.dot_dimension_numbers<[1], [0], [0], [1], [0, 0, 1, 1], [], []>} : vector<440x3xbf16>, vector<3x8xbf16>, vector<440x8xf32> -> vector<440x8xf32>
    %48 = arith.addf %42, %47 : vector<440x8xf32>
    %c0_57 = arith.constant 0 : index
    %c0_58 = arith.constant 0 : index
    %49 = vector.load %arg7[%c0_57, %c0_58] : memref<440x8xf32, #tpu.memory_space<vmem>>, vector<440x8xf32>
    tpu.vector_store %arg7[%c0_57, %c0_58], %48 {strides = array<i32>} : memref<440x8xf32, #tpu.memory_space<vmem>>, vector<440x8xf32>,
    %c0_59 = arith.constant 0 : index
    %c0_60 = arith.constant 0 : index
    %50 = vector.load %arg7[%c0_59, %c0_60] : memref<440x8xf32, #tpu.memory_space<vmem>>, vector<440x8xf32>
    %c0_61 = arith.constant 0 : index
    %c44 = arith.constant 44 : index
    %c0_62 = arith.constant 0 : index
    %51 = vector.load %arg2[%c0_61, %c44, %c0_62] : memref<1x506x3xbf16, #tpu.memory_space<vmem>>, vector<1x440x3xbf16>
    %52 = vector.shape_cast %51 : vector<1x440x3xbf16> to vector<440x3xbf16>
    %c6 = arith.constant 6 : index
    %c0_63 = arith.constant 0 : index
    %c0_64 = arith.constant 0 : index
    %53 = vector.load %arg3[%c6, %c0_63, %c0_64] : memref<9x3x8xbf16, #tpu.memory_space<vmem>>, vector<1x3x8xbf16>
    %54 = vector.shape_cast %53 : vector<1x3x8xbf16> to vector<3x8xbf16>
    %cst_65 = arith.constant dense<0.000000e+00> : vector<440x8xf32>
    %55 = tpu.matmul %52, %54, %cst_65 {dimension_numbers = #tpu.dot_dimension_numbers<[1], [0], [0], [1], [0, 0, 1, 1], [], []>} : vector<440x3xbf16>, vector<3x8xbf16>, vector<440x8xf32> -> vector<440x8xf32>
    %56 = arith.addf %50, %55 : vector<440x8xf32>
    %c0_66 = arith.constant 0 : index
    %c0_67 = arith.constant 0 : index
    %57 = vector.load %arg7[%c0_66, %c0_67] : memref<440x8xf32, #tpu.memory_space<vmem>>, vector<440x8xf32>
    tpu.vector_store %arg7[%c0_66, %c0_67], %56 {strides = array<i32>} : memref<440x8xf32, #tpu.memory_space<vmem>>, vector<440x8xf32>,
    %c0_68 = arith.constant 0 : index
    %c0_69 = arith.constant 0 : index
    %58 = vector.load %arg7[%c0_68, %c0_69] : memref<440x8xf32, #tpu.memory_space<vmem>>, vector<440x8xf32>
    %c0_70 = arith.constant 0 : index
    %c45 = arith.constant 45 : index
    %c0_71 = arith.constant 0 : index
    %59 = vector.load %arg2[%c0_70, %c45, %c0_71] : memref<1x506x3xbf16, #tpu.memory_space<vmem>>, vector<1x440x3xbf16>
    %60 = vector.shape_cast %59 : vector<1x440x3xbf16> to vector<440x3xbf16>
    %c7 = arith.constant 7 : index
    %c0_72 = arith.constant 0 : index
    %c0_73 = arith.constant 0 : index
    %61 = vector.load %arg3[%c7, %c0_72, %c0_73] : memref<9x3x8xbf16, #tpu.memory_space<vmem>>, vector<1x3x8xbf16>
    %62 = vector.shape_cast %61 : vector<1x3x8xbf16> to vector<3x8xbf16>
    %cst_74 = arith.constant dense<0.000000e+00> : vector<440x8xf32>
    %63 = tpu.matmul %60, %62, %cst_74 {dimension_numbers = #tpu.dot_dimension_numbers<[1], [0], [0], [1], [0, 0, 1, 1], [], []>} : vector<440x3xbf16>, vector<3x8xbf16>, vector<440x8xf32> -> vector<440x8xf32>
    %64 = arith.addf %58, %63 : vector<440x8xf32>
    %c0_75 = arith.constant 0 : index
    %c0_76 = arith.constant 0 : index
    %65 = vector.load %arg7[%c0_75, %c0_76] : memref<440x8xf32, #tpu.memory_space<vmem>>, vector<440x8xf32>
    tpu.vector_store %arg7[%c0_75, %c0_76], %64 {strides = array<i32>} : memref<440x8xf32, #tpu.memory_space<vmem>>, vector<440x8xf32>,
    %c0_77 = arith.constant 0 : index
    %c0_78 = arith.constant 0 : index
    %66 = vector.load %arg7[%c0_77, %c0_78] : memref<440x8xf32, #tpu.memory_space<vmem>>, vector<440x8xf32>
    %c0_79 = arith.constant 0 : index
    %c46 = arith.constant 46 : index
    %c0_80 = arith.constant 0 : index
    %67 = vector.load %arg2[%c0_79, %c46, %c0_80] : memref<1x506x3xbf16, #tpu.memory_space<vmem>>, vector<1x440x3xbf16>
    %68 = vector.shape_cast %67 : vector<1x440x3xbf16> to vector<440x3xbf16>
    %c8 = arith.constant 8 : index
    %c0_81 = arith.constant 0 : index
    %c0_82 = arith.constant 0 : index
    %69 = vector.load %arg3[%c8, %c0_81, %c0_82] : memref<9x3x8xbf16, #tpu.memory_space<vmem>>, vector<1x3x8xbf16>
    %70 = vector.shape_cast %69 : vector<1x3x8xbf16> to vector<3x8xbf16>
    %cst_83 = arith.constant dense<0.000000e+00> : vector<440x8xf32>
    %71 = tpu.matmul %68, %70, %cst_83 {dimension_numbers = #tpu.dot_dimension_numbers<[1], [0], [0], [1], [0, 0, 1, 1], [], []>} : vector<440x3xbf16>, vector<3x8xbf16>, vector<440x8xf32> -> vector<440x8xf32>
    %72 = arith.addf %66, %71 : vector<440x8xf32>
    %c0_84 = arith.constant 0 : index
    %c0_85 = arith.constant 0 : index
    %73 = vector.load %arg7[%c0_84, %c0_85] : memref<440x8xf32, #tpu.memory_space<vmem>>, vector<440x8xf32>
    tpu.vector_store %arg7[%c0_84, %c0_85], %72 {strides = array<i32>} : memref<440x8xf32, #tpu.memory_space<vmem>>, vector<440x8xf32>,
    %c0_86 = arith.constant 0 : index
    %c0_87 = arith.constant 0 : index
    %74 = vector.load %arg7[%c0_86, %c0_87] : memref<440x8xf32, #tpu.memory_space<vmem>>, vector<440x8xf32>
    %c0_88 = arith.constant 0 : index
    %c0_89 = arith.constant 0 : index
    %75 = vector.load %arg4[%c0_88, %c0_89] : memref<1x8xf32, #tpu.memory_space<vmem>>, vector<1x8xf32>
    %76 = vector.broadcast %75 : vector<1x8xf32> to vector<440x8xf32>
    %77 = arith.mulf %74, %76 : vector<440x8xf32>
    %c0_90 = arith.constant 0 : index
    %c0_91 = arith.constant 0 : index
    %78 = vector.load %arg5[%c0_90, %c0_91] : memref<1x8xf32, #tpu.memory_space<vmem>>, vector<1x8xf32>
    %79 = vector.broadcast %78 : vector<1x8xf32> to vector<440x8xf32>
    %80 = arith.addf %77, %79 : vector<440x8xf32>
    %cst_92 = arith.constant 0.000000e+00 : f32
    %81 = vector.broadcast %cst_92 : f32 to vector<440x8xf32>
    %82 = arith.maximumf %80, %81 : vector<440x8xf32>
    %83 = arith.truncf %82 : vector<440x8xf32> to vector<440x8xbf16>
    %c0_93 = arith.constant 0 : index
    %c0_94 = arith.constant 0 : index
    %c0_95 = arith.constant 0 : index
    %84 = vector.load %arg6[%c0_93, %c0_94, %c0_95] : memref<1x440x8xbf16, #tpu.memory_space<vmem>>, vector<1x440x8xbf16>
    %85 = vector.shape_cast %84 : vector<1x440x8xbf16> to vector<440x8xbf16>
    %86 = vector.shape_cast %83 : vector<440x8xbf16> to vector<1x440x8xbf16>
    tpu.vector_store %arg6[%c0_93, %c0_94, %c0_95], %86 {strides = array<i32>} : memref<1x440x8xbf16, #tpu.memory_space<vmem>>, vector<1x440x8xbf16>,
    return
  }
  func.func @transform_0(%arg0: i32, %arg1: i32) -> (i32, i32, i32) {
    %c0_i32 = arith.constant 0 : i32
    %c0_i32_0 = arith.constant 0 : i32
    %c0_i32_1 = arith.constant 0 : i32
    return %arg0, %c0_i32, %c0_i32_0 : i32, i32, i32
  }
  func.func @transform_1(%arg0: i32, %arg1: i32) -> (i32, i32, i32) {
    %c0_i32 = arith.constant 0 : i32
    %c0_i32_0 = arith.constant 0 : i32
    %c0_i32_1 = arith.constant 0 : i32
    return %c0_i32, %c0_i32_0, %arg1 : i32, i32, i32
  }
  func.func @transform_2(%arg0: i32, %arg1: i32) -> (i32, i32) {
    %c0_i32 = arith.constant 0 : i32
    %c0_i32_0 = arith.constant 0 : i32
    return %c0_i32, %arg1 : i32, i32
  }
  func.func @transform_3(%arg0: i32, %arg1: i32) -> (i32, i32) {
    %c0_i32 = arith.constant 0 : i32
    %c0_i32_0 = arith.constant 0 : i32
    return %c0_i32, %arg1 : i32, i32
  }
  func.func @transform_4(%arg0: i32, %arg1: i32) -> (i32, i32, i32) {
    %c0_i32 = arith.constant 0 : i32
    %c0_i32_0 = arith.constant 0 : i32
    return %arg0, %c0_i32, %arg1 : i32, i32, i32
  }
}

</mosaic_0001>

<llo_original>
// kernel: tpu_custom_call.1
$region0: #{tpu_custom_call.1}
  #allocation0 [shape = 'u32[]', space=smem, size = 0x4, offset = 0x4, fixed_abs, tag = 'smem constant byte address 0x4 - core index']
  #allocation1 [shape = 'u32[144,128]{1,0:T(1,128)}', space=vmem, size = 0x12000, scoped, tag = 'internal scratch']
  #allocation2 [shape = 'f32[440,8]{1,0:T(8,128)}', space=vmem, size = 0x37000, scoped, tag = 'scratch operand']
  %s0 = inlined_call_operand.hbm [shape: bf16[2,506,3], index: 0, kind: input, shape index: {}]
  %s1 = inlined_call_operand.hbm [shape: bf16[9,3,8], index: 1, kind: input, shape index: {}]
  %s2 = inlined_call_operand.hbm [shape: f32[1,8], index: 2, kind: input, shape index: {}]
  %s3 = inlined_call_operand.hbm [shape: f32[1,8], index: 3, kind: input, shape index: {}]
  %s4 = inlined_call_operand.hbm [shape: bf16[2,440,8], index: 4, kind: output, shape index: {}]
  %s5 = sld [smem:[#allocation0]]
  $region65: #{tpu_custom_call.1} parent=0
    _
  %s7 = ssub.s32 1, %s5
  %s8 = scalar_select 0, %s7, %s5
  $region1: #{tpu_custom_call.1} parent=0
    #allocation3 [shape = 'u8[262144]{0}', space=vmem, size = 0x40000, scoped, tag = 'input window, operand 0']
    #allocation4 [shape = 's32[2]{0}', space=sflag, size = 0x8, scoped, tag = 'scoped memory for tpu_custom_call.1']
    #allocation5 [shape = 's32[2]{0}', space=sflag, size = 0x8, scoped, tag = 'scoped memory for tpu_custom_call.1']
    #allocation6 [shape = 'u8[9216]{0}', space=vmem, size = 0x2400, scoped, tag = 'input window, operand 1, single buffered']
    #allocation7 [shape = 's32[1]{0}', space=sflag, size = 0x4, scoped, tag = 'scoped memory for tpu_custom_call.1']
    #allocation8 [shape = 'u8[512]{0}', space=vmem, size = 0x400, scoped, tag = 'input window, operand 2, single buffered']
    #allocation9 [shape = 'u8[512]{0}', space=vmem, size = 0x400, scoped, tag = 'input window, operand 3, single buffered']
    #allocation10 [shape = 's32[1]{0}', space=sflag, size = 0x4, scoped, tag = 'scoped memory for tpu_custom_call.1']
    #allocation11 [shape = 'u8[225280]{0}', space=vmem, size = 0x37000, scoped, tag = 'output window, operand 0']
    %9 = vsyncpa [#allocation4], 0
    %s10 = scalar_lea.sflag [#allocation4], 1
    %11 = vsyncpa %s10, 0
    %12 = vsyncpa [#allocation7], 0
    %13 = vsyncpa [#allocation10], 0
    %14 = vsyncpa [#allocation5], 0
    %s15 = scalar_lea.sflag [#allocation5], 1
    %16 = vsyncpa %s15, 0
    loop: start=0, step=1, limit=4
    $region2: #{tpu_custom_call.1} parent=1 // loop_pre_header
      _
    $region3: #{tpu_custom_call.1} parent=1 // loop_header
      %s18 = sphi 0, %s22
      %p19 = scmp.ge.s32.totalorder %s18, 4
      %s25 = sphi 0, %s37
      %s26 = sphi 0, %s33
      %s27 = sphi 0, %s25
      %s28 = sphi 0, %s26
      %s29 = sphi 0, %s27
      %s30 = sphi 0, %s28
      %s40 = sphi 0, %s42
      %s43 = sphi 0, %s40
      %s44 = sphi 0, %s43
      %s60 = sphi 0, %s44
      %s66 = sphi 0, %s68
      %s69 = sphi 0, %s66
      %s70 = sphi 0, %s69
      %s86 = sphi 0, %s70
      %s92 = sphi 0, %s94
      %s95 = sphi 0, %s92
      %s96 = sphi 0, %s95
      %s112 = sphi 0, %s96
      %s118 = sphi 0, %s120
      %s121 = sphi 0, %s118
      %s122 = sphi 0, %s121
      %s138 = sphi 0, %s122
      %s146 = sphi 0, %s148
      %s149 = sphi 0, %s146
      %s150 = sphi 0, %s149
      %s166 = sphi 0, %s150
    $region4: #{tpu_custom_call.1} parent=1 // loop_header_branch
      %21 = sbr.rel (%p19) target = $region8
    $region5: #{tpu_custom_call.1} parent=1 // loop_body
      %s23 = ssub.s32 %s18, 1
      %s24 = ssub.s32 %s18, 2
      %s31 = sadd.s32 1, %s26
      %p32 = scmp.ge.s32.totalorder %s31, 1
      %s33 = scalar_select %p32, 0, %s31
      %s34 = sadd.s32 1, %s25
      %s35 = scalar_select %p32, %s34, %s25
      %p36 = scmp.ge.s32.totalorder %s35, 2
      %s37 = scalar_select %p36, 0, %s35
      %s38 = ssub.s32 %s25, %s37
      %p39 = scmp.eq.s32.totalorder %s38, 0
      %s41 = sadd.s32 %s40, 1
      %s42 = scalar_select %p39, %s40, %s41
      %p45 = pneg %p39
      %p46 = scmp.eq.s32.totalorder %s18, 1
      %p47 = por %p45, %p46
      %p48 = scmp.ne.s32.totalorder %s40, %s43
      %p49 = scmp.eq.s32.totalorder %s18, 0
      %p50 = por %p48, %p49
      %p51 = scmp.ne.s32.totalorder %s40, %s43
      %p52 = scmp.eq.s32.totalorder %s23, 1
      %p53 = por %p51, %p52
      %p54 = scmp.ne.s32.totalorder %s43, %s44
      %p55 = scmp.eq.s32.totalorder %s23, 0
      %p56 = por %p54, %p55
      %p57 = scmp.ne.s32.totalorder %s43, %s44
      %p58 = scmp.eq.s32.totalorder %s24, 1
      %p59 = por %p57, %p58
      %p61 = scmp.ne.s32.totalorder %s44, %s60
      %p62 = scmp.eq.s32.totalorder %s24, 0
      %p63 = por %p61, %p62
      %s64 = ssub.s32 %s26, %s33
      %p65 = scmp.eq.s32.totalorder %s64, 0
      %s67 = sadd.s32 %s66, 1
      %s68 = scalar_select %p65, %s66, %s67
      %p71 = pneg %p65
      %p72 = scmp.eq.s32.totalorder %s18, 1
      %p73 = por %p71, %p72
      %p74 = scmp.ne.s32.totalorder %s66, %s69
      %p75 = scmp.eq.s32.totalorder %s18, 0
      %p76 = por %p74, %p75
      %p77 = scmp.ne.s32.totalorder %s66, %s69
      %p78 = scmp.eq.s32.totalorder %s23, 1
      %p79 = por %p77, %p78
      %p80 = scmp.ne.s32.totalorder %s69, %s70
      %p81 = scmp.eq.s32.totalorder %s23, 0
      %p82 = por %p80, %p81
      %p83 = scmp.ne.s32.totalorder %s69, %s70
      %p84 = scmp.eq.s32.totalorder %s24, 1
      %p85 = por %p83, %p84
      %p87 = scmp.ne.s32.totalorder %s70, %s86
      %p88 = scmp.eq.s32.totalorder %s24, 0
      %p89 = por %p87, %p88
      %s90 = ssub.s32 %s26, %s33
      %p91 = scmp.eq.s32.totalorder %s90, 0
      %s93 = sadd.s32 %s92, 1
      %s94 = scalar_select %p91, %s92, %s93
      %p97 = pneg %p91
      %p98 = scmp.eq.s32.totalorder %s18, 1
      %p99 = por %p97, %p98
      %p100 = scmp.ne.s32.totalorder %s92, %s95
      %p101 = scmp.eq.s32.totalorder %s18, 0
      %p102 = por %p100, %p101
      %p103 = scmp.ne.s32.totalorder %s92, %s95
      %p104 = scmp.eq.s32.totalorder %s23, 1
      %p105 = por %p103, %p104
      %p106 = scmp.ne.s32.totalorder %s95, %s96
      %p107 = scmp.eq.s32.totalorder %s23, 0
      %p108 = por %p106, %p107
      %p109 = scmp.ne.s32.totalorder %s95, %s96
      %p110 = scmp.eq.s32.totalorder %s24, 1
      %p111 = por %p109, %p110
      %p113 = scmp.ne.s32.totalorder %s96, %s112
      %p114 = scmp.eq.s32.totalorder %s24, 0
      %p115 = por %p113, %p114
      %s116 = ssub.s32 %s26, %s33
      %p117 = scmp.eq.s32.totalorder %s116, 0
      %s119 = sadd.s32 %s118, 1
      %s120 = scalar_select %p117, %s118, %s119
      %p123 = pneg %p117
      %p124 = scmp.eq.s32.totalorder %s18, 1
      %p125 = por %p123, %p124
      %p126 = scmp.ne.s32.totalorder %s118, %s121
      %p127 = scmp.eq.s32.totalorder %s18, 0
      %p128 = por %p126, %p127
      %p129 = scmp.ne.s32.totalorder %s118, %s121
      %p130 = scmp.eq.s32.totalorder %s23, 1
      %p131 = por %p129, %p130
      %p132 = scmp.ne.s32.totalorder %s121, %s122
      %p133 = scmp.eq.s32.totalorder %s23, 0
      %p134 = por %p132, %p133
      %p135 = scmp.ne.s32.totalorder %s121, %s122
      %p136 = scmp.eq.s32.totalorder %s24, 1
      %p137 = por %p135, %p136
      %p139 = scmp.ne.s32.totalorder %s122, %s138
      %p140 = scmp.eq.s32.totalorder %s24, 0
      %p141 = por %p139, %p140
      %s142 = ssub.s32 %s25, %s37
      %s143 = ssub.s32 %s26, %s33
      %s144 = sor.u32 %s142, %s143
      %p145 = scmp.eq.s32.totalorder %s144, 0
      %s147 = sadd.s32 %s146, 1
      %s148 = scalar_select %p145, %s146, %s147
      %p151 = pneg %p145
      %p152 = scmp.eq.s32.totalorder %s18, 1
      %p153 = por %p151, %p152
      %p154 = scmp.ne.s32.totalorder %s146, %s149
      %p155 = scmp.eq.s32.totalorder %s18, 0
      %p156 = por %p154, %p155
      %p157 = scmp.ne.s32.totalorder %s146, %s149
      %p158 = scmp.eq.s32.totalorder %s23, 1
      %p159 = por %p157, %p158
      %p160 = scmp.ne.s32.totalorder %s149, %s150
      %p161 = scmp.eq.s32.totalorder %s23, 0
      %p162 = por %p160, %p161
      %p163 = scmp.ne.s32.totalorder %s149, %s150
      %p164 = scmp.eq.s32.totalorder %s24, 1
      %p165 = por %p163, %p164
      %p167 = scmp.ne.s32.totalorder %s150, %s166
      %p168 = scmp.eq.s32.totalorder %s24, 0
      %p169 = por %p167, %p168
      %p170 = scmp.le.s32.totalorder 1, %s18
      %p171 = scmp.lt.s32.totalorder %s18, 3
      %p172 = pnand %p170, %p171
      %p173 = pneg %p172
      // Predicated region
      $region9: #{tpu_custom_call.1} parent=5 // pred_check
        _
      $region10: #{tpu_custom_call.1} parent=5 // pred_check_branch
        %175 = sbr.rel (%p172) target = $region12
      $region11: #{tpu_custom_call.1} parent=5 // pred_region
        %s176 = ssub.s32 %s18, 1
        // Predicated region
        $region13: #{tpu_custom_call.1} parent=11 // pred_check
          %p177 = pneg %p82
        $region14: #{tpu_custom_call.1} parent=11 // pred_check_branch
          %179 = sbr.rel (%p177) target = $region16
        $region15: #{tpu_custom_call.1} parent=11 // pred_region
          %s181 = ssub.s32 288, 288
          %182 = vsyncadd [#allocation7], %s181
          %s183 = smul.addr %s28, 32
          %s184 = scalar_lea.hbm %s1, %s183
          %s185 = sshll.u32 [#allocation6], 4
          %s186 = int_to_ptr.vmem [resolvable:$true] %s185
          %191 = dma.hbm_to_vmem [thread:$0]  %s184, 288, %s186, [#allocation7], 32, 32, 2
        $region16: #{tpu_custom_call.1} parent=11 // pred_fallthru
          _
        // Predicated region
        $region17: #{tpu_custom_call.1} parent=11 // pred_check
          %p192 = pneg %p108
        $region18: #{tpu_custom_call.1} parent=11 // pred_check_branch
          %194 = sbr.rel (%p192) target = $region20
        $region19: #{tpu_custom_call.1} parent=11 // pred_region
          %s196 = ssub.s32 16, 16
          %197 = vsyncadd [#allocation7], %s196
          %s198 = smul.addr %s28, 16
          %s199 = scalar_lea.hbm %s2, %s198
          %s201 = sshll.u32 [#allocation8], 4
          %s202 = int_to_ptr.vmem [resolvable:$true] %s201
          %204 = dma.hbm_to_vmem [thread:$0]  %s199, 16, %s202, [#allocation7]
        $region20: #{tpu_custom_call.1} parent=11 // pred_fallthru
          _
        // Predicated region
        $region21: #{tpu_custom_call.1} parent=11 // pred_check
          %p205 = pneg %p134
        $region22: #{tpu_custom_call.1} parent=11 // pred_check_branch
          %207 = sbr.rel (%p205) target = $region24
        $region23: #{tpu_custom_call.1} parent=11 // pred_region
          %s209 = ssub.s32 16, 16
          %210 = vsyncadd [#allocation10], %s209
          %s211 = smul.addr %s28, 16
          %s212 = scalar_lea.hbm %s3, %s211
          %s214 = sshll.u32 [#allocation9], 4
          %s215 = int_to_ptr.vmem [resolvable:$true] %s214
          %217 = dma.hbm_to_vmem [thread:$0]  %s212, 16, %s215, [#allocation10]
        $region24: #{tpu_custom_call.1} parent=11 // pred_fallthru
          _
      $region12: #{tpu_custom_call.1} parent=5 // pred_fallthru
        _
      %p218 = scmp.lt.s32.totalorder %s18, 2
      // Predicated region
      $region25: #{tpu_custom_call.1} parent=5 // pred_check
        %p219 = pneg %p218
      $region26: #{tpu_custom_call.1} parent=5 // pred_check_branch
        %221 = sbr.rel (%p219) target = $region28
      $region27: #{tpu_custom_call.1} parent=5 // pred_region
        // Predicated region
        $region29: #{tpu_custom_call.1} parent=27 // pred_check
          %p222 = pneg %p50
        $region30: #{tpu_custom_call.1} parent=27 // pred_check_branch
          %224 = sbr.rel (%p222) target = $region32
        $region31: #{tpu_custom_call.1} parent=27 // pred_region
          %s225 = sand.u32 %s40, 1
          %s226 = scalar_lea.sflag [#allocation4], %s225
          %s227 = sand.u32 %s40, 1
          %s228 = smul.addr %s227, 256
          %s229 = scalar_lea.vmem [#allocation3], %s228
          %s231 = ssub.s32 4096, 4096
          %232 = vsyncadd %s226, %s231
          %s233 = smul.addr %s25, 64
          %s234 = smul.addr %s233, 64
          %s235 = scalar_lea.hbm %s0, %s234
          %s236 = sshll.u32 %s229, 4
          %s237 = int_to_ptr.vmem [resolvable:$true] %s236
          %242 = dma.hbm_to_vmem [thread:$0]  %s235, 4096, %s237, %s226, 64, 64, 4
        $region32: #{tpu_custom_call.1} parent=27 // pred_fallthru
          _
      $region28: #{tpu_custom_call.1} parent=5 // pred_fallthru
        _
      %p243 = scmp.le.s32.totalorder 1, %s18
      %p244 = scmp.lt.s32.totalorder %s18, 3
      %p245 = pnand %p243, %p244
      %p246 = pneg %p245
      // Predicated region
      $region33: #{tpu_custom_call.1} parent=5 // pred_check
        _
      $region34: #{tpu_custom_call.1} parent=5 // pred_check_branch
        %248 = sbr.rel (%p245) target = $region36
      $region35: #{tpu_custom_call.1} parent=5 // pred_region
        %s249 = ssub.s32 %s18, 1
        %s250 = sand.u32 %s43, 1
        %s251 = scalar_lea.sflag [#allocation4], %s250
        %s252 = sand.u32 %s43, 1
        %s253 = smul.addr %s252, 256
        %s254 = scalar_lea.vmem [#allocation3], %s253
        // Predicated region
        $region37: #{tpu_custom_call.1} parent=35 // pred_check
          %p255 = pneg %p56
        $region38: #{tpu_custom_call.1} parent=35 // pred_check_branch
          %257 = sbr.rel (%p255) target = $region40
        $region39: #{tpu_custom_call.1} parent=35 // pred_region
          %258 = dma.done %s251, 4096
        $region40: #{tpu_custom_call.1} parent=35 // pred_fallthru
          _
        // Predicated region
        $region41: #{tpu_custom_call.1} parent=35 // pred_check
          %p259 = pneg %p82
        $region42: #{tpu_custom_call.1} parent=35 // pred_check_branch
          %261 = sbr.rel (%p259) target = $region44
        $region43: #{tpu_custom_call.1} parent=35 // pred_region
          %262 = dma.done [#allocation7], 288
        $region44: #{tpu_custom_call.1} parent=35 // pred_fallthru
          _
        // Predicated region
        $region45: #{tpu_custom_call.1} parent=35 // pred_check
          %p263 = pneg %p108
        $region46: #{tpu_custom_call.1} parent=35 // pred_check_branch
          %265 = sbr.rel (%p263) target = $region48
        $region47: #{tpu_custom_call.1} parent=35 // pred_region
          %266 = dma.done [#allocation7], 16
        $region48: #{tpu_custom_call.1} parent=35 // pred_fallthru
          _
        // Predicated region
        $region49: #{tpu_custom_call.1} parent=35 // pred_check
          %p267 = pneg %p134
        $region50: #{tpu_custom_call.1} parent=35 // pred_check_branch
          %269 = sbr.rel (%p267) target = $region52
        $region51: #{tpu_custom_call.1} parent=35 // pred_region
          %270 = dma.done [#allocation10], 16
        $region52: #{tpu_custom_call.1} parent=35 // pred_fallthru
          _
        %s271 = sand.u32 %s43, 1
        %s272 = scalar_lea.sflag [#allocation4], %s271
        %s273 = sand.u32 %s43, 1
        %s274 = smul.addr %s273, 256
        %s275 = scalar_lea.vmem [#allocation3], %s274
        %p276 = pneg %p56
        %p277 = pneg %p53
        %p278 = pneg %p82
        %p279 = pneg %p79
        %p280 = pneg %p108
        %p281 = pneg %p105
        %p282 = pneg %p134
        %p283 = pneg %p131
        %p284 = pneg %p162
        %p285 = pneg %p159
        %s286 = sand.u32 %s149, 1
        %s287 = scalar_lea.sflag [#allocation5], %s286
        %s288 = sand.u32 %s149, 1
        %s289 = smul.addr %s288, 220
        %s290 = scalar_lea.vmem [#allocation11], %s289
        %vm292 = vcmask 64512
        %293 = vst.msk [vmem:[#allocation2] sm:$0xff] %vm292, 0.0
        %294 = vst.msk [vmem:[#allocation2 + $0x8] sm:$0xff] %vm292, 0.0
        %295 = vst.msk [vmem:[#allocation2 + $0x10] sm:$0xff] %vm292, 0.0
        %296 = vst.msk [vmem:[#allocation2 + $0x18] sm:$0xff] %vm292, 0.0
        %297 = vst.msk [vmem:[#allocation2 + $0x20] sm:$0xff] %vm292, 0.0
        %298 = vst.msk [vmem:[#allocation2 + $0x28] sm:$0xff] %vm292, 0.0
        %299 = vst.msk [vmem:[#allocation2 + $0x30] sm:$0xff] %vm292, 0.0
        %300 = vst.msk [vmem:[#allocation2 + $0x38] sm:$0xff] %vm292, 0.0
        %301 = vst.msk [vmem:[#allocation2 + $0x40] sm:$0xff] %vm292, 0.0
        %302 = vst.msk [vmem:[#allocation2 + $0x48] sm:$0xff] %vm292, 0.0
        %303 = vst.msk [vmem:[#allocation2 + $0x50] sm:$0xff] %vm292, 0.0
        %304 = vst.msk [vmem:[#allocation2 + $0x58] sm:$0xff] %vm292, 0.0
        %305 = vst.msk [vmem:[#allocation2 + $0x60] sm:$0xff] %vm292, 0.0
        %306 = vst.msk [vmem:[#allocation2 + $0x68] sm:$0xff] %vm292, 0.0
        %307 = vst.msk [vmem:[#allocation2 + $0x70] sm:$0xff] %vm292, 0.0
        %308 = vst.msk [vmem:[#allocation2 + $0x78] sm:$0xff] %vm292, 0.0
        %309 = vst.msk [vmem:[#allocation2 + $0x80] sm:$0xff] %vm292, 0.0
        %310 = vst.msk [vmem:[#allocation2 + $0x88] sm:$0xff] %vm292, 0.0
        %311 = vst.msk [vmem:[#allocation2 + $0x90] sm:$0xff] %vm292, 0.0
        %312 = vst.msk [vmem:[#allocation2 + $0x98] sm:$0xff] %vm292, 0.0
        %313 = vst.msk [vmem:[#allocation2 + $0xa0] sm:$0xff] %vm292, 0.0
        %314 = vst.msk [vmem:[#allocation2 + $0xa8] sm:$0xff] %vm292, 0.0
        %315 = vst.msk [vmem:[#allocation2 + $0xb0] sm:$0xff] %vm292, 0.0
        %316 = vst.msk [vmem:[#allocation2 + $0xb8] sm:$0xff] %vm292, 0.0
        %317 = vst.msk [vmem:[#allocation2 + $0xc0] sm:$0xff] %vm292, 0.0
        %318 = vst.msk [vmem:[#allocation2 + $0xc8] sm:$0xff] %vm292, 0.0
        %319 = vst.msk [vmem:[#allocation2 + $0xd0] sm:$0xff] %vm292, 0.0
        %320 = vst.msk [vmem:[#allocation2 + $0xd8] sm:$0xff] %vm292, 0.0
        %321 = vst.msk [vmem:[#allocation2 + $0xe0] sm:$0xff] %vm292, 0.0
        %322 = vst.msk [vmem:[#allocation2 + $0xe8] sm:$0xff] %vm292, 0.0
        %323 = vst.msk [vmem:[#allocation2 + $0xf0] sm:$0xff] %vm292, 0.0
        %324 = vst.msk [vmem:[#allocation2 + $0xf8] sm:$0xff] %vm292, 0.0
        %325 = vst.msk [vmem:[#allocation2 + $0x100] sm:$0xff] %vm292, 0.0
        %326 = vst.msk [vmem:[#allocation2 + $0x108] sm:$0xff] %vm292, 0.0
        %327 = vst.msk [vmem:[#allocation2 + $0x110] sm:$0xff] %vm292, 0.0
        %328 = vst.msk [vmem:[#allocation2 + $0x118] sm:$0xff] %vm292, 0.0
        %329 = vst.msk [vmem:[#allocation2 + $0x120] sm:$0xff] %vm292, 0.0
        %330 = vst.msk [vmem:[#allocation2 + $0x128] sm:$0xff] %vm292, 0.0
        %331 = vst.msk [vmem:[#allocation2 + $0x130] sm:$0xff] %vm292, 0.0
        %332 = vst.msk [vmem:[#allocation2 + $0x138] sm:$0xff] %vm292, 0.0
        %333 = vst.msk [vmem:[#allocation2 + $0x140] sm:$0xff] %vm292, 0.0
        %334 = vst.msk [vmem:[#allocation2 + $0x148] sm:$0xff] %vm292, 0.0
        %335 = vst.msk [vmem:[#allocation2 + $0x150] sm:$0xff] %vm292, 0.0
        %336 = vst.msk [vmem:[#allocation2 + $0x158] sm:$0xff] %vm292, 0.0
        %337 = vst.msk [vmem:[#allocation2 + $0x160] sm:$0xff] %vm292, 0.0
        %338 = vst.msk [vmem:[#allocation2 + $0x168] sm:$0xff] %vm292, 0.0
        %339 = vst.msk [vmem:[#allocation2 + $0x170] sm:$0xff] %vm292, 0.0
        %340 = vst.msk [vmem:[#allocation2 + $0x178] sm:$0xff] %vm292, 0.0
        %341 = vst.msk [vmem:[#allocation2 + $0x180] sm:$0xff] %vm292, 0.0
        %342 = vst.msk [vmem:[#allocation2 + $0x188] sm:$0xff] %vm292, 0.0
        %343 = vst.msk [vmem:[#allocation2 + $0x190] sm:$0xff] %vm292, 0.0
        %344 = vst.msk [vmem:[#allocation2 + $0x198] sm:$0xff] %vm292, 0.0
        %345 = vst.msk [vmem:[#allocation2 + $0x1a0] sm:$0xff] %vm292, 0.0
        %346 = vst.msk [vmem:[#allocation2 + $0x1a8] sm:$0xff] %vm292, 0.0
        %347 = vst.msk [vmem:[#allocation2 + $0x1b0] sm:$0xff] %vm292, 0.0
        %v348 = vld [vmem:[#allocation2] sm:$0xff]
        %v349 = vld [vmem:[#allocation2 + $0x8] sm:$0xff]
        %v350 = vld [vmem:[#allocation2 + $0x10] sm:$0xff]
        %v351 = vld [vmem:[#allocation2 + $0x18] sm:$0xff]
        %v352 = vld [vmem:[#allocation2 + $0x20] sm:$0xff]
        %v353 = vld [vmem:[#allocation2 + $0x28] sm:$0xff]
        %v354 = vld [vmem:[#allocation2 + $0x30] sm:$0xff]
        %v355 = vld [vmem:[#allocation2 + $0x38] sm:$0xff]
        %v356 = vld [vmem:[#allocation2 + $0x40] sm:$0xff]
        %v357 = vld [vmem:[#allocation2 + $0x48] sm:$0xff]
        %v358 = vld [vmem:[#allocation2 + $0x50] sm:$0xff]
        %v359 = vld [vmem:[#allocation2 + $0x58] sm:$0xff]
        %v360 = vld [vmem:[#allocation2 + $0x60] sm:$0xff]
        %v361 = vld [vmem:[#allocation2 + $0x68] sm:$0xff]
        %v362 = vld [vmem:[#allocation2 + $0x70] sm:$0xff]
        %v363 = vld [vmem:[#allocation2 + $0x78] sm:$0xff]
        %v364 = vld [vmem:[#allocation2 + $0x80] sm:$0xff]
        %v365 = vld [vmem:[#allocation2 + $0x88] sm:$0xff]
        %v366 = vld [vmem:[#allocation2 + $0x90] sm:$0xff]
        %v367 = vld [vmem:[#allocation2 + $0x98] sm:$0xff]
        %v368 = vld [vmem:[#allocation2 + $0xa0] sm:$0xff]
        %v369 = vld [vmem:[#allocation2 + $0xa8] sm:$0xff]
        %v370 = vld [vmem:[#allocation2 + $0xb0] sm:$0xff]
        %v371 = vld [vmem:[#allocation2 + $0xb8] sm:$0xff]
        %v372 = vld [vmem:[#allocation2 + $0xc0] sm:$0xff]
        %v373 = vld [vmem:[#allocation2 + $0xc8] sm:$0xff]
        %v374 = vld [vmem:[#allocation2 + $0xd0] sm:$0xff]
        %v375 = vld [vmem:[#allocation2 + $0xd8] sm:$0xff]
        %v376 = vld [vmem:[#allocation2 + $0xe0] sm:$0xff]
        %v377 = vld [vmem:[#allocation2 + $0xe8] sm:$0xff]
        %v378 = vld [vmem:[#allocation2 + $0xf0] sm:$0xff]
        %v379 = vld [vmem:[#allocation2 + $0xf8] sm:$0xff]
        %v380 = vld [vmem:[#allocation2 + $0x100] sm:$0xff]
        %v381 = vld [vmem:[#allocation2 + $0x108] sm:$0xff]
        %v382 = vld [vmem:[#allocation2 + $0x110] sm:$0xff]
        %v383 = vld [vmem:[#allocation2 + $0x118] sm:$0xff]
        %v384 = vld [vmem:[#allocation2 + $0x120] sm:$0xff]
        %v385 = vld [vmem:[#allocation2 + $0x128] sm:$0xff]
        %v386 = vld [vmem:[#allocation2 + $0x130] sm:$0xff]
        %v387 = vld [vmem:[#allocation2 + $0x138] sm:$0xff]
        %v388 = vld [vmem:[#allocation2 + $0x140] sm:$0xff]
        %v389 = vld [vmem:[#allocation2 + $0x148] sm:$0xff]
        %v390 = vld [vmem:[#allocation2 + $0x150] sm:$0xff]
        %v391 = vld [vmem:[#allocation2 + $0x158] sm:$0xff]
        %v392 = vld [vmem:[#allocation2 + $0x160] sm:$0xff]
        %v393 = vld [vmem:[#allocation2 + $0x168] sm:$0xff]
        %v394 = vld [vmem:[#allocation2 + $0x170] sm:$0xff]
        %v395 = vld [vmem:[#allocation2 + $0x178] sm:$0xff]
        %v396 = vld [vmem:[#allocation2 + $0x180] sm:$0xff]
        %v397 = vld [vmem:[#allocation2 + $0x188] sm:$0xff]
        %v398 = vld [vmem:[#allocation2 + $0x190] sm:$0xff]
        %v399 = vld [vmem:[#allocation2 + $0x198] sm:$0xff]
        %v400 = vld [vmem:[#allocation2 + $0x1a0] sm:$0xff]
        %v401 = vld [vmem:[#allocation2 + $0x1a8] sm:$0xff]
        %v402 = vld [vmem:[#allocation2 + $0x1b0] sm:$0xff]
        %v403 = vld [vmem:[%s254] sm:$0xf]
        %v404 = vld [vmem:[%s254 + $0x4] sm:$0xf]
        %v405 = vld [vmem:[%s254 + $0x8] sm:$0xf]
        %v406 = vld [vmem:[%s254 + $0xc] sm:$0xf]
        %v407 = vld [vmem:[%s254 + $0x10] sm:$0xf]
        %v408 = vld [vmem:[%s254 + $0x14] sm:$0xf]
        %v409 = vld [vmem:[%s254 + $0x18] sm:$0xf]
        %v410 = vld [vmem:[%s254 + $0x1c] sm:$0xf]
        %v411 = vld [vmem:[%s254 + $0x20] sm:$0xf]
        %v412 = vld [vmem:[%s254 + $0x24] sm:$0xf]
        %v413 = vld [vmem:[%s254 + $0x28] sm:$0xf]
        %v414 = vld [vmem:[%s254 + $0x2c] sm:$0xf]
        %v415 = vld [vmem:[%s254 + $0x30] sm:$0xf]
        %v416 = vld [vmem:[%s254 + $0x34] sm:$0xf]
        %v417 = vld [vmem:[%s254 + $0x38] sm:$0xf]
        %v418 = vld [vmem:[%s254 + $0x3c] sm:$0xf]
        %v419 = vld [vmem:[%s254 + $0x40] sm:$0xf]
        %v420 = vld [vmem:[%s254 + $0x44] sm:$0xf]
        %v421 = vld [vmem:[%s254 + $0x48] sm:$0xf]
        %v422 = vld [vmem:[%s254 + $0x4c] sm:$0xf]
        %v423 = vld [vmem:[%s254 + $0x50] sm:$0xf]
        %v424 = vld [vmem:[%s254 + $0x54] sm:$0xf]
        %v425 = vld [vmem:[%s254 + $0x58] sm:$0xf]
        %v426 = vld [vmem:[%s254 + $0x5c] sm:$0xf]
        %v427 = vld [vmem:[%s254 + $0x60] sm:$0xf]
        %v428 = vld [vmem:[%s254 + $0x64] sm:$0xf]
        %v429 = vld [vmem:[%s254 + $0x68] sm:$0xf]
        %v430 = vld [vmem:[%s254 + $0x6c] sm:$0xf]
        %v431 = vld [vmem:[%s254 + $0x70] sm:$0xf]
        %v432 = vld [vmem:[%s254 + $0x74] sm:$0xf]
        %v433 = vld [vmem:[%s254 + $0x78] sm:$0xf]
        %v434 = vld [vmem:[%s254 + $0x7c] sm:$0xf]
        %v435 = vld [vmem:[%s254 + $0x80] sm:$0xf]
        %v436 = vld [vmem:[%s254 + $0x84] sm:$0xf]
        %v437 = vld [vmem:[%s254 + $0x88] sm:$0xf]
        %v438 = vld [vmem:[%s254 + $0x8c] sm:$0xf]
        %v439 = vld [vmem:[%s254 + $0x90] sm:$0xf]
        %v440 = vld [vmem:[%s254 + $0x94] sm:$0xf]
        %v441 = vld [vmem:[%s254 + $0x98] sm:$0xf]
        %v442 = vld [vmem:[%s254 + $0x9c] sm:$0xf]
        %v443 = vld [vmem:[%s254 + $0xa0] sm:$0xf]
        %v444 = vld [vmem:[%s254 + $0xa4] sm:$0xf]
        %v445 = vld [vmem:[%s254 + $0xa8] sm:$0xf]
        %v446 = vld [vmem:[%s254 + $0xac] sm:$0xf]
        %v447 = vld [vmem:[%s254 + $0xb0] sm:$0xf]
        %v448 = vld [vmem:[%s254 + $0xb4] sm:$0xf]
        %v449 = vld [vmem:[%s254 + $0xb8] sm:$0xf]
        %v450 = vld [vmem:[%s254 + $0xbc] sm:$0xf]
        %v451 = vld [vmem:[%s254 + $0xc0] sm:$0xf]
        %v452 = vld [vmem:[%s254 + $0xc4] sm:$0xf]
        %v453 = vld [vmem:[%s254 + $0xc8] sm:$0xf]
        %v454 = vld [vmem:[%s254 + $0xcc] sm:$0xf]
        %v455 = vld [vmem:[%s254 + $0xd0] sm:$0xf]
        %v456 = vld [vmem:[%s254 + $0xd4] sm:$0xf]
        %v457 = vld [vmem:[%s254 + $0xd8] sm:$0xf]
        %v458 = vld [vmem:[#allocation6] sm:$0x3]
        %v514 = vunpack.c.l.b16 %v403
        %v515 = vunpack.c.l.b16 %v404
        %v516 = vunpack.c.l.b16 %v405
        %v517 = vunpack.c.l.b16 %v406
        %v518 = vunpack.c.l.b16 %v407
        %v519 = vunpack.c.l.b16 %v408
        %v520 = vunpack.c.l.b16 %v409
        %v521 = vunpack.c.l.b16 %v410
        %v522 = vunpack.c.l.b16 %v411
        %v523 = vunpack.c.l.b16 %v412
        %v524 = vunpack.c.l.b16 %v413
        %v525 = vunpack.c.l.b16 %v414
        %v526 = vunpack.c.l.b16 %v415
        %v527 = vunpack.c.l.b16 %v416
        %v528 = vunpack.c.l.b16 %v417
        %v529 = vunpack.c.l.b16 %v418
        %v530 = vunpack.c.l.b16 %v419
        %v531 = vunpack.c.l.b16 %v420
        %v532 = vunpack.c.l.b16 %v421
        %v533 = vunpack.c.l.b16 %v422
        %v534 = vunpack.c.l.b16 %v423
        %v535 = vunpack.c.l.b16 %v424
        %v536 = vunpack.c.l.b16 %v425
        %v537 = vunpack.c.l.b16 %v426
        %v538 = vunpack.c.l.b16 %v427
        %v539 = vunpack.c.l.b16 %v428
        %v540 = vunpack.c.l.b16 %v429
        %v541 = vunpack.c.l.b16 %v430
        %v542 = vunpack.c.l.b16 %v431
        %v543 = vunpack.c.l.b16 %v432
        %v544 = vunpack.c.l.b16 %v433
        %v545 = vunpack.c.l.b16 %v434
        %v546 = vunpack.c.l.b16 %v435
        %v547 = vunpack.c.l.b16 %v436
        %v548 = vunpack.c.l.b16 %v437
        %v549 = vunpack.c.l.b16 %v438
        %v550 = vunpack.c.l.b16 %v439
        %v551 = vunpack.c.l.b16 %v440
        %v552 = vunpack.c.l.b16 %v441
        %v553 = vunpack.c.l.b16 %v442
        %v554 = vunpack.c.l.b16 %v443
        %v555 = vunpack.c.l.b16 %v444
        %v556 = vunpack.c.l.b16 %v445
        %v557 = vunpack.c.l.b16 %v446
        %v558 = vunpack.c.l.b16 %v447
        %v559 = vunpack.c.l.b16 %v448
        %v560 = vunpack.c.l.b16 %v449
        %v561 = vunpack.c.l.b16 %v450
        %v562 = vunpack.c.l.b16 %v451
        %v563 = vunpack.c.l.b16 %v452
        %v564 = vunpack.c.l.b16 %v453
        %v565 = vunpack.c.l.b16 %v454
        %v566 = vunpack.c.l.b16 %v455
        %v567 = vunpack.c.l.b16 %v456
        %v568 = vunpack.c.l.b16 %v457
        %v569 = vpack.c.b16 %v515, %v514
        %v570 = vpack.c.b16 %v517, %v516
        %v571 = vpack.c.b16 %v519, %v518
        %v572 = vpack.c.b16 %v521, %v520
        %v573 = vpack.c.b16 %v523, %v522
        %v574 = vpack.c.b16 %v525, %v524
        %v575 = vpack.c.b16 %v527, %v526
        %v576 = vpack.c.b16 %v529, %v528
        %v577 = vpack.c.b16 %v531, %v530
        %v578 = vpack.c.b16 %v533, %v532
        %v579 = vpack.c.b16 %v535, %v534
        %v580 = vpack.c.b16 %v537, %v536
        %v581 = vpack.c.b16 %v539, %v538
        %v582 = vpack.c.b16 %v541, %v540
        %v583 = vpack.c.b16 %v543, %v542
        %v584 = vpack.c.b16 %v545, %v544
        %v585 = vpack.c.b16 %v547, %v546
        %v586 = vpack.c.b16 %v549, %v548
        %v587 = vpack.c.b16 %v551, %v550
        %v588 = vpack.c.b16 %v553, %v552
        %v589 = vpack.c.b16 %v555, %v554
        %v590 = vpack.c.b16 %v557, %v556
        %v591 = vpack.c.b16 %v559, %v558
        %v592 = vpack.c.b16 %v561, %v560
        %v593 = vpack.c.b16 %v563, %v562
        %v594 = vpack.c.b16 %v565, %v564
        %v595 = vpack.c.b16 %v567, %v566
        %v596 = vpack.c.b16 %v568, %v568
        %vm597 = vcmask 23552
        %v599 = vsel %vm597, %v569, 0
        %v602 = vsel %vm597, %v570, 0
        %v605 = vsel %vm597, %v571, 0
        %v608 = vsel %vm597, %v572, 0
        %v611 = vsel %vm597, %v573, 0
        %v614 = vsel %vm597, %v574, 0
        %v617 = vsel %vm597, %v575, 0
        %v620 = vsel %vm597, %v576, 0
        %v623 = vsel %vm597, %v577, 0
        %v626 = vsel %vm597, %v578, 0
        %v629 = vsel %vm597, %v579, 0
        %v632 = vsel %vm597, %v580, 0
        %v635 = vsel %vm597, %v581, 0
        %v638 = vsel %vm597, %v582, 0
        %v641 = vsel %vm597, %v583, 0
        %v644 = vsel %vm597, %v584, 0
        %v647 = vsel %vm597, %v585, 0
        %v650 = vsel %vm597, %v586, 0
        %v653 = vsel %vm597, %v587, 0
        %v656 = vsel %vm597, %v588, 0
        %v659 = vsel %vm597, %v589, 0
        %v662 = vsel %vm597, %v590, 0
        %v665 = vsel %vm597, %v591, 0
        %v668 = vsel %vm597, %v592, 0
        %v671 = vsel %vm597, %v593, 0
        %v674 = vsel %vm597, %v594, 0
        %v677 = vsel %vm597, %v595, 0
        %v680 = vsel %vm597, %v596, 0
        %vm682 = vcmask 1040384
        %vm683 = vcmask 1041408
        %v684 = vsel %vm682, 4294967295, 65535
        %v685 = vsel %vm683, %v684, 0
        %v687 = vand.u32 %v458, %v685
        %689 = vmatprep.subr.bf16.mxu0 0
        %690 = vmatpush1.bf16.msra.mxu0 %v687
        %691 = vmatprep.subr.bf16.mxu0 0
        %692 = vmatpush1.bf16.msra.mxu0 0
        %693 = vmatprep.subr.bf16.mxu0 0
        %694 = vmatpush1.bf16.msra.mxu0 0
        %695 = vmatprep.subr.bf16.mxu0 0
        %696 = vmatpush1.bf16.msra.mxu0 0
        %697 = vmatprep.subr.bf16.mxu0 0
        %698 = vmatpush1.bf16.msra.mxu0 0
        %699 = vmatprep.subr.bf16.mxu0 0
        %700 = vmatpush1.bf16.msra.mxu0 0
        %701 = vmatprep.subr.bf16.mxu0 0
        %702 = vmatpush1.bf16.msra.mxu0 0
        %703 = vmatprep.subr.bf16.mxu0 0
        %704 = vmatpush1.bf16.msra.mxu0 0
        %705 = vmatprep.subr.bf16.mxu0 0
        %706 = vmatpush1.bf16.msra.mxu0 0
        %707 = vmatprep.subr.bf16.mxu0 0
        %708 = vmatpush1.bf16.msra.mxu0 0
        %709 = vmatprep.subr.bf16.mxu0 0
        %710 = vmatpush1.bf16.msra.mxu0 0
        %711 = vmatprep.subr.bf16.mxu0 0
        %712 = vmatpush1.bf16.msra.mxu0 0
        %713 = vmatprep.subr.bf16.mxu0 0
        %714 = vmatpush1.bf16.msra.mxu0 0
        %715 = vmatprep.subr.bf16.mxu0 0
        %716 = vmatpush1.bf16.msra.mxu0 0
        %717 = vmatprep.subr.bf16.mxu0 0
        %718 = vmatpush1.bf16.msra.mxu0 0
        %719 = vmatprep.subr.bf16.mxu0 0
        %720 = vmatpush1.bf16.msra.mxu0 0
        %721 = vmatprep.mubr.bf16.mxu0 0
        %722 = vmatmul.mubr.bf16.gmra.mrb[0].mxu0 %v599
        %v723 = vpop.f32.mrb[0].mxu0
        %v724 = vadd.f32 0.0, %v723
        %v725 = vpop.f32.mrb[0].mxu0
        %v726 = vpop.f32.mrb[0].mxu0
        %v727 = vadd.f32 0.0, %v726
        %v728 = vpop.f32.mrb[0].mxu0
        %729 = vmatprep.mubr.bf16.mxu0 0
        %730 = vmatmul.mubr.bf16.gmra.mrb[0].mxu0 %v602
        %v731 = vpop.f32.mrb[0].mxu0
        %v732 = vadd.f32 0.0, %v731
        %v733 = vpop.f32.mrb[0].mxu0
        %v734 = vpop.f32.mrb[0].mxu0
        %v735 = vadd.f32 0.0, %v734
        %v736 = vpop.f32.mrb[0].mxu0
        %737 = vmatprep.mubr.bf16.mxu0 0
        %738 = vmatmul.mubr.bf16.gmra.mrb[0].mxu0 %v605
        %v739 = vpop.f32.mrb[0].mxu0
        %v740 = vadd.f32 0.0, %v739
        %v741 = vpop.f32.mrb[0].mxu0
        %v742 = vpop.f32.mrb[0].mxu0
        %v743 = vadd.f32 0.0, %v742
        %v744 = vpop.f32.mrb[0].mxu0
        %745 = vmatprep.mubr.bf16.mxu0 0
        %746 = vmatmul.mubr.bf16.gmra.mrb[0].mxu0 %v608
        %v747 = vpop.f32.mrb[0].mxu0
        %v748 = vadd.f32 0.0, %v747
        %v749 = vpop.f32.mrb[0].mxu0
        %v750 = vpop.f32.mrb[0].mxu0
        %v751 = vadd.f32 0.0, %v750
        %v752 = vpop.f32.mrb[0].mxu0
        %753 = vmatprep.mubr.bf16.mxu0 0
        %754 = vmatmul.mubr.bf16.gmra.mrb[0].mxu0 %v611
        %v755 = vpop.f32.mrb[0].mxu0
        %v756 = vadd.f32 0.0, %v755
        %v757 = vpop.f32.mrb[0].mxu0
        %v758 = vpop.f32.mrb[0].mxu0
        %v759 = vadd.f32 0.0, %v758
        %v760 = vpop.f32.mrb[0].mxu0
        %761 = vmatprep.mubr.bf16.mxu0 0
        %762 = vmatmul.mubr.bf16.gmra.mrb[0].mxu0 %v614
        %v763 = vpop.f32.mrb[0].mxu0
        %v764 = vadd.f32 0.0, %v763
        %v765 = vpop.f32.mrb[0].mxu0
        %v766 = vpop.f32.mrb[0].mxu0
        %v767 = vadd.f32 0.0, %v766
        %v768 = vpop.f32.mrb[0].mxu0
        %769 = vmatprep.mubr.bf16.mxu0 0
        %770 = vmatmul.mubr.bf16.gmra.mrb[0].mxu0 %v617
        %v771 = vpop.f32.mrb[0].mxu0
        %v772 = vadd.f32 0.0, %v771
        %v773 = vpop.f32.mrb[0].mxu0
        %v774 = vpop.f32.mrb[0].mxu0
        %v775 = vadd.f32 0.0, %v774
        %v776 = vpop.f32.mrb[0].mxu0
        %777 = vmatprep.mubr.bf16.mxu0 0
        %778 = vmatmul.mubr.bf16.gmra.mrb[0].mxu0 %v620
        %v779 = vpop.f32.mrb[0].mxu0
        %v780 = vadd.f32 0.0, %v779
        %v781 = vpop.f32.mrb[0].mxu0
        %v782 = vpop.f32.mrb[0].mxu0
        %v783 = vadd.f32 0.0, %v782
        %v784 = vpop.f32.mrb[0].mxu0
        %785 = vmatprep.mubr.bf16.mxu0 0
        %786 = vmatmul.mubr.bf16.gmra.mrb[0].mxu0 %v623
        %v787 = vpop.f32.mrb[0].mxu0
        %v788 = vadd.f32 0.0, %v787
        %v789 = vpop.f32.mrb[0].mxu0
        %v790 = vpop.f32.mrb[0].mxu0
        %v791 = vadd.f32 0.0, %v790
        %v792 = vpop.f32.mrb[0].mxu0
        %793 = vmatprep.mubr.bf16.mxu0 0
        %794 = vmatmul.mubr.bf16.gmra.mrb[0].mxu0 %v626
        %v795 = vpop.f32.mrb[0].mxu0
        %v796 = vadd.f32 0.0, %v795
        %v797 = vpop.f32.mrb[0].mxu0
        %v798 = vpop.f32.mrb[0].mxu0
        %v799 = vadd.f32 0.0, %v798
        %v800 = vpop.f32.mrb[0].mxu0
        %801 = vmatprep.mubr.bf16.mxu0 0
        %802 = vmatmul.mubr.bf16.gmra.mrb[0].mxu0 %v629
        %v803 = vpop.f32.mrb[0].mxu0
        %v804 = vadd.f32 0.0, %v803
        %v805 = vpop.f32.mrb[0].mxu0
        %v806 = vpop.f32.mrb[0].mxu0
        %v807 = vadd.f32 0.0, %v806
        %v808 = vpop.f32.mrb[0].mxu0
        %809 = vmatprep.mubr.bf16.mxu0 0
        %810 = vmatmul.mubr.bf16.gmra.mrb[0].mxu0 %v632
        %v811 = vpop.f32.mrb[0].mxu0
        %v812 = vadd.f32 0.0, %v811
        %v813 = vpop.f32.mrb[0].mxu0
        %v814 = vpop.f32.mrb[0].mxu0
        %v815 = vadd.f32 0.0, %v814
        %v816 = vpop.f32.mrb[0].mxu0
        %817 = vmatprep.mubr.bf16.mxu0 0
        %818 = vmatmul.mubr.bf16.gmra.mrb[0].mxu0 %v635
        %v819 = vpop.f32.mrb[0].mxu0
        %v820 = vadd.f32 0.0, %v819
        %v821 = vpop.f32.mrb[0].mxu0
        %v822 = vpop.f32.mrb[0].mxu0
        %v823 = vadd.f32 0.0, %v822
        %v824 = vpop.f32.mrb[0].mxu0
        %825 = vmatprep.mubr.bf16.mxu0 0
        %826 = vmatmul.mubr.bf16.gmra.mrb[0].mxu0 %v638
        %v827 = vpop.f32.mrb[0].mxu0
        %v828 = vadd.f32 0.0, %v827
        %v829 = vpop.f32.mrb[0].mxu0
        %v830 = vpop.f32.mrb[0].mxu0
        %v831 = vadd.f32 0.0, %v830
        %v832 = vpop.f32.mrb[0].mxu0
        %833 = vmatprep.mubr.bf16.mxu0 0
        %834 = vmatmul.mubr.bf16.gmra.mrb[0].mxu0 %v641
        %v835 = vpop.f32.mrb[0].mxu0
        %v836 = vadd.f32 0.0, %v835
        %v837 = vpop.f32.mrb[0].mxu0
        %v838 = vpop.f32.mrb[0].mxu0
        %v839 = vadd.f32 0.0, %v838
        %v840 = vpop.f32.mrb[0].mxu0
        %841 = vmatprep.mubr.bf16.mxu0 0
        %842 = vmatmul.mubr.bf16.gmra.mrb[0].mxu0 %v644
        %v843 = vpop.f32.mrb[0].mxu0
        %v844 = vadd.f32 0.0, %v843
        %v845 = vpop.f32.mrb[0].mxu0
        %v846 = vpop.f32.mrb[0].mxu0
        %v847 = vadd.f32 0.0, %v846
        %v848 = vpop.f32.mrb[0].mxu0
        %849 = vmatprep.mubr.bf16.mxu0 0
        %850 = vmatmul.mubr.bf16.gmra.mrb[0].mxu0 %v647
        %v851 = vpop.f32.mrb[0].mxu0
        %v852 = vadd.f32 0.0, %v851
        %v853 = vpop.f32.mrb[0].mxu0
        %v854 = vpop.f32.mrb[0].mxu0
        %v855 = vadd.f32 0.0, %v854
        %v856 = vpop.f32.mrb[0].mxu0
        %857 = vmatprep.mubr.bf16.mxu0 0
        %858 = vmatmul.mubr.bf16.gmra.mrb[0].mxu0 %v650
        %v859 = vpop.f32.mrb[0].mxu0
        %v860 = vadd.f32 0.0, %v859
        %v861 = vpop.f32.mrb[0].mxu0
        %v862 = vpop.f32.mrb[0].mxu0
        %v863 = vadd.f32 0.0, %v862
        %v864 = vpop.f32.mrb[0].mxu0
        %865 = vmatprep.mubr.bf16.mxu0 0
        %866 = vmatmul.mubr.bf16.gmra.mrb[0].mxu0 %v653
        %v867 = vpop.f32.mrb[0].mxu0
        %v868 = vadd.f32 0.0, %v867
        %v869 = vpop.f32.mrb[0].mxu0
        %v870 = vpop.f32.mrb[0].mxu0
        %v871 = vadd.f32 0.0, %v870
        %v872 = vpop.f32.mrb[0].mxu0
        %873 = vmatprep.mubr.bf16.mxu0 0
        %874 = vmatmul.mubr.bf16.gmra.mrb[0].mxu0 %v656
        %v875 = vpop.f32.mrb[0].mxu0
        %v876 = vadd.f32 0.0, %v875
        %v877 = vpop.f32.mrb[0].mxu0
        %v878 = vpop.f32.mrb[0].mxu0
        %v879 = vadd.f32 0.0, %v878
        %v880 = vpop.f32.mrb[0].mxu0
        %881 = vmatprep.mubr.bf16.mxu0 0
        %882 = vmatmul.mubr.bf16.gmra.mrb[0].mxu0 %v659
        %v883 = vpop.f32.mrb[0].mxu0
        %v884 = vadd.f32 0.0, %v883
        %v885 = vpop.f32.mrb[0].mxu0
        %v886 = vpop.f32.mrb[0].mxu0
        %v887 = vadd.f32 0.0, %v886
        %v888 = vpop.f32.mrb[0].mxu0
        %889 = vmatprep.mubr.bf16.mxu0 0
        %890 = vmatmul.mubr.bf16.gmra.mrb[0].mxu0 %v662
        %v891 = vpop.f32.mrb[0].mxu0
        %v892 = vadd.f32 0.0, %v891
        %v893 = vpop.f32.mrb[0].mxu0
        %v894 = vpop.f32.mrb[0].mxu0
        %v895 = vadd.f32 0.0, %v894
        %v896 = vpop.f32.mrb[0].mxu0
        %897 = vmatprep.mubr.bf16.mxu0 0
        %898 = vmatmul.mubr.bf16.gmra.mrb[0].mxu0 %v665
        %v899 = vpop.f32.mrb[0].mxu0
        %v900 = vadd.f32 0.0, %v899
        %v901 = vpop.f32.mrb[0].mxu0
        %v902 = vpop.f32.mrb[0].mxu0
        %v903 = vadd.f32 0.0, %v902
        %v904 = vpop.f32.mrb[0].mxu0
        %905 = vmatprep.mubr.bf16.mxu0 0
        %906 = vmatmul.mubr.bf16.gmra.mrb[0].mxu0 %v668
        %v907 = vpop.f32.mrb[0].mxu0
        %v908 = vadd.f32 0.0, %v907
        %v909 = vpop.f32.mrb[0].mxu0
        %v910 = vpop.f32.mrb[0].mxu0
        %v911 = vadd.f32 0.0, %v910
        %v912 = vpop.f32.mrb[0].mxu0
        %913 = vmatprep.mubr.bf16.mxu0 0
        %914 = vmatmul.mubr.bf16.gmra.mrb[0].mxu0 %v671
        %v915 = vpop.f32.mrb[0].mxu0
        %v916 = vadd.f32 0.0, %v915
        %v917 = vpop.f32.mrb[0].mxu0
        %v918 = vpop.f32.mrb[0].mxu0
        %v919 = vadd.f32 0.0, %v918
        %v920 = vpop.f32.mrb[0].mxu0
        %921 = vmatprep.mubr.bf16.mxu0 0
        %922 = vmatmul.mubr.bf16.gmra.mrb[0].mxu0 %v674
        %v923 = vpop.f32.mrb[0].mxu0
        %v924 = vadd.f32 0.0, %v923
        %v925 = vpop.f32.mrb[0].mxu0
        %v926 = vpop.f32.mrb[0].mxu0
        %v927 = vadd.f32 0.0, %v926
        %v928 = vpop.f32.mrb[0].mxu0
        %929 = vmatprep.mubr.bf16.mxu0 0
        %930 = vmatmul.mubr.bf16.gmra.mrb[0].mxu0 %v677
        %v931 = vpop.f32.mrb[0].mxu0
        %v932 = vadd.f32 0.0, %v931
        %v933 = vpop.f32.mrb[0].mxu0
        %v934 = vpop.f32.mrb[0].mxu0
        %v935 = vadd.f32 0.0, %v934
        %v936 = vpop.f32.mrb[0].mxu0
        %937 = vmatprep.mubr.bf16.mxu0 0
        %938 = vmatmul.mubr.bf16.gmra.mrb[0].mxu0 %v680
        %v939 = vpop.f32.mrb[0].mxu0
        %v940 = vadd.f32 0.0, %v939
        %v941 = vpop.f32.mrb[0].mxu0
        %v942 = vpop.f32.mrb[0].mxu0
        %v943 = vpop.f32.mrb[0].mxu0
        %944 = vdwg.mxu0
        %v945 = vadd.f32 %v348, %v724
        %v946 = vadd.f32 %v349, %v727
        %v947 = vadd.f32 %v350, %v732
        %v948 = vadd.f32 %v351, %v735
        %v949 = vadd.f32 %v352, %v740
        %v950 = vadd.f32 %v353, %v743
        %v951 = vadd.f32 %v354, %v748
        %v952 = vadd.f32 %v355, %v751
        %v953 = vadd.f32 %v356, %v756
        %v954 = vadd.f32 %v357, %v759
        %v955 = vadd.f32 %v358, %v764
        %v956 = vadd.f32 %v359, %v767
        %v957 = vadd.f32 %v360, %v772
        %v958 = vadd.f32 %v361, %v775
        %v959 = vadd.f32 %v362, %v780
        %v960 = vadd.f32 %v363, %v783
        %v961 = vadd.f32 %v364, %v788
        %v962 = vadd.f32 %v365, %v791
        %v963 = vadd.f32 %v366, %v796
        %v964 = vadd.f32 %v367, %v799
        %v965 = vadd.f32 %v368, %v804
        %v966 = vadd.f32 %v369, %v807
        %v967 = vadd.f32 %v370, %v812
        %v968 = vadd.f32 %v371, %v815
        %v969 = vadd.f32 %v372, %v820
        %v970 = vadd.f32 %v373, %v823
        %v971 = vadd.f32 %v374, %v828
        %v972 = vadd.f32 %v375, %v831
        %v973 = vadd.f32 %v376, %v836
        %v974 = vadd.f32 %v377, %v839
        %v975 = vadd.f32 %v378, %v844
        %v976 = vadd.f32 %v379, %v847
        %v977 = vadd.f32 %v380, %v852
        %v978 = vadd.f32 %v381, %v855
        %v979 = vadd.f32 %v382, %v860
        %v980 = vadd.f32 %v383, %v863
        %v981 = vadd.f32 %v384, %v868
        %v982 = vadd.f32 %v385, %v871
        %v983 = vadd.f32 %v386, %v876
        %v984 = vadd.f32 %v387, %v879
        %v985 = vadd.f32 %v388, %v884
        %v986 = vadd.f32 %v389, %v887
        %v987 = vadd.f32 %v390, %v892
        %v988 = vadd.f32 %v391, %v895
        %v989 = vadd.f32 %v392, %v900
        %v990 = vadd.f32 %v393, %v903
        %v991 = vadd.f32 %v394, %v908
        %v992 = vadd.f32 %v395, %v911
        %v993 = vadd.f32 %v396, %v916
        %v994 = vadd.f32 %v397, %v919
        %v995 = vadd.f32 %v398, %v924
        %v996 = vadd.f32 %v399, %v927
        %v997 = vadd.f32 %v400, %v932
        %v998 = vadd.f32 %v401, %v935
        %v999 = vadd.f32 %v402, %v940
        %1000 = vst.msk [vmem:[#allocation2] sm:$0xff] %vm292, %v945
        %1001 = vst.msk [vmem:[#allocation2 + $0x8] sm:$0xff] %vm292, %v946
        %1002 = vst.msk [vmem:[#allocation2 + $0x10] sm:$0xff] %vm292, %v947
        %1003 = vst.msk [vmem:[#allocation2 + $0x18] sm:$0xff] %vm292, %v948
        %1004 = vst.msk [vmem:[#allocation2 + $0x20] sm:$0xff] %vm292, %v949
        %1005 = vst.msk [vmem:[#allocation2 + $0x28] sm:$0xff] %vm292, %v950
        %1006 = vst.msk [vmem:[#allocation2 + $0x30] sm:$0xff] %vm292, %v951
        %1007 = vst.msk [vmem:[#allocation2 + $0x38] sm:$0xff] %vm292, %v952
        %1008 = vst.msk [vmem:[#allocation2 + $0x40] sm:$0xff] %vm292, %v953
        %1009 = vst.msk [vmem:[#allocation2 + $0x48] sm:$0xff] %vm292, %v954
        %1010 = vst.msk [vmem:[#allocation2 + $0x50] sm:$0xff] %vm292, %v955
        %1011 = vst.msk [vmem:[#allocation2 + $0x58] sm:$0xff] %vm292, %v956
        %1012 = vst.msk [vmem:[#allocation2 + $0x60] sm:$0xff] %vm292, %v957
        %1013 = vst.msk [vmem:[#allocation2 + $0x68] sm:$0xff] %vm292, %v958
        %1014 = vst.msk [vmem:[#allocation2 + $0x70] sm:$0xff] %vm292, %v959
        %1015 = vst.msk [vmem:[#allocation2 + $0x78] sm:$0xff] %vm292, %v960
        %1016 = vst.msk [vmem:[#allocation2 + $0x80] sm:$0xff] %vm292, %v961
        %1017 = vst.msk [vmem:[#allocation2 + $0x88] sm:$0xff] %vm292, %v962
        %1018 = vst.msk [vmem:[#allocation2 + $0x90] sm:$0xff] %vm292, %v963
        %1019 = vst.msk [vmem:[#allocation2 + $0x98] sm:$0xff] %vm292, %v964
        %1020 = vst.msk [vmem:[#allocation2 + $0xa0] sm:$0xff] %vm292, %v965
        %1021 = vst.msk [vmem:[#allocation2 + $0xa8] sm:$0xff] %vm292, %v966
        %1022 = vst.msk [vmem:[#allocation2 + $0xb0] sm:$0xff] %vm292, %v967
        %1023 = vst.msk [vmem:[#allocation2 + $0xb8] sm:$0xff] %vm292, %v968
        %1024 = vst.msk [vmem:[#allocation2 + $0xc0] sm:$0xff] %vm292, %v969
        %1025 = vst.msk [vmem:[#allocation2 + $0xc8] sm:$0xff] %vm292, %v970
        %1026 = vst.msk [vmem:[#allocation2 + $0xd0] sm:$0xff] %vm292, %v971
        %1027 = vst.msk [vmem:[#allocation2 + $0xd8] sm:$0xff] %vm292, %v972
        %1028 = vst.msk [vmem:[#allocation2 + $0xe0] sm:$0xff] %vm292, %v973
        %1029 = vst.msk [vmem:[#allocation2 + $0xe8] sm:$0xff] %vm292, %v974
        %1030 = vst.msk [vmem:[#allocation2 + $0xf0] sm:$0xff] %vm292, %v975
        %1031 = vst.msk [vmem:[#allocation2 + $0xf8] sm:$0xff] %vm292, %v976
        %1032 = vst.msk [vmem:[#allocation2 + $0x100] sm:$0xff] %vm292, %v977
        %1033 = vst.msk [vmem:[#allocation2 + $0x108] sm:$0xff] %vm292, %v978
        %1034 = vst.msk [vmem:[#allocation2 + $0x110] sm:$0xff] %vm292, %v979
        %1035 = vst.msk [vmem:[#allocation2 + $0x118] sm:$0xff] %vm292, %v980
        %1036 = vst.msk [vmem:[#allocation2 + $0x120] sm:$0xff] %vm292, %v981
        %1037 = vst.msk [vmem:[#allocation2 + $0x128] sm:$0xff] %vm292, %v982
        %1038 = vst.msk [vmem:[#allocation2 + $0x130] sm:$0xff] %vm292, %v983
        %1039 = vst.msk [vmem:[#allocation2 + $0x138] sm:$0xff] %vm292, %v984
        %1040 = vst.msk [vmem:[#allocation2 + $0x140] sm:$0xff] %vm292, %v985
        %1041 = vst.msk [vmem:[#allocation2 + $0x148] sm:$0xff] %vm292, %v986
        %1042 = vst.msk [vmem:[#allocation2 + $0x150] sm:$0xff] %vm292, %v987
        %1043 = vst.msk [vmem:[#allocation2 + $0x158] sm:$0xff] %vm292, %v988
        %1044 = vst.msk [vmem:[#allocation2 + $0x160] sm:$0xff] %vm292, %v989
        %1045 = vst.msk [vmem:[#allocation2 + $0x168] sm:$0xff] %vm292, %v990
        %1046 = vst.msk [vmem:[#allocation2 + $0x170] sm:$0xff] %vm292, %v991
        %1047 = vst.msk [vmem:[#allocation2 + $0x178] sm:$0xff] %vm292, %v992
        %1048 = vst.msk [vmem:[#allocation2 + $0x180] sm:$0xff] %vm292, %v993
        %1049 = vst.msk [vmem:[#allocation2 + $0x188] sm:$0xff] %vm292, %v994
        %1050 = vst.msk [vmem:[#allocation2 + $0x190] sm:$0xff] %vm292, %v995
        %1051 = vst.msk [vmem:[#allocation2 + $0x198] sm:$0xff] %vm292, %v996
        %1052 = vst.msk [vmem:[#allocation2 + $0x1a0] sm:$0xff] %vm292, %v997
        %1053 = vst.msk [vmem:[#allocation2 + $0x1a8] sm:$0xff] %vm292, %v998
        %1054 = vst.msk [vmem:[#allocation2 + $0x1b0] sm:$0xff] %vm292, %v999
        %v1055 = vld [vmem:[#allocation2] sm:$0xff]
        %v1056 = vld [vmem:[#allocation2 + $0x8] sm:$0xff]
        %v1057 = vld [vmem:[#allocation2 + $0x10] sm:$0xff]
        %v1058 = vld [vmem:[#allocation2 + $0x18] sm:$0xff]
        %v1059 = vld [vmem:[#allocation2 + $0x20] sm:$0xff]
        %v1060 = vld [vmem:[#allocation2 + $0x28] sm:$0xff]
        %v1061 = vld [vmem:[#allocation2 + $0x30] sm:$0xff]
        %v1062 = vld [vmem:[#allocation2 + $0x38] sm:$0xff]
        %v1063 = vld [vmem:[#allocation2 + $0x40] sm:$0xff]
        %v1064 = vld [vmem:[#allocation2 + $0x48] sm:$0xff]
        %v1065 = vld [vmem:[#allocation2 + $0x50] sm:$0xff]
        %v1066 = vld [vmem:[#allocation2 + $0x58] sm:$0xff]
        %v1067 = vld [vmem:[#allocation2 + $0x60] sm:$0xff]
        %v1068 = vld [vmem:[#allocation2 + $0x68] sm:$0xff]
        %v1069 = vld [vmem:[#allocation2 + $0x70] sm:$0xff]
        %v1070 = vld [vmem:[#allocation2 + $0x78] sm:$0xff]
        %v1071 = vld [vmem:[#allocation2 + $0x80] sm:$0xff]
        %v1072 = vld [vmem:[#allocation2 + $0x88] sm:$0xff]
        %v1073 = vld [vmem:[#allocation2 + $0x90] sm:$0xff]
        %v1074 = vld [vmem:[#allocation2 + $0x98] sm:$0xff]
        %v1075 = vld [vmem:[#allocation2 + $0xa0] sm:$0xff]
        %v1076 = vld [vmem:[#allocation2 + $0xa8] sm:$0xff]
        %v1077 = vld [vmem:[#allocation2 + $0xb0] sm:$0xff]
        %v1078 = vld [vmem:[#allocation2 + $0xb8] sm:$0xff]
        %v1079 = vld [vmem:[#allocation2 + $0xc0] sm:$0xff]
        %v1080 = vld [vmem:[#allocation2 + $0xc8] sm:$0xff]
        %v1081 = vld [vmem:[#allocation2 + $0xd0] sm:$0xff]
        %v1082 = vld [vmem:[#allocation2 + $0xd8] sm:$0xff]
        %v1083 = vld [vmem:[#allocation2 + $0xe0] sm:$0xff]
        %v1084 = vld [vmem:[#allocation2 + $0xe8] sm:$0xff]
        %v1085 = vld [vmem:[#allocation2 + $0xf0] sm:$0xff]
        %v1086 = vld [vmem:[#allocation2 + $0xf8] sm:$0xff]
        %v1087 = vld [vmem:[#allocation2 + $0x100] sm:$0xff]
        %v1088 = vld [vmem:[#allocation2 + $0x108] sm:$0xff]
        %v1089 = vld [vmem:[#allocation2 + $0x110] sm:$0xff]
        %v1090 = vld [vmem:[#allocation2 + $0x118] sm:$0xff]
        %v1091 = vld [vmem:[#allocation2 + $0x120] sm:$0xff]
        %v1092 = vld [vmem:[#allocation2 + $0x128] sm:$0xff]
        %v1093 = vld [vmem:[#allocation2 + $0x130] sm:$0xff]
        %v1094 = vld [vmem:[#allocation2 + $0x138] sm:$0xff]
        %v1095 = vld [vmem:[#allocation2 + $0x140] sm:$0xff]
        %v1096 = vld [vmem:[#allocation2 + $0x148] sm:$0xff]
        %v1097 = vld [vmem:[#allocation2 + $0x150] sm:$0xff]
        %v1098 = vld [vmem:[#allocation2 + $0x158] sm:$0xff]
        %v1099 = vld [vmem:[#allocation2 + $0x160] sm:$0xff]
        %v1100 = vld [vmem:[#allocation2 + $0x168] sm:$0xff]
        %v1101 = vld [vmem:[#allocation2 + $0x170] sm:$0xff]
        %v1102 = vld [vmem:[#allocation2 + $0x178] sm:$0xff]
        %v1103 = vld [vmem:[#allocation2 + $0x180] sm:$0xff]
        %v1104 = vld [vmem:[#allocation2 + $0x188] sm:$0xff]
        %v1105 = vld [vmem:[#allocation2 + $0x190] sm:$0xff]
        %v1106 = vld [vmem:[#allocation2 + $0x198] sm:$0xff]
        %v1107 = vld [vmem:[#allocation2 + $0x1a0] sm:$0xff]
        %v1108 = vld [vmem:[#allocation2 + $0x1a8] sm:$0xff]
        %v1109 = vld [vmem:[#allocation2 + $0x1b0] sm:$0xff]
        %v1110 = vld [vmem:[%s254] sm:$0xf]
        %v1111 = vld [vmem:[%s254 + $0x4] sm:$0xf]
        %v1112 = vld [vmem:[%s254 + $0x8] sm:$0xf]
        %v1113 = vld [vmem:[%s254 + $0xc] sm:$0xf]
        %v1114 = vld [vmem:[%s254 + $0x10] sm:$0xf]
        %v1115 = vld [vmem:[%s254 + $0x14] sm:$0xf]
        %v1116 = vld [vmem:[%s254 + $0x18] sm:$0xf]
        %v1117 = vld [vmem:[%s254 + $0x1c] sm:$0xf]
        %v1118 = vld [vmem:[%s254 + $0x20] sm:$0xf]
        %v1119 = vld [vmem:[%s254 + $0x24] sm:$0xf]
        %v1120 = vld [vmem:[%s254 + $0x28] sm:$0xf]
        %v1121 = vld [vmem:[%s254 + $0x2c] sm:$0xf]
        %v1122 = vld [vmem:[%s254 + $0x30] sm:$0xf]
        %v1123 = vld [vmem:[%s254 + $0x34] sm:$0xf]
        %v1124 = vld [vmem:[%s254 + $0x38] sm:$0xf]
        %v1125 = vld [vmem:[%s254 + $0x3c] sm:$0xf]
        %v1126 = vld [vmem:[%s254 + $0x40] sm:$0xf]
        %v1127 = vld [vmem:[%s254 + $0x44] sm:$0xf]
        %v1128 = vld [vmem:[%s254 + $0x48] sm:$0xf]
        %v1129 = vld [vmem:[%s254 + $0x4c] sm:$0xf]
        %v1130 = vld [vmem:[%s254 + $0x50] sm:$0xf]
        %v1131 = vld [vmem:[%s254 + $0x54] sm:$0xf]
        %v1132 = vld [vmem:[%s254 + $0x58] sm:$0xf]
        %v1133 = vld [vmem:[%s254 + $0x5c] sm:$0xf]
        %v1134 = vld [vmem:[%s254 + $0x60] sm:$0xf]
        %v1135 = vld [vmem:[%s254 + $0x64] sm:$0xf]
        %v1136 = vld [vmem:[%s254 + $0x68] sm:$0xf]
        %v1137 = vld [vmem:[%s254 + $0x6c] sm:$0xf]
        %v1138 = vld [vmem:[%s254 + $0x70] sm:$0xf]
        %v1139 = vld [vmem:[%s254 + $0x74] sm:$0xf]
        %v1140 = vld [vmem:[%s254 + $0x78] sm:$0xf]
        %v1141 = vld [vmem:[%s254 + $0x7c] sm:$0xf]
        %v1142 = vld [vmem:[%s254 + $0x80] sm:$0xf]
        %v1143 = vld [vmem:[%s254 + $0x84] sm:$0xf]
        %v1144 = vld [vmem:[%s254 + $0x88] sm:$0xf]
        %v1145 = vld [vmem:[%s254 + $0x8c] sm:$0xf]
        %v1146 = vld [vmem:[%s254 + $0x90] sm:$0xf]
        %v1147 = vld [vmem:[%s254 + $0x94] sm:$0xf]
        %v1148 = vld [vmem:[%s254 + $0x98] sm:$0xf]
        %v1149 = vld [vmem:[%s254 + $0x9c] sm:$0xf]
        %v1150 = vld [vmem:[%s254 + $0xa0] sm:$0xf]
        %v1151 = vld [vmem:[%s254 + $0xa4] sm:$0xf]
        %v1152 = vld [vmem:[%s254 + $0xa8] sm:$0xf]
        %v1153 = vld [vmem:[%s254 + $0xac] sm:$0xf]
        %v1154 = vld [vmem:[%s254 + $0xb0] sm:$0xf]
        %v1155 = vld [vmem:[%s254 + $0xb4] sm:$0xf]
        %v1156 = vld [vmem:[%s254 + $0xb8] sm:$0xf]
        %v1157 = vld [vmem:[%s254 + $0xbc] sm:$0xf]
        %v1158 = vld [vmem:[%s254 + $0xc0] sm:$0xf]
        %v1159 = vld [vmem:[%s254 + $0xc4] sm:$0xf]
        %v1160 = vld [vmem:[%s254 + $0xc8] sm:$0xf]
        %v1161 = vld [vmem:[%s254 + $0xcc] sm:$0xf]
        %v1162 = vld [vmem:[%s254 + $0xd0] sm:$0xf]
        %v1163 = vld [vmem:[%s254 + $0xd4] sm:$0xf]
        %v1164 = vld [vmem:[%s254 + $0xd8] sm:$0xf]
        %v1165 = vld [vmem:[%s254 + $0xdc] sm:$0x1]
        %s1166 = scalar_lea.vmem [#allocation6], 2
        %v1167 = vld [vmem:[%s1166] sm:$0x3]
        %v1224 = vunpack.c.l.b16 %v1110
        %v1225 = vunpack.c.l.b16 %v1111
        %v1226 = vunpack.c.l.b16 %v1112
        %v1227 = vunpack.c.l.b16 %v1113
        %v1228 = vunpack.c.l.b16 %v1114
        %v1229 = vunpack.c.l.b16 %v1115
        %v1230 = vunpack.c.l.b16 %v1116
        %v1231 = vunpack.c.l.b16 %v1117
        %v1232 = vunpack.c.l.b16 %v1118
        %v1233 = vunpack.c.l.b16 %v1119
        %v1234 = vunpack.c.l.b16 %v1120
        %v1235 = vunpack.c.l.b16 %v1121
        %v1236 = vunpack.c.l.b16 %v1122
        %v1237 = vunpack.c.l.b16 %v1123
        %v1238 = vunpack.c.l.b16 %v1124
        %v1239 = vunpack.c.l.b16 %v1125
        %v1240 = vunpack.c.l.b16 %v1126
        %v1241 = vunpack.c.l.b16 %v1127
        %v1242 = vunpack.c.l.b16 %v1128
        %v1243 = vunpack.c.l.b16 %v1129
        %v1244 = vunpack.c.l.b16 %v1130
        %v1245 = vunpack.c.l.b16 %v1131
        %v1246 = vunpack.c.l.b16 %v1132
        %v1247 = vunpack.c.l.b16 %v1133
        %v1248 = vunpack.c.l.b16 %v1134
        %v1249 = vunpack.c.l.b16 %v1135
        %v1250 = vunpack.c.l.b16 %v1136
        %v1251 = vunpack.c.l.b16 %v1137
        %v1252 = vunpack.c.l.b16 %v1138
        %v1253 = vunpack.c.l.b16 %v1139
        %v1254 = vunpack.c.l.b16 %v1140
        %v1255 = vunpack.c.l.b16 %v1141
        %v1256 = vunpack.c.l.b16 %v1142
        %v1257 = vunpack.c.l.b16 %v1143
        %v1258 = vunpack.c.l.b16 %v1144
        %v1259 = vunpack.c.l.b16 %v1145
        %v1260 = vunpack.c.l.b16 %v1146
        %v1261 = vunpack.c.l.b16 %v1147
        %v1262 = vunpack.c.l.b16 %v1148
        %v1263 = vunpack.c.l.b16 %v1149
        %v1264 = vunpack.c.l.b16 %v1150
        %v1265 = vunpack.c.l.b16 %v1151
        %v1266 = vunpack.c.l.b16 %v1152
        %v1267 = vunpack.c.l.b16 %v1153
        %v1268 = vunpack.c.l.b16 %v1154
        %v1269 = vunpack.c.l.b16 %v1155
        %v1270 = vunpack.c.l.b16 %v1156
        %v1271 = vunpack.c.l.b16 %v1157
        %v1272 = vunpack.c.l.b16 %v1158
        %v1273 = vunpack.c.l.b16 %v1159
        %v1274 = vunpack.c.l.b16 %v1160
        %v1275 = vunpack.c.l.b16 %v1161
        %v1276 = vunpack.c.l.b16 %v1162
        %v1277 = vunpack.c.l.b16 %v1163
        %v1278 = vunpack.c.l.b16 %v1164
        %v1279 = vunpack.c.l.b16 %v1165
        %v1280 = vpack.c.b16 %v1225, %v1224
        %v1281 = vpack.c.b16 %v1227, %v1226
        %v1282 = vpack.c.b16 %v1229, %v1228
        %v1283 = vpack.c.b16 %v1231, %v1230
        %v1284 = vpack.c.b16 %v1233, %v1232
        %v1285 = vpack.c.b16 %v1235, %v1234
        %v1286 = vpack.c.b16 %v1237, %v1236
        %v1287 = vpack.c.b16 %v1239, %v1238
        %v1288 = vpack.c.b16 %v1241, %v1240
        %v1289 = vpack.c.b16 %v1243, %v1242
        %v1290 = vpack.c.b16 %v1245, %v1244
        %v1291 = vpack.c.b16 %v1247, %v1246
        %v1292 = vpack.c.b16 %v1249, %v1248
        %v1293 = vpack.c.b16 %v1251, %v1250
        %v1294 = vpack.c.b16 %v1253, %v1252
        %v1295 = vpack.c.b16 %v1255, %v1254
        %v1296 = vpack.c.b16 %v1257, %v1256
        %v1297 = vpack.c.b16 %v1259, %v1258
        %v1298 = vpack.c.b16 %v1261, %v1260
        %v1299 = vpack.c.b16 %v1263, %v1262
        %v1300 = vpack.c.b16 %v1265, %v1264
        %v1301 = vpack.c.b16 %v1267, %v1266
        %v1302 = vpack.c.b16 %v1269, %v1268
        %v1303 = vpack.c.b16 %v1271, %v1270
        %v1304 = vpack.c.b16 %v1273, %v1272
        %v1305 = vpack.c.b16 %v1275, %v1274
        %v1306 = vpack.c.b16 %v1277, %v1276
        %v1307 = vpack.c.b16 %v1279, %v1278
        %vm1308 = vsmask.f32 7424
        %v1310 = vshrl.u32 %v1280, 16
        %v1312 = vshll.u32 %v1280, 16
        %v1314 = vrot.slane %v1312, 1
        %v1315 = vor.u32 %v1310, %v1314
        %v1317 = vshll.u32 %v1281, 16
        %v1319 = vrot.slane %v1317, 1
        %v1320 = vsel %vm1308, %v1315, %v1319
        %v1321 = vshrl.u32 %v1281, 16
        %v1323 = vor.u32 %v1321, %v1319
        %v1325 = vshll.u32 %v1282, 16
        %v1327 = vrot.slane %v1325, 1
        %v1328 = vsel %vm1308, %v1323, %v1327
        %v1329 = vshrl.u32 %v1282, 16
        %v1331 = vor.u32 %v1329, %v1327
        %v1333 = vshll.u32 %v1283, 16
        %v1335 = vrot.slane %v1333, 1
        %v1336 = vsel %vm1308, %v1331, %v1335
        %v1337 = vshrl.u32 %v1283, 16
        %v1339 = vor.u32 %v1337, %v1335
        %v1341 = vshll.u32 %v1284, 16
        %v1343 = vrot.slane %v1341, 1
        %v1344 = vsel %vm1308, %v1339, %v1343
        %v1345 = vshrl.u32 %v1284, 16
        %v1347 = vor.u32 %v1345, %v1343
        %v1349 = vshll.u32 %v1285, 16
        %v1351 = vrot.slane %v1349, 1
        %v1352 = vsel %vm1308, %v1347, %v1351
        %v1353 = vshrl.u32 %v1285, 16
        %v1355 = vor.u32 %v1353, %v1351
        %v1357 = vshll.u32 %v1286, 16
        %v1359 = vrot.slane %v1357, 1
        %v1360 = vsel %vm1308, %v1355, %v1359
        %v1361 = vshrl.u32 %v1286, 16
        %v1363 = vor.u32 %v1361, %v1359
        %v1365 = vshll.u32 %v1287, 16
        %v1367 = vrot.slane %v1365, 1
        %v1368 = vsel %vm1308, %v1363, %v1367
        %v1369 = vshrl.u32 %v1287, 16
        %v1371 = vor.u32 %v1369, %v1367
        %v1373 = vshll.u32 %v1288, 16
        %v1375 = vrot.slane %v1373, 1
        %v1376 = vsel %vm1308, %v1371, %v1375
        %v1377 = vshrl.u32 %v1288, 16
        %v1379 = vor.u32 %v1377, %v1375
        %v1381 = vshll.u32 %v1289, 16
        %v1383 = vrot.slane %v1381, 1
        %v1384 = vsel %vm1308, %v1379, %v1383
        %v1385 = vshrl.u32 %v1289, 16
        %v1387 = vor.u32 %v1385, %v1383
        %v1389 = vshll.u32 %v1290, 16
        %v1391 = vrot.slane %v1389, 1
        %v1392 = vsel %vm1308, %v1387, %v1391
        %v1393 = vshrl.u32 %v1290, 16
        %v1395 = vor.u32 %v1393, %v1391
        %v1397 = vshll.u32 %v1291, 16
        %v1399 = vrot.slane %v1397, 1
        %v1400 = vsel %vm1308, %v1395, %v1399
        %v1401 = vshrl.u32 %v1291, 16
        %v1403 = vor.u32 %v1401, %v1399
        %v1405 = vshll.u32 %v1292, 16
        %v1407 = vrot.slane %v1405, 1
        %v1408 = vsel %vm1308, %v1403, %v1407
        %v1409 = vshrl.u32 %v1292, 16
        %v1411 = vor.u32 %v1409, %v1407
        %v1413 = vshll.u32 %v1293, 16
        %v1415 = vrot.slane %v1413, 1
        %v1416 = vsel %vm1308, %v1411, %v1415
        %v1417 = vshrl.u32 %v1293, 16
        %v1419 = vor.u32 %v1417, %v1415
        %v1421 = vshll.u32 %v1294, 16
        %v1423 = vrot.slane %v1421, 1
        %v1424 = vsel %vm1308, %v1419, %v1423
        %v1425 = vshrl.u32 %v1294, 16
        %v1427 = vor.u32 %v1425, %v1423
        %v1429 = vshll.u32 %v1295, 16
        %v1431 = vrot.slane %v1429, 1
        %v1432 = vsel %vm1308, %v1427, %v1431
        %v1433 = vshrl.u32 %v1295, 16
        %v1435 = vor.u32 %v1433, %v1431
        %v1437 = vshll.u32 %v1296, 16
        %v1439 = vrot.slane %v1437, 1
        %v1440 = vsel %vm1308, %v1435, %v1439
        %v1441 = vshrl.u32 %v1296, 16
        %v1443 = vor.u32 %v1441, %v1439
        %v1445 = vshll.u32 %v1297, 16
        %v1447 = vrot.slane %v1445, 1
        %v1448 = vsel %vm1308, %v1443, %v1447
        %v1449 = vshrl.u32 %v1297, 16
        %v1451 = vor.u32 %v1449, %v1447
        %v1453 = vshll.u32 %v1298, 16
        %v1455 = vrot.slane %v1453, 1
        %v1456 = vsel %vm1308, %v1451, %v1455
        %v1457 = vshrl.u32 %v1298, 16
        %v1459 = vor.u32 %v1457, %v1455
        %v1461 = vshll.u32 %v1299, 16
        %v1463 = vrot.slane %v1461, 1
        %v1464 = vsel %vm1308, %v1459, %v1463
        %v1465 = vshrl.u32 %v1299, 16
        %v1467 = vor.u32 %v1465, %v1463
        %v1469 = vshll.u32 %v1300, 16
        %v1471 = vrot.slane %v1469, 1
        %v1472 = vsel %vm1308, %v1467, %v1471
        %v1473 = vshrl.u32 %v1300, 16
        %v1475 = vor.u32 %v1473, %v1471
        %v1477 = vshll.u32 %v1301, 16
        %v1479 = vrot.slane %v1477, 1
        %v1480 = vsel %vm1308, %v1475, %v1479
        %v1481 = vshrl.u32 %v1301, 16
        %v1483 = vor.u32 %v1481, %v1479
        %v1485 = vshll.u32 %v1302, 16
        %v1487 = vrot.slane %v1485, 1
        %v1488 = vsel %vm1308, %v1483, %v1487
        %v1489 = vshrl.u32 %v1302, 16
        %v1491 = vor.u32 %v1489, %v1487
        %v1493 = vshll.u32 %v1303, 16
        %v1495 = vrot.slane %v1493, 1
        %v1496 = vsel %vm1308, %v1491, %v1495
        %v1497 = vshrl.u32 %v1303, 16
        %v1499 = vor.u32 %v1497, %v1495
        %v1501 = vshll.u32 %v1304, 16
        %v1503 = vrot.slane %v1501, 1
        %v1504 = vsel %vm1308, %v1499, %v1503
        %v1505 = vshrl.u32 %v1304, 16
        %v1507 = vor.u32 %v1505, %v1503
        %v1509 = vshll.u32 %v1305, 16
        %v1511 = vrot.slane %v1509, 1
        %v1512 = vsel %vm1308, %v1507, %v1511
        %v1513 = vshrl.u32 %v1305, 16
        %v1515 = vor.u32 %v1513, %v1511
        %v1517 = vshll.u32 %v1306, 16
        %v1519 = vrot.slane %v1517, 1
        %v1520 = vsel %vm1308, %v1515, %v1519
        %v1521 = vshrl.u32 %v1306, 16
        %v1523 = vor.u32 %v1521, %v1519
        %v1525 = vshll.u32 %v1307, 16
        %v1527 = vrot.slane %v1525, 1
        %v1528 = vsel %vm1308, %v1523, %v1527
        %v1529 = vshrl.u32 %v1307, 16
        %v1531 = vor.u32 %v1529, %v1527
        %v1533 = vsel %vm597, %v1320, 0
        %v1536 = vsel %vm597, %v1328, 0
        %v1539 = vsel %vm597, %v1336, 0
        %v1542 = vsel %vm597, %v1344, 0
        %v1545 = vsel %vm597, %v1352, 0
        %v1548 = vsel %vm597, %v1360, 0
        %v1551 = vsel %vm597, %v1368, 0
        %v1554 = vsel %vm597, %v1376, 0
        %v1557 = vsel %vm597, %v1384, 0
        %v1560 = vsel %vm597, %v1392, 0
        %v1563 = vsel %vm597, %v1400, 0
        %v1566 = vsel %vm597, %v1408, 0
        %v1569 = vsel %vm597, %v1416, 0
        %v1572 = vsel %vm597, %v1424, 0
        %v1575 = vsel %vm597, %v1432, 0
        %v1578 = vsel %vm597, %v1440, 0
        %v1581 = vsel %vm597, %v1448, 0
        %v1584 = vsel %vm597, %v1456, 0
        %v1587 = vsel %vm597, %v1464, 0
        %v1590 = vsel %vm597, %v1472, 0
        %v1593 = vsel %vm597, %v1480, 0
        %v1596 = vsel %vm597, %v1488, 0
        %v1599 = vsel %vm597, %v1496, 0
        %v1602 = vsel %vm597, %v1504, 0
        %v1605 = vsel %vm597, %v1512, 0
        %v1608 = vsel %vm597, %v1520, 0
        %v1611 = vsel %vm597, %v1528, 0
        %v1614 = vsel %vm597, %v1531, 0
        %v1617 = vand.u32 %v1167, %v685
        %1619 = vmatprep.subr.bf16.mxu0 0
        %1620 = vmatpush1.bf16.msra.mxu0 %v1617
        %1621 = vmatprep.subr.bf16.mxu0 0
        %1622 = vmatpush1.bf16.msra.mxu0 0
        %1623 = vmatprep.subr.bf16.mxu0 0
        %1624 = vmatpush1.bf16.msra.mxu0 0
        %1625 = vmatprep.subr.bf16.mxu0 0
        %1626 = vmatpush1.bf16.msra.mxu0 0
        %1627 = vmatprep.subr.bf16.mxu0 0
        %1628 = vmatpush1.bf16.msra.mxu0 0
        %1629 = vmatprep.subr.bf16.mxu0 0
        %1630 = vmatpush1.bf16.msra.mxu0 0
        %1631 = vmatprep.subr.bf16.mxu0 0
        %1632 = vmatpush1.bf16.msra.mxu0 0
        %1633 = vmatprep.subr.bf16.mxu0 0
        %1634 = vmatpush1.bf16.msra.mxu0 0
        %1635 = vmatprep.subr.bf16.mxu0 0
        %1636 = vmatpush1.bf16.msra.mxu0 0
        %1637 = vmatprep.subr.bf16.mxu0 0
        %1638 = vmatpush1.bf16.msra.mxu0 0
        %1639 = vmatprep.subr.bf16.mxu0 0
        %1640 = vmatpush1.bf16.msra.mxu0 0
        %1641 = vmatprep.subr.bf16.mxu0 0
        %1642 = vmatpush1.bf16.msra.mxu0 0
        %1643 = vmatprep.subr.bf16.mxu0 0
        %1644 = vmatpush1.bf16.msra.mxu0 0
        %1645 = vmatprep.subr.bf16.mxu0 0
        %1646 = vmatpush1.bf16.msra.mxu0 0
        %1647 = vmatprep.subr.bf16.mxu0 0
        %1648 = vmatpush1.bf16.msra.mxu0 0
        %1649 = vmatprep.subr.bf16.mxu0 0
        %1650 = vmatpush1.bf16.msra.mxu0 0
        %1651 = vmatprep.mubr.bf16.mxu0 0
        %1652 = vmatmul.mubr.bf16.gmra.mrb[0].mxu0 %v1533
        %v1653 = vpop.f32.mrb[0].mxu0
        %v1654 = vadd.f32 0.0, %v1653
        %v1655 = vpop.f32.mrb[0].mxu0
        %v1656 = vpop.f32.mrb[0].mxu0
        %v1657 = vadd.f32 0.0, %v1656
        %v1658 = vpop.f32.mrb[0].mxu0
        %1659 = vmatprep.mubr.bf16.mxu0 0
        %1660 = vmatmul.mubr.bf16.gmra.mrb[0].mxu0 %v1536
        %v1661 = vpop.f32.mrb[0].mxu0
        %v1662 = vadd.f32 0.0, %v1661
        %v1663 = vpop.f32.mrb[0].mxu0
        %v1664 = vpop.f32.mrb[0].mxu0
        %v1665 = vadd.f32 0.0, %v1664
        %v1666 = vpop.f32.mrb[0].mxu0
        %1667 = vmatprep.mubr.bf16.mxu0 0
        %1668 = vmatmul.mubr.bf16.gmra.mrb[0].mxu0 %v1539
        %v1669 = vpop.f32.mrb[0].mxu0
        %v1670 = vadd.f32 0.0, %v1669
        %v1671 = vpop.f32.mrb[0].mxu0
        %v1672 = vpop.f32.mrb[0].mxu0
        %v1673 = vadd.f32 0.0, %v1672
        %v1674 = vpop.f32.mrb[0].mxu0
        %1675 = vmatprep.mubr.bf16.mxu0 0
        %1676 = vmatmul.mubr.bf16.gmra.mrb[0].mxu0 %v1542
        %v1677 = vpop.f32.mrb[0].mxu0
        %v1678 = vadd.f32 0.0, %v1677
        %v1679 = vpop.f32.mrb[0].mxu0
        %v1680 = vpop.f32.mrb[0].mxu0
        %v1681 = vadd.f32 0.0, %v1680
        %v1682 = vpop.f32.mrb[0].mxu0
        %1683 = vmatprep.mubr.bf16.mxu0 0
        %1684 = vmatmul.mubr.bf16.gmra.mrb[0].mxu0 %v1545
        %v1685 = vpop.f32.mrb[0].mxu0
        %v1686 = vadd.f32 0.0, %v1685
        %v1687 = vpop.f32.mrb[0].mxu0
        %v1688 = vpop.f32.mrb[0].mxu0
        %v1689 = vadd.f32 0.0, %v1688
        %v1690 = vpop.f32.mrb[0].mxu0
        %1691 = vmatprep.mubr.bf16.mxu0 0
        %1692 = vmatmul.mubr.bf16.gmra.mrb[0].mxu0 %v1548
        %v1693 = vpop.f32.mrb[0].mxu0
        %v1694 = vadd.f32 0.0, %v1693
        %v1695 = vpop.f32.mrb[0].mxu0
        %v1696 = vpop.f32.mrb[0].mxu0
        %v1697 = vadd.f32 0.0, %v1696
        %v1698 = vpop.f32.mrb[0].mxu0
        %1699 = vmatprep.mubr.bf16.mxu0 0
        %1700 = vmatmul.mubr.bf16.gmra.mrb[0].mxu0 %v1551
        %v1701 = vpop.f32.mrb[0].mxu0
        %v1702 = vadd.f32 0.0, %v1701
        %v1703 = vpop.f32.mrb[0].mxu0
        %v1704 = vpop.f32.mrb[0].mxu0
        %v1705 = vadd.f32 0.0, %v1704
        %v1706 = vpop.f32.mrb[0].mxu0
        %1707 = vmatprep.mubr.bf16.mxu0 0
        %1708 = vmatmul.mubr.bf16.gmra.mrb[0].mxu0 %v1554
        %v1709 = vpop.f32.mrb[0].mxu0
        %v1710 = vadd.f32 0.0, %v1709
        %v1711 = vpop.f32.mrb[0].mxu0
        %v1712 = vpop.f32.mrb[0].mxu0
        %v1713 = vadd.f32 0.0, %v1712
        %v1714 = vpop.f32.mrb[0].mxu0
        %1715 = vmatprep.mubr.bf16.mxu0 0
        %1716 = vmatmul.mubr.bf16.gmra.mrb[0].mxu0 %v1557
        %v1717 = vpop.f32.mrb[0].mxu0
        %v1718 = vadd.f32 0.0, %v1717
        %v1719 = vpop.f32.mrb[0].mxu0
        %v1720 = vpop.f32.mrb[0].mxu0
        %v1721 = vadd.f32 0.0, %v1720
        %v1722 = vpop.f32.mrb[0].mxu0
        %1723 = vmatprep.mubr.bf16.mxu0 0
        %1724 = vmatmul.mubr.bf16.gmra.mrb[0].mxu0 %v1560
        %v1725 = vpop.f32.mrb[0].mxu0
        %v1726 = vadd.f32 0.0, %v1725
        %v1727 = vpop.f32.mrb[0].mxu0
        %v1728 = vpop.f32.mrb[0].mxu0
        %v1729 = vadd.f32 0.0, %v1728
        %v1730 = vpop.f32.mrb[0].mxu0
        %1731 = vmatprep.mubr.bf16.mxu0 0
        %1732 = vmatmul.mubr.bf16.gmra.mrb[0].mxu0 %v1563
        %v1733 = vpop.f32.mrb[0].mxu0
        %v1734 = vadd.f32 0.0, %v1733
        %v1735 = vpop.f32.mrb[0].mxu0
        %v1736 = vpop.f32.mrb[0].mxu0
        %v1737 = vadd.f32 0.0, %v1736
        %v1738 = vpop.f32.mrb[0].mxu0
        %1739 = vmatprep.mubr.bf16.mxu0 0
        %1740 = vmatmul.mubr.bf16.gmra.mrb[0].mxu0 %v1566
        %v1741 = vpop.f32.mrb[0].mxu0
        %v1742 = vadd.f32 0.0, %v1741
        %v1743 = vpop.f32.mrb[0].mxu0
        %v1744 = vpop.f32.mrb[0].mxu0
        %v1745 = vadd.f32 0.0, %v1744
        %v1746 = vpop.f32.mrb[0].mxu0
        %1747 = vmatprep.mubr.bf16.mxu0 0
        %1748 = vmatmul.mubr.bf16.gmra.mrb[0].mxu0 %v1569
        %v1749 = vpop.f32.mrb[0].mxu0
        %v1750 = vadd.f32 0.0, %v1749
        %v1751 = vpop.f32.mrb[0].mxu0
        %v1752 = vpop.f32.mrb[0].mxu0
        %v1753 = vadd.f32 0.0, %v1752
        %v1754 = vpop.f32.mrb[0].mxu0
        %1755 = vmatprep.mubr.bf16.mxu0 0
        %1756 = vmatmul.mubr.bf16.gmra.mrb[0].mxu0 %v1572
        %v1757 = vpop.f32.mrb[0].mxu0
        %v1758 = vadd.f32 0.0, %v1757
        %v1759 = vpop.f32.mrb[0].mxu0
        %v1760 = vpop.f32.mrb[0].mxu0
        %v1761 = vadd.f32 0.0, %v1760
        %v1762 = vpop.f32.mrb[0].mxu0
        %1763 = vmatprep.mubr.bf16.mxu0 0
        %1764 = vmatmul.mubr.bf16.gmra.mrb[0].mxu0 %v1575
        %v1765 = vpop.f32.mrb[0].mxu0
        %v1766 = vadd.f32 0.0, %v1765
        %v1767 = vpop.f32.mrb[0].mxu0
        %v1768 = vpop.f32.mrb[0].mxu0
        %v1769 = vadd.f32 0.0, %v1768
        %v1770 = vpop.f32.mrb[0].mxu0
        %1771 = vmatprep.mubr.bf16.mxu0 0
        %1772 = vmatmul.mubr.bf16.gmra.mrb[0].mxu0 %v1578
        %v1773 = vpop.f32.mrb[0].mxu0
        %v1774 = vadd.f32 0.0, %v1773
        %v1775 = vpop.f32.mrb[0].mxu0
        %v1776 = vpop.f32.mrb[0].mxu0
        %v1777 = vadd.f32 0.0, %v1776
        %v1778 = vpop.f32.mrb[0].mxu0
        %1779 = vmatprep.mubr.bf16.mxu0 0
        %1780 = vmatmul.mubr.bf16.gmra.mrb[0].mxu0 %v1581
        %v1781 = vpop.f32.mrb[0].mxu0
        %v1782 = vadd.f32 0.0, %v1781
        %v1783 = vpop.f32.mrb[0].mxu0
        %v1784 = vpop.f32.mrb[0].mxu0
        %v1785 = vadd.f32 0.0, %v1784
        %v1786 = vpop.f32.mrb[0].mxu0
        %1787 = vmatprep.mubr.bf16.mxu0 0
        %1788 = vmatmul.mubr.bf16.gmra.mrb[0].mxu0 %v1584
        %v1789 = vpop.f32.mrb[0].mxu0
        %v1790 = vadd.f32 0.0, %v1789
        %v1791 = vpop.f32.mrb[0].mxu0
        %v1792 = vpop.f32.mrb[0].mxu0
        %v1793 = vadd.f32 0.0, %v1792
        %v1794 = vpop.f32.mrb[0].mxu0
        %1795 = vmatprep.mubr.bf16.mxu0 0
        %1796 = vmatmul.mubr.bf16.gmra.mrb[0].mxu0 %v1587
        %v1797 = vpop.f32.mrb[0].mxu0
        %v1798 = vadd.f32 0.0, %v1797
        %v1799 = vpop.f32.mrb[0].mxu0
        %v1800 = vpop.f32.mrb[0].mxu0
        %v1801 = vadd.f32 0.0, %v1800
        %v1802 = vpop.f32.mrb[0].mxu0
        %1803 = vmatprep.mubr.bf16.mxu0 0
        %1804 = vmatmul.mubr.bf16.gmra.mrb[0].mxu0 %v1590
        %v1805 = vpop.f32.mrb[0].mxu0
        %v1806 = vadd.f32 0.0, %v1805
        %v1807 = vpop.f32.mrb[0].mxu0
        %v1808 = vpop.f32.mrb[0].mxu0
        %v1809 = vadd.f32 0.0, %v1808
        %v1810 = vpop.f32.mrb[0].mxu0
        %1811 = vmatprep.mubr.bf16.mxu0 0
        %1812 = vmatmul.mubr.bf16.gmra.mrb[0].mxu0 %v1593
        %v1813 = vpop.f32.mrb[0].mxu0
        %v1814 = vadd.f32 0.0, %v1813
        %v1815 = vpop.f32.mrb[0].mxu0
        %v1816 = vpop.f32.mrb[0].mxu0
        %v1817 = vadd.f32 0.0, %v1816
        %v1818 = vpop.f32.mrb[0].mxu0
        %1819 = vmatprep.mubr.bf16.mxu0 0
        %1820 = vmatmul.mubr.bf16.gmra.mrb[0].mxu0 %v1596
        %v1821 = vpop.f32.mrb[0].mxu0
        %v1822 = vadd.f32 0.0, %v1821
        %v1823 = vpop.f32.mrb[0].mxu0
        %v1824 = vpop.f32.mrb[0].mxu0
        %v1825 = vadd.f32 0.0, %v1824
        %v1826 = vpop.f32.mrb[0].mxu0
        %1827 = vmatprep.mubr.bf16.mxu0 0
        %1828 = vmatmul.mubr.bf16.gmra.mrb[0].mxu0 %v1599
        %v1829 = vpop.f32.mrb[0].mxu0
        %v1830 = vadd.f32 0.0, %v1829
        %v1831 = vpop.f32.mrb[0].mxu0
        %v1832 = vpop.f32.mrb[0].mxu0
        %v1833 = vadd.f32 0.0, %v1832
        %v1834 = vpop.f32.mrb[0].mxu0
        %1835 = vmatprep.mubr.bf16.mxu0 0
        %1836 = vmatmul.mubr.bf16.gmra.mrb[0].mxu0 %v1602
        %v1837 = vpop.f32.mrb[0].mxu0
        %v1838 = vadd.f32 0.0, %v1837
        %v1839 = vpop.f32.mrb[0].mxu0
        %v1840 = vpop.f32.mrb[0].mxu0
        %v1841 = vadd.f32 0.0, %v1840
        %v1842 = vpop.f32.mrb[0].mxu0
        %1843 = vmatprep.mubr.bf16.mxu0 0
        %1844 = vmatmul.mubr.bf16.gmra.mrb[0].mxu0 %v1605
        %v1845 = vpop.f32.mrb[0].mxu0
        %v1846 = vadd.f32 0.0, %v1845
        %v1847 = vpop.f32.mrb[0].mxu0
        %v1848 = vpop.f32.mrb[0].mxu0
        %v1849 = vadd.f32 0.0, %v1848
        %v1850 = vpop.f32.mrb[0].mxu0
        %1851 = vmatprep.mubr.bf16.mxu0 0
        %1852 = vmatmul.mubr.bf16.gmra.mrb[0].mxu0 %v1608
        %v1853 = vpop.f32.mrb[0].mxu0
        %v1854 = vadd.f32 0.0, %v1853
        %v1855 = vpop.f32.mrb[0].mxu0
        %v1856 = vpop.f32.mrb[0].mxu0
        %v1857 = vadd.f32 0.0, %v1856
        %v1858 = vpop.f32.mrb[0].mxu0
        %1859 = vmatprep.mubr.bf16.mxu0 0
        %1860 = vmatmul.mubr.bf16.gmra.mrb[0].mxu0 %v1611
        %v1861 = vpop.f32.mrb[0].mxu0
        %v1862 = vadd.f32 0.0, %v1861
        %v1863 = vpop.f32.mrb[0].mxu0
        %v1864 = vpop.f32.mrb[0].mxu0
        %v1865 = vadd.f32 0.0, %v1864
        %v1866 = vpop.f32.mrb[0].mxu0
        %1867 = vmatprep.mubr.bf16.mxu0 0
        %1868 = vmatmul.mubr.bf16.gmra.mrb[0].mxu0 %v1614
        %v1869 = vpop.f32.mrb[0].mxu0
        %v1870 = vadd.f32 0.0, %v1869
        %v1871 = vpop.f32.mrb[0].mxu0
        %v1872 = vpop.f32.mrb[0].mxu0
        %v1873 = vpop.f32.mrb[0].mxu0
        %1874 = vdwg.mxu0
        %v1875 = vadd.f32 %v1055, %v1654
        %v1876 = vadd.f32 %v1056, %v1657
        %v1877 = vadd.f32 %v1057, %v1662
        %v1878 = vadd.f32 %v1058, %v1665
        %v1879 = vadd.f32 %v1059, %v1670
        %v1880 = vadd.f32 %v1060, %v1673
        %v1881 = vadd.f32 %v1061, %v1678
        %v1882 = vadd.f32 %v1062, %v1681
        %v1883 = vadd.f32 %v1063, %v1686
        %v1884 = vadd.f32 %v1064, %v1689
        %v1885 = vadd.f32 %v1065, %v1694
        %v1886 = vadd.f32 %v1066, %v1697
        %v1887 = vadd.f32 %v1067, %v1702
        %v1888 = vadd.f32 %v1068, %v1705
        %v1889 = vadd.f32 %v1069, %v1710
        %v1890 = vadd.f32 %v1070, %v1713
        %v1891 = vadd.f32 %v1071, %v1718
        %v1892 = vadd.f32 %v1072, %v1721
        %v1893 = vadd.f32 %v1073, %v1726
        %v1894 = vadd.f32 %v1074, %v1729
        %v1895 = vadd.f32 %v1075, %v1734
        %v1896 = vadd.f32 %v1076, %v1737
        %v1897 = vadd.f32 %v1077, %v1742
        %v1898 = vadd.f32 %v1078, %v1745
        %v1899 = vadd.f32 %v1079, %v1750
        %v1900 = vadd.f32 %v1080, %v1753
        %v1901 = vadd.f32 %v1081, %v1758
        %v1902 = vadd.f32 %v1082, %v1761
        %v1903 = vadd.f32 %v1083, %v1766
        %v1904 = vadd.f32 %v1084, %v1769
        %v1905 = vadd.f32 %v1085, %v1774
        %v1906 = vadd.f32 %v1086, %v1777
        %v1907 = vadd.f32 %v1087, %v1782
        %v1908 = vadd.f32 %v1088, %v1785
        %v1909 = vadd.f32 %v1089, %v1790
        %v1910 = vadd.f32 %v1090, %v1793
        %v1911 = vadd.f32 %v1091, %v1798
        %v1912 = vadd.f32 %v1092, %v1801
        %v1913 = vadd.f32 %v1093, %v1806
        %v1914 = vadd.f32 %v1094, %v1809
        %v1915 = vadd.f32 %v1095, %v1814
        %v1916 = vadd.f32 %v1096, %v1817
        %v1917 = vadd.f32 %v1097, %v1822
        %v1918 = vadd.f32 %v1098, %v1825
        %v1919 = vadd.f32 %v1099, %v1830
        %v1920 = vadd.f32 %v1100, %v1833
        %v1921 = vadd.f32 %v1101, %v1838
        %v1922 = vadd.f32 %v1102, %v1841
        %v1923 = vadd.f32 %v1103, %v1846
        %v1924 = vadd.f32 %v1104, %v1849
        %v1925 = vadd.f32 %v1105, %v1854
        %v1926 = vadd.f32 %v1106, %v1857
        %v1927 = vadd.f32 %v1107, %v1862
        %v1928 = vadd.f32 %v1108, %v1865
        %v1929 = vadd.f32 %v1109, %v1870
        %1930 = vst.msk [vmem:[#allocation2] sm:$0xff] %vm292, %v1875
        %1931 = vst.msk [vmem:[#allocation2 + $0x8] sm:$0xff] %vm292, %v1876
        %1932 = vst.msk [vmem:[#allocation2 + $0x10] sm:$0xff] %vm292, %v1877
        %1933 = vst.msk [vmem:[#allocation2 + $0x18] sm:$0xff] %vm292, %v1878
        %1934 = vst.msk [vmem:[#allocation2 + $0x20] sm:$0xff] %vm292, %v1879
        %1935 = vst.msk [vmem:[#allocation2 + $0x28] sm:$0xff] %vm292, %v1880
        %1936 = vst.msk [vmem:[#allocation2 + $0x30] sm:$0xff] %vm292, %v1881
        %1937 = vst.msk [vmem:[#allocation2 + $0x38] sm:$0xff] %vm292, %v1882
        %1938 = vst.msk [vmem:[#allocation2 + $0x40] sm:$0xff] %vm292, %v1883
        %1939 = vst.msk [vmem:[#allocation2 + $0x48] sm:$0xff] %vm292, %v1884
        %1940 = vst.msk [vmem:[#allocation2 + $0x50] sm:$0xff] %vm292, %v1885
        %1941 = vst.msk [vmem:[#allocation2 + $0x58] sm:$0xff] %vm292, %v1886
        %1942 = vst.msk [vmem:[#allocation2 + $0x60] sm:$0xff] %vm292, %v1887
        %1943 = vst.msk [vmem:[#allocation2 + $0x68] sm:$0xff] %vm292, %v1888
        %1944 = vst.msk [vmem:[#allocation2 + $0x70] sm:$0xff] %vm292, %v1889
        %1945 = vst.msk [vmem:[#allocation2 + $0x78] sm:$0xff] %vm292, %v1890
        %1946 = vst.msk [vmem:[#allocation2 + $0x80] sm:$0xff] %vm292, %v1891
        %1947 = vst.msk [vmem:[#allocation2 + $0x88] sm:$0xff] %vm292, %v1892
        %1948 = vst.msk [vmem:[#allocation2 + $0x90] sm:$0xff] %vm292, %v1893
        %1949 = vst.msk [vmem:[#allocation2 + $0x98] sm:$0xff] %vm292, %v1894
        %1950 = vst.msk [vmem:[#allocation2 + $0xa0] sm:$0xff] %vm292, %v1895
        %1951 = vst.msk [vmem:[#allocation2 + $0xa8] sm:$0xff] %vm292, %v1896
        %1952 = vst.msk [vmem:[#allocation2 + $0xb0] sm:$0xff] %vm292, %v1897
        %1953 = vst.msk [vmem:[#allocation2 + $0xb8] sm:$0xff] %vm292, %v1898
        %1954 = vst.msk [vmem:[#allocation2 + $0xc0] sm:$0xff] %vm292, %v1899
        %1955 = vst.msk [vmem:[#allocation2 + $0xc8] sm:$0xff] %vm292, %v1900
        %1956 = vst.msk [vmem:[#allocation2 + $0xd0] sm:$0xff] %vm292, %v1901
        %1957 = vst.msk [vmem:[#allocation2 + $0xd8] sm:$0xff] %vm292, %v1902
        %1958 = vst.msk [vmem:[#allocation2 + $0xe0] sm:$0xff] %vm292, %v1903
        %1959 = vst.msk [vmem:[#allocation2 + $0xe8] sm:$0xff] %vm292, %v1904
        %1960 = vst.msk [vmem:[#allocation2 + $0xf0] sm:$0xff] %vm292, %v1905
        %1961 = vst.msk [vmem:[#allocation2 + $0xf8] sm:$0xff] %vm292, %v1906
        %1962 = vst.msk [vmem:[#allocation2 + $0x100] sm:$0xff] %vm292, %v1907
        %1963 = vst.msk [vmem:[#allocation2 + $0x108] sm:$0xff] %vm292, %v1908
        %1964 = vst.msk [vmem:[#allocation2 + $0x110] sm:$0xff] %vm292, %v1909
        %1965 = vst.msk [vmem:[#allocation2 + $0x118] sm:$0xff] %vm292, %v1910
        %1966 = vst.msk [vmem:[#allocation2 + $0x120] sm:$0xff] %vm292, %v1911
        %1967 = vst.msk [vmem:[#allocation2 + $0x128] sm:$0xff] %vm292, %v1912
        %1968 = vst.msk [vmem:[#allocation2 + $0x130] sm:$0xff] %vm292, %v1913
        %1969 = vst.msk [vmem:[#allocation2 + $0x138] sm:$0xff] %vm292, %v1914
        %1970 = vst.msk [vmem:[#allocation2 + $0x140] sm:$0xff] %vm292, %v1915
        %1971 = vst.msk [vmem:[#allocation2 + $0x148] sm:$0xff] %vm292, %v1916
        %1972 = vst.msk [vmem:[#allocation2 + $0x150] sm:$0xff] %vm292, %v1917
        %1973 = vst.msk [vmem:[#allocation2 + $0x158] sm:$0xff] %vm292, %v1918
        %1974 = vst.msk [vmem:[#allocation2 + $0x160] sm:$0xff] %vm292, %v1919
        %1975 = vst.msk [vmem:[#allocation2 + $0x168] sm:$0xff] %vm292, %v1920
        %1976 = vst.msk [vmem:[#allocation2 + $0x170] sm:$0xff] %vm292, %v1921
        %1977 = vst.msk [vmem:[#allocation2 + $0x178] sm:$0xff] %vm292, %v1922
        %1978 = vst.msk [vmem:[#allocation2 + $0x180] sm:$0xff] %vm292, %v1923
        %1979 = vst.msk [vmem:[#allocation2 + $0x188] sm:$0xff] %vm292, %v1924
        %1980 = vst.msk [vmem:[#allocation2 + $0x190] sm:$0xff] %vm292, %v1925
        %1981 = vst.msk [vmem:[#allocation2 + $0x198] sm:$0xff] %vm292, %v1926
        %1982 = vst.msk [vmem:[#allocation2 + $0x1a0] sm:$0xff] %vm292, %v1927
        %1983 = vst.msk [vmem:[#allocation2 + $0x1a8] sm:$0xff] %vm292, %v1928
        %1984 = vst.msk [vmem:[#allocation2 + $0x1b0] sm:$0xff] %vm292, %v1929
        %v1985 = vld [vmem:[#allocation2] sm:$0xff]
        %v1986 = vld [vmem:[#allocation2 + $0x8] sm:$0xff]
        %v1987 = vld [vmem:[#allocation2 + $0x10] sm:$0xff]
        %v1988 = vld [vmem:[#allocation2 + $0x18] sm:$0xff]
        %v1989 = vld [vmem:[#allocation2 + $0x20] sm:$0xff]
        %v1990 = vld [vmem:[#allocation2 + $0x28] sm:$0xff]
        %v1991 = vld [vmem:[#allocation2 + $0x30] sm:$0xff]
        %v1992 = vld [vmem:[#allocation2 + $0x38] sm:$0xff]
        %v1993 = vld [vmem:[#allocation2 + $0x40] sm:$0xff]
        %v1994 = vld [vmem:[#allocation2 + $0x48] sm:$0xff]
        %v1995 = vld [vmem:[#allocation2 + $0x50] sm:$0xff]
        %v1996 = vld [vmem:[#allocation2 + $0x58] sm:$0xff]
        %v1997 = vld [vmem:[#allocation2 + $0x60] sm:$0xff]
        %v1998 = vld [vmem:[#allocation2 + $0x68] sm:$0xff]
        %v1999 = vld [vmem:[#allocation2 + $0x70] sm:$0xff]
        %v2000 = vld [vmem:[#allocation2 + $0x78] sm:$0xff]
        %v2001 = vld [vmem:[#allocation2 + $0x80] sm:$0xff]
        %v2002 = vld [vmem:[#allocation2 + $0x88] sm:$0xff]
        %v2003 = vld [vmem:[#allocation2 + $0x90] sm:$0xff]
        %v2004 = vld [vmem:[#allocation2 + $0x98] sm:$0xff]
        %v2005 = vld [vmem:[#allocation2 + $0xa0] sm:$0xff]
        %v2006 = vld [vmem:[#allocation2 + $0xa8] sm:$0xff]
        %v2007 = vld [vmem:[#allocation2 + $0xb0] sm:$0xff]
        %v2008 = vld [vmem:[#allocation2 + $0xb8] sm:$0xff]
        %v2009 = vld [vmem:[#allocation2 + $0xc0] sm:$0xff]
        %v2010 = vld [vmem:[#allocation2 + $0xc8] sm:$0xff]
        %v2011 = vld [vmem:[#allocation2 + $0xd0] sm:$0xff]
        %v2012 = vld [vmem:[#allocation2 + $0xd8] sm:$0xff]
        %v2013 = vld [vmem:[#allocation2 + $0xe0] sm:$0xff]
        %v2014 = vld [vmem:[#allocation2 + $0xe8] sm:$0xff]
        %v2015 = vld [vmem:[#allocation2 + $0xf0] sm:$0xff]
        %v2016 = vld [vmem:[#allocation2 + $0xf8] sm:$0xff]
        %v2017 = vld [vmem:[#allocation2 + $0x100] sm:$0xff]
        %v2018 = vld [vmem:[#allocation2 + $0x108] sm:$0xff]
        %v2019 = vld [vmem:[#allocation2 + $0x110] sm:$0xff]
        %v2020 = vld [vmem:[#allocation2 + $0x118] sm:$0xff]
        %v2021 = vld [vmem:[#allocation2 + $0x120] sm:$0xff]
        %v2022 = vld [vmem:[#allocation2 + $0x128] sm:$0xff]
        %v2023 = vld [vmem:[#allocation2 + $0x130] sm:$0xff]
        %v2024 = vld [vmem:[#allocation2 + $0x138] sm:$0xff]
        %v2025 = vld [vmem:[#allocation2 + $0x140] sm:$0xff]
        %v2026 = vld [vmem:[#allocation2 + $0x148] sm:$0xff]
        %v2027 = vld [vmem:[#allocation2 + $0x150] sm:$0xff]
        %v2028 = vld [vmem:[#allocation2 + $0x158] sm:$0xff]
        %v2029 = vld [vmem:[#allocation2 + $0x160] sm:$0xff]
        %v2030 = vld [vmem:[#allocation2 + $0x168] sm:$0xff]
        %v2031 = vld [vmem:[#allocation2 + $0x170] sm:$0xff]
        %v2032 = vld [vmem:[#allocation2 + $0x178] sm:$0xff]
        %v2033 = vld [vmem:[#allocation2 + $0x180] sm:$0xff]
        %v2034 = vld [vmem:[#allocation2 + $0x188] sm:$0xff]
        %v2035 = vld [vmem:[#allocation2 + $0x190] sm:$0xff]
        %v2036 = vld [vmem:[#allocation2 + $0x198] sm:$0xff]
        %v2037 = vld [vmem:[#allocation2 + $0x1a0] sm:$0xff]
        %v2038 = vld [vmem:[#allocation2 + $0x1a8] sm:$0xff]
        %v2039 = vld [vmem:[#allocation2 + $0x1b0] sm:$0xff]
        %v2040 = vld [vmem:[%s254] sm:$0xe]
        %v2041 = vld [vmem:[%s254 + $0x4] sm:$0xf]
        %v2042 = vld [vmem:[%s254 + $0x8] sm:$0xf]
        %v2043 = vld [vmem:[%s254 + $0xc] sm:$0xf]
        %v2044 = vld [vmem:[%s254 + $0x10] sm:$0xf]
        %v2045 = vld [vmem:[%s254 + $0x14] sm:$0xf]
        %v2046 = vld [vmem:[%s254 + $0x18] sm:$0xf]
        %v2047 = vld [vmem:[%s254 + $0x1c] sm:$0xf]
        %v2048 = vld [vmem:[%s254 + $0x20] sm:$0xf]
        %v2049 = vld [vmem:[%s254 + $0x24] sm:$0xf]
        %v2050 = vld [vmem:[%s254 + $0x28] sm:$0xf]
        %v2051 = vld [vmem:[%s254 + $0x2c] sm:$0xf]
        %v2052 = vld [vmem:[%s254 + $0x30] sm:$0xf]
        %v2053 = vld [vmem:[%s254 + $0x34] sm:$0xf]
        %v2054 = vld [vmem:[%s254 + $0x38] sm:$0xf]
        %v2055 = vld [vmem:[%s254 + $0x3c] sm:$0xf]
        %v2056 = vld [vmem:[%s254 + $0x40] sm:$0xf]
        %v2057 = vld [vmem:[%s254 + $0x44] sm:$0xf]
        %v2058 = vld [vmem:[%s254 + $0x48] sm:$0xf]
        %v2059 = vld [vmem:[%s254 + $0x4c] sm:$0xf]
        %v2060 = vld [vmem:[%s254 + $0x50] sm:$0xf]
        %v2061 = vld [vmem:[%s254 + $0x54] sm:$0xf]
        %v2062 = vld [vmem:[%s254 + $0x58] sm:$0xf]
        %v2063 = vld [vmem:[%s254 + $0x5c] sm:$0xf]
        %v2064 = vld [vmem:[%s254 + $0x60] sm:$0xf]
        %v2065 = vld [vmem:[%s254 + $0x64] sm:$0xf]
        %v2066 = vld [vmem:[%s254 + $0x68] sm:$0xf]
        %v2067 = vld [vmem:[%s254 + $0x6c] sm:$0xf]
        %v2068 = vld [vmem:[%s254 + $0x70] sm:$0xf]
        %v2069 = vld [vmem:[%s254 + $0x74] sm:$0xf]
        %v2070 = vld [vmem:[%s254 + $0x78] sm:$0xf]
        %v2071 = vld [vmem:[%s254 + $0x7c] sm:$0xf]
        %v2072 = vld [vmem:[%s254 + $0x80] sm:$0xf]
        %v2073 = vld [vmem:[%s254 + $0x84] sm:$0xf]
        %v2074 = vld [vmem:[%s254 + $0x88] sm:$0xf]
        %v2075 = vld [vmem:[%s254 + $0x8c] sm:$0xf]
        %v2076 = vld [vmem:[%s254 + $0x90] sm:$0xf]
        %v2077 = vld [vmem:[%s254 + $0x94] sm:$0xf]
        %v2078 = vld [vmem:[%s254 + $0x98] sm:$0xf]
        %v2079 = vld [vmem:[%s254 + $0x9c] sm:$0xf]
        %v2080 = vld [vmem:[%s254 + $0xa0] sm:$0xf]
        %v2081 = vld [vmem:[%s254 + $0xa4] sm:$0xf]
        %v2082 = vld [vmem:[%s254 + $0xa8] sm:$0xf]
        %v2083 = vld [vmem:[%s254 + $0xac] sm:$0xf]
        %v2084 = vld [vmem:[%s254 + $0xb0] sm:$0xf]
        %v2085 = vld [vmem:[%s254 + $0xb4] sm:$0xf]
        %v2086 = vld [vmem:[%s254 + $0xb8] sm:$0xf]
        %v2087 = vld [vmem:[%s254 + $0xbc] sm:$0xf]
        %v2088 = vld [vmem:[%s254 + $0xc0] sm:$0xf]
        %v2089 = vld [vmem:[%s254 + $0xc4] sm:$0xf]
        %v2090 = vld [vmem:[%s254 + $0xc8] sm:$0xf]
        %v2091 = vld [vmem:[%s254 + $0xcc] sm:$0xf]
        %v2092 = vld [vmem:[%s254 + $0xd0] sm:$0xf]
        %v2093 = vld [vmem:[%s254 + $0xd4] sm:$0xf]
        %v2094 = vld [vmem:[%s254 + $0xd8] sm:$0xf]
        %v2095 = vld [vmem:[%s254 + $0xdc] sm:$0x1]
        %s2096 = scalar_lea.vmem [#allocation6], 4
        %v2097 = vld [vmem:[%s2096] sm:$0x3]
        %v2154 = vunpack.c.l.b16 %v2040
        %v2155 = vunpack.c.l.b16 %v2041
        %v2156 = vunpack.c.l.b16 %v2042
        %v2157 = vunpack.c.l.b16 %v2043
        %v2158 = vunpack.c.l.b16 %v2044
        %v2159 = vunpack.c.l.b16 %v2045
        %v2160 = vunpack.c.l.b16 %v2046
        %v2161 = vunpack.c.l.b16 %v2047
        %v2162 = vunpack.c.l.b16 %v2048
        %v2163 = vunpack.c.l.b16 %v2049
        %v2164 = vunpack.c.l.b16 %v2050
        %v2165 = vunpack.c.l.b16 %v2051
        %v2166 = vunpack.c.l.b16 %v2052
        %v2167 = vunpack.c.l.b16 %v2053
        %v2168 = vunpack.c.l.b16 %v2054
        %v2169 = vunpack.c.l.b16 %v2055
        %v2170 = vunpack.c.l.b16 %v2056
        %v2171 = vunpack.c.l.b16 %v2057
        %v2172 = vunpack.c.l.b16 %v2058
        %v2173 = vunpack.c.l.b16 %v2059
        %v2174 = vunpack.c.l.b16 %v2060
        %v2175 = vunpack.c.l.b16 %v2061
        %v2176 = vunpack.c.l.b16 %v2062
        %v2177 = vunpack.c.l.b16 %v2063
        %v2178 = vunpack.c.l.b16 %v2064
        %v2179 = vunpack.c.l.b16 %v2065
        %v2180 = vunpack.c.l.b16 %v2066
        %v2181 = vunpack.c.l.b16 %v2067
        %v2182 = vunpack.c.l.b16 %v2068
        %v2183 = vunpack.c.l.b16 %v2069
        %v2184 = vunpack.c.l.b16 %v2070
        %v2185 = vunpack.c.l.b16 %v2071
        %v2186 = vunpack.c.l.b16 %v2072
        %v2187 = vunpack.c.l.b16 %v2073
        %v2188 = vunpack.c.l.b16 %v2074
        %v2189 = vunpack.c.l.b16 %v2075
        %v2190 = vunpack.c.l.b16 %v2076
        %v2191 = vunpack.c.l.b16 %v2077
        %v2192 = vunpack.c.l.b16 %v2078
        %v2193 = vunpack.c.l.b16 %v2079
        %v2194 = vunpack.c.l.b16 %v2080
        %v2195 = vunpack.c.l.b16 %v2081
        %v2196 = vunpack.c.l.b16 %v2082
        %v2197 = vunpack.c.l.b16 %v2083
        %v2198 = vunpack.c.l.b16 %v2084
        %v2199 = vunpack.c.l.b16 %v2085
        %v2200 = vunpack.c.l.b16 %v2086
        %v2201 = vunpack.c.l.b16 %v2087
        %v2202 = vunpack.c.l.b16 %v2088
        %v2203 = vunpack.c.l.b16 %v2089
        %v2204 = vunpack.c.l.b16 %v2090
        %v2205 = vunpack.c.l.b16 %v2091
        %v2206 = vunpack.c.l.b16 %v2092
        %v2207 = vunpack.c.l.b16 %v2093
        %v2208 = vunpack.c.l.b16 %v2094
        %v2209 = vunpack.c.l.b16 %v2095
        %v2210 = vpack.c.b16 %v2155, %v2154
        %v2211 = vpack.c.b16 %v2157, %v2156
        %v2212 = vpack.c.b16 %v2159, %v2158
        %v2213 = vpack.c.b16 %v2161, %v2160
        %v2214 = vpack.c.b16 %v2163, %v2162
        %v2215 = vpack.c.b16 %v2165, %v2164
        %v2216 = vpack.c.b16 %v2167, %v2166
        %v2217 = vpack.c.b16 %v2169, %v2168
        %v2218 = vpack.c.b16 %v2171, %v2170
        %v2219 = vpack.c.b16 %v2173, %v2172
        %v2220 = vpack.c.b16 %v2175, %v2174
        %v2221 = vpack.c.b16 %v2177, %v2176
        %v2222 = vpack.c.b16 %v2179, %v2178
        %v2223 = vpack.c.b16 %v2181, %v2180
        %v2224 = vpack.c.b16 %v2183, %v2182
        %v2225 = vpack.c.b16 %v2185, %v2184
        %v2226 = vpack.c.b16 %v2187, %v2186
        %v2227 = vpack.c.b16 %v2189, %v2188
        %v2228 = vpack.c.b16 %v2191, %v2190
        %v2229 = vpack.c.b16 %v2193, %v2192
        %v2230 = vpack.c.b16 %v2195, %v2194
        %v2231 = vpack.c.b16 %v2197, %v2196
        %v2232 = vpack.c.b16 %v2199, %v2198
        %v2233 = vpack.c.b16 %v2201, %v2200
        %v2234 = vpack.c.b16 %v2203, %v2202
        %v2235 = vpack.c.b16 %v2205, %v2204
        %v2236 = vpack.c.b16 %v2207, %v2206
        %v2237 = vpack.c.b16 %v2209, %v2208
        %vm2238 = vcmask 1046528
        %v2239 = vrot.slane %v2210, 1
        %v2240 = vrot.slane %v2211, 1
        %v2241 = vsel %vm2238, %v2239, %v2240
        %v2242 = vrot.slane %v2212, 1
        %v2243 = vsel %vm2238, %v2240, %v2242
        %v2244 = vrot.slane %v2213, 1
        %v2245 = vsel %vm2238, %v2242, %v2244
        %v2246 = vrot.slane %v2214, 1
        %v2247 = vsel %vm2238, %v2244, %v2246
        %v2248 = vrot.slane %v2215, 1
        %v2249 = vsel %vm2238, %v2246, %v2248
        %v2250 = vrot.slane %v2216, 1
        %v2251 = vsel %vm2238, %v2248, %v2250
        %v2252 = vrot.slane %v2217, 1
        %v2253 = vsel %vm2238, %v2250, %v2252
        %v2254 = vrot.slane %v2218, 1
        %v2255 = vsel %vm2238, %v2252, %v2254
        %v2256 = vrot.slane %v2219, 1
        %v2257 = vsel %vm2238, %v2254, %v2256
        %v2258 = vrot.slane %v2220, 1
        %v2259 = vsel %vm2238, %v2256, %v2258
        %v2260 = vrot.slane %v2221, 1
        %v2261 = vsel %vm2238, %v2258, %v2260
        %v2262 = vrot.slane %v2222, 1
        %v2263 = vsel %vm2238, %v2260, %v2262
        %v2264 = vrot.slane %v2223, 1
        %v2265 = vsel %vm2238, %v2262, %v2264
        %v2266 = vrot.slane %v2224, 1
        %v2267 = vsel %vm2238, %v2264, %v2266
        %v2268 = vrot.slane %v2225, 1
        %v2269 = vsel %vm2238, %v2266, %v2268
        %v2270 = vrot.slane %v2226, 1
        %v2271 = vsel %vm2238, %v2268, %v2270
        %v2272 = vrot.slane %v2227, 1
        %v2273 = vsel %vm2238, %v2270, %v2272
        %v2274 = vrot.slane %v2228, 1
        %v2275 = vsel %vm2238, %v2272, %v2274
        %v2276 = vrot.slane %v2229, 1
        %v2277 = vsel %vm2238, %v2274, %v2276
        %v2278 = vrot.slane %v2230, 1
        %v2279 = vsel %vm2238, %v2276, %v2278
        %v2280 = vrot.slane %v2231, 1
        %v2281 = vsel %vm2238, %v2278, %v2280
        %v2282 = vrot.slane %v2232, 1
        %v2283 = vsel %vm2238, %v2280, %v2282
        %v2284 = vrot.slane %v2233, 1
        %v2285 = vsel %vm2238, %v2282, %v2284
        %v2286 = vrot.slane %v2234, 1
        %v2287 = vsel %vm2238, %v2284, %v2286
        %v2288 = vrot.slane %v2235, 1
        %v2289 = vsel %vm2238, %v2286, %v2288
        %v2290 = vrot.slane %v2236, 1
        %v2291 = vsel %vm2238, %v2288, %v2290
        %v2292 = vrot.slane %v2237, 1
        %v2293 = vsel %vm2238, %v2290, %v2292
        %v2295 = vsel %vm597, %v2241, 0
        %v2298 = vsel %vm597, %v2243, 0
        %v2301 = vsel %vm597, %v2245, 0
        %v2304 = vsel %vm597, %v2247, 0
        %v2307 = vsel %vm597, %v2249, 0
        %v2310 = vsel %vm597, %v2251, 0
        %v2313 = vsel %vm597, %v2253, 0
        %v2316 = vsel %vm597, %v2255, 0
        %v2319 = vsel %vm597, %v2257, 0
        %v2322 = vsel %vm597, %v2259, 0
        %v2325 = vsel %vm597, %v2261, 0
        %v2328 = vsel %vm597, %v2263, 0
        %v2331 = vsel %vm597, %v2265, 0
        %v2334 = vsel %vm597, %v2267, 0
        %v2337 = vsel %vm597, %v2269, 0
        %v2340 = vsel %vm597, %v2271, 0
        %v2343 = vsel %vm597, %v2273, 0
        %v2346 = vsel %vm597, %v2275, 0
        %v2349 = vsel %vm597, %v2277, 0
        %v2352 = vsel %vm597, %v2279, 0
        %v2355 = vsel %vm597, %v2281, 0
        %v2358 = vsel %vm597, %v2283, 0
        %v2361 = vsel %vm597, %v2285, 0
        %v2364 = vsel %vm597, %v2287, 0
        %v2367 = vsel %vm597, %v2289, 0
        %v2370 = vsel %vm597, %v2291, 0
        %v2373 = vsel %vm597, %v2293, 0
        %v2376 = vsel %vm597, %v2292, 0
        %v2379 = vand.u32 %v2097, %v685
        %2381 = vmatprep.subr.bf16.mxu0 0
        %2382 = vmatpush1.bf16.msra.mxu0 %v2379
        %2383 = vmatprep.subr.bf16.mxu0 0
        %2384 = vmatpush1.bf16.msra.mxu0 0
        %2385 = vmatprep.subr.bf16.mxu0 0
        %2386 = vmatpush1.bf16.msra.mxu0 0
        %2387 = vmatprep.subr.bf16.mxu0 0
        %2388 = vmatpush1.bf16.msra.mxu0 0
        %2389 = vmatprep.subr.bf16.mxu0 0
        %2390 = vmatpush1.bf16.msra.mxu0 0
        %2391 = vmatprep.subr.bf16.mxu0 0
        %2392 = vmatpush1.bf16.msra.mxu0 0
        %2393 = vmatprep.subr.bf16.mxu0 0
        %2394 = vmatpush1.bf16.msra.mxu0 0
        %2395 = vmatprep.subr.bf16.mxu0 0
        %2396 = vmatpush1.bf16.msra.mxu0 0
        %2397 = vmatprep.subr.bf16.mxu0 0
        %2398 = vmatpush1.bf16.msra.mxu0 0
        %2399 = vmatprep.subr.bf16.mxu0 0
        %2400 = vmatpush1.bf16.msra.mxu0 0
        %2401 = vmatprep.subr.bf16.mxu0 0
        %2402 = vmatpush1.bf16.msra.mxu0 0
        %2403 = vmatprep.subr.bf16.mxu0 0
        %2404 = vmatpush1.bf16.msra.mxu0 0
        %2405 = vmatprep.subr.bf16.mxu0 0
        %2406 = vmatpush1.bf16.msra.mxu0 0
        %2407 = vmatprep.subr.bf16.mxu0 0
        %2408 = vmatpush1.bf16.msra.mxu0 0
        %2409 = vmatprep.subr.bf16.mxu0 0
        %2410 = vmatpush1.bf16.msra.mxu0 0
        %2411 = vmatprep.subr.bf16.mxu0 0
        %2412 = vmatpush1.bf16.msra.mxu0 0
        %2413 = vmatprep.mubr.bf16.mxu0 0
        %2414 = vmatmul.mubr.bf16.gmra.mrb[0].mxu0 %v2295
        %v2415 = vpop.f32.mrb[0].mxu0
        %v2416 = vadd.f32 0.0, %v2415
        %v2417 = vpop.f32.mrb[0].mxu0
        %v2418 = vpop.f32.mrb[0].mxu0
        %v2419 = vadd.f32 0.0, %v2418
        %v2420 = vpop.f32.mrb[0].mxu0
        %2421 = vmatprep.mubr.bf16.mxu0 0
        %2422 = vmatmul.mubr.bf16.gmra.mrb[0].mxu0 %v2298
        %v2423 = vpop.f32.mrb[0].mxu0
        %v2424 = vadd.f32 0.0, %v2423
        %v2425 = vpop.f32.mrb[0].mxu0
        %v2426 = vpop.f32.mrb[0].mxu0
        %v2427 = vadd.f32 0.0, %v2426
        %v2428 = vpop.f32.mrb[0].mxu0
        %2429 = vmatprep.mubr.bf16.mxu0 0
        %2430 = vmatmul.mubr.bf16.gmra.mrb[0].mxu0 %v2301
        %v2431 = vpop.f32.mrb[0].mxu0
        %v2432 = vadd.f32 0.0, %v2431
        %v2433 = vpop.f32.mrb[0].mxu0
        %v2434 = vpop.f32.mrb[0].mxu0
        %v2435 = vadd.f32 0.0, %v2434
        %v2436 = vpop.f32.mrb[0].mxu0
        %2437 = vmatprep.mubr.bf16.mxu0 0
        %2438 = vmatmul.mubr.bf16.gmra.mrb[0].mxu0 %v2304
        %v2439 = vpop.f32.mrb[0].mxu0
        %v2440 = vadd.f32 0.0, %v2439
        %v2441 = vpop.f32.mrb[0].mxu0
        %v2442 = vpop.f32.mrb[0].mxu0
        %v2443 = vadd.f32 0.0, %v2442
        %v2444 = vpop.f32.mrb[0].mxu0
        %2445 = vmatprep.mubr.bf16.mxu0 0
        %2446 = vmatmul.mubr.bf16.gmra.mrb[0].mxu0 %v2307
        %v2447 = vpop.f32.mrb[0].mxu0
        %v2448 = vadd.f32 0.0, %v2447
        %v2449 = vpop.f32.mrb[0].mxu0
        %v2450 = vpop.f32.mrb[0].mxu0
        %v2451 = vadd.f32 0.0, %v2450
        %v2452 = vpop.f32.mrb[0].mxu0
        %2453 = vmatprep.mubr.bf16.mxu0 0
        %2454 = vmatmul.mubr.bf16.gmra.mrb[0].mxu0 %v2310
        %v2455 = vpop.f32.mrb[0].mxu0
        %v2456 = vadd.f32 0.0, %v2455
        %v2457 = vpop.f32.mrb[0].mxu0
        %v2458 = vpop.f32.mrb[0].mxu0
        %v2459 = vadd.f32 0.0, %v2458
        %v2460 = vpop.f32.mrb[0].mxu0
        %2461 = vmatprep.mubr.bf16.mxu0 0
        %2462 = vmatmul.mubr.bf16.gmra.mrb[0].mxu0 %v2313
        %v2463 = vpop.f32.mrb[0].mxu0
        %v2464 = vadd.f32 0.0, %v2463
        %v2465 = vpop.f32.mrb[0].mxu0
        %v2466 = vpop.f32.mrb[0].mxu0
        %v2467 = vadd.f32 0.0, %v2466
        %v2468 = vpop.f32.mrb[0].mxu0
        %2469 = vmatprep.mubr.bf16.mxu0 0
        %2470 = vmatmul.mubr.bf16.gmra.mrb[0].mxu0 %v2316
        %v2471 = vpop.f32.mrb[0].mxu0
        %v2472 = vadd.f32 0.0, %v2471
        %v2473 = vpop.f32.mrb[0].mxu0
        %v2474 = vpop.f32.mrb[0].mxu0
        %v2475 = vadd.f32 0.0, %v2474
        %v2476 = vpop.f32.mrb[0].mxu0
        %2477 = vmatprep.mubr.bf16.mxu0 0
        %2478 = vmatmul.mubr.bf16.gmra.mrb[0].mxu0 %v2319
        %v2479 = vpop.f32.mrb[0].mxu0
        %v2480 = vadd.f32 0.0, %v2479
        %v2481 = vpop.f32.mrb[0].mxu0
        %v2482 = vpop.f32.mrb[0].mxu0
        %v2483 = vadd.f32 0.0, %v2482
        %v2484 = vpop.f32.mrb[0].mxu0
        %2485 = vmatprep.mubr.bf16.mxu0 0
        %2486 = vmatmul.mubr.bf16.gmra.mrb[0].mxu0 %v2322
        %v2487 = vpop.f32.mrb[0].mxu0
        %v2488 = vadd.f32 0.0, %v2487
        %v2489 = vpop.f32.mrb[0].mxu0
        %v2490 = vpop.f32.mrb[0].mxu0
        %v2491 = vadd.f32 0.0, %v2490
        %v2492 = vpop.f32.mrb[0].mxu0
        %2493 = vmatprep.mubr.bf16.mxu0 0
        %2494 = vmatmul.mubr.bf16.gmra.mrb[0].mxu0 %v2325
        %v2495 = vpop.f32.mrb[0].mxu0
        %v2496 = vadd.f32 0.0, %v2495
        %v2497 = vpop.f32.mrb[0].mxu0
        %v2498 = vpop.f32.mrb[0].mxu0
        %v2499 = vadd.f32 0.0, %v2498
        %v2500 = vpop.f32.mrb[0].mxu0
        %2501 = vmatprep.mubr.bf16.mxu0 0
        %2502 = vmatmul.mubr.bf16.gmra.mrb[0].mxu0 %v2328
        %v2503 = vpop.f32.mrb[0].mxu0
        %v2504 = vadd.f32 0.0, %v2503
        %v2505 = vpop.f32.mrb[0].mxu0
        %v2506 = vpop.f32.mrb[0].mxu0
        %v2507 = vadd.f32 0.0, %v2506
        %v2508 = vpop.f32.mrb[0].mxu0
        %2509 = vmatprep.mubr.bf16.mxu0 0
        %2510 = vmatmul.mubr.bf16.gmra.mrb[0].mxu0 %v2331
        %v2511 = vpop.f32.mrb[0].mxu0
        %v2512 = vadd.f32 0.0, %v2511
        %v2513 = vpop.f32.mrb[0].mxu0
        %v2514 = vpop.f32.mrb[0].mxu0
        %v2515 = vadd.f32 0.0, %v2514
        %v2516 = vpop.f32.mrb[0].mxu0
        %2517 = vmatprep.mubr.bf16.mxu0 0
        %2518 = vmatmul.mubr.bf16.gmra.mrb[0].mxu0 %v2334
        %v2519 = vpop.f32.mrb[0].mxu0
        %v2520 = vadd.f32 0.0, %v2519
        %v2521 = vpop.f32.mrb[0].mxu0
        %v2522 = vpop.f32.mrb[0].mxu0
        %v2523 = vadd.f32 0.0, %v2522
        %v2524 = vpop.f32.mrb[0].mxu0
        %2525 = vmatprep.mubr.bf16.mxu0 0
        %2526 = vmatmul.mubr.bf16.gmra.mrb[0].mxu0 %v2337
        %v2527 = vpop.f32.mrb[0].mxu0
        %v2528 = vadd.f32 0.0, %v2527
        %v2529 = vpop.f32.mrb[0].mxu0
        %v2530 = vpop.f32.mrb[0].mxu0
        %v2531 = vadd.f32 0.0, %v2530
        %v2532 = vpop.f32.mrb[0].mxu0
        %2533 = vmatprep.mubr.bf16.mxu0 0
        %2534 = vmatmul.mubr.bf16.gmra.mrb[0].mxu0 %v2340
        %v2535 = vpop.f32.mrb[0].mxu0
        %v2536 = vadd.f32 0.0, %v2535
        %v2537 = vpop.f32.mrb[0].mxu0
        %v2538 = vpop.f32.mrb[0].mxu0
        %v2539 = vadd.f32 0.0, %v2538
        %v2540 = vpop.f32.mrb[0].mxu0
        %2541 = vmatprep.mubr.bf16.mxu0 0
        %2542 = vmatmul.mubr.bf16.gmra.mrb[0].mxu0 %v2343
        %v2543 = vpop.f32.mrb[0].mxu0
        %v2544 = vadd.f32 0.0, %v2543
        %v2545 = vpop.f32.mrb[0].mxu0
        %v2546 = vpop.f32.mrb[0].mxu0
        %v2547 = vadd.f32 0.0, %v2546
        %v2548 = vpop.f32.mrb[0].mxu0
        %2549 = vmatprep.mubr.bf16.mxu0 0
        %2550 = vmatmul.mubr.bf16.gmra.mrb[0].mxu0 %v2346
        %v2551 = vpop.f32.mrb[0].mxu0
        %v2552 = vadd.f32 0.0, %v2551
        %v2553 = vpop.f32.mrb[0].mxu0
        %v2554 = vpop.f32.mrb[0].mxu0
        %v2555 = vadd.f32 0.0, %v2554
        %v2556 = vpop.f32.mrb[0].mxu0
        %2557 = vmatprep.mubr.bf16.mxu0 0
        %2558 = vmatmul.mubr.bf16.gmra.mrb[0].mxu0 %v2349
        %v2559 = vpop.f32.mrb[0].mxu0
        %v2560 = vadd.f32 0.0, %v2559
        %v2561 = vpop.f32.mrb[0].mxu0
        %v2562 = vpop.f32.mrb[0].mxu0
        %v2563 = vadd.f32 0.0, %v2562
        %v2564 = vpop.f32.mrb[0].mxu0
        %2565 = vmatprep.mubr.bf16.mxu0 0
        %2566 = vmatmul.mubr.bf16.gmra.mrb[0].mxu0 %v2352
        %v2567 = vpop.f32.mrb[0].mxu0
        %v2568 = vadd.f32 0.0, %v2567
        %v2569 = vpop.f32.mrb[0].mxu0
        %v2570 = vpop.f32.mrb[0].mxu0
        %v2571 = vadd.f32 0.0, %v2570
        %v2572 = vpop.f32.mrb[0].mxu0
        %2573 = vmatprep.mubr.bf16.mxu0 0
        %2574 = vmatmul.mubr.bf16.gmra.mrb[0].mxu0 %v2355
        %v2575 = vpop.f32.mrb[0].mxu0
        %v2576 = vadd.f32 0.0, %v2575
        %v2577 = vpop.f32.mrb[0].mxu0
        %v2578 = vpop.f32.mrb[0].mxu0
        %v2579 = vadd.f32 0.0, %v2578
        %v2580 = vpop.f32.mrb[0].mxu0
        %2581 = vmatprep.mubr.bf16.mxu0 0
        %2582 = vmatmul.mubr.bf16.gmra.mrb[0].mxu0 %v2358
        %v2583 = vpop.f32.mrb[0].mxu0
        %v2584 = vadd.f32 0.0, %v2583
        %v2585 = vpop.f32.mrb[0].mxu0
        %v2586 = vpop.f32.mrb[0].mxu0
        %v2587 = vadd.f32 0.0, %v2586
        %v2588 = vpop.f32.mrb[0].mxu0
        %2589 = vmatprep.mubr.bf16.mxu0 0
        %2590 = vmatmul.mubr.bf16.gmra.mrb[0].mxu0 %v2361
        %v2591 = vpop.f32.mrb[0].mxu0
        %v2592 = vadd.f32 0.0, %v2591
        %v2593 = vpop.f32.mrb[0].mxu0
        %v2594 = vpop.f32.mrb[0].mxu0
        %v2595 = vadd.f32 0.0, %v2594
        %v2596 = vpop.f32.mrb[0].mxu0
        %2597 = vmatprep.mubr.bf16.mxu0 0
        %2598 = vmatmul.mubr.bf16.gmra.mrb[0].mxu0 %v2364
        %v2599 = vpop.f32.mrb[0].mxu0
        %v2600 = vadd.f32 0.0, %v2599
        %v2601 = vpop.f32.mrb[0].mxu0
        %v2602 = vpop.f32.mrb[0].mxu0
        %v2603 = vadd.f32 0.0, %v2602
        %v2604 = vpop.f32.mrb[0].mxu0
        %2605 = vmatprep.mubr.bf16.mxu0 0
        %2606 = vmatmul.mubr.bf16.gmra.mrb[0].mxu0 %v2367
        %v2607 = vpop.f32.mrb[0].mxu0
        %v2608 = vadd.f32 0.0, %v2607
        %v2609 = vpop.f32.mrb[0].mxu0
        %v2610 = vpop.f32.mrb[0].mxu0
        %v2611 = vadd.f32 0.0, %v2610
        %v2612 = vpop.f32.mrb[0].mxu0
        %2613 = vmatprep.mubr.bf16.mxu0 0
        %2614 = vmatmul.mubr.bf16.gmra.mrb[0].mxu0 %v2370
        %v2615 = vpop.f32.mrb[0].mxu0
        %v2616 = vadd.f32 0.0, %v2615
        %v2617 = vpop.f32.mrb[0].mxu0
        %v2618 = vpop.f32.mrb[0].mxu0
        %v2619 = vadd.f32 0.0, %v2618
        %v2620 = vpop.f32.mrb[0].mxu0
        %2621 = vmatprep.mubr.bf16.mxu0 0
        %2622 = vmatmul.mubr.bf16.gmra.mrb[0].mxu0 %v2373
        %v2623 = vpop.f32.mrb[0].mxu0
        %v2624 = vadd.f32 0.0, %v2623
        %v2625 = vpop.f32.mrb[0].mxu0
        %v2626 = vpop.f32.mrb[0].mxu0
        %v2627 = vadd.f32 0.0, %v2626
        %v2628 = vpop.f32.mrb[0].mxu0
        %2629 = vmatprep.mubr.bf16.mxu0 0
        %2630 = vmatmul.mubr.bf16.gmra.mrb[0].mxu0 %v2376
        %v2631 = vpop.f32.mrb[0].mxu0
        %v2632 = vadd.f32 0.0, %v2631
        %v2633 = vpop.f32.mrb[0].mxu0
        %v2634 = vpop.f32.mrb[0].mxu0
        %v2635 = vpop.f32.mrb[0].mxu0
        %2636 = vdwg.mxu0
        %v2637 = vadd.f32 %v1985, %v2416
        %v2638 = vadd.f32 %v1986, %v2419
        %v2639 = vadd.f32 %v1987, %v2424
        %v2640 = vadd.f32 %v1988, %v2427
        %v2641 = vadd.f32 %v1989, %v2432
        %v2642 = vadd.f32 %v1990, %v2435
        %v2643 = vadd.f32 %v1991, %v2440
        %v2644 = vadd.f32 %v1992, %v2443
        %v2645 = vadd.f32 %v1993, %v2448
        %v2646 = vadd.f32 %v1994, %v2451
        %v2647 = vadd.f32 %v1995, %v2456
        %v2648 = vadd.f32 %v1996, %v2459
        %v2649 = vadd.f32 %v1997, %v2464
        %v2650 = vadd.f32 %v1998, %v2467
        %v2651 = vadd.f32 %v1999, %v2472
        %v2652 = vadd.f32 %v2000, %v2475
        %v2653 = vadd.f32 %v2001, %v2480
        %v2654 = vadd.f32 %v2002, %v2483
        %v2655 = vadd.f32 %v2003, %v2488
        %v2656 = vadd.f32 %v2004, %v2491
        %v2657 = vadd.f32 %v2005, %v2496
        %v2658 = vadd.f32 %v2006, %v2499
        %v2659 = vadd.f32 %v2007, %v2504
        %v2660 = vadd.f32 %v2008, %v2507
        %v2661 = vadd.f32 %v2009, %v2512
        %v2662 = vadd.f32 %v2010, %v2515
        %v2663 = vadd.f32 %v2011, %v2520
        %v2664 = vadd.f32 %v2012, %v2523
        %v2665 = vadd.f32 %v2013, %v2528
        %v2666 = vadd.f32 %v2014, %v2531
        %v2667 = vadd.f32 %v2015, %v2536
        %v2668 = vadd.f32 %v2016, %v2539
        %v2669 = vadd.f32 %v2017, %v2544
        %v2670 = vadd.f32 %v2018, %v2547
        %v2671 = vadd.f32 %v2019, %v2552
        %v2672 = vadd.f32 %v2020, %v2555
        %v2673 = vadd.f32 %v2021, %v2560
        %v2674 = vadd.f32 %v2022, %v2563
        %v2675 = vadd.f32 %v2023, %v2568
        %v2676 = vadd.f32 %v2024, %v2571
        %v2677 = vadd.f32 %v2025, %v2576
        %v2678 = vadd.f32 %v2026, %v2579
        %v2679 = vadd.f32 %v2027, %v2584
        %v2680 = vadd.f32 %v2028, %v2587
        %v2681 = vadd.f32 %v2029, %v2592
        %v2682 = vadd.f32 %v2030, %v2595
        %v2683 = vadd.f32 %v2031, %v2600
        %v2684 = vadd.f32 %v2032, %v2603
        %v2685 = vadd.f32 %v2033, %v2608
        %v2686 = vadd.f32 %v2034, %v2611
        %v2687 = vadd.f32 %v2035, %v2616
        %v2688 = vadd.f32 %v2036, %v2619
        %v2689 = vadd.f32 %v2037, %v2624
        %v2690 = vadd.f32 %v2038, %v2627
        %v2691 = vadd.f32 %v2039, %v2632
        %2692 = vst.msk [vmem:[#allocation2] sm:$0xff] %vm292, %v2637
        %2693 = vst.msk [vmem:[#allocation2 + $0x8] sm:$0xff] %vm292, %v2638
        %2694 = vst.msk [vmem:[#allocation2 + $0x10] sm:$0xff] %vm292, %v2639
        %2695 = vst.msk [vmem:[#allocation2 + $0x18] sm:$0xff] %vm292, %v2640
        %2696 = vst.msk [vmem:[#allocation2 + $0x20] sm:$0xff] %vm292, %v2641
        %2697 = vst.msk [vmem:[#allocation2 + $0x28] sm:$0xff] %vm292, %v2642
        %2698 = vst.msk [vmem:[#allocation2 + $0x30] sm:$0xff] %vm292, %v2643
        %2699 = vst.msk [vmem:[#allocation2 + $0x38] sm:$0xff] %vm292, %v2644
        %2700 = vst.msk [vmem:[#allocation2 + $0x40] sm:$0xff] %vm292, %v2645
        %2701 = vst.msk [vmem:[#allocation2 + $0x48] sm:$0xff] %vm292, %v2646
        %2702 = vst.msk [vmem:[#allocation2 + $0x50] sm:$0xff] %vm292, %v2647
        %2703 = vst.msk [vmem:[#allocation2 + $0x58] sm:$0xff] %vm292, %v2648
        %2704 = vst.msk [vmem:[#allocation2 + $0x60] sm:$0xff] %vm292, %v2649
        %2705 = vst.msk [vmem:[#allocation2 + $0x68] sm:$0xff] %vm292, %v2650
        %2706 = vst.msk [vmem:[#allocation2 + $0x70] sm:$0xff] %vm292, %v2651
        %2707 = vst.msk [vmem:[#allocation2 + $0x78] sm:$0xff] %vm292, %v2652
        %2708 = vst.msk [vmem:[#allocation2 + $0x80] sm:$0xff] %vm292, %v2653
        %2709 = vst.msk [vmem:[#allocation2 + $0x88] sm:$0xff] %vm292, %v2654
        %2710 = vst.msk [vmem:[#allocation2 + $0x90] sm:$0xff] %vm292, %v2655
        %2711 = vst.msk [vmem:[#allocation2 + $0x98] sm:$0xff] %vm292, %v2656
        %2712 = vst.msk [vmem:[#allocation2 + $0xa0] sm:$0xff] %vm292, %v2657
        %2713 = vst.msk [vmem:[#allocation2 + $0xa8] sm:$0xff] %vm292, %v2658
        %2714 = vst.msk [vmem:[#allocation2 + $0xb0] sm:$0xff] %vm292, %v2659
        %2715 = vst.msk [vmem:[#allocation2 + $0xb8] sm:$0xff] %vm292, %v2660
        %2716 = vst.msk [vmem:[#allocation2 + $0xc0] sm:$0xff] %vm292, %v2661
        %2717 = vst.msk [vmem:[#allocation2 + $0xc8] sm:$0xff] %vm292, %v2662
        %2718 = vst.msk [vmem:[#allocation2 + $0xd0] sm:$0xff] %vm292, %v2663
        %2719 = vst.msk [vmem:[#allocation2 + $0xd8] sm:$0xff] %vm292, %v2664
        %2720 = vst.msk [vmem:[#allocation2 + $0xe0] sm:$0xff] %vm292, %v2665
        %2721 = vst.msk [vmem:[#allocation2 + $0xe8] sm:$0xff] %vm292, %v2666
        %2722 = vst.msk [vmem:[#allocation2 + $0xf0] sm:$0xff] %vm292, %v2667
        %2723 = vst.msk [vmem:[#allocation2 + $0xf8] sm:$0xff] %vm292, %v2668
        %2724 = vst.msk [vmem:[#allocation2 + $0x100] sm:$0xff] %vm292, %v2669
        %2725 = vst.msk [vmem:[#allocation2 + $0x108] sm:$0xff] %vm292, %v2670
        %2726 = vst.msk [vmem:[#allocation2 + $0x110] sm:$0xff] %vm292, %v2671
        %2727 = vst.msk [vmem:[#allocation2 + $0x118] sm:$0xff] %vm292, %v2672
        %2728 = vst.msk [vmem:[#allocation2 + $0x120] sm:$0xff] %vm292, %v2673
        %2729 = vst.msk [vmem:[#allocation2 + $0x128] sm:$0xff] %vm292, %v2674
        %2730 = vst.msk [vmem:[#allocation2 + $0x130] sm:$0xff] %vm292, %v2675
        %2731 = vst.msk [vmem:[#allocation2 + $0x138] sm:$0xff] %vm292, %v2676
        %2732 = vst.msk [vmem:[#allocation2 + $0x140] sm:$0xff] %vm292, %v2677
        %2733 = vst.msk [vmem:[#allocation2 + $0x148] sm:$0xff] %vm292, %v2678
        %2734 = vst.msk [vmem:[#allocation2 + $0x150] sm:$0xff] %vm292, %v2679
        %2735 = vst.msk [vmem:[#allocation2 + $0x158] sm:$0xff] %vm292, %v2680
        %2736 = vst.msk [vmem:[#allocation2 + $0x160] sm:$0xff] %vm292, %v2681
        %2737 = vst.msk [vmem:[#allocation2 + $0x168] sm:$0xff] %vm292, %v2682
        %2738 = vst.msk [vmem:[#allocation2 + $0x170] sm:$0xff] %vm292, %v2683
        %2739 = vst.msk [vmem:[#allocation2 + $0x178] sm:$0xff] %vm292, %v2684
        %2740 = vst.msk [vmem:[#allocation2 + $0x180] sm:$0xff] %vm292, %v2685
        %2741 = vst.msk [vmem:[#allocation2 + $0x188] sm:$0xff] %vm292, %v2686
        %2742 = vst.msk [vmem:[#allocation2 + $0x190] sm:$0xff] %vm292, %v2687
        %2743 = vst.msk [vmem:[#allocation2 + $0x198] sm:$0xff] %vm292, %v2688
        %2744 = vst.msk [vmem:[#allocation2 + $0x1a0] sm:$0xff] %vm292, %v2689
        %2745 = vst.msk [vmem:[#allocation2 + $0x1a8] sm:$0xff] %vm292, %v2690
        %2746 = vst.msk [vmem:[#allocation2 + $0x1b0] sm:$0xff] %vm292, %v2691
        %v2747 = vld [vmem:[#allocation2] sm:$0xff]
        %v2748 = vld [vmem:[#allocation2 + $0x8] sm:$0xff]
        %v2749 = vld [vmem:[#allocation2 + $0x10] sm:$0xff]
        %v2750 = vld [vmem:[#allocation2 + $0x18] sm:$0xff]
        %v2751 = vld [vmem:[#allocation2 + $0x20] sm:$0xff]
        %v2752 = vld [vmem:[#allocation2 + $0x28] sm:$0xff]
        %v2753 = vld [vmem:[#allocation2 + $0x30] sm:$0xff]
        %v2754 = vld [vmem:[#allocation2 + $0x38] sm:$0xff]
        %v2755 = vld [vmem:[#allocation2 + $0x40] sm:$0xff]
        %v2756 = vld [vmem:[#allocation2 + $0x48] sm:$0xff]
        %v2757 = vld [vmem:[#allocation2 + $0x50] sm:$0xff]
        %v2758 = vld [vmem:[#allocation2 + $0x58] sm:$0xff]
        %v2759 = vld [vmem:[#allocation2 + $0x60] sm:$0xff]
        %v2760 = vld [vmem:[#allocation2 + $0x68] sm:$0xff]
        %v2761 = vld [vmem:[#allocation2 + $0x70] sm:$0xff]
        %v2762 = vld [vmem:[#allocation2 + $0x78] sm:$0xff]
        %v2763 = vld [vmem:[#allocation2 + $0x80] sm:$0xff]
        %v2764 = vld [vmem:[#allocation2 + $0x88] sm:$0xff]
        %v2765 = vld [vmem:[#allocation2 + $0x90] sm:$0xff]
        %v2766 = vld [vmem:[#allocation2 + $0x98] sm:$0xff]
        %v2767 = vld [vmem:[#allocation2 + $0xa0] sm:$0xff]
        %v2768 = vld [vmem:[#allocation2 + $0xa8] sm:$0xff]
        %v2769 = vld [vmem:[#allocation2 + $0xb0] sm:$0xff]
        %v2770 = vld [vmem:[#allocation2 + $0xb8] sm:$0xff]
        %v2771 = vld [vmem:[#allocation2 + $0xc0] sm:$0xff]
        %v2772 = vld [vmem:[#allocation2 + $0xc8] sm:$0xff]
        %v2773 = vld [vmem:[#allocation2 + $0xd0] sm:$0xff]
        %v2774 = vld [vmem:[#allocation2 + $0xd8] sm:$0xff]
        %v2775 = vld [vmem:[#allocation2 + $0xe0] sm:$0xff]
        %v2776 = vld [vmem:[#allocation2 + $0xe8] sm:$0xff]
        %v2777 = vld [vmem:[#allocation2 + $0xf0] sm:$0xff]
        %v2778 = vld [vmem:[#allocation2 + $0xf8] sm:$0xff]
        %v2779 = vld [vmem:[#allocation2 + $0x100] sm:$0xff]
        %v2780 = vld [vmem:[#allocation2 + $0x108] sm:$0xff]
        %v2781 = vld [vmem:[#allocation2 + $0x110] sm:$0xff]
        %v2782 = vld [vmem:[#allocation2 + $0x118] sm:$0xff]
        %v2783 = vld [vmem:[#allocation2 + $0x120] sm:$0xff]
        %v2784 = vld [vmem:[#allocation2 + $0x128] sm:$0xff]
        %v2785 = vld [vmem:[#allocation2 + $0x130] sm:$0xff]
        %v2786 = vld [vmem:[#allocation2 + $0x138] sm:$0xff]
        %v2787 = vld [vmem:[#allocation2 + $0x140] sm:$0xff]
        %v2788 = vld [vmem:[#allocation2 + $0x148] sm:$0xff]
        %v2789 = vld [vmem:[#allocation2 + $0x150] sm:$0xff]
        %v2790 = vld [vmem:[#allocation2 + $0x158] sm:$0xff]
        %v2791 = vld [vmem:[#allocation2 + $0x160] sm:$0xff]
        %v2792 = vld [vmem:[#allocation2 + $0x168] sm:$0xff]
        %v2793 = vld [vmem:[#allocation2 + $0x170] sm:$0xff]
        %v2794 = vld [vmem:[#allocation2 + $0x178] sm:$0xff]
        %v2795 = vld [vmem:[#allocation2 + $0x180] sm:$0xff]
        %v2796 = vld [vmem:[#allocation2 + $0x188] sm:$0xff]
        %v2797 = vld [vmem:[#allocation2 + $0x190] sm:$0xff]
        %v2798 = vld [vmem:[#allocation2 + $0x198] sm:$0xff]
        %v2799 = vld [vmem:[#allocation2 + $0x1a0] sm:$0xff]
        %v2800 = vld [vmem:[#allocation2 + $0x1a8] sm:$0xff]
        %v2801 = vld [vmem:[#allocation2 + $0x1b0] sm:$0xff]
        %v2802 = vld [vmem:[%s254 + $0x8] sm:$0x8]
        %v2803 = vld [vmem:[%s254 + $0xc] sm:$0xf]
        %v2804 = vld [vmem:[%s254 + $0x10] sm:$0xf]
        %v2805 = vld [vmem:[%s254 + $0x14] sm:$0xf]
        %v2806 = vld [vmem:[%s254 + $0x18] sm:$0xf]
        %v2807 = vld [vmem:[%s254 + $0x1c] sm:$0xf]
        %v2808 = vld [vmem:[%s254 + $0x20] sm:$0xf]
        %v2809 = vld [vmem:[%s254 + $0x24] sm:$0xf]
        %v2810 = vld [vmem:[%s254 + $0x28] sm:$0xf]
        %v2811 = vld [vmem:[%s254 + $0x2c] sm:$0xf]
        %v2812 = vld [vmem:[%s254 + $0x30] sm:$0xf]
        %v2813 = vld [vmem:[%s254 + $0x34] sm:$0xf]
        %v2814 = vld [vmem:[%s254 + $0x38] sm:$0xf]
        %v2815 = vld [vmem:[%s254 + $0x3c] sm:$0xf]
        %v2816 = vld [vmem:[%s254 + $0x40] sm:$0xf]
        %v2817 = vld [vmem:[%s254 + $0x44] sm:$0xf]
        %v2818 = vld [vmem:[%s254 + $0x48] sm:$0xf]
        %v2819 = vld [vmem:[%s254 + $0x4c] sm:$0xf]
        %v2820 = vld [vmem:[%s254 + $0x50] sm:$0xf]
        %v2821 = vld [vmem:[%s254 + $0x54] sm:$0xf]
        %v2822 = vld [vmem:[%s254 + $0x58] sm:$0xf]
        %v2823 = vld [vmem:[%s254 + $0x5c] sm:$0xf]
        %v2824 = vld [vmem:[%s254 + $0x60] sm:$0xf]
        %v2825 = vld [vmem:[%s254 + $0x64] sm:$0xf]
        %v2826 = vld [vmem:[%s254 + $0x68] sm:$0xf]
        %v2827 = vld [vmem:[%s254 + $0x6c] sm:$0xf]
        %v2828 = vld [vmem:[%s254 + $0x70] sm:$0xf]
        %v2829 = vld [vmem:[%s254 + $0x74] sm:$0xf]
        %v2830 = vld [vmem:[%s254 + $0x78] sm:$0xf]
        %v2831 = vld [vmem:[%s254 + $0x7c] sm:$0xf]
        %v2832 = vld [vmem:[%s254 + $0x80] sm:$0xf]
        %v2833 = vld [vmem:[%s254 + $0x84] sm:$0xf]
        %v2834 = vld [vmem:[%s254 + $0x88] sm:$0xf]
        %v2835 = vld [vmem:[%s254 + $0x8c] sm:$0xf]
        %v2836 = vld [vmem:[%s254 + $0x90] sm:$0xf]
        %v2837 = vld [vmem:[%s254 + $0x94] sm:$0xf]
        %v2838 = vld [vmem:[%s254 + $0x98] sm:$0xf]
        %v2839 = vld [vmem:[%s254 + $0x9c] sm:$0xf]
        %v2840 = vld [vmem:[%s254 + $0xa0] sm:$0xf]
        %v2841 = vld [vmem:[%s254 + $0xa4] sm:$0xf]
        %v2842 = vld [vmem:[%s254 + $0xa8] sm:$0xf]
        %v2843 = vld [vmem:[%s254 + $0xac] sm:$0xf]
        %v2844 = vld [vmem:[%s254 + $0xb0] sm:$0xf]
        %v2845 = vld [vmem:[%s254 + $0xb4] sm:$0xf]
        %v2846 = vld [vmem:[%s254 + $0xb8] sm:$0xf]
        %v2847 = vld [vmem:[%s254 + $0xbc] sm:$0xf]
        %v2848 = vld [vmem:[%s254 + $0xc0] sm:$0xf]
        %v2849 = vld [vmem:[%s254 + $0xc4] sm:$0xf]
        %v2850 = vld [vmem:[%s254 + $0xc8] sm:$0xf]
        %v2851 = vld [vmem:[%s254 + $0xcc] sm:$0xf]
        %v2852 = vld [vmem:[%s254 + $0xd0] sm:$0xf]
        %v2853 = vld [vmem:[%s254 + $0xd4] sm:$0xf]
        %v2854 = vld [vmem:[%s254 + $0xd8] sm:$0xf]
        %v2855 = vld [vmem:[%s254 + $0xdc] sm:$0xf]
        %v2856 = vld [vmem:[%s254 + $0xe0] sm:$0xf]
        %v2857 = vld [vmem:[%s254 + $0xe4] sm:$0x7]
        %s2858 = scalar_lea.vmem [#allocation6], 6
        %v2859 = vld [vmem:[%s2858] sm:$0x3]
        %v2916 = vunpack.c.l.b16 %v2802
        %v2917 = vunpack.c.l.b16 %v2803
        %v2918 = vunpack.c.l.b16 %v2804
        %v2919 = vunpack.c.l.b16 %v2805
        %v2920 = vunpack.c.l.b16 %v2806
        %v2921 = vunpack.c.l.b16 %v2807
        %v2922 = vunpack.c.l.b16 %v2808
        %v2923 = vunpack.c.l.b16 %v2809
        %v2924 = vunpack.c.l.b16 %v2810
        %v2925 = vunpack.c.l.b16 %v2811
        %v2926 = vunpack.c.l.b16 %v2812
        %v2927 = vunpack.c.l.b16 %v2813
        %v2928 = vunpack.c.l.b16 %v2814
        %v2929 = vunpack.c.l.b16 %v2815
        %v2930 = vunpack.c.l.b16 %v2816
        %v2931 = vunpack.c.l.b16 %v2817
        %v2932 = vunpack.c.l.b16 %v2818
        %v2933 = vunpack.c.l.b16 %v2819
        %v2934 = vunpack.c.l.b16 %v2820
        %v2935 = vunpack.c.l.b16 %v2821
        %v2936 = vunpack.c.l.b16 %v2822
        %v2937 = vunpack.c.l.b16 %v2823
        %v2938 = vunpack.c.l.b16 %v2824
        %v2939 = vunpack.c.l.b16 %v2825
        %v2940 = vunpack.c.l.b16 %v2826
        %v2941 = vunpack.c.l.b16 %v2827
        %v2942 = vunpack.c.l.b16 %v2828
        %v2943 = vunpack.c.l.b16 %v2829
        %v2944 = vunpack.c.l.b16 %v2830
        %v2945 = vunpack.c.l.b16 %v2831
        %v2946 = vunpack.c.l.b16 %v2832
        %v2947 = vunpack.c.l.b16 %v2833
        %v2948 = vunpack.c.l.b16 %v2834
        %v2949 = vunpack.c.l.b16 %v2835
        %v2950 = vunpack.c.l.b16 %v2836
        %v2951 = vunpack.c.l.b16 %v2837
        %v2952 = vunpack.c.l.b16 %v2838
        %v2953 = vunpack.c.l.b16 %v2839
        %v2954 = vunpack.c.l.b16 %v2840
        %v2955 = vunpack.c.l.b16 %v2841
        %v2956 = vunpack.c.l.b16 %v2842
        %v2957 = vunpack.c.l.b16 %v2843
        %v2958 = vunpack.c.l.b16 %v2844
        %v2959 = vunpack.c.l.b16 %v2845
        %v2960 = vunpack.c.l.b16 %v2846
        %v2961 = vunpack.c.l.b16 %v2847
        %v2962 = vunpack.c.l.b16 %v2848
        %v2963 = vunpack.c.l.b16 %v2849
        %v2964 = vunpack.c.l.b16 %v2850
        %v2965 = vunpack.c.l.b16 %v2851
        %v2966 = vunpack.c.l.b16 %v2852
        %v2967 = vunpack.c.l.b16 %v2853
        %v2968 = vunpack.c.l.b16 %v2854
        %v2969 = vunpack.c.l.b16 %v2855
        %v2970 = vunpack.c.l.b16 %v2856
        %v2971 = vunpack.c.l.b16 %v2857
        %v2972 = vpack.c.b16 %v2917, %v2916
        %v2973 = vpack.c.b16 %v2919, %v2918
        %v2974 = vpack.c.b16 %v2921, %v2920
        %v2975 = vpack.c.b16 %v2923, %v2922
        %v2976 = vpack.c.b16 %v2925, %v2924
        %v2977 = vpack.c.b16 %v2927, %v2926
        %v2978 = vpack.c.b16 %v2929, %v2928
        %v2979 = vpack.c.b16 %v2931, %v2930
        %v2980 = vpack.c.b16 %v2933, %v2932
        %v2981 = vpack.c.b16 %v2935, %v2934
        %v2982 = vpack.c.b16 %v2937, %v2936
        %v2983 = vpack.c.b16 %v2939, %v2938
        %v2984 = vpack.c.b16 %v2941, %v2940
        %v2985 = vpack.c.b16 %v2943, %v2942
        %v2986 = vpack.c.b16 %v2945, %v2944
        %v2987 = vpack.c.b16 %v2947, %v2946
        %v2988 = vpack.c.b16 %v2949, %v2948
        %v2989 = vpack.c.b16 %v2951, %v2950
        %v2990 = vpack.c.b16 %v2953, %v2952
        %v2991 = vpack.c.b16 %v2955, %v2954
        %v2992 = vpack.c.b16 %v2957, %v2956
        %v2993 = vpack.c.b16 %v2959, %v2958
        %v2994 = vpack.c.b16 %v2961, %v2960
        %v2995 = vpack.c.b16 %v2963, %v2962
        %v2996 = vpack.c.b16 %v2965, %v2964
        %v2997 = vpack.c.b16 %v2967, %v2966
        %v2998 = vpack.c.b16 %v2969, %v2968
        %v2999 = vpack.c.b16 %v2971, %v2970
        %vm3000 = vcmask 1044480
        %v3001 = vrot.slane %v2972, 3
        %v3002 = vrot.slane %v2973, 3
        %v3003 = vsel %vm3000, %v3001, %v3002
        %v3004 = vrot.slane %v2974, 3
        %v3005 = vsel %vm3000, %v3002, %v3004
        %v3006 = vrot.slane %v2975, 3
        %v3007 = vsel %vm3000, %v3004, %v3006
        %v3008 = vrot.slane %v2976, 3
        %v3009 = vsel %vm3000, %v3006, %v3008
        %v3010 = vrot.slane %v2977, 3
        %v3011 = vsel %vm3000, %v3008, %v3010
        %v3012 = vrot.slane %v2978, 3
        %v3013 = vsel %vm3000, %v3010, %v3012
        %v3014 = vrot.slane %v2979, 3
        %v3015 = vsel %vm3000, %v3012, %v3014
        %v3016 = vrot.slane %v2980, 3
        %v3017 = vsel %vm3000, %v3014, %v3016
        %v3018 = vrot.slane %v2981, 3
        %v3019 = vsel %vm3000, %v3016, %v3018
        %v3020 = vrot.slane %v2982, 3
        %v3021 = vsel %vm3000, %v3018, %v3020
        %v3022 = vrot.slane %v2983, 3
        %v3023 = vsel %vm3000, %v3020, %v3022
        %v3024 = vrot.slane %v2984, 3
        %v3025 = vsel %vm3000, %v3022, %v3024
        %v3026 = vrot.slane %v2985, 3
        %v3027 = vsel %vm3000, %v3024, %v3026
        %v3028 = vrot.slane %v2986, 3
        %v3029 = vsel %vm3000, %v3026, %v3028
        %v3030 = vrot.slane %v2987, 3
        %v3031 = vsel %vm3000, %v3028, %v3030
        %v3032 = vrot.slane %v2988, 3
        %v3033 = vsel %vm3000, %v3030, %v3032
        %v3034 = vrot.slane %v2989, 3
        %v3035 = vsel %vm3000, %v3032, %v3034
        %v3036 = vrot.slane %v2990, 3
        %v3037 = vsel %vm3000, %v3034, %v3036
        %v3038 = vrot.slane %v2991, 3
        %v3039 = vsel %vm3000, %v3036, %v3038
        %v3040 = vrot.slane %v2992, 3
        %v3041 = vsel %vm3000, %v3038, %v3040
        %v3042 = vrot.slane %v2993, 3
        %v3043 = vsel %vm3000, %v3040, %v3042
        %v3044 = vrot.slane %v2994, 3
        %v3045 = vsel %vm3000, %v3042, %v3044
        %v3046 = vrot.slane %v2995, 3
        %v3047 = vsel %vm3000, %v3044, %v3046
        %v3048 = vrot.slane %v2996, 3
        %v3049 = vsel %vm3000, %v3046, %v3048
        %v3050 = vrot.slane %v2997, 3
        %v3051 = vsel %vm3000, %v3048, %v3050
        %v3052 = vrot.slane %v2998, 3
        %v3053 = vsel %vm3000, %v3050, %v3052
        %v3054 = vrot.slane %v2999, 3
        %v3055 = vsel %vm3000, %v3052, %v3054
        %v3057 = vsel %vm597, %v3003, 0
        %v3060 = vsel %vm597, %v3005, 0
        %v3063 = vsel %vm597, %v3007, 0
        %v3066 = vsel %vm597, %v3009, 0
        %v3069 = vsel %vm597, %v3011, 0
        %v3072 = vsel %vm597, %v3013, 0
        %v3075 = vsel %vm597, %v3015, 0
        %v3078 = vsel %vm597, %v3017, 0
        %v3081 = vsel %vm597, %v3019, 0
        %v3084 = vsel %vm597, %v3021, 0
        %v3087 = vsel %vm597, %v3023, 0
        %v3090 = vsel %vm597, %v3025, 0
        %v3093 = vsel %vm597, %v3027, 0
        %v3096 = vsel %vm597, %v3029, 0
        %v3099 = vsel %vm597, %v3031, 0
        %v3102 = vsel %vm597, %v3033, 0
        %v3105 = vsel %vm597, %v3035, 0
        %v3108 = vsel %vm597, %v3037, 0
        %v3111 = vsel %vm597, %v3039, 0
        %v3114 = vsel %vm597, %v3041, 0
        %v3117 = vsel %vm597, %v3043, 0
        %v3120 = vsel %vm597, %v3045, 0
        %v3123 = vsel %vm597, %v3047, 0
        %v3126 = vsel %vm597, %v3049, 0
        %v3129 = vsel %vm597, %v3051, 0
        %v3132 = vsel %vm597, %v3053, 0
        %v3135 = vsel %vm597, %v3055, 0
        %v3138 = vsel %vm597, %v3054, 0
        %v3141 = vand.u32 %v2859, %v685
        %3143 = vmatprep.subr.bf16.mxu0 0
        %3144 = vmatpush1.bf16.msra.mxu0 %v3141
        %3145 = vmatprep.subr.bf16.mxu0 0
        %3146 = vmatpush1.bf16.msra.mxu0 0
        %3147 = vmatprep.subr.bf16.mxu0 0
        %3148 = vmatpush1.bf16.msra.mxu0 0
        %3149 = vmatprep.subr.bf16.mxu0 0
        %3150 = vmatpush1.bf16.msra.mxu0 0
        %3151 = vmatprep.subr.bf16.mxu0 0
        %3152 = vmatpush1.bf16.msra.mxu0 0
        %3153 = vmatprep.subr.bf16.mxu0 0
        %3154 = vmatpush1.bf16.msra.mxu0 0
        %3155 = vmatprep.subr.bf16.mxu0 0
        %3156 = vmatpush1.bf16.msra.mxu0 0
        %3157 = vmatprep.subr.bf16.mxu0 0
        %3158 = vmatpush1.bf16.msra.mxu0 0
        %3159 = vmatprep.subr.bf16.mxu0 0
        %3160 = vmatpush1.bf16.msra.mxu0 0
        %3161 = vmatprep.subr.bf16.mxu0 0
        %3162 = vmatpush1.bf16.msra.mxu0 0
        %3163 = vmatprep.subr.bf16.mxu0 0
        %3164 = vmatpush1.bf16.msra.mxu0 0
        %3165 = vmatprep.subr.bf16.mxu0 0
        %3166 = vmatpush1.bf16.msra.mxu0 0
        %3167 = vmatprep.subr.bf16.mxu0 0
        %3168 = vmatpush1.bf16.msra.mxu0 0
        %3169 = vmatprep.subr.bf16.mxu0 0
        %3170 = vmatpush1.bf16.msra.mxu0 0
        %3171 = vmatprep.subr.bf16.mxu0 0
        %3172 = vmatpush1.bf16.msra.mxu0 0
        %3173 = vmatprep.subr.bf16.mxu0 0
        %3174 = vmatpush1.bf16.msra.mxu0 0
        %3175 = vmatprep.mubr.bf16.mxu0 0
        %3176 = vmatmul.mubr.bf16.gmra.mrb[0].mxu0 %v3057
        %v3177 = vpop.f32.mrb[0].mxu0
        %v3178 = vadd.f32 0.0, %v3177
        %v3179 = vpop.f32.mrb[0].mxu0
        %v3180 = vpop.f32.mrb[0].mxu0
        %v3181 = vadd.f32 0.0, %v3180
        %v3182 = vpop.f32.mrb[0].mxu0
        %3183 = vmatprep.mubr.bf16.mxu0 0
        %3184 = vmatmul.mubr.bf16.gmra.mrb[0].mxu0 %v3060
        %v3185 = vpop.f32.mrb[0].mxu0
        %v3186 = vadd.f32 0.0, %v3185
        %v3187 = vpop.f32.mrb[0].mxu0
        %v3188 = vpop.f32.mrb[0].mxu0
        %v3189 = vadd.f32 0.0, %v3188
        %v3190 = vpop.f32.mrb[0].mxu0
        %3191 = vmatprep.mubr.bf16.mxu0 0
        %3192 = vmatmul.mubr.bf16.gmra.mrb[0].mxu0 %v3063
        %v3193 = vpop.f32.mrb[0].mxu0
        %v3194 = vadd.f32 0.0, %v3193
        %v3195 = vpop.f32.mrb[0].mxu0
        %v3196 = vpop.f32.mrb[0].mxu0
        %v3197 = vadd.f32 0.0, %v3196
        %v3198 = vpop.f32.mrb[0].mxu0
        %3199 = vmatprep.mubr.bf16.mxu0 0
        %3200 = vmatmul.mubr.bf16.gmra.mrb[0].mxu0 %v3066
        %v3201 = vpop.f32.mrb[0].mxu0
        %v3202 = vadd.f32 0.0, %v3201
        %v3203 = vpop.f32.mrb[0].mxu0
        %v3204 = vpop.f32.mrb[0].mxu0
        %v3205 = vadd.f32 0.0, %v3204
        %v3206 = vpop.f32.mrb[0].mxu0
        %3207 = vmatprep.mubr.bf16.mxu0 0
        %3208 = vmatmul.mubr.bf16.gmra.mrb[0].mxu0 %v3069
        %v3209 = vpop.f32.mrb[0].mxu0
        %v3210 = vadd.f32 0.0, %v3209
        %v3211 = vpop.f32.mrb[0].mxu0
        %v3212 = vpop.f32.mrb[0].mxu0
        %v3213 = vadd.f32 0.0, %v3212
        %v3214 = vpop.f32.mrb[0].mxu0
        %3215 = vmatprep.mubr.bf16.mxu0 0
        %3216 = vmatmul.mubr.bf16.gmra.mrb[0].mxu0 %v3072
        %v3217 = vpop.f32.mrb[0].mxu0
        %v3218 = vadd.f32 0.0, %v3217
        %v3219 = vpop.f32.mrb[0].mxu0
        %v3220 = vpop.f32.mrb[0].mxu0
        %v3221 = vadd.f32 0.0, %v3220
        %v3222 = vpop.f32.mrb[0].mxu0
        %3223 = vmatprep.mubr.bf16.mxu0 0
        %3224 = vmatmul.mubr.bf16.gmra.mrb[0].mxu0 %v3075
        %v3225 = vpop.f32.mrb[0].mxu0
        %v3226 = vadd.f32 0.0, %v3225
        %v3227 = vpop.f32.mrb[0].mxu0
        %v3228 = vpop.f32.mrb[0].mxu0
        %v3229 = vadd.f32 0.0, %v3228
        %v3230 = vpop.f32.mrb[0].mxu0
        %3231 = vmatprep.mubr.bf16.mxu0 0
        %3232 = vmatmul.mubr.bf16.gmra.mrb[0].mxu0 %v3078
        %v3233 = vpop.f32.mrb[0].mxu0
        %v3234 = vadd.f32 0.0, %v3233
        %v3235 = vpop.f32.mrb[0].mxu0
        %v3236 = vpop.f32.mrb[0].mxu0
        %v3237 = vadd.f32 0.0, %v3236
        %v3238 = vpop.f32.mrb[0].mxu0
        %3239 = vmatprep.mubr.bf16.mxu0 0
        %3240 = vmatmul.mubr.bf16.gmra.mrb[0].mxu0 %v3081
        %v3241 = vpop.f32.mrb[0].mxu0
        %v3242 = vadd.f32 0.0, %v3241
        %v3243 = vpop.f32.mrb[0].mxu0
        %v3244 = vpop.f32.mrb[0].mxu0
        %v3245 = vadd.f32 0.0, %v3244
        %v3246 = vpop.f32.mrb[0].mxu0
        %3247 = vmatprep.mubr.bf16.mxu0 0
        %3248 = vmatmul.mubr.bf16.gmra.mrb[0].mxu0 %v3084
        %v3249 = vpop.f32.mrb[0].mxu0
        %v3250 = vadd.f32 0.0, %v3249
        %v3251 = vpop.f32.mrb[0].mxu0
        %v3252 = vpop.f32.mrb[0].mxu0
        %v3253 = vadd.f32 0.0, %v3252
        %v3254 = vpop.f32.mrb[0].mxu0
        %3255 = vmatprep.mubr.bf16.mxu0 0
        %3256 = vmatmul.mubr.bf16.gmra.mrb[0].mxu0 %v3087
        %v3257 = vpop.f32.mrb[0].mxu0
        %v3258 = vadd.f32 0.0, %v3257
        %v3259 = vpop.f32.mrb[0].mxu0
        %v3260 = vpop.f32.mrb[0].mxu0
        %v3261 = vadd.f32 0.0, %v3260
        %v3262 = vpop.f32.mrb[0].mxu0
        %3263 = vmatprep.mubr.bf16.mxu0 0
        %3264 = vmatmul.mubr.bf16.gmra.mrb[0].mxu0 %v3090
        %v3265 = vpop.f32.mrb[0].mxu0
        %v3266 = vadd.f32 0.0, %v3265
        %v3267 = vpop.f32.mrb[0].mxu0
        %v3268 = vpop.f32.mrb[0].mxu0
        %v3269 = vadd.f32 0.0, %v3268
        %v3270 = vpop.f32.mrb[0].mxu0
        %3271 = vmatprep.mubr.bf16.mxu0 0
        %3272 = vmatmul.mubr.bf16.gmra.mrb[0].mxu0 %v3093
        %v3273 = vpop.f32.mrb[0].mxu0
        %v3274 = vadd.f32 0.0, %v3273
        %v3275 = vpop.f32.mrb[0].mxu0
        %v3276 = vpop.f32.mrb[0].mxu0
        %v3277 = vadd.f32 0.0, %v3276
        %v3278 = vpop.f32.mrb[0].mxu0
        %3279 = vmatprep.mubr.bf16.mxu0 0
        %3280 = vmatmul.mubr.bf16.gmra.mrb[0].mxu0 %v3096
        %v3281 = vpop.f32.mrb[0].mxu0
        %v3282 = vadd.f32 0.0, %v3281
        %v3283 = vpop.f32.mrb[0].mxu0
        %v3284 = vpop.f32.mrb[0].mxu0
        %v3285 = vadd.f32 0.0, %v3284
        %v3286 = vpop.f32.mrb[0].mxu0
        %3287 = vmatprep.mubr.bf16.mxu0 0
        %3288 = vmatmul.mubr.bf16.gmra.mrb[0].mxu0 %v3099
        %v3289 = vpop.f32.mrb[0].mxu0
        %v3290 = vadd.f32 0.0, %v3289
        %v3291 = vpop.f32.mrb[0].mxu0
        %v3292 = vpop.f32.mrb[0].mxu0
        %v3293 = vadd.f32 0.0, %v3292
        %v3294 = vpop.f32.mrb[0].mxu0
        %3295 = vmatprep.mubr.bf16.mxu0 0
        %3296 = vmatmul.mubr.bf16.gmra.mrb[0].mxu0 %v3102
        %v3297 = vpop.f32.mrb[0].mxu0
        %v3298 = vadd.f32 0.0, %v3297
        %v3299 = vpop.f32.mrb[0].mxu0
        %v3300 = vpop.f32.mrb[0].mxu0
        %v3301 = vadd.f32 0.0, %v3300
        %v3302 = vpop.f32.mrb[0].mxu0
        %3303 = vmatprep.mubr.bf16.mxu0 0
        %3304 = vmatmul.mubr.bf16.gmra.mrb[0].mxu0 %v3105
        %v3305 = vpop.f32.mrb[0].mxu0
        %v3306 = vadd.f32 0.0, %v3305
        %v3307 = vpop.f32.mrb[0].mxu0
        %v3308 = vpop.f32.mrb[0].mxu0
        %v3309 = vadd.f32 0.0, %v3308
        %v3310 = vpop.f32.mrb[0].mxu0
        %3311 = vmatprep.mubr.bf16.mxu0 0
        %3312 = vmatmul.mubr.bf16.gmra.mrb[0].mxu0 %v3108
        %v3313 = vpop.f32.mrb[0].mxu0
        %v3314 = vadd.f32 0.0, %v3313
        %v3315 = vpop.f32.mrb[0].mxu0
        %v3316 = vpop.f32.mrb[0].mxu0
        %v3317 = vadd.f32 0.0, %v3316
        %v3318 = vpop.f32.mrb[0].mxu0
        %3319 = vmatprep.mubr.bf16.mxu0 0
        %3320 = vmatmul.mubr.bf16.gmra.mrb[0].mxu0 %v3111
        %v3321 = vpop.f32.mrb[0].mxu0
        %v3322 = vadd.f32 0.0, %v3321
        %v3323 = vpop.f32.mrb[0].mxu0
        %v3324 = vpop.f32.mrb[0].mxu0
        %v3325 = vadd.f32 0.0, %v3324
        %v3326 = vpop.f32.mrb[0].mxu0
        %3327 = vmatprep.mubr.bf16.mxu0 0
        %3328 = vmatmul.mubr.bf16.gmra.mrb[0].mxu0 %v3114
        %v3329 = vpop.f32.mrb[0].mxu0
        %v3330 = vadd.f32 0.0, %v3329
        %v3331 = vpop.f32.mrb[0].mxu0
        %v3332 = vpop.f32.mrb[0].mxu0
        %v3333 = vadd.f32 0.0, %v3332
        %v3334 = vpop.f32.mrb[0].mxu0
        %3335 = vmatprep.mubr.bf16.mxu0 0
        %3336 = vmatmul.mubr.bf16.gmra.mrb[0].mxu0 %v3117
        %v3337 = vpop.f32.mrb[0].mxu0
        %v3338 = vadd.f32 0.0, %v3337
        %v3339 = vpop.f32.mrb[0].mxu0
        %v3340 = vpop.f32.mrb[0].mxu0
        %v3341 = vadd.f32 0.0, %v3340
        %v3342 = vpop.f32.mrb[0].mxu0
        %3343 = vmatprep.mubr.bf16.mxu0 0
        %3344 = vmatmul.mubr.bf16.gmra.mrb[0].mxu0 %v3120
        %v3345 = vpop.f32.mrb[0].mxu0
        %v3346 = vadd.f32 0.0, %v3345
        %v3347 = vpop.f32.mrb[0].mxu0
        %v3348 = vpop.f32.mrb[0].mxu0
        %v3349 = vadd.f32 0.0, %v3348
        %v3350 = vpop.f32.mrb[0].mxu0
        %3351 = vmatprep.mubr.bf16.mxu0 0
        %3352 = vmatmul.mubr.bf16.gmra.mrb[0].mxu0 %v3123
        %v3353 = vpop.f32.mrb[0].mxu0
        %v3354 = vadd.f32 0.0, %v3353
        %v3355 = vpop.f32.mrb[0].mxu0
        %v3356 = vpop.f32.mrb[0].mxu0
        %v3357 = vadd.f32 0.0, %v3356
        %v3358 = vpop.f32.mrb[0].mxu0
        %3359 = vmatprep.mubr.bf16.mxu0 0
        %3360 = vmatmul.mubr.bf16.gmra.mrb[0].mxu0 %v3126
        %v3361 = vpop.f32.mrb[0].mxu0
        %v3362 = vadd.f32 0.0, %v3361
        %v3363 = vpop.f32.mrb[0].mxu0
        %v3364 = vpop.f32.mrb[0].mxu0
        %v3365 = vadd.f32 0.0, %v3364
        %v3366 = vpop.f32.mrb[0].mxu0
        %3367 = vmatprep.mubr.bf16.mxu0 0
        %3368 = vmatmul.mubr.bf16.gmra.mrb[0].mxu0 %v3129
        %v3369 = vpop.f32.mrb[0].mxu0
        %v3370 = vadd.f32 0.0, %v3369
        %v3371 = vpop.f32.mrb[0].mxu0
        %v3372 = vpop.f32.mrb[0].mxu0
        %v3373 = vadd.f32 0.0, %v3372
        %v3374 = vpop.f32.mrb[0].mxu0
        %3375 = vmatprep.mubr.bf16.mxu0 0
        %3376 = vmatmul.mubr.bf16.gmra.mrb[0].mxu0 %v3132
        %v3377 = vpop.f32.mrb[0].mxu0
        %v3378 = vadd.f32 0.0, %v3377
        %v3379 = vpop.f32.mrb[0].mxu0
        %v3380 = vpop.f32.mrb[0].mxu0
        %v3381 = vadd.f32 0.0, %v3380
        %v3382 = vpop.f32.mrb[0].mxu0
        %3383 = vmatprep.mubr.bf16.mxu0 0
        %3384 = vmatmul.mubr.bf16.gmra.mrb[0].mxu0 %v3135
        %v3385 = vpop.f32.mrb[0].mxu0
        %v3386 = vadd.f32 0.0, %v3385
        %v3387 = vpop.f32.mrb[0].mxu0
        %v3388 = vpop.f32.mrb[0].mxu0
        %v3389 = vadd.f32 0.0, %v3388
        %v3390 = vpop.f32.mrb[0].mxu0
        %3391 = vmatprep.mubr.bf16.mxu0 0
        %3392 = vmatmul.mubr.bf16.gmra.mrb[0].mxu0 %v3138
        %v3393 = vpop.f32.mrb[0].mxu0
        %v3394 = vadd.f32 0.0, %v3393
        %v3395 = vpop.f32.mrb[0].mxu0
        %v3396 = vpop.f32.mrb[0].mxu0
        %v3397 = vpop.f32.mrb[0].mxu0
        %3398 = vdwg.mxu0
        %v3399 = vadd.f32 %v2747, %v3178
        %v3400 = vadd.f32 %v2748, %v3181
        %v3401 = vadd.f32 %v2749, %v3186
        %v3402 = vadd.f32 %v2750, %v3189
        %v3403 = vadd.f32 %v2751, %v3194
        %v3404 = vadd.f32 %v2752, %v3197
        %v3405 = vadd.f32 %v2753, %v3202
        %v3406 = vadd.f32 %v2754, %v3205
        %v3407 = vadd.f32 %v2755, %v3210
        %v3408 = vadd.f32 %v2756, %v3213
        %v3409 = vadd.f32 %v2757, %v3218
        %v3410 = vadd.f32 %v2758, %v3221
        %v3411 = vadd.f32 %v2759, %v3226
        %v3412 = vadd.f32 %v2760, %v3229
        %v3413 = vadd.f32 %v2761, %v3234
        %v3414 = vadd.f32 %v2762, %v3237
        %v3415 = vadd.f32 %v2763, %v3242
        %v3416 = vadd.f32 %v2764, %v3245
        %v3417 = vadd.f32 %v2765, %v3250
        %v3418 = vadd.f32 %v2766, %v3253
        %v3419 = vadd.f32 %v2767, %v3258
        %v3420 = vadd.f32 %v2768, %v3261
        %v3421 = vadd.f32 %v2769, %v3266
        %v3422 = vadd.f32 %v2770, %v3269
        %v3423 = vadd.f32 %v2771, %v3274
        %v3424 = vadd.f32 %v2772, %v3277
        %v3425 = vadd.f32 %v2773, %v3282
        %v3426 = vadd.f32 %v2774, %v3285
        %v3427 = vadd.f32 %v2775, %v3290
        %v3428 = vadd.f32 %v2776, %v3293
        %v3429 = vadd.f32 %v2777, %v3298
        %v3430 = vadd.f32 %v2778, %v3301
        %v3431 = vadd.f32 %v2779, %v3306
        %v3432 = vadd.f32 %v2780, %v3309
        %v3433 = vadd.f32 %v2781, %v3314
        %v3434 = vadd.f32 %v2782, %v3317
        %v3435 = vadd.f32 %v2783, %v3322
        %v3436 = vadd.f32 %v2784, %v3325
        %v3437 = vadd.f32 %v2785, %v3330
        %v3438 = vadd.f32 %v2786, %v3333
        %v3439 = vadd.f32 %v2787, %v3338
        %v3440 = vadd.f32 %v2788, %v3341
        %v3441 = vadd.f32 %v2789, %v3346
        %v3442 = vadd.f32 %v2790, %v3349
        %v3443 = vadd.f32 %v2791, %v3354
        %v3444 = vadd.f32 %v2792, %v3357
        %v3445 = vadd.f32 %v2793, %v3362
        %v3446 = vadd.f32 %v2794, %v3365
        %v3447 = vadd.f32 %v2795, %v3370
        %v3448 = vadd.f32 %v2796, %v3373
        %v3449 = vadd.f32 %v2797, %v3378
        %v3450 = vadd.f32 %v2798, %v3381
        %v3451 = vadd.f32 %v2799, %v3386
        %v3452 = vadd.f32 %v2800, %v3389
        %v3453 = vadd.f32 %v2801, %v3394
        %3454 = vst.msk [vmem:[#allocation2] sm:$0xff] %vm292, %v3399
        %3455 = vst.msk [vmem:[#allocation2 + $0x8] sm:$0xff] %vm292, %v3400
        %3456 = vst.msk [vmem:[#allocation2 + $0x10] sm:$0xff] %vm292, %v3401
        %3457 = vst.msk [vmem:[#allocation2 + $0x18] sm:$0xff] %vm292, %v3402
        %3458 = vst.msk [vmem:[#allocation2 + $0x20] sm:$0xff] %vm292, %v3403
        %3459 = vst.msk [vmem:[#allocation2 + $0x28] sm:$0xff] %vm292, %v3404
        %3460 = vst.msk [vmem:[#allocation2 + $0x30] sm:$0xff] %vm292, %v3405
        %3461 = vst.msk [vmem:[#allocation2 + $0x38] sm:$0xff] %vm292, %v3406
        %3462 = vst.msk [vmem:[#allocation2 + $0x40] sm:$0xff] %vm292, %v3407
        %3463 = vst.msk [vmem:[#allocation2 + $0x48] sm:$0xff] %vm292, %v3408
        %3464 = vst.msk [vmem:[#allocation2 + $0x50] sm:$0xff] %vm292, %v3409
        %3465 = vst.msk [vmem:[#allocation2 + $0x58] sm:$0xff] %vm292, %v3410
        %3466 = vst.msk [vmem:[#allocation2 + $0x60] sm:$0xff] %vm292, %v3411
        %3467 = vst.msk [vmem:[#allocation2 + $0x68] sm:$0xff] %vm292, %v3412
        %3468 = vst.msk [vmem:[#allocation2 + $0x70] sm:$0xff] %vm292, %v3413
        %3469 = vst.msk [vmem:[#allocation2 + $0x78] sm:$0xff] %vm292, %v3414
        %3470 = vst.msk [vmem:[#allocation2 + $0x80] sm:$0xff] %vm292, %v3415
        %3471 = vst.msk [vmem:[#allocation2 + $0x88] sm:$0xff] %vm292, %v3416
        %3472 = vst.msk [vmem:[#allocation2 + $0x90] sm:$0xff] %vm292, %v3417
        %3473 = vst.msk [vmem:[#allocation2 + $0x98] sm:$0xff] %vm292, %v3418
        %3474 = vst.msk [vmem:[#allocation2 + $0xa0] sm:$0xff] %vm292, %v3419
        %3475 = vst.msk [vmem:[#allocation2 + $0xa8] sm:$0xff] %vm292, %v3420
        %3476 = vst.msk [vmem:[#allocation2 + $0xb0] sm:$0xff] %vm292, %v3421
        %3477 = vst.msk [vmem:[#allocation2 + $0xb8] sm:$0xff] %vm292, %v3422
        %3478 = vst.msk [vmem:[#allocation2 + $0xc0] sm:$0xff] %vm292, %v3423
        %3479 = vst.msk [vmem:[#allocation2 + $0xc8] sm:$0xff] %vm292, %v3424
        %3480 = vst.msk [vmem:[#allocation2 + $0xd0] sm:$0xff] %vm292, %v3425
        %3481 = vst.msk [vmem:[#allocation2 + $0xd8] sm:$0xff] %vm292, %v3426
        %3482 = vst.msk [vmem:[#allocation2 + $0xe0] sm:$0xff] %vm292, %v3427
        %3483 = vst.msk [vmem:[#allocation2 + $0xe8] sm:$0xff] %vm292, %v3428
        %3484 = vst.msk [vmem:[#allocation2 + $0xf0] sm:$0xff] %vm292, %v3429
        %3485 = vst.msk [vmem:[#allocation2 + $0xf8] sm:$0xff] %vm292, %v3430
        %3486 = vst.msk [vmem:[#allocation2 + $0x100] sm:$0xff] %vm292, %v3431
        %3487 = vst.msk [vmem:[#allocation2 + $0x108] sm:$0xff] %vm292, %v3432
        %3488 = vst.msk [vmem:[#allocation2 + $0x110] sm:$0xff] %vm292, %v3433
        %3489 = vst.msk [vmem:[#allocation2 + $0x118] sm:$0xff] %vm292, %v3434
        %3490 = vst.msk [vmem:[#allocation2 + $0x120] sm:$0xff] %vm292, %v3435
        %3491 = vst.msk [vmem:[#allocation2 + $0x128] sm:$0xff] %vm292, %v3436
        %3492 = vst.msk [vmem:[#allocation2 + $0x130] sm:$0xff] %vm292, %v3437
        %3493 = vst.msk [vmem:[#allocation2 + $0x138] sm:$0xff] %vm292, %v3438
        %3494 = vst.msk [vmem:[#allocation2 + $0x140] sm:$0xff] %vm292, %v3439
        %3495 = vst.msk [vmem:[#allocation2 + $0x148] sm:$0xff] %vm292, %v3440
        %3496 = vst.msk [vmem:[#allocation2 + $0x150] sm:$0xff] %vm292, %v3441
        %3497 = vst.msk [vmem:[#allocation2 + $0x158] sm:$0xff] %vm292, %v3442
        %3498 = vst.msk [vmem:[#allocation2 + $0x160] sm:$0xff] %vm292, %v3443
        %3499 = vst.msk [vmem:[#allocation2 + $0x168] sm:$0xff] %vm292, %v3444
        %3500 = vst.msk [vmem:[#allocation2 + $0x170] sm:$0xff] %vm292, %v3445
        %3501 = vst.msk [vmem:[#allocation2 + $0x178] sm:$0xff] %vm292, %v3446
        %3502 = vst.msk [vmem:[#allocation2 + $0x180] sm:$0xff] %vm292, %v3447
        %3503 = vst.msk [vmem:[#allocation2 + $0x188] sm:$0xff] %vm292, %v3448
        %3504 = vst.msk [vmem:[#allocation2 + $0x190] sm:$0xff] %vm292, %v3449
        %3505 = vst.msk [vmem:[#allocation2 + $0x198] sm:$0xff] %vm292, %v3450
        %3506 = vst.msk [vmem:[#allocation2 + $0x1a0] sm:$0xff] %vm292, %v3451
        %3507 = vst.msk [vmem:[#allocation2 + $0x1a8] sm:$0xff] %vm292, %v3452
        %3508 = vst.msk [vmem:[#allocation2 + $0x1b0] sm:$0xff] %vm292, %v3453
        %v3509 = vld [vmem:[#allocation2] sm:$0xff]
        %v3510 = vld [vmem:[#allocation2 + $0x8] sm:$0xff]
        %v3511 = vld [vmem:[#allocation2 + $0x10] sm:$0xff]
        %v3512 = vld [vmem:[#allocation2 + $0x18] sm:$0xff]
        %v3513 = vld [vmem:[#allocation2 + $0x20] sm:$0xff]
        %v3514 = vld [vmem:[#allocation2 + $0x28] sm:$0xff]
        %v3515 = vld [vmem:[#allocation2 + $0x30] sm:$0xff]
        %v3516 = vld [vmem:[#allocation2 + $0x38] sm:$0xff]
        %v3517 = vld [vmem:[#allocation2 + $0x40] sm:$0xff]
        %v3518 = vld [vmem:[#allocation2 + $0x48] sm:$0xff]
        %v3519 = vld [vmem:[#allocation2 + $0x50] sm:$0xff]
        %v3520 = vld [vmem:[#allocation2 + $0x58] sm:$0xff]
        %v3521 = vld [vmem:[#allocation2 + $0x60] sm:$0xff]
        %v3522 = vld [vmem:[#allocation2 + $0x68] sm:$0xff]
        %v3523 = vld [vmem:[#allocation2 + $0x70] sm:$0xff]
        %v3524 = vld [vmem:[#allocation2 + $0x78] sm:$0xff]
        %v3525 = vld [vmem:[#allocation2 + $0x80] sm:$0xff]
        %v3526 = vld [vmem:[#allocation2 + $0x88] sm:$0xff]
        %v3527 = vld [vmem:[#allocation2 + $0x90] sm:$0xff]
        %v3528 = vld [vmem:[#allocation2 + $0x98] sm:$0xff]
        %v3529 = vld [vmem:[#allocation2 + $0xa0] sm:$0xff]
        %v3530 = vld [vmem:[#allocation2 + $0xa8] sm:$0xff]
        %v3531 = vld [vmem:[#allocation2 + $0xb0] sm:$0xff]
        %v3532 = vld [vmem:[#allocation2 + $0xb8] sm:$0xff]
        %v3533 = vld [vmem:[#allocation2 + $0xc0] sm:$0xff]
        %v3534 = vld [vmem:[#allocation2 + $0xc8] sm:$0xff]
        %v3535 = vld [vmem:[#allocation2 + $0xd0] sm:$0xff]
        %v3536 = vld [vmem:[#allocation2 + $0xd8] sm:$0xff]
        %v3537 = vld [vmem:[#allocation2 + $0xe0] sm:$0xff]
        %v3538 = vld [vmem:[#allocation2 + $0xe8] sm:$0xff]
        %v3539 = vld [vmem:[#allocation2 + $0xf0] sm:$0xff]
        %v3540 = vld [vmem:[#allocation2 + $0xf8] sm:$0xff]
        %v3541 = vld [vmem:[#allocation2 + $0x100] sm:$0xff]
        %v3542 = vld [vmem:[#allocation2 + $0x108] sm:$0xff]
        %v3543 = vld [vmem:[#allocation2 + $0x110] sm:$0xff]
        %v3544 = vld [vmem:[#allocation2 + $0x118] sm:$0xff]
        %v3545 = vld [vmem:[#allocation2 + $0x120] sm:$0xff]
        %v3546 = vld [vmem:[#allocation2 + $0x128] sm:$0xff]
        %v3547 = vld [vmem:[#allocation2 + $0x130] sm:$0xff]
        %v3548 = vld [vmem:[#allocation2 + $0x138] sm:$0xff]
        %v3549 = vld [vmem:[#allocation2 + $0x140] sm:$0xff]
        %v3550 = vld [vmem:[#allocation2 + $0x148] sm:$0xff]
        %v3551 = vld [vmem:[#allocation2 + $0x150] sm:$0xff]
        %v3552 = vld [vmem:[#allocation2 + $0x158] sm:$0xff]
        %v3553 = vld [vmem:[#allocation2 + $0x160] sm:$0xff]
        %v3554 = vld [vmem:[#allocation2 + $0x168] sm:$0xff]
        %v3555 = vld [vmem:[#allocation2 + $0x170] sm:$0xff]
        %v3556 = vld [vmem:[#allocation2 + $0x178] sm:$0xff]
        %v3557 = vld [vmem:[#allocation2 + $0x180] sm:$0xff]
        %v3558 = vld [vmem:[#allocation2 + $0x188] sm:$0xff]
        %v3559 = vld [vmem:[#allocation2 + $0x190] sm:$0xff]
        %v3560 = vld [vmem:[#allocation2 + $0x198] sm:$0xff]
        %v3561 = vld [vmem:[#allocation2 + $0x1a0] sm:$0xff]
        %v3562 = vld [vmem:[#allocation2 + $0x1a8] sm:$0xff]
        %v3563 = vld [vmem:[#allocation2 + $0x1b0] sm:$0xff]
        %v3564 = vld [vmem:[%s254 + $0x8] sm:$0x8]
        %v3565 = vld [vmem:[%s254 + $0xc] sm:$0xf]
        %v3566 = vld [vmem:[%s254 + $0x10] sm:$0xf]
        %v3567 = vld [vmem:[%s254 + $0x14] sm:$0xf]
        %v3568 = vld [vmem:[%s254 + $0x18] sm:$0xf]
        %v3569 = vld [vmem:[%s254 + $0x1c] sm:$0xf]
        %v3570 = vld [vmem:[%s254 + $0x20] sm:$0xf]
        %v3571 = vld [vmem:[%s254 + $0x24] sm:$0xf]
        %v3572 = vld [vmem:[%s254 + $0x28] sm:$0xf]
        %v3573 = vld [vmem:[%s254 + $0x2c] sm:$0xf]
        %v3574 = vld [vmem:[%s254 + $0x30] sm:$0xf]
        %v3575 = vld [vmem:[%s254 + $0x34] sm:$0xf]
        %v3576 = vld [vmem:[%s254 + $0x38] sm:$0xf]
        %v3577 = vld [vmem:[%s254 + $0x3c] sm:$0xf]
        %v3578 = vld [vmem:[%s254 + $0x40] sm:$0xf]
        %v3579 = vld [vmem:[%s254 + $0x44] sm:$0xf]
        %v3580 = vld [vmem:[%s254 + $0x48] sm:$0xf]
        %v3581 = vld [vmem:[%s254 + $0x4c] sm:$0xf]
        %v3582 = vld [vmem:[%s254 + $0x50] sm:$0xf]
        %v3583 = vld [vmem:[%s254 + $0x54] sm:$0xf]
        %v3584 = vld [vmem:[%s254 + $0x58] sm:$0xf]
        %v3585 = vld [vmem:[%s254 + $0x5c] sm:$0xf]
        %v3586 = vld [vmem:[%s254 + $0x60] sm:$0xf]
        %v3587 = vld [vmem:[%s254 + $0x64] sm:$0xf]
        %v3588 = vld [vmem:[%s254 + $0x68] sm:$0xf]
        %v3589 = vld [vmem:[%s254 + $0x6c] sm:$0xf]
        %v3590 = vld [vmem:[%s254 + $0x70] sm:$0xf]
        %v3591 = vld [vmem:[%s254 + $0x74] sm:$0xf]
        %v3592 = vld [vmem:[%s254 + $0x78] sm:$0xf]
        %v3593 = vld [vmem:[%s254 + $0x7c] sm:$0xf]
        %v3594 = vld [vmem:[%s254 + $0x80] sm:$0xf]
        %v3595 = vld [vmem:[%s254 + $0x84] sm:$0xf]
        %v3596 = vld [vmem:[%s254 + $0x88] sm:$0xf]
        %v3597 = vld [vmem:[%s254 + $0x8c] sm:$0xf]
        %v3598 = vld [vmem:[%s254 + $0x90] sm:$0xf]
        %v3599 = vld [vmem:[%s254 + $0x94] sm:$0xf]
        %v3600 = vld [vmem:[%s254 + $0x98] sm:$0xf]
        %v3601 = vld [vmem:[%s254 + $0x9c] sm:$0xf]
        %v3602 = vld [vmem:[%s254 + $0xa0] sm:$0xf]
        %v3603 = vld [vmem:[%s254 + $0xa4] sm:$0xf]
        %v3604 = vld [vmem:[%s254 + $0xa8] sm:$0xf]
        %v3605 = vld [vmem:[%s254 + $0xac] sm:$0xf]
        %v3606 = vld [vmem:[%s254 + $0xb0] sm:$0xf]
        %v3607 = vld [vmem:[%s254 + $0xb4] sm:$0xf]
        %v3608 = vld [vmem:[%s254 + $0xb8] sm:$0xf]
        %v3609 = vld [vmem:[%s254 + $0xbc] sm:$0xf]
        %v3610 = vld [vmem:[%s254 + $0xc0] sm:$0xf]
        %v3611 = vld [vmem:[%s254 + $0xc4] sm:$0xf]
        %v3612 = vld [vmem:[%s254 + $0xc8] sm:$0xf]
        %v3613 = vld [vmem:[%s254 + $0xcc] sm:$0xf]
        %v3614 = vld [vmem:[%s254 + $0xd0] sm:$0xf]
        %v3615 = vld [vmem:[%s254 + $0xd4] sm:$0xf]
        %v3616 = vld [vmem:[%s254 + $0xd8] sm:$0xf]
        %v3617 = vld [vmem:[%s254 + $0xdc] sm:$0xf]
        %v3618 = vld [vmem:[%s254 + $0xe0] sm:$0xf]
        %v3619 = vld [vmem:[%s254 + $0xe4] sm:$0xf]
        %s3620 = scalar_lea.vmem [#allocation6], 8
        %v3621 = vld [vmem:[%s3620] sm:$0x3]
        %v3678 = vunpack.c.l.b16 %v3564
        %v3679 = vunpack.c.l.b16 %v3565
        %v3680 = vunpack.c.l.b16 %v3566
        %v3681 = vunpack.c.l.b16 %v3567
        %v3682 = vunpack.c.l.b16 %v3568
        %v3683 = vunpack.c.l.b16 %v3569
        %v3684 = vunpack.c.l.b16 %v3570
        %v3685 = vunpack.c.l.b16 %v3571
        %v3686 = vunpack.c.l.b16 %v3572
        %v3687 = vunpack.c.l.b16 %v3573
        %v3688 = vunpack.c.l.b16 %v3574
        %v3689 = vunpack.c.l.b16 %v3575
        %v3690 = vunpack.c.l.b16 %v3576
        %v3691 = vunpack.c.l.b16 %v3577
        %v3692 = vunpack.c.l.b16 %v3578
        %v3693 = vunpack.c.l.b16 %v3579
        %v3694 = vunpack.c.l.b16 %v3580
        %v3695 = vunpack.c.l.b16 %v3581
        %v3696 = vunpack.c.l.b16 %v3582
        %v3697 = vunpack.c.l.b16 %v3583
        %v3698 = vunpack.c.l.b16 %v3584
        %v3699 = vunpack.c.l.b16 %v3585
        %v3700 = vunpack.c.l.b16 %v3586
        %v3701 = vunpack.c.l.b16 %v3587
        %v3702 = vunpack.c.l.b16 %v3588
        %v3703 = vunpack.c.l.b16 %v3589
        %v3704 = vunpack.c.l.b16 %v3590
        %v3705 = vunpack.c.l.b16 %v3591
        %v3706 = vunpack.c.l.b16 %v3592
        %v3707 = vunpack.c.l.b16 %v3593
        %v3708 = vunpack.c.l.b16 %v3594
        %v3709 = vunpack.c.l.b16 %v3595
        %v3710 = vunpack.c.l.b16 %v3596
        %v3711 = vunpack.c.l.b16 %v3597
        %v3712 = vunpack.c.l.b16 %v3598
        %v3713 = vunpack.c.l.b16 %v3599
        %v3714 = vunpack.c.l.b16 %v3600
        %v3715 = vunpack.c.l.b16 %v3601
        %v3716 = vunpack.c.l.b16 %v3602
        %v3717 = vunpack.c.l.b16 %v3603
        %v3718 = vunpack.c.l.b16 %v3604
        %v3719 = vunpack.c.l.b16 %v3605
        %v3720 = vunpack.c.l.b16 %v3606
        %v3721 = vunpack.c.l.b16 %v3607
        %v3722 = vunpack.c.l.b16 %v3608
        %v3723 = vunpack.c.l.b16 %v3609
        %v3724 = vunpack.c.l.b16 %v3610
        %v3725 = vunpack.c.l.b16 %v3611
        %v3726 = vunpack.c.l.b16 %v3612
        %v3727 = vunpack.c.l.b16 %v3613
        %v3728 = vunpack.c.l.b16 %v3614
        %v3729 = vunpack.c.l.b16 %v3615
        %v3730 = vunpack.c.l.b16 %v3616
        %v3731 = vunpack.c.l.b16 %v3617
        %v3732 = vunpack.c.l.b16 %v3618
        %v3733 = vunpack.c.l.b16 %v3619
        %v3734 = vpack.c.b16 %v3679, %v3678
        %v3735 = vpack.c.b16 %v3681, %v3680
        %v3736 = vpack.c.b16 %v3683, %v3682
        %v3737 = vpack.c.b16 %v3685, %v3684
        %v3738 = vpack.c.b16 %v3687, %v3686
        %v3739 = vpack.c.b16 %v3689, %v3688
        %v3740 = vpack.c.b16 %v3691, %v3690
        %v3741 = vpack.c.b16 %v3693, %v3692
        %v3742 = vpack.c.b16 %v3695, %v3694
        %v3743 = vpack.c.b16 %v3697, %v3696
        %v3744 = vpack.c.b16 %v3699, %v3698
        %v3745 = vpack.c.b16 %v3701, %v3700
        %v3746 = vpack.c.b16 %v3703, %v3702
        %v3747 = vpack.c.b16 %v3705, %v3704
        %v3748 = vpack.c.b16 %v3707, %v3706
        %v3749 = vpack.c.b16 %v3709, %v3708
        %v3750 = vpack.c.b16 %v3711, %v3710
        %v3751 = vpack.c.b16 %v3713, %v3712
        %v3752 = vpack.c.b16 %v3715, %v3714
        %v3753 = vpack.c.b16 %v3717, %v3716
        %v3754 = vpack.c.b16 %v3719, %v3718
        %v3755 = vpack.c.b16 %v3721, %v3720
        %v3756 = vpack.c.b16 %v3723, %v3722
        %v3757 = vpack.c.b16 %v3725, %v3724
        %v3758 = vpack.c.b16 %v3727, %v3726
        %v3759 = vpack.c.b16 %v3729, %v3728
        %v3760 = vpack.c.b16 %v3731, %v3730
        %v3761 = vpack.c.b16 %v3733, %v3732
        %vm3762 = vsmask.f32 4352
        %v3764 = vshrl.u32 %v3734, 16
        %v3766 = vrot.slane %v3764, 3
        %v3767 = vshll.u32 %v3734, 16
        %v3769 = vrot.slane %v3767, 4
        %v3770 = vor.u32 %v3766, %v3769
        %v3772 = vshrl.u32 %v3735, 16
        %v3774 = vrot.slane %v3772, 3
        %v3775 = vshll.u32 %v3735, 16
        %v3777 = vrot.slane %v3775, 4
        %v3778 = vor.u32 %v3774, %v3777
        %v3779 = vsel %vm3762, %v3770, %v3778
        %v3781 = vshrl.u32 %v3736, 16
        %v3783 = vrot.slane %v3781, 3
        %v3784 = vshll.u32 %v3736, 16
        %v3786 = vrot.slane %v3784, 4
        %v3787 = vor.u32 %v3783, %v3786
        %v3788 = vsel %vm3762, %v3778, %v3787
        %v3790 = vshrl.u32 %v3737, 16
        %v3792 = vrot.slane %v3790, 3
        %v3793 = vshll.u32 %v3737, 16
        %v3795 = vrot.slane %v3793, 4
        %v3796 = vor.u32 %v3792, %v3795
        %v3797 = vsel %vm3762, %v3787, %v3796
        %v3799 = vshrl.u32 %v3738, 16
        %v3801 = vrot.slane %v3799, 3
        %v3802 = vshll.u32 %v3738, 16
        %v3804 = vrot.slane %v3802, 4
        %v3805 = vor.u32 %v3801, %v3804
        %v3806 = vsel %vm3762, %v3796, %v3805
        %v3808 = vshrl.u32 %v3739, 16
        %v3810 = vrot.slane %v3808, 3
        %v3811 = vshll.u32 %v3739, 16
        %v3813 = vrot.slane %v3811, 4
        %v3814 = vor.u32 %v3810, %v3813
        %v3815 = vsel %vm3762, %v3805, %v3814
        %v3817 = vshrl.u32 %v3740, 16
        %v3819 = vrot.slane %v3817, 3
        %v3820 = vshll.u32 %v3740, 16
        %v3822 = vrot.slane %v3820, 4
        %v3823 = vor.u32 %v3819, %v3822
        %v3824 = vsel %vm3762, %v3814, %v3823
        %v3826 = vshrl.u32 %v3741, 16
        %v3828 = vrot.slane %v3826, 3
        %v3829 = vshll.u32 %v3741, 16
        %v3831 = vrot.slane %v3829, 4
        %v3832 = vor.u32 %v3828, %v3831
        %v3833 = vsel %vm3762, %v3823, %v3832
        %v3835 = vshrl.u32 %v3742, 16
        %v3837 = vrot.slane %v3835, 3
        %v3838 = vshll.u32 %v3742, 16
        %v3840 = vrot.slane %v3838, 4
        %v3841 = vor.u32 %v3837, %v3840
        %v3842 = vsel %vm3762, %v3832, %v3841
        %v3844 = vshrl.u32 %v3743, 16
        %v3846 = vrot.slane %v3844, 3
        %v3847 = vshll.u32 %v3743, 16
        %v3849 = vrot.slane %v3847, 4
        %v3850 = vor.u32 %v3846, %v3849
        %v3851 = vsel %vm3762, %v3841, %v3850
        %v3853 = vshrl.u32 %v3744, 16
        %v3855 = vrot.slane %v3853, 3
        %v3856 = vshll.u32 %v3744, 16
        %v3858 = vrot.slane %v3856, 4
        %v3859 = vor.u32 %v3855, %v3858
        %v3860 = vsel %vm3762, %v3850, %v3859
        %v3862 = vshrl.u32 %v3745, 16
        %v3864 = vrot.slane %v3862, 3
        %v3865 = vshll.u32 %v3745, 16
        %v3867 = vrot.slane %v3865, 4
        %v3868 = vor.u32 %v3864, %v3867
        %v3869 = vsel %vm3762, %v3859, %v3868
        %v3871 = vshrl.u32 %v3746, 16
        %v3873 = vrot.slane %v3871, 3
        %v3874 = vshll.u32 %v3746, 16
        %v3876 = vrot.slane %v3874, 4
        %v3877 = vor.u32 %v3873, %v3876
        %v3878 = vsel %vm3762, %v3868, %v3877
        %v3880 = vshrl.u32 %v3747, 16
        %v3882 = vrot.slane %v3880, 3
        %v3883 = vshll.u32 %v3747, 16
        %v3885 = vrot.slane %v3883, 4
        %v3886 = vor.u32 %v3882, %v3885
        %v3887 = vsel %vm3762, %v3877, %v3886
        %v3889 = vshrl.u32 %v3748, 16
        %v3891 = vrot.slane %v3889, 3
        %v3892 = vshll.u32 %v3748, 16
        %v3894 = vrot.slane %v3892, 4
        %v3895 = vor.u32 %v3891, %v3894
        %v3896 = vsel %vm3762, %v3886, %v3895
        %v3898 = vshrl.u32 %v3749, 16
        %v3900 = vrot.slane %v3898, 3
        %v3901 = vshll.u32 %v3749, 16
        %v3903 = vrot.slane %v3901, 4
        %v3904 = vor.u32 %v3900, %v3903
        %v3905 = vsel %vm3762, %v3895, %v3904
        %v3907 = vshrl.u32 %v3750, 16
        %v3909 = vrot.slane %v3907, 3
        %v3910 = vshll.u32 %v3750, 16
        %v3912 = vrot.slane %v3910, 4
        %v3913 = vor.u32 %v3909, %v3912
        %v3914 = vsel %vm3762, %v3904, %v3913
        %v3916 = vshrl.u32 %v3751, 16
        %v3918 = vrot.slane %v3916, 3
        %v3919 = vshll.u32 %v3751, 16
        %v3921 = vrot.slane %v3919, 4
        %v3922 = vor.u32 %v3918, %v3921
        %v3923 = vsel %vm3762, %v3913, %v3922
        %v3925 = vshrl.u32 %v3752, 16
        %v3927 = vrot.slane %v3925, 3
        %v3928 = vshll.u32 %v3752, 16
        %v3930 = vrot.slane %v3928, 4
        %v3931 = vor.u32 %v3927, %v3930
        %v3932 = vsel %vm3762, %v3922, %v3931
        %v3934 = vshrl.u32 %v3753, 16
        %v3936 = vrot.slane %v3934, 3
        %v3937 = vshll.u32 %v3753, 16
        %v3939 = vrot.slane %v3937, 4
        %v3940 = vor.u32 %v3936, %v3939
        %v3941 = vsel %vm3762, %v3931, %v3940
        %v3943 = vshrl.u32 %v3754, 16
        %v3945 = vrot.slane %v3943, 3
        %v3946 = vshll.u32 %v3754, 16
        %v3948 = vrot.slane %v3946, 4
        %v3949 = vor.u32 %v3945, %v3948
        %v3950 = vsel %vm3762, %v3940, %v3949
        %v3952 = vshrl.u32 %v3755, 16
        %v3954 = vrot.slane %v3952, 3
        %v3955 = vshll.u32 %v3755, 16
        %v3957 = vrot.slane %v3955, 4
        %v3958 = vor.u32 %v3954, %v3957
        %v3959 = vsel %vm3762, %v3949, %v3958
        %v3961 = vshrl.u32 %v3756, 16
        %v3963 = vrot.slane %v3961, 3
        %v3964 = vshll.u32 %v3756, 16
        %v3966 = vrot.slane %v3964, 4
        %v3967 = vor.u32 %v3963, %v3966
        %v3968 = vsel %vm3762, %v3958, %v3967
        %v3970 = vshrl.u32 %v3757, 16
        %v3972 = vrot.slane %v3970, 3
        %v3973 = vshll.u32 %v3757, 16
        %v3975 = vrot.slane %v3973, 4
        %v3976 = vor.u32 %v3972, %v3975
        %v3977 = vsel %vm3762, %v3967, %v3976
        %v3979 = vshrl.u32 %v3758, 16
        %v3981 = vrot.slane %v3979, 3
        %v3982 = vshll.u32 %v3758, 16
        %v3984 = vrot.slane %v3982, 4
        %v3985 = vor.u32 %v3981, %v3984
        %v3986 = vsel %vm3762, %v3976, %v3985
        %v3988 = vshrl.u32 %v3759, 16
        %v3990 = vrot.slane %v3988, 3
        %v3991 = vshll.u32 %v3759, 16
        %v3993 = vrot.slane %v3991, 4
        %v3994 = vor.u32 %v3990, %v3993
        %v3995 = vsel %vm3762, %v3985, %v3994
        %v3997 = vshrl.u32 %v3760, 16
        %v3999 = vrot.slane %v3997, 3
        %v4000 = vshll.u32 %v3760, 16
        %v4002 = vrot.slane %v4000, 4
        %v4003 = vor.u32 %v3999, %v4002
        %v4004 = vsel %vm3762, %v3994, %v4003
        %v4006 = vshrl.u32 %v3761, 16
        %v4008 = vrot.slane %v4006, 3
        %v4009 = vshll.u32 %v3761, 16
        %v4011 = vrot.slane %v4009, 4
        %v4012 = vor.u32 %v4008, %v4011
        %v4013 = vsel %vm3762, %v4003, %v4012
        %v4015 = vsel %vm597, %v3779, 0
        %v4018 = vsel %vm597, %v3788, 0
        %v4021 = vsel %vm597, %v3797, 0
        %v4024 = vsel %vm597, %v3806, 0
        %v4027 = vsel %vm597, %v3815, 0
        %v4030 = vsel %vm597, %v3824, 0
        %v4033 = vsel %vm597, %v3833, 0
        %v4036 = vsel %vm597, %v3842, 0
        %v4039 = vsel %vm597, %v3851, 0
        %v4042 = vsel %vm597, %v3860, 0
        %v4045 = vsel %vm597, %v3869, 0
        %v4048 = vsel %vm597, %v3878, 0
        %v4051 = vsel %vm597, %v3887, 0
        %v4054 = vsel %vm597, %v3896, 0
        %v4057 = vsel %vm597, %v3905, 0
        %v4060 = vsel %vm597, %v3914, 0
        %v4063 = vsel %vm597, %v3923, 0
        %v4066 = vsel %vm597, %v3932, 0
        %v4069 = vsel %vm597, %v3941, 0
        %v4072 = vsel %vm597, %v3950, 0
        %v4075 = vsel %vm597, %v3959, 0
        %v4078 = vsel %vm597, %v3968, 0
        %v4081 = vsel %vm597, %v3977, 0
        %v4084 = vsel %vm597, %v3986, 0
        %v4087 = vsel %vm597, %v3995, 0
        %v4090 = vsel %vm597, %v4004, 0
        %v4093 = vsel %vm597, %v4013, 0
        %v4096 = vsel %vm597, %v4012, 0
        %v4099 = vand.u32 %v3621, %v685
        %4101 = vmatprep.subr.bf16.mxu0 0
        %4102 = vmatpush1.bf16.msra.mxu0 %v4099
        %4103 = vmatprep.subr.bf16.mxu0 0
        %4104 = vmatpush1.bf16.msra.mxu0 0
        %4105 = vmatprep.subr.bf16.mxu0 0
        %4106 = vmatpush1.bf16.msra.mxu0 0
        %4107 = vmatprep.subr.bf16.mxu0 0
        %4108 = vmatpush1.bf16.msra.mxu0 0
        %4109 = vmatprep.subr.bf16.mxu0 0
        %4110 = vmatpush1.bf16.msra.mxu0 0
        %4111 = vmatprep.subr.bf16.mxu0 0
        %4112 = vmatpush1.bf16.msra.mxu0 0
        %4113 = vmatprep.subr.bf16.mxu0 0
        %4114 = vmatpush1.bf16.msra.mxu0 0
        %4115 = vmatprep.subr.bf16.mxu0 0
        %4116 = vmatpush1.bf16.msra.mxu0 0
        %4117 = vmatprep.subr.bf16.mxu0 0
        %4118 = vmatpush1.bf16.msra.mxu0 0
        %4119 = vmatprep.subr.bf16.mxu0 0
        %4120 = vmatpush1.bf16.msra.mxu0 0
        %4121 = vmatprep.subr.bf16.mxu0 0
        %4122 = vmatpush1.bf16.msra.mxu0 0
        %4123 = vmatprep.subr.bf16.mxu0 0
        %4124 = vmatpush1.bf16.msra.mxu0 0
        %4125 = vmatprep.subr.bf16.mxu0 0
        %4126 = vmatpush1.bf16.msra.mxu0 0
        %4127 = vmatprep.subr.bf16.mxu0 0
        %4128 = vmatpush1.bf16.msra.mxu0 0
        %4129 = vmatprep.subr.bf16.mxu0 0
        %4130 = vmatpush1.bf16.msra.mxu0 0
        %4131 = vmatprep.subr.bf16.mxu0 0
        %4132 = vmatpush1.bf16.msra.mxu0 0
        %4133 = vmatprep.mubr.bf16.mxu0 0
        %4134 = vmatmul.mubr.bf16.gmra.mrb[0].mxu0 %v4015
        %v4135 = vpop.f32.mrb[0].mxu0
        %v4136 = vadd.f32 0.0, %v4135
        %v4137 = vpop.f32.mrb[0].mxu0
        %v4138 = vpop.f32.mrb[0].mxu0
        %v4139 = vadd.f32 0.0, %v4138
        %v4140 = vpop.f32.mrb[0].mxu0
        %4141 = vmatprep.mubr.bf16.mxu0 0
        %4142 = vmatmul.mubr.bf16.gmra.mrb[0].mxu0 %v4018
        %v4143 = vpop.f32.mrb[0].mxu0
        %v4144 = vadd.f32 0.0, %v4143
        %v4145 = vpop.f32.mrb[0].mxu0
        %v4146 = vpop.f32.mrb[0].mxu0
        %v4147 = vadd.f32 0.0, %v4146
        %v4148 = vpop.f32.mrb[0].mxu0
        %4149 = vmatprep.mubr.bf16.mxu0 0
        %4150 = vmatmul.mubr.bf16.gmra.mrb[0].mxu0 %v4021
        %v4151 = vpop.f32.mrb[0].mxu0
        %v4152 = vadd.f32 0.0, %v4151
        %v4153 = vpop.f32.mrb[0].mxu0
        %v4154 = vpop.f32.mrb[0].mxu0
        %v4155 = vadd.f32 0.0, %v4154
        %v4156 = vpop.f32.mrb[0].mxu0
        %4157 = vmatprep.mubr.bf16.mxu0 0
        %4158 = vmatmul.mubr.bf16.gmra.mrb[0].mxu0 %v4024
        %v4159 = vpop.f32.mrb[0].mxu0
        %v4160 = vadd.f32 0.0, %v4159
        %v4161 = vpop.f32.mrb[0].mxu0
        %v4162 = vpop.f32.mrb[0].mxu0
        %v4163 = vadd.f32 0.0, %v4162
        %v4164 = vpop.f32.mrb[0].mxu0
        %4165 = vmatprep.mubr.bf16.mxu0 0
        %4166 = vmatmul.mubr.bf16.gmra.mrb[0].mxu0 %v4027
        %v4167 = vpop.f32.mrb[0].mxu0
        %v4168 = vadd.f32 0.0, %v4167
        %v4169 = vpop.f32.mrb[0].mxu0
        %v4170 = vpop.f32.mrb[0].mxu0
        %v4171 = vadd.f32 0.0, %v4170
        %v4172 = vpop.f32.mrb[0].mxu0
        %4173 = vmatprep.mubr.bf16.mxu0 0
        %4174 = vmatmul.mubr.bf16.gmra.mrb[0].mxu0 %v4030
        %v4175 = vpop.f32.mrb[0].mxu0
        %v4176 = vadd.f32 0.0, %v4175
        %v4177 = vpop.f32.mrb[0].mxu0
        %v4178 = vpop.f32.mrb[0].mxu0
        %v4179 = vadd.f32 0.0, %v4178
        %v4180 = vpop.f32.mrb[0].mxu0
        %4181 = vmatprep.mubr.bf16.mxu0 0
        %4182 = vmatmul.mubr.bf16.gmra.mrb[0].mxu0 %v4033
        %v4183 = vpop.f32.mrb[0].mxu0
        %v4184 = vadd.f32 0.0, %v4183
        %v4185 = vpop.f32.mrb[0].mxu0
        %v4186 = vpop.f32.mrb[0].mxu0
        %v4187 = vadd.f32 0.0, %v4186
        %v4188 = vpop.f32.mrb[0].mxu0
        %4189 = vmatprep.mubr.bf16.mxu0 0
        %4190 = vmatmul.mubr.bf16.gmra.mrb[0].mxu0 %v4036
        %v4191 = vpop.f32.mrb[0].mxu0
        %v4192 = vadd.f32 0.0, %v4191
        %v4193 = vpop.f32.mrb[0].mxu0
        %v4194 = vpop.f32.mrb[0].mxu0
        %v4195 = vadd.f32 0.0, %v4194
        %v4196 = vpop.f32.mrb[0].mxu0
        %4197 = vmatprep.mubr.bf16.mxu0 0
        %4198 = vmatmul.mubr.bf16.gmra.mrb[0].mxu0 %v4039
        %v4199 = vpop.f32.mrb[0].mxu0
        %v4200 = vadd.f32 0.0, %v4199
        %v4201 = vpop.f32.mrb[0].mxu0
        %v4202 = vpop.f32.mrb[0].mxu0
        %v4203 = vadd.f32 0.0, %v4202
        %v4204 = vpop.f32.mrb[0].mxu0
        %4205 = vmatprep.mubr.bf16.mxu0 0
        %4206 = vmatmul.mubr.bf16.gmra.mrb[0].mxu0 %v4042
        %v4207 = vpop.f32.mrb[0].mxu0
        %v4208 = vadd.f32 0.0, %v4207
        %v4209 = vpop.f32.mrb[0].mxu0
        %v4210 = vpop.f32.mrb[0].mxu0
        %v4211 = vadd.f32 0.0, %v4210
        %v4212 = vpop.f32.mrb[0].mxu0
        %4213 = vmatprep.mubr.bf16.mxu0 0
        %4214 = vmatmul.mubr.bf16.gmra.mrb[0].mxu0 %v4045
        %v4215 = vpop.f32.mrb[0].mxu0
        %v4216 = vadd.f32 0.0, %v4215
        %v4217 = vpop.f32.mrb[0].mxu0
        %v4218 = vpop.f32.mrb[0].mxu0
        %v4219 = vadd.f32 0.0, %v4218
        %v4220 = vpop.f32.mrb[0].mxu0
        %4221 = vmatprep.mubr.bf16.mxu0 0
        %4222 = vmatmul.mubr.bf16.gmra.mrb[0].mxu0 %v4048
        %v4223 = vpop.f32.mrb[0].mxu0
        %v4224 = vadd.f32 0.0, %v4223
        %v4225 = vpop.f32.mrb[0].mxu0
        %v4226 = vpop.f32.mrb[0].mxu0
        %v4227 = vadd.f32 0.0, %v4226
        %v4228 = vpop.f32.mrb[0].mxu0
        %4229 = vmatprep.mubr.bf16.mxu0 0
        %4230 = vmatmul.mubr.bf16.gmra.mrb[0].mxu0 %v4051
        %v4231 = vpop.f32.mrb[0].mxu0
        %v4232 = vadd.f32 0.0, %v4231
        %v4233 = vpop.f32.mrb[0].mxu0
        %v4234 = vpop.f32.mrb[0].mxu0
        %v4235 = vadd.f32 0.0, %v4234
        %v4236 = vpop.f32.mrb[0].mxu0
        %4237 = vmatprep.mubr.bf16.mxu0 0
        %4238 = vmatmul.mubr.bf16.gmra.mrb[0].mxu0 %v4054
        %v4239 = vpop.f32.mrb[0].mxu0
        %v4240 = vadd.f32 0.0, %v4239
        %v4241 = vpop.f32.mrb[0].mxu0
        %v4242 = vpop.f32.mrb[0].mxu0
        %v4243 = vadd.f32 0.0, %v4242
        %v4244 = vpop.f32.mrb[0].mxu0
        %4245 = vmatprep.mubr.bf16.mxu0 0
        %4246 = vmatmul.mubr.bf16.gmra.mrb[0].mxu0 %v4057
        %v4247 = vpop.f32.mrb[0].mxu0
        %v4248 = vadd.f32 0.0, %v4247
        %v4249 = vpop.f32.mrb[0].mxu0
        %v4250 = vpop.f32.mrb[0].mxu0
        %v4251 = vadd.f32 0.0, %v4250
        %v4252 = vpop.f32.mrb[0].mxu0
        %4253 = vmatprep.mubr.bf16.mxu0 0
        %4254 = vmatmul.mubr.bf16.gmra.mrb[0].mxu0 %v4060
        %v4255 = vpop.f32.mrb[0].mxu0
        %v4256 = vadd.f32 0.0, %v4255
        %v4257 = vpop.f32.mrb[0].mxu0
        %v4258 = vpop.f32.mrb[0].mxu0
        %v4259 = vadd.f32 0.0, %v4258
        %v4260 = vpop.f32.mrb[0].mxu0
        %4261 = vmatprep.mubr.bf16.mxu0 0
        %4262 = vmatmul.mubr.bf16.gmra.mrb[0].mxu0 %v4063
        %v4263 = vpop.f32.mrb[0].mxu0
        %v4264 = vadd.f32 0.0, %v4263
        %v4265 = vpop.f32.mrb[0].mxu0
        %v4266 = vpop.f32.mrb[0].mxu0
        %v4267 = vadd.f32 0.0, %v4266
        %v4268 = vpop.f32.mrb[0].mxu0
        %4269 = vmatprep.mubr.bf16.mxu0 0
        %4270 = vmatmul.mubr.bf16.gmra.mrb[0].mxu0 %v4066
        %v4271 = vpop.f32.mrb[0].mxu0
        %v4272 = vadd.f32 0.0, %v4271
        %v4273 = vpop.f32.mrb[0].mxu0
        %v4274 = vpop.f32.mrb[0].mxu0
        %v4275 = vadd.f32 0.0, %v4274
        %v4276 = vpop.f32.mrb[0].mxu0
        %4277 = vmatprep.mubr.bf16.mxu0 0
        %4278 = vmatmul.mubr.bf16.gmra.mrb[0].mxu0 %v4069
        %v4279 = vpop.f32.mrb[0].mxu0
        %v4280 = vadd.f32 0.0, %v4279
        %v4281 = vpop.f32.mrb[0].mxu0
        %v4282 = vpop.f32.mrb[0].mxu0
        %v4283 = vadd.f32 0.0, %v4282
        %v4284 = vpop.f32.mrb[0].mxu0
        %4285 = vmatprep.mubr.bf16.mxu0 0
        %4286 = vmatmul.mubr.bf16.gmra.mrb[0].mxu0 %v4072
        %v4287 = vpop.f32.mrb[0].mxu0
        %v4288 = vadd.f32 0.0, %v4287
        %v4289 = vpop.f32.mrb[0].mxu0
        %v4290 = vpop.f32.mrb[0].mxu0
        %v4291 = vadd.f32 0.0, %v4290
        %v4292 = vpop.f32.mrb[0].mxu0
        %4293 = vmatprep.mubr.bf16.mxu0 0
        %4294 = vmatmul.mubr.bf16.gmra.mrb[0].mxu0 %v4075
        %v4295 = vpop.f32.mrb[0].mxu0
        %v4296 = vadd.f32 0.0, %v4295
        %v4297 = vpop.f32.mrb[0].mxu0
        %v4298 = vpop.f32.mrb[0].mxu0
        %v4299 = vadd.f32 0.0, %v4298
        %v4300 = vpop.f32.mrb[0].mxu0
        %4301 = vmatprep.mubr.bf16.mxu0 0
        %4302 = vmatmul.mubr.bf16.gmra.mrb[0].mxu0 %v4078
        %v4303 = vpop.f32.mrb[0].mxu0
        %v4304 = vadd.f32 0.0, %v4303
        %v4305 = vpop.f32.mrb[0].mxu0
        %v4306 = vpop.f32.mrb[0].mxu0
        %v4307 = vadd.f32 0.0, %v4306
        %v4308 = vpop.f32.mrb[0].mxu0
        %4309 = vmatprep.mubr.bf16.mxu0 0
        %4310 = vmatmul.mubr.bf16.gmra.mrb[0].mxu0 %v4081
        %v4311 = vpop.f32.mrb[0].mxu0
        %v4312 = vadd.f32 0.0, %v4311
        %v4313 = vpop.f32.mrb[0].mxu0
        %v4314 = vpop.f32.mrb[0].mxu0
        %v4315 = vadd.f32 0.0, %v4314
        %v4316 = vpop.f32.mrb[0].mxu0
        %4317 = vmatprep.mubr.bf16.mxu0 0
        %4318 = vmatmul.mubr.bf16.gmra.mrb[0].mxu0 %v4084
        %v4319 = vpop.f32.mrb[0].mxu0
        %v4320 = vadd.f32 0.0, %v4319
        %v4321 = vpop.f32.mrb[0].mxu0
        %v4322 = vpop.f32.mrb[0].mxu0
        %v4323 = vadd.f32 0.0, %v4322
        %v4324 = vpop.f32.mrb[0].mxu0
        %4325 = vmatprep.mubr.bf16.mxu0 0
        %4326 = vmatmul.mubr.bf16.gmra.mrb[0].mxu0 %v4087
        %v4327 = vpop.f32.mrb[0].mxu0
        %v4328 = vadd.f32 0.0, %v4327
        %v4329 = vpop.f32.mrb[0].mxu0
        %v4330 = vpop.f32.mrb[0].mxu0
        %v4331 = vadd.f32 0.0, %v4330
        %v4332 = vpop.f32.mrb[0].mxu0
        %4333 = vmatprep.mubr.bf16.mxu0 0
        %4334 = vmatmul.mubr.bf16.gmra.mrb[0].mxu0 %v4090
        %v4335 = vpop.f32.mrb[0].mxu0
        %v4336 = vadd.f32 0.0, %v4335
        %v4337 = vpop.f32.mrb[0].mxu0
        %v4338 = vpop.f32.mrb[0].mxu0
        %v4339 = vadd.f32 0.0, %v4338
        %v4340 = vpop.f32.mrb[0].mxu0
        %4341 = vmatprep.mubr.bf16.mxu0 0
        %4342 = vmatmul.mubr.bf16.gmra.mrb[0].mxu0 %v4093
        %v4343 = vpop.f32.mrb[0].mxu0
        %v4344 = vadd.f32 0.0, %v4343
        %v4345 = vpop.f32.mrb[0].mxu0
        %v4346 = vpop.f32.mrb[0].mxu0
        %v4347 = vadd.f32 0.0, %v4346
        %v4348 = vpop.f32.mrb[0].mxu0
        %4349 = vmatprep.mubr.bf16.mxu0 0
        %4350 = vmatmul.mubr.bf16.gmra.mrb[0].mxu0 %v4096
        %v4351 = vpop.f32.mrb[0].mxu0
        %v4352 = vadd.f32 0.0, %v4351
        %v4353 = vpop.f32.mrb[0].mxu0
        %v4354 = vpop.f32.mrb[0].mxu0
        %v4355 = vpop.f32.mrb[0].mxu0
        %4356 = vdwg.mxu0
        %v4357 = vadd.f32 %v3509, %v4136
        %v4358 = vadd.f32 %v3510, %v4139
        %v4359 = vadd.f32 %v3511, %v4144
        %v4360 = vadd.f32 %v3512, %v4147
        %v4361 = vadd.f32 %v3513, %v4152
        %v4362 = vadd.f32 %v3514, %v4155
        %v4363 = vadd.f32 %v3515, %v4160
        %v4364 = vadd.f32 %v3516, %v4163
        %v4365 = vadd.f32 %v3517, %v4168
        %v4366 = vadd.f32 %v3518, %v4171
        %v4367 = vadd.f32 %v3519, %v4176
        %v4368 = vadd.f32 %v3520, %v4179
        %v4369 = vadd.f32 %v3521, %v4184
        %v4370 = vadd.f32 %v3522, %v4187
        %v4371 = vadd.f32 %v3523, %v4192
        %v4372 = vadd.f32 %v3524, %v4195
        %v4373 = vadd.f32 %v3525, %v4200
        %v4374 = vadd.f32 %v3526, %v4203
        %v4375 = vadd.f32 %v3527, %v4208
        %v4376 = vadd.f32 %v3528, %v4211
        %v4377 = vadd.f32 %v3529, %v4216
        %v4378 = vadd.f32 %v3530, %v4219
        %v4379 = vadd.f32 %v3531, %v4224
        %v4380 = vadd.f32 %v3532, %v4227
        %v4381 = vadd.f32 %v3533, %v4232
        %v4382 = vadd.f32 %v3534, %v4235
        %v4383 = vadd.f32 %v3535, %v4240
        %v4384 = vadd.f32 %v3536, %v4243
        %v4385 = vadd.f32 %v3537, %v4248
        %v4386 = vadd.f32 %v3538, %v4251
        %v4387 = vadd.f32 %v3539, %v4256
        %v4388 = vadd.f32 %v3540, %v4259
        %v4389 = vadd.f32 %v3541, %v4264
        %v4390 = vadd.f32 %v3542, %v4267
        %v4391 = vadd.f32 %v3543, %v4272
        %v4392 = vadd.f32 %v3544, %v4275
        %v4393 = vadd.f32 %v3545, %v4280
        %v4394 = vadd.f32 %v3546, %v4283
        %v4395 = vadd.f32 %v3547, %v4288
        %v4396 = vadd.f32 %v3548, %v4291
        %v4397 = vadd.f32 %v3549, %v4296
        %v4398 = vadd.f32 %v3550, %v4299
        %v4399 = vadd.f32 %v3551, %v4304
        %v4400 = vadd.f32 %v3552, %v4307
        %v4401 = vadd.f32 %v3553, %v4312
        %v4402 = vadd.f32 %v3554, %v4315
        %v4403 = vadd.f32 %v3555, %v4320
        %v4404 = vadd.f32 %v3556, %v4323
        %v4405 = vadd.f32 %v3557, %v4328
        %v4406 = vadd.f32 %v3558, %v4331
        %v4407 = vadd.f32 %v3559, %v4336
        %v4408 = vadd.f32 %v3560, %v4339
        %v4409 = vadd.f32 %v3561, %v4344
        %v4410 = vadd.f32 %v3562, %v4347
        %v4411 = vadd.f32 %v3563, %v4352
        %4412 = vst.msk [vmem:[#allocation2] sm:$0xff] %vm292, %v4357
        %4413 = vst.msk [vmem:[#allocation2 + $0x8] sm:$0xff] %vm292, %v4358
        %4414 = vst.msk [vmem:[#allocation2 + $0x10] sm:$0xff] %vm292, %v4359
        %4415 = vst.msk [vmem:[#allocation2 + $0x18] sm:$0xff] %vm292, %v4360
        %4416 = vst.msk [vmem:[#allocation2 + $0x20] sm:$0xff] %vm292, %v4361
        %4417 = vst.msk [vmem:[#allocation2 + $0x28] sm:$0xff] %vm292, %v4362
        %4418 = vst.msk [vmem:[#allocation2 + $0x30] sm:$0xff] %vm292, %v4363
        %4419 = vst.msk [vmem:[#allocation2 + $0x38] sm:$0xff] %vm292, %v4364
        %4420 = vst.msk [vmem:[#allocation2 + $0x40] sm:$0xff] %vm292, %v4365
        %4421 = vst.msk [vmem:[#allocation2 + $0x48] sm:$0xff] %vm292, %v4366
        %4422 = vst.msk [vmem:[#allocation2 + $0x50] sm:$0xff] %vm292, %v4367
        %4423 = vst.msk [vmem:[#allocation2 + $0x58] sm:$0xff] %vm292, %v4368
        %4424 = vst.msk [vmem:[#allocation2 + $0x60] sm:$0xff] %vm292, %v4369
        %4425 = vst.msk [vmem:[#allocation2 + $0x68] sm:$0xff] %vm292, %v4370
        %4426 = vst.msk [vmem:[#allocation2 + $0x70] sm:$0xff] %vm292, %v4371
        %4427 = vst.msk [vmem:[#allocation2 + $0x78] sm:$0xff] %vm292, %v4372
        %4428 = vst.msk [vmem:[#allocation2 + $0x80] sm:$0xff] %vm292, %v4373
        %4429 = vst.msk [vmem:[#allocation2 + $0x88] sm:$0xff] %vm292, %v4374
        %4430 = vst.msk [vmem:[#allocation2 + $0x90] sm:$0xff] %vm292, %v4375
        %4431 = vst.msk [vmem:[#allocation2 + $0x98] sm:$0xff] %vm292, %v4376
        %4432 = vst.msk [vmem:[#allocation2 + $0xa0] sm:$0xff] %vm292, %v4377
        %4433 = vst.msk [vmem:[#allocation2 + $0xa8] sm:$0xff] %vm292, %v4378
        %4434 = vst.msk [vmem:[#allocation2 + $0xb0] sm:$0xff] %vm292, %v4379
        %4435 = vst.msk [vmem:[#allocation2 + $0xb8] sm:$0xff] %vm292, %v4380
        %4436 = vst.msk [vmem:[#allocation2 + $0xc0] sm:$0xff] %vm292, %v4381
        %4437 = vst.msk [vmem:[#allocation2 + $0xc8] sm:$0xff] %vm292, %v4382
        %4438 = vst.msk [vmem:[#allocation2 + $0xd0] sm:$0xff] %vm292, %v4383
        %4439 = vst.msk [vmem:[#allocation2 + $0xd8] sm:$0xff] %vm292, %v4384
        %4440 = vst.msk [vmem:[#allocation2 + $0xe0] sm:$0xff] %vm292, %v4385
        %4441 = vst.msk [vmem:[#allocation2 + $0xe8] sm:$0xff] %vm292, %v4386
        %4442 = vst.msk [vmem:[#allocation2 + $0xf0] sm:$0xff] %vm292, %v4387
        %4443 = vst.msk [vmem:[#allocation2 + $0xf8] sm:$0xff] %vm292, %v4388
        %4444 = vst.msk [vmem:[#allocation2 + $0x100] sm:$0xff] %vm292, %v4389
        %4445 = vst.msk [vmem:[#allocation2 + $0x108] sm:$0xff] %vm292, %v4390
        %4446 = vst.msk [vmem:[#allocation2 + $0x110] sm:$0xff] %vm292, %v4391
        %4447 = vst.msk [vmem:[#allocation2 + $0x118] sm:$0xff] %vm292, %v4392
        %4448 = vst.msk [vmem:[#allocation2 + $0x120] sm:$0xff] %vm292, %v4393
        %4449 = vst.msk [vmem:[#allocation2 + $0x128] sm:$0xff] %vm292, %v4394
        %4450 = vst.msk [vmem:[#allocation2 + $0x130] sm:$0xff] %vm292, %v4395
        %4451 = vst.msk [vmem:[#allocation2 + $0x138] sm:$0xff] %vm292, %v4396
        %4452 = vst.msk [vmem:[#allocation2 + $0x140] sm:$0xff] %vm292, %v4397
        %4453 = vst.msk [vmem:[#allocation2 + $0x148] sm:$0xff] %vm292, %v4398
        %4454 = vst.msk [vmem:[#allocation2 + $0x150] sm:$0xff] %vm292, %v4399
        %4455 = vst.msk [vmem:[#allocation2 + $0x158] sm:$0xff] %vm292, %v4400
        %4456 = vst.msk [vmem:[#allocation2 + $0x160] sm:$0xff] %vm292, %v4401
        %4457 = vst.msk [vmem:[#allocation2 + $0x168] sm:$0xff] %vm292, %v4402
        %4458 = vst.msk [vmem:[#allocation2 + $0x170] sm:$0xff] %vm292, %v4403
        %4459 = vst.msk [vmem:[#allocation2 + $0x178] sm:$0xff] %vm292, %v4404
        %4460 = vst.msk [vmem:[#allocation2 + $0x180] sm:$0xff] %vm292, %v4405
        %4461 = vst.msk [vmem:[#allocation2 + $0x188] sm:$0xff] %vm292, %v4406
        %4462 = vst.msk [vmem:[#allocation2 + $0x190] sm:$0xff] %vm292, %v4407
        %4463 = vst.msk [vmem:[#allocation2 + $0x198] sm:$0xff] %vm292, %v4408
        %4464 = vst.msk [vmem:[#allocation2 + $0x1a0] sm:$0xff] %vm292, %v4409
        %4465 = vst.msk [vmem:[#allocation2 + $0x1a8] sm:$0xff] %vm292, %v4410
        %4466 = vst.msk [vmem:[#allocation2 + $0x1b0] sm:$0xff] %vm292, %v4411
        %v4467 = vld [vmem:[#allocation2] sm:$0xff]
        %v4468 = vld [vmem:[#allocation2 + $0x8] sm:$0xff]
        %v4469 = vld [vmem:[#allocation2 + $0x10] sm:$0xff]
        %v4470 = vld [vmem:[#allocation2 + $0x18] sm:$0xff]
        %v4471 = vld [vmem:[#allocation2 + $0x20] sm:$0xff]
        %v4472 = vld [vmem:[#allocation2 + $0x28] sm:$0xff]
        %v4473 = vld [vmem:[#allocation2 + $0x30] sm:$0xff]
        %v4474 = vld [vmem:[#allocation2 + $0x38] sm:$0xff]
        %v4475 = vld [vmem:[#allocation2 + $0x40] sm:$0xff]
        %v4476 = vld [vmem:[#allocation2 + $0x48] sm:$0xff]
        %v4477 = vld [vmem:[#allocation2 + $0x50] sm:$0xff]
        %v4478 = vld [vmem:[#allocation2 + $0x58] sm:$0xff]
        %v4479 = vld [vmem:[#allocation2 + $0x60] sm:$0xff]
        %v4480 = vld [vmem:[#allocation2 + $0x68] sm:$0xff]
        %v4481 = vld [vmem:[#allocation2 + $0x70] sm:$0xff]
        %v4482 = vld [vmem:[#allocation2 + $0x78] sm:$0xff]
        %v4483 = vld [vmem:[#allocation2 + $0x80] sm:$0xff]
        %v4484 = vld [vmem:[#allocation2 + $0x88] sm:$0xff]
        %v4485 = vld [vmem:[#allocation2 + $0x90] sm:$0xff]
        %v4486 = vld [vmem:[#allocation2 + $0x98] sm:$0xff]
        %v4487 = vld [vmem:[#allocation2 + $0xa0] sm:$0xff]
        %v4488 = vld [vmem:[#allocation2 + $0xa8] sm:$0xff]
        %v4489 = vld [vmem:[#allocation2 + $0xb0] sm:$0xff]
        %v4490 = vld [vmem:[#allocation2 + $0xb8] sm:$0xff]
        %v4491 = vld [vmem:[#allocation2 + $0xc0] sm:$0xff]
        %v4492 = vld [vmem:[#allocation2 + $0xc8] sm:$0xff]
        %v4493 = vld [vmem:[#allocation2 + $0xd0] sm:$0xff]
        %v4494 = vld [vmem:[#allocation2 + $0xd8] sm:$0xff]
        %v4495 = vld [vmem:[#allocation2 + $0xe0] sm:$0xff]
        %v4496 = vld [vmem:[#allocation2 + $0xe8] sm:$0xff]
        %v4497 = vld [vmem:[#allocation2 + $0xf0] sm:$0xff]
        %v4498 = vld [vmem:[#allocation2 + $0xf8] sm:$0xff]
        %v4499 = vld [vmem:[#allocation2 + $0x100] sm:$0xff]
        %v4500 = vld [vmem:[#allocation2 + $0x108] sm:$0xff]
        %v4501 = vld [vmem:[#allocation2 + $0x110] sm:$0xff]
        %v4502 = vld [vmem:[#allocation2 + $0x118] sm:$0xff]
        %v4503 = vld [vmem:[#allocation2 + $0x120] sm:$0xff]
        %v4504 = vld [vmem:[#allocation2 + $0x128] sm:$0xff]
        %v4505 = vld [vmem:[#allocation2 + $0x130] sm:$0xff]
        %v4506 = vld [vmem:[#allocation2 + $0x138] sm:$0xff]
        %v4507 = vld [vmem:[#allocation2 + $0x140] sm:$0xff]
        %v4508 = vld [vmem:[#allocation2 + $0x148] sm:$0xff]
        %v4509 = vld [vmem:[#allocation2 + $0x150] sm:$0xff]
        %v4510 = vld [vmem:[#allocation2 + $0x158] sm:$0xff]
        %v4511 = vld [vmem:[#allocation2 + $0x160] sm:$0xff]
        %v4512 = vld [vmem:[#allocation2 + $0x168] sm:$0xff]
        %v4513 = vld [vmem:[#allocation2 + $0x170] sm:$0xff]
        %v4514 = vld [vmem:[#allocation2 + $0x178] sm:$0xff]
        %v4515 = vld [vmem:[#allocation2 + $0x180] sm:$0xff]
        %v4516 = vld [vmem:[#allocation2 + $0x188] sm:$0xff]
        %v4517 = vld [vmem:[#allocation2 + $0x190] sm:$0xff]
        %v4518 = vld [vmem:[#allocation2 + $0x198] sm:$0xff]
        %v4519 = vld [vmem:[#allocation2 + $0x1a0] sm:$0xff]
        %v4520 = vld [vmem:[#allocation2 + $0x1a8] sm:$0xff]
        %v4521 = vld [vmem:[#allocation2 + $0x1b0] sm:$0xff]
        %v4522 = vld [vmem:[%s254 + $0xc] sm:$0xf]
        %v4523 = vld [vmem:[%s254 + $0x10] sm:$0xf]
        %v4524 = vld [vmem:[%s254 + $0x14] sm:$0xf]
        %v4525 = vld [vmem:[%s254 + $0x18] sm:$0xf]
        %v4526 = vld [vmem:[%s254 + $0x1c] sm:$0xf]
        %v4527 = vld [vmem:[%s254 + $0x20] sm:$0xf]
        %v4528 = vld [vmem:[%s254 + $0x24] sm:$0xf]
        %v4529 = vld [vmem:[%s254 + $0x28] sm:$0xf]
        %v4530 = vld [vmem:[%s254 + $0x2c] sm:$0xf]
        %v4531 = vld [vmem:[%s254 + $0x30] sm:$0xf]
        %v4532 = vld [vmem:[%s254 + $0x34] sm:$0xf]
        %v4533 = vld [vmem:[%s254 + $0x38] sm:$0xf]
        %v4534 = vld [vmem:[%s254 + $0x3c] sm:$0xf]
        %v4535 = vld [vmem:[%s254 + $0x40] sm:$0xf]
        %v4536 = vld [vmem:[%s254 + $0x44] sm:$0xf]
        %v4537 = vld [vmem:[%s254 + $0x48] sm:$0xf]
        %v4538 = vld [vmem:[%s254 + $0x4c] sm:$0xf]
        %v4539 = vld [vmem:[%s254 + $0x50] sm:$0xf]
        %v4540 = vld [vmem:[%s254 + $0x54] sm:$0xf]
        %v4541 = vld [vmem:[%s254 + $0x58] sm:$0xf]
        %v4542 = vld [vmem:[%s254 + $0x5c] sm:$0xf]
        %v4543 = vld [vmem:[%s254 + $0x60] sm:$0xf]
        %v4544 = vld [vmem:[%s254 + $0x64] sm:$0xf]
        %v4545 = vld [vmem:[%s254 + $0x68] sm:$0xf]
        %v4546 = vld [vmem:[%s254 + $0x6c] sm:$0xf]
        %v4547 = vld [vmem:[%s254 + $0x70] sm:$0xf]
        %v4548 = vld [vmem:[%s254 + $0x74] sm:$0xf]
        %v4549 = vld [vmem:[%s254 + $0x78] sm:$0xf]
        %v4550 = vld [vmem:[%s254 + $0x7c] sm:$0xf]
        %v4551 = vld [vmem:[%s254 + $0x80] sm:$0xf]
        %v4552 = vld [vmem:[%s254 + $0x84] sm:$0xf]
        %v4553 = vld [vmem:[%s254 + $0x88] sm:$0xf]
        %v4554 = vld [vmem:[%s254 + $0x8c] sm:$0xf]
        %v4555 = vld [vmem:[%s254 + $0x90] sm:$0xf]
        %v4556 = vld [vmem:[%s254 + $0x94] sm:$0xf]
        %v4557 = vld [vmem:[%s254 + $0x98] sm:$0xf]
        %v4558 = vld [vmem:[%s254 + $0x9c] sm:$0xf]
        %v4559 = vld [vmem:[%s254 + $0xa0] sm:$0xf]
        %v4560 = vld [vmem:[%s254 + $0xa4] sm:$0xf]
        %v4561 = vld [vmem:[%s254 + $0xa8] sm:$0xf]
        %v4562 = vld [vmem:[%s254 + $0xac] sm:$0xf]
        %v4563 = vld [vmem:[%s254 + $0xb0] sm:$0xf]
        %v4564 = vld [vmem:[%s254 + $0xb4] sm:$0xf]
        %v4565 = vld [vmem:[%s254 + $0xb8] sm:$0xf]
        %v4566 = vld [vmem:[%s254 + $0xbc] sm:$0xf]
        %v4567 = vld [vmem:[%s254 + $0xc0] sm:$0xf]
        %v4568 = vld [vmem:[%s254 + $0xc4] sm:$0xf]
        %v4569 = vld [vmem:[%s254 + $0xc8] sm:$0xf]
        %v4570 = vld [vmem:[%s254 + $0xcc] sm:$0xf]
        %v4571 = vld [vmem:[%s254 + $0xd0] sm:$0xf]
        %v4572 = vld [vmem:[%s254 + $0xd4] sm:$0xf]
        %v4573 = vld [vmem:[%s254 + $0xd8] sm:$0xf]
        %v4574 = vld [vmem:[%s254 + $0xdc] sm:$0xf]
        %v4575 = vld [vmem:[%s254 + $0xe0] sm:$0xf]
        %v4576 = vld [vmem:[%s254 + $0xe4] sm:$0xf]
        %s4577 = scalar_lea.vmem [#allocation6], 10
        %v4578 = vld [vmem:[%s4577] sm:$0x3]
        %v4634 = vunpack.c.l.b16 %v4522
        %v4635 = vunpack.c.l.b16 %v4523
        %v4636 = vunpack.c.l.b16 %v4524
        %v4637 = vunpack.c.l.b16 %v4525
        %v4638 = vunpack.c.l.b16 %v4526
        %v4639 = vunpack.c.l.b16 %v4527
        %v4640 = vunpack.c.l.b16 %v4528
        %v4641 = vunpack.c.l.b16 %v4529
        %v4642 = vunpack.c.l.b16 %v4530
        %v4643 = vunpack.c.l.b16 %v4531
        %v4644 = vunpack.c.l.b16 %v4532
        %v4645 = vunpack.c.l.b16 %v4533
        %v4646 = vunpack.c.l.b16 %v4534
        %v4647 = vunpack.c.l.b16 %v4535
        %v4648 = vunpack.c.l.b16 %v4536
        %v4649 = vunpack.c.l.b16 %v4537
        %v4650 = vunpack.c.l.b16 %v4538
        %v4651 = vunpack.c.l.b16 %v4539
        %v4652 = vunpack.c.l.b16 %v4540
        %v4653 = vunpack.c.l.b16 %v4541
        %v4654 = vunpack.c.l.b16 %v4542
        %v4655 = vunpack.c.l.b16 %v4543
        %v4656 = vunpack.c.l.b16 %v4544
        %v4657 = vunpack.c.l.b16 %v4545
        %v4658 = vunpack.c.l.b16 %v4546
        %v4659 = vunpack.c.l.b16 %v4547
        %v4660 = vunpack.c.l.b16 %v4548
        %v4661 = vunpack.c.l.b16 %v4549
        %v4662 = vunpack.c.l.b16 %v4550
        %v4663 = vunpack.c.l.b16 %v4551
        %v4664 = vunpack.c.l.b16 %v4552
        %v4665 = vunpack.c.l.b16 %v4553
        %v4666 = vunpack.c.l.b16 %v4554
        %v4667 = vunpack.c.l.b16 %v4555
        %v4668 = vunpack.c.l.b16 %v4556
        %v4669 = vunpack.c.l.b16 %v4557
        %v4670 = vunpack.c.l.b16 %v4558
        %v4671 = vunpack.c.l.b16 %v4559
        %v4672 = vunpack.c.l.b16 %v4560
        %v4673 = vunpack.c.l.b16 %v4561
        %v4674 = vunpack.c.l.b16 %v4562
        %v4675 = vunpack.c.l.b16 %v4563
        %v4676 = vunpack.c.l.b16 %v4564
        %v4677 = vunpack.c.l.b16 %v4565
        %v4678 = vunpack.c.l.b16 %v4566
        %v4679 = vunpack.c.l.b16 %v4567
        %v4680 = vunpack.c.l.b16 %v4568
        %v4681 = vunpack.c.l.b16 %v4569
        %v4682 = vunpack.c.l.b16 %v4570
        %v4683 = vunpack.c.l.b16 %v4571
        %v4684 = vunpack.c.l.b16 %v4572
        %v4685 = vunpack.c.l.b16 %v4573
        %v4686 = vunpack.c.l.b16 %v4574
        %v4687 = vunpack.c.l.b16 %v4575
        %v4688 = vunpack.c.l.b16 %v4576
        %v4689 = vpack.c.b16 %v4635, %v4634
        %v4690 = vpack.c.b16 %v4637, %v4636
        %v4691 = vpack.c.b16 %v4639, %v4638
        %v4692 = vpack.c.b16 %v4641, %v4640
        %v4693 = vpack.c.b16 %v4643, %v4642
        %v4694 = vpack.c.b16 %v4645, %v4644
        %v4695 = vpack.c.b16 %v4647, %v4646
        %v4696 = vpack.c.b16 %v4649, %v4648
        %v4697 = vpack.c.b16 %v4651, %v4650
        %v4698 = vpack.c.b16 %v4653, %v4652
        %v4699 = vpack.c.b16 %v4655, %v4654
        %v4700 = vpack.c.b16 %v4657, %v4656
        %v4701 = vpack.c.b16 %v4659, %v4658
        %v4702 = vpack.c.b16 %v4661, %v4660
        %v4703 = vpack.c.b16 %v4663, %v4662
        %v4704 = vpack.c.b16 %v4665, %v4664
        %v4705 = vpack.c.b16 %v4667, %v4666
        %v4706 = vpack.c.b16 %v4669, %v4668
        %v4707 = vpack.c.b16 %v4671, %v4670
        %v4708 = vpack.c.b16 %v4673, %v4672
        %v4709 = vpack.c.b16 %v4675, %v4674
        %v4710 = vpack.c.b16 %v4677, %v4676
        %v4711 = vpack.c.b16 %v4679, %v4678
        %v4712 = vpack.c.b16 %v4681, %v4680
        %v4713 = vpack.c.b16 %v4683, %v4682
        %v4714 = vpack.c.b16 %v4685, %v4684
        %v4715 = vpack.c.b16 %v4687, %v4686
        %v4716 = vpack.c.b16 %v4688, %v4688
        %v4718 = vsel %vm597, %v4689, 0
        %v4721 = vsel %vm597, %v4690, 0
        %v4724 = vsel %vm597, %v4691, 0
        %v4727 = vsel %vm597, %v4692, 0
        %v4730 = vsel %vm597, %v4693, 0
        %v4733 = vsel %vm597, %v4694, 0
        %v4736 = vsel %vm597, %v4695, 0
        %v4739 = vsel %vm597, %v4696, 0
        %v4742 = vsel %vm597, %v4697, 0
        %v4745 = vsel %vm597, %v4698, 0
        %v4748 = vsel %vm597, %v4699, 0
        %v4751 = vsel %vm597, %v4700, 0
        %v4754 = vsel %vm597, %v4701, 0
        %v4757 = vsel %vm597, %v4702, 0
        %v4760 = vsel %vm597, %v4703, 0
        %v4763 = vsel %vm597, %v4704, 0
        %v4766 = vsel %vm597, %v4705, 0
        %v4769 = vsel %vm597, %v4706, 0
        %v4772 = vsel %vm597, %v4707, 0
        %v4775 = vsel %vm597, %v4708, 0
        %v4778 = vsel %vm597, %v4709, 0
        %v4781 = vsel %vm597, %v4710, 0
        %v4784 = vsel %vm597, %v4711, 0
        %v4787 = vsel %vm597, %v4712, 0
        %v4790 = vsel %vm597, %v4713, 0
        %v4793 = vsel %vm597, %v4714, 0
        %v4796 = vsel %vm597, %v4715, 0
        %v4799 = vsel %vm597, %v4716, 0
        %v4802 = vand.u32 %v4578, %v685
        %4804 = vmatprep.subr.bf16.mxu0 0
        %4805 = vmatpush1.bf16.msra.mxu0 %v4802
        %4806 = vmatprep.subr.bf16.mxu0 0
        %4807 = vmatpush1.bf16.msra.mxu0 0
        %4808 = vmatprep.subr.bf16.mxu0 0
        %4809 = vmatpush1.bf16.msra.mxu0 0
        %4810 = vmatprep.subr.bf16.mxu0 0
        %4811 = vmatpush1.bf16.msra.mxu0 0
        %4812 = vmatprep.subr.bf16.mxu0 0
        %4813 = vmatpush1.bf16.msra.mxu0 0
        %4814 = vmatprep.subr.bf16.mxu0 0
        %4815 = vmatpush1.bf16.msra.mxu0 0
        %4816 = vmatprep.subr.bf16.mxu0 0
        %4817 = vmatpush1.bf16.msra.mxu0 0
        %4818 = vmatprep.subr.bf16.mxu0 0
        %4819 = vmatpush1.bf16.msra.mxu0 0
        %4820 = vmatprep.subr.bf16.mxu0 0
        %4821 = vmatpush1.bf16.msra.mxu0 0
        %4822 = vmatprep.subr.bf16.mxu0 0
        %4823 = vmatpush1.bf16.msra.mxu0 0
        %4824 = vmatprep.subr.bf16.mxu0 0
        %4825 = vmatpush1.bf16.msra.mxu0 0
        %4826 = vmatprep.subr.bf16.mxu0 0
        %4827 = vmatpush1.bf16.msra.mxu0 0
        %4828 = vmatprep.subr.bf16.mxu0 0
        %4829 = vmatpush1.bf16.msra.mxu0 0
        %4830 = vmatprep.subr.bf16.mxu0 0
        %4831 = vmatpush1.bf16.msra.mxu0 0
        %4832 = vmatprep.subr.bf16.mxu0 0
        %4833 = vmatpush1.bf16.msra.mxu0 0
        %4834 = vmatprep.subr.bf16.mxu0 0
        %4835 = vmatpush1.bf16.msra.mxu0 0
        %4836 = vmatprep.mubr.bf16.mxu0 0
        %4837 = vmatmul.mubr.bf16.gmra.mrb[0].mxu0 %v4718
        %v4838 = vpop.f32.mrb[0].mxu0
        %v4839 = vadd.f32 0.0, %v4838
        %v4840 = vpop.f32.mrb[0].mxu0
        %v4841 = vpop.f32.mrb[0].mxu0
        %v4842 = vadd.f32 0.0, %v4841
        %v4843 = vpop.f32.mrb[0].mxu0
        %4844 = vmatprep.mubr.bf16.mxu0 0
        %4845 = vmatmul.mubr.bf16.gmra.mrb[0].mxu0 %v4721
        %v4846 = vpop.f32.mrb[0].mxu0
        %v4847 = vadd.f32 0.0, %v4846
        %v4848 = vpop.f32.mrb[0].mxu0
        %v4849 = vpop.f32.mrb[0].mxu0
        %v4850 = vadd.f32 0.0, %v4849
        %v4851 = vpop.f32.mrb[0].mxu0
        %4852 = vmatprep.mubr.bf16.mxu0 0
        %4853 = vmatmul.mubr.bf16.gmra.mrb[0].mxu0 %v4724
        %v4854 = vpop.f32.mrb[0].mxu0
        %v4855 = vadd.f32 0.0, %v4854
        %v4856 = vpop.f32.mrb[0].mxu0
        %v4857 = vpop.f32.mrb[0].mxu0
        %v4858 = vadd.f32 0.0, %v4857
        %v4859 = vpop.f32.mrb[0].mxu0
        %4860 = vmatprep.mubr.bf16.mxu0 0
        %4861 = vmatmul.mubr.bf16.gmra.mrb[0].mxu0 %v4727
        %v4862 = vpop.f32.mrb[0].mxu0
        %v4863 = vadd.f32 0.0, %v4862
        %v4864 = vpop.f32.mrb[0].mxu0
        %v4865 = vpop.f32.mrb[0].mxu0
        %v4866 = vadd.f32 0.0, %v4865
        %v4867 = vpop.f32.mrb[0].mxu0
        %4868 = vmatprep.mubr.bf16.mxu0 0
        %4869 = vmatmul.mubr.bf16.gmra.mrb[0].mxu0 %v4730
        %v4870 = vpop.f32.mrb[0].mxu0
        %v4871 = vadd.f32 0.0, %v4870
        %v4872 = vpop.f32.mrb[0].mxu0
        %v4873 = vpop.f32.mrb[0].mxu0
        %v4874 = vadd.f32 0.0, %v4873
        %v4875 = vpop.f32.mrb[0].mxu0
        %4876 = vmatprep.mubr.bf16.mxu0 0
        %4877 = vmatmul.mubr.bf16.gmra.mrb[0].mxu0 %v4733
        %v4878 = vpop.f32.mrb[0].mxu0
        %v4879 = vadd.f32 0.0, %v4878
        %v4880 = vpop.f32.mrb[0].mxu0
        %v4881 = vpop.f32.mrb[0].mxu0
        %v4882 = vadd.f32 0.0, %v4881
        %v4883 = vpop.f32.mrb[0].mxu0
        %4884 = vmatprep.mubr.bf16.mxu0 0
        %4885 = vmatmul.mubr.bf16.gmra.mrb[0].mxu0 %v4736
        %v4886 = vpop.f32.mrb[0].mxu0
        %v4887 = vadd.f32 0.0, %v4886
        %v4888 = vpop.f32.mrb[0].mxu0
        %v4889 = vpop.f32.mrb[0].mxu0
        %v4890 = vadd.f32 0.0, %v4889
        %v4891 = vpop.f32.mrb[0].mxu0
        %4892 = vmatprep.mubr.bf16.mxu0 0
        %4893 = vmatmul.mubr.bf16.gmra.mrb[0].mxu0 %v4739
        %v4894 = vpop.f32.mrb[0].mxu0
        %v4895 = vadd.f32 0.0, %v4894
        %v4896 = vpop.f32.mrb[0].mxu0
        %v4897 = vpop.f32.mrb[0].mxu0
        %v4898 = vadd.f32 0.0, %v4897
        %v4899 = vpop.f32.mrb[0].mxu0
        %4900 = vmatprep.mubr.bf16.mxu0 0
        %4901 = vmatmul.mubr.bf16.gmra.mrb[0].mxu0 %v4742
        %v4902 = vpop.f32.mrb[0].mxu0
        %v4903 = vadd.f32 0.0, %v4902
        %v4904 = vpop.f32.mrb[0].mxu0
        %v4905 = vpop.f32.mrb[0].mxu0
        %v4906 = vadd.f32 0.0, %v4905
        %v4907 = vpop.f32.mrb[0].mxu0
        %4908 = vmatprep.mubr.bf16.mxu0 0
        %4909 = vmatmul.mubr.bf16.gmra.mrb[0].mxu0 %v4745
        %v4910 = vpop.f32.mrb[0].mxu0
        %v4911 = vadd.f32 0.0, %v4910
        %v4912 = vpop.f32.mrb[0].mxu0
        %v4913 = vpop.f32.mrb[0].mxu0
        %v4914 = vadd.f32 0.0, %v4913
        %v4915 = vpop.f32.mrb[0].mxu0
        %4916 = vmatprep.mubr.bf16.mxu0 0
        %4917 = vmatmul.mubr.bf16.gmra.mrb[0].mxu0 %v4748
        %v4918 = vpop.f32.mrb[0].mxu0
        %v4919 = vadd.f32 0.0, %v4918
        %v4920 = vpop.f32.mrb[0].mxu0
        %v4921 = vpop.f32.mrb[0].mxu0
        %v4922 = vadd.f32 0.0, %v4921
        %v4923 = vpop.f32.mrb[0].mxu0
        %4924 = vmatprep.mubr.bf16.mxu0 0
        %4925 = vmatmul.mubr.bf16.gmra.mrb[0].mxu0 %v4751
        %v4926 = vpop.f32.mrb[0].mxu0
        %v4927 = vadd.f32 0.0, %v4926
        %v4928 = vpop.f32.mrb[0].mxu0
        %v4929 = vpop.f32.mrb[0].mxu0
        %v4930 = vadd.f32 0.0, %v4929
        %v4931 = vpop.f32.mrb[0].mxu0
        %4932 = vmatprep.mubr.bf16.mxu0 0
        %4933 = vmatmul.mubr.bf16.gmra.mrb[0].mxu0 %v4754
        %v4934 = vpop.f32.mrb[0].mxu0
        %v4935 = vadd.f32 0.0, %v4934
        %v4936 = vpop.f32.mrb[0].mxu0
        %v4937 = vpop.f32.mrb[0].mxu0
        %v4938 = vadd.f32 0.0, %v4937
        %v4939 = vpop.f32.mrb[0].mxu0
        %4940 = vmatprep.mubr.bf16.mxu0 0
        %4941 = vmatmul.mubr.bf16.gmra.mrb[0].mxu0 %v4757
        %v4942 = vpop.f32.mrb[0].mxu0
        %v4943 = vadd.f32 0.0, %v4942
        %v4944 = vpop.f32.mrb[0].mxu0
        %v4945 = vpop.f32.mrb[0].mxu0
        %v4946 = vadd.f32 0.0, %v4945
        %v4947 = vpop.f32.mrb[0].mxu0
        %4948 = vmatprep.mubr.bf16.mxu0 0
        %4949 = vmatmul.mubr.bf16.gmra.mrb[0].mxu0 %v4760
        %v4950 = vpop.f32.mrb[0].mxu0
        %v4951 = vadd.f32 0.0, %v4950
        %v4952 = vpop.f32.mrb[0].mxu0
        %v4953 = vpop.f32.mrb[0].mxu0
        %v4954 = vadd.f32 0.0, %v4953
        %v4955 = vpop.f32.mrb[0].mxu0
        %4956 = vmatprep.mubr.bf16.mxu0 0
        %4957 = vmatmul.mubr.bf16.gmra.mrb[0].mxu0 %v4763
        %v4958 = vpop.f32.mrb[0].mxu0
        %v4959 = vadd.f32 0.0, %v4958
        %v4960 = vpop.f32.mrb[0].mxu0
        %v4961 = vpop.f32.mrb[0].mxu0
        %v4962 = vadd.f32 0.0, %v4961
        %v4963 = vpop.f32.mrb[0].mxu0
        %4964 = vmatprep.mubr.bf16.mxu0 0
        %4965 = vmatmul.mubr.bf16.gmra.mrb[0].mxu0 %v4766
        %v4966 = vpop.f32.mrb[0].mxu0
        %v4967 = vadd.f32 0.0, %v4966
        %v4968 = vpop.f32.mrb[0].mxu0
        %v4969 = vpop.f32.mrb[0].mxu0
        %v4970 = vadd.f32 0.0, %v4969
        %v4971 = vpop.f32.mrb[0].mxu0
        %4972 = vmatprep.mubr.bf16.mxu0 0
        %4973 = vmatmul.mubr.bf16.gmra.mrb[0].mxu0 %v4769
        %v4974 = vpop.f32.mrb[0].mxu0
        %v4975 = vadd.f32 0.0, %v4974
        %v4976 = vpop.f32.mrb[0].mxu0
        %v4977 = vpop.f32.mrb[0].mxu0
        %v4978 = vadd.f32 0.0, %v4977
        %v4979 = vpop.f32.mrb[0].mxu0
        %4980 = vmatprep.mubr.bf16.mxu0 0
        %4981 = vmatmul.mubr.bf16.gmra.mrb[0].mxu0 %v4772
        %v4982 = vpop.f32.mrb[0].mxu0
        %v4983 = vadd.f32 0.0, %v4982
        %v4984 = vpop.f32.mrb[0].mxu0
        %v4985 = vpop.f32.mrb[0].mxu0
        %v4986 = vadd.f32 0.0, %v4985
        %v4987 = vpop.f32.mrb[0].mxu0
        %4988 = vmatprep.mubr.bf16.mxu0 0
        %4989 = vmatmul.mubr.bf16.gmra.mrb[0].mxu0 %v4775
        %v4990 = vpop.f32.mrb[0].mxu0
        %v4991 = vadd.f32 0.0, %v4990
        %v4992 = vpop.f32.mrb[0].mxu0
        %v4993 = vpop.f32.mrb[0].mxu0
        %v4994 = vadd.f32 0.0, %v4993
        %v4995 = vpop.f32.mrb[0].mxu0
        %4996 = vmatprep.mubr.bf16.mxu0 0
        %4997 = vmatmul.mubr.bf16.gmra.mrb[0].mxu0 %v4778
        %v4998 = vpop.f32.mrb[0].mxu0
        %v4999 = vadd.f32 0.0, %v4998
        %v5000 = vpop.f32.mrb[0].mxu0
        %v5001 = vpop.f32.mrb[0].mxu0
        %v5002 = vadd.f32 0.0, %v5001
        %v5003 = vpop.f32.mrb[0].mxu0
        %5004 = vmatprep.mubr.bf16.mxu0 0
        %5005 = vmatmul.mubr.bf16.gmra.mrb[0].mxu0 %v4781
        %v5006 = vpop.f32.mrb[0].mxu0
        %v5007 = vadd.f32 0.0, %v5006
        %v5008 = vpop.f32.mrb[0].mxu0
        %v5009 = vpop.f32.mrb[0].mxu0
        %v5010 = vadd.f32 0.0, %v5009
        %v5011 = vpop.f32.mrb[0].mxu0
        %5012 = vmatprep.mubr.bf16.mxu0 0
        %5013 = vmatmul.mubr.bf16.gmra.mrb[0].mxu0 %v4784
        %v5014 = vpop.f32.mrb[0].mxu0
        %v5015 = vadd.f32 0.0, %v5014
        %v5016 = vpop.f32.mrb[0].mxu0
        %v5017 = vpop.f32.mrb[0].mxu0
        %v5018 = vadd.f32 0.0, %v5017
        %v5019 = vpop.f32.mrb[0].mxu0
        %5020 = vmatprep.mubr.bf16.mxu0 0
        %5021 = vmatmul.mubr.bf16.gmra.mrb[0].mxu0 %v4787
        %v5022 = vpop.f32.mrb[0].mxu0
        %v5023 = vadd.f32 0.0, %v5022
        %v5024 = vpop.f32.mrb[0].mxu0
        %v5025 = vpop.f32.mrb[0].mxu0
        %v5026 = vadd.f32 0.0, %v5025
        %v5027 = vpop.f32.mrb[0].mxu0
        %5028 = vmatprep.mubr.bf16.mxu0 0
        %5029 = vmatmul.mubr.bf16.gmra.mrb[0].mxu0 %v4790
        %v5030 = vpop.f32.mrb[0].mxu0
        %v5031 = vadd.f32 0.0, %v5030
        %v5032 = vpop.f32.mrb[0].mxu0
        %v5033 = vpop.f32.mrb[0].mxu0
        %v5034 = vadd.f32 0.0, %v5033
        %v5035 = vpop.f32.mrb[0].mxu0
        %5036 = vmatprep.mubr.bf16.mxu0 0
        %5037 = vmatmul.mubr.bf16.gmra.mrb[0].mxu0 %v4793
        %v5038 = vpop.f32.mrb[0].mxu0
        %v5039 = vadd.f32 0.0, %v5038
        %v5040 = vpop.f32.mrb[0].mxu0
        %v5041 = vpop.f32.mrb[0].mxu0
        %v5042 = vadd.f32 0.0, %v5041
        %v5043 = vpop.f32.mrb[0].mxu0
        %5044 = vmatprep.mubr.bf16.mxu0 0
        %5045 = vmatmul.mubr.bf16.gmra.mrb[0].mxu0 %v4796
        %v5046 = vpop.f32.mrb[0].mxu0
        %v5047 = vadd.f32 0.0, %v5046
        %v5048 = vpop.f32.mrb[0].mxu0
        %v5049 = vpop.f32.mrb[0].mxu0
        %v5050 = vadd.f32 0.0, %v5049
        %v5051 = vpop.f32.mrb[0].mxu0
        %5052 = vmatprep.mubr.bf16.mxu0 0
        %5053 = vmatmul.mubr.bf16.gmra.mrb[0].mxu0 %v4799
        %v5054 = vpop.f32.mrb[0].mxu0
        %v5055 = vadd.f32 0.0, %v5054
        %v5056 = vpop.f32.mrb[0].mxu0
        %v5057 = vpop.f32.mrb[0].mxu0
        %v5058 = vpop.f32.mrb[0].mxu0
        %5059 = vdwg.mxu0
        %v5060 = vadd.f32 %v4467, %v4839
        %v5061 = vadd.f32 %v4468, %v4842
        %v5062 = vadd.f32 %v4469, %v4847
        %v5063 = vadd.f32 %v4470, %v4850
        %v5064 = vadd.f32 %v4471, %v4855
        %v5065 = vadd.f32 %v4472, %v4858
        %v5066 = vadd.f32 %v4473, %v4863
        %v5067 = vadd.f32 %v4474, %v4866
        %v5068 = vadd.f32 %v4475, %v4871
        %v5069 = vadd.f32 %v4476, %v4874
        %v5070 = vadd.f32 %v4477, %v4879
        %v5071 = vadd.f32 %v4478, %v4882
        %v5072 = vadd.f32 %v4479, %v4887
        %v5073 = vadd.f32 %v4480, %v4890
        %v5074 = vadd.f32 %v4481, %v4895
        %v5075 = vadd.f32 %v4482, %v4898
        %v5076 = vadd.f32 %v4483, %v4903
        %v5077 = vadd.f32 %v4484, %v4906
        %v5078 = vadd.f32 %v4485, %v4911
        %v5079 = vadd.f32 %v4486, %v4914
        %v5080 = vadd.f32 %v4487, %v4919
        %v5081 = vadd.f32 %v4488, %v4922
        %v5082 = vadd.f32 %v4489, %v4927
        %v5083 = vadd.f32 %v4490, %v4930
        %v5084 = vadd.f32 %v4491, %v4935
        %v5085 = vadd.f32 %v4492, %v4938
        %v5086 = vadd.f32 %v4493, %v4943
        %v5087 = vadd.f32 %v4494, %v4946
        %v5088 = vadd.f32 %v4495, %v4951
        %v5089 = vadd.f32 %v4496, %v4954
        %v5090 = vadd.f32 %v4497, %v4959
        %v5091 = vadd.f32 %v4498, %v4962
        %v5092 = vadd.f32 %v4499, %v4967
        %v5093 = vadd.f32 %v4500, %v4970
        %v5094 = vadd.f32 %v4501, %v4975
        %v5095 = vadd.f32 %v4502, %v4978
        %v5096 = vadd.f32 %v4503, %v4983
        %v5097 = vadd.f32 %v4504, %v4986
        %v5098 = vadd.f32 %v4505, %v4991
        %v5099 = vadd.f32 %v4506, %v4994
        %v5100 = vadd.f32 %v4507, %v4999
        %v5101 = vadd.f32 %v4508, %v5002
        %v5102 = vadd.f32 %v4509, %v5007
        %v5103 = vadd.f32 %v4510, %v5010
        %v5104 = vadd.f32 %v4511, %v5015
        %v5105 = vadd.f32 %v4512, %v5018
        %v5106 = vadd.f32 %v4513, %v5023
        %v5107 = vadd.f32 %v4514, %v5026
        %v5108 = vadd.f32 %v4515, %v5031
        %v5109 = vadd.f32 %v4516, %v5034
        %v5110 = vadd.f32 %v4517, %v5039
        %v5111 = vadd.f32 %v4518, %v5042
        %v5112 = vadd.f32 %v4519, %v5047
        %v5113 = vadd.f32 %v4520, %v5050
        %v5114 = vadd.f32 %v4521, %v5055
        %5115 = vst.msk [vmem:[#allocation2] sm:$0xff] %vm292, %v5060
        %5116 = vst.msk [vmem:[#allocation2 + $0x8] sm:$0xff] %vm292, %v5061
        %5117 = vst.msk [vmem:[#allocation2 + $0x10] sm:$0xff] %vm292, %v5062
        %5118 = vst.msk [vmem:[#allocation2 + $0x18] sm:$0xff] %vm292, %v5063
        %5119 = vst.msk [vmem:[#allocation2 + $0x20] sm:$0xff] %vm292, %v5064
        %5120 = vst.msk [vmem:[#allocation2 + $0x28] sm:$0xff] %vm292, %v5065
        %5121 = vst.msk [vmem:[#allocation2 + $0x30] sm:$0xff] %vm292, %v5066
        %5122 = vst.msk [vmem:[#allocation2 + $0x38] sm:$0xff] %vm292, %v5067
        %5123 = vst.msk [vmem:[#allocation2 + $0x40] sm:$0xff] %vm292, %v5068
        %5124 = vst.msk [vmem:[#allocation2 + $0x48] sm:$0xff] %vm292, %v5069
        %5125 = vst.msk [vmem:[#allocation2 + $0x50] sm:$0xff] %vm292, %v5070
        %5126 = vst.msk [vmem:[#allocation2 + $0x58] sm:$0xff] %vm292, %v5071
        %5127 = vst.msk [vmem:[#allocation2 + $0x60] sm:$0xff] %vm292, %v5072
        %5128 = vst.msk [vmem:[#allocation2 + $0x68] sm:$0xff] %vm292, %v5073
        %5129 = vst.msk [vmem:[#allocation2 + $0x70] sm:$0xff] %vm292, %v5074
        %5130 = vst.msk [vmem:[#allocation2 + $0x78] sm:$0xff] %vm292, %v5075
        %5131 = vst.msk [vmem:[#allocation2 + $0x80] sm:$0xff] %vm292, %v5076
        %5132 = vst.msk [vmem:[#allocation2 + $0x88] sm:$0xff] %vm292, %v5077
        %5133 = vst.msk [vmem:[#allocation2 + $0x90] sm:$0xff] %vm292, %v5078
        %5134 = vst.msk [vmem:[#allocation2 + $0x98] sm:$0xff] %vm292, %v5079
        %5135 = vst.msk [vmem:[#allocation2 + $0xa0] sm:$0xff] %vm292, %v5080
        %5136 = vst.msk [vmem:[#allocation2 + $0xa8] sm:$0xff] %vm292, %v5081
        %5137 = vst.msk [vmem:[#allocation2 + $0xb0] sm:$0xff] %vm292, %v5082
        %5138 = vst.msk [vmem:[#allocation2 + $0xb8] sm:$0xff] %vm292, %v5083
        %5139 = vst.msk [vmem:[#allocation2 + $0xc0] sm:$0xff] %vm292, %v5084
        %5140 = vst.msk [vmem:[#allocation2 + $0xc8] sm:$0xff] %vm292, %v5085
        %5141 = vst.msk [vmem:[#allocation2 + $0xd0] sm:$0xff] %vm292, %v5086
        %5142 = vst.msk [vmem:[#allocation2 + $0xd8] sm:$0xff] %vm292, %v5087
        %5143 = vst.msk [vmem:[#allocation2 + $0xe0] sm:$0xff] %vm292, %v5088
        %5144 = vst.msk [vmem:[#allocation2 + $0xe8] sm:$0xff] %vm292, %v5089
        %5145 = vst.msk [vmem:[#allocation2 + $0xf0] sm:$0xff] %vm292, %v5090
        %5146 = vst.msk [vmem:[#allocation2 + $0xf8] sm:$0xff] %vm292, %v5091
        %5147 = vst.msk [vmem:[#allocation2 + $0x100] sm:$0xff] %vm292, %v5092
        %5148 = vst.msk [vmem:[#allocation2 + $0x108] sm:$0xff] %vm292, %v5093
        %5149 = vst.msk [vmem:[#allocation2 + $0x110] sm:$0xff] %vm292, %v5094
        %5150 = vst.msk [vmem:[#allocation2 + $0x118] sm:$0xff] %vm292, %v5095
        %5151 = vst.msk [vmem:[#allocation2 + $0x120] sm:$0xff] %vm292, %v5096
        %5152 = vst.msk [vmem:[#allocation2 + $0x128] sm:$0xff] %vm292, %v5097
        %5153 = vst.msk [vmem:[#allocation2 + $0x130] sm:$0xff] %vm292, %v5098
        %5154 = vst.msk [vmem:[#allocation2 + $0x138] sm:$0xff] %vm292, %v5099
        %5155 = vst.msk [vmem:[#allocation2 + $0x140] sm:$0xff] %vm292, %v5100
        %5156 = vst.msk [vmem:[#allocation2 + $0x148] sm:$0xff] %vm292, %v5101
        %5157 = vst.msk [vmem:[#allocation2 + $0x150] sm:$0xff] %vm292, %v5102
        %5158 = vst.msk [vmem:[#allocation2 + $0x158] sm:$0xff] %vm292, %v5103
        %5159 = vst.msk [vmem:[#allocation2 + $0x160] sm:$0xff] %vm292, %v5104
        %5160 = vst.msk [vmem:[#allocation2 + $0x168] sm:$0xff] %vm292, %v5105
        %5161 = vst.msk [vmem:[#allocation2 + $0x170] sm:$0xff] %vm292, %v5106
        %5162 = vst.msk [vmem:[#allocation2 + $0x178] sm:$0xff] %vm292, %v5107
        %5163 = vst.msk [vmem:[#allocation2 + $0x180] sm:$0xff] %vm292, %v5108
        %5164 = vst.msk [vmem:[#allocation2 + $0x188] sm:$0xff] %vm292, %v5109
        %5165 = vst.msk [vmem:[#allocation2 + $0x190] sm:$0xff] %vm292, %v5110
        %5166 = vst.msk [vmem:[#allocation2 + $0x198] sm:$0xff] %vm292, %v5111
        %5167 = vst.msk [vmem:[#allocation2 + $0x1a0] sm:$0xff] %vm292, %v5112
        %5168 = vst.msk [vmem:[#allocation2 + $0x1a8] sm:$0xff] %vm292, %v5113
        %5169 = vst.msk [vmem:[#allocation2 + $0x1b0] sm:$0xff] %vm292, %v5114
        %v5170 = vld [vmem:[#allocation2] sm:$0xff]
        %v5171 = vld [vmem:[#allocation2 + $0x8] sm:$0xff]
        %v5172 = vld [vmem:[#allocation2 + $0x10] sm:$0xff]
        %v5173 = vld [vmem:[#allocation2 + $0x18] sm:$0xff]
        %v5174 = vld [vmem:[#allocation2 + $0x20] sm:$0xff]
        %v5175 = vld [vmem:[#allocation2 + $0x28] sm:$0xff]
        %v5176 = vld [vmem:[#allocation2 + $0x30] sm:$0xff]
        %v5177 = vld [vmem:[#allocation2 + $0x38] sm:$0xff]
        %v5178 = vld [vmem:[#allocation2 + $0x40] sm:$0xff]
        %v5179 = vld [vmem:[#allocation2 + $0x48] sm:$0xff]
        %v5180 = vld [vmem:[#allocation2 + $0x50] sm:$0xff]
        %v5181 = vld [vmem:[#allocation2 + $0x58] sm:$0xff]
        %v5182 = vld [vmem:[#allocation2 + $0x60] sm:$0xff]
        %v5183 = vld [vmem:[#allocation2 + $0x68] sm:$0xff]
        %v5184 = vld [vmem:[#allocation2 + $0x70] sm:$0xff]
        %v5185 = vld [vmem:[#allocation2 + $0x78] sm:$0xff]
        %v5186 = vld [vmem:[#allocation2 + $0x80] sm:$0xff]
        %v5187 = vld [vmem:[#allocation2 + $0x88] sm:$0xff]
        %v5188 = vld [vmem:[#allocation2 + $0x90] sm:$0xff]
        %v5189 = vld [vmem:[#allocation2 + $0x98] sm:$0xff]
        %v5190 = vld [vmem:[#allocation2 + $0xa0] sm:$0xff]
        %v5191 = vld [vmem:[#allocation2 + $0xa8] sm:$0xff]
        %v5192 = vld [vmem:[#allocation2 + $0xb0] sm:$0xff]
        %v5193 = vld [vmem:[#allocation2 + $0xb8] sm:$0xff]
        %v5194 = vld [vmem:[#allocation2 + $0xc0] sm:$0xff]
        %v5195 = vld [vmem:[#allocation2 + $0xc8] sm:$0xff]
        %v5196 = vld [vmem:[#allocation2 + $0xd0] sm:$0xff]
        %v5197 = vld [vmem:[#allocation2 + $0xd8] sm:$0xff]
        %v5198 = vld [vmem:[#allocation2 + $0xe0] sm:$0xff]
        %v5199 = vld [vmem:[#allocation2 + $0xe8] sm:$0xff]
        %v5200 = vld [vmem:[#allocation2 + $0xf0] sm:$0xff]
        %v5201 = vld [vmem:[#allocation2 + $0xf8] sm:$0xff]
        %v5202 = vld [vmem:[#allocation2 + $0x100] sm:$0xff]
        %v5203 = vld [vmem:[#allocation2 + $0x108] sm:$0xff]
        %v5204 = vld [vmem:[#allocation2 + $0x110] sm:$0xff]
        %v5205 = vld [vmem:[#allocation2 + $0x118] sm:$0xff]
        %v5206 = vld [vmem:[#allocation2 + $0x120] sm:$0xff]
        %v5207 = vld [vmem:[#allocation2 + $0x128] sm:$0xff]
        %v5208 = vld [vmem:[#allocation2 + $0x130] sm:$0xff]
        %v5209 = vld [vmem:[#allocation2 + $0x138] sm:$0xff]
        %v5210 = vld [vmem:[#allocation2 + $0x140] sm:$0xff]
        %v5211 = vld [vmem:[#allocation2 + $0x148] sm:$0xff]
        %v5212 = vld [vmem:[#allocation2 + $0x150] sm:$0xff]
        %v5213 = vld [vmem:[#allocation2 + $0x158] sm:$0xff]
        %v5214 = vld [vmem:[#allocation2 + $0x160] sm:$0xff]
        %v5215 = vld [vmem:[#allocation2 + $0x168] sm:$0xff]
        %v5216 = vld [vmem:[#allocation2 + $0x170] sm:$0xff]
        %v5217 = vld [vmem:[#allocation2 + $0x178] sm:$0xff]
        %v5218 = vld [vmem:[#allocation2 + $0x180] sm:$0xff]
        %v5219 = vld [vmem:[#allocation2 + $0x188] sm:$0xff]
        %v5220 = vld [vmem:[#allocation2 + $0x190] sm:$0xff]
        %v5221 = vld [vmem:[#allocation2 + $0x198] sm:$0xff]
        %v5222 = vld [vmem:[#allocation2 + $0x1a0] sm:$0xff]
        %v5223 = vld [vmem:[#allocation2 + $0x1a8] sm:$0xff]
        %v5224 = vld [vmem:[#allocation2 + $0x1b0] sm:$0xff]
        %v5225 = vld [vmem:[%s254 + $0x14] sm:$0xc]
        %v5226 = vld [vmem:[%s254 + $0x18] sm:$0xf]
        %v5227 = vld [vmem:[%s254 + $0x1c] sm:$0xf]
        %v5228 = vld [vmem:[%s254 + $0x20] sm:$0xf]
        %v5229 = vld [vmem:[%s254 + $0x24] sm:$0xf]
        %v5230 = vld [vmem:[%s254 + $0x28] sm:$0xf]
        %v5231 = vld [vmem:[%s254 + $0x2c] sm:$0xf]
        %v5232 = vld [vmem:[%s254 + $0x30] sm:$0xf]
        %v5233 = vld [vmem:[%s254 + $0x34] sm:$0xf]
        %v5234 = vld [vmem:[%s254 + $0x38] sm:$0xf]
        %v5235 = vld [vmem:[%s254 + $0x3c] sm:$0xf]
        %v5236 = vld [vmem:[%s254 + $0x40] sm:$0xf]
        %v5237 = vld [vmem:[%s254 + $0x44] sm:$0xf]
        %v5238 = vld [vmem:[%s254 + $0x48] sm:$0xf]
        %v5239 = vld [vmem:[%s254 + $0x4c] sm:$0xf]
        %v5240 = vld [vmem:[%s254 + $0x50] sm:$0xf]
        %v5241 = vld [vmem:[%s254 + $0x54] sm:$0xf]
        %v5242 = vld [vmem:[%s254 + $0x58] sm:$0xf]
        %v5243 = vld [vmem:[%s254 + $0x5c] sm:$0xf]
        %v5244 = vld [vmem:[%s254 + $0x60] sm:$0xf]
        %v5245 = vld [vmem:[%s254 + $0x64] sm:$0xf]
        %v5246 = vld [vmem:[%s254 + $0x68] sm:$0xf]
        %v5247 = vld [vmem:[%s254 + $0x6c] sm:$0xf]
        %v5248 = vld [vmem:[%s254 + $0x70] sm:$0xf]
        %v5249 = vld [vmem:[%s254 + $0x74] sm:$0xf]
        %v5250 = vld [vmem:[%s254 + $0x78] sm:$0xf]
        %v5251 = vld [vmem:[%s254 + $0x7c] sm:$0xf]
        %v5252 = vld [vmem:[%s254 + $0x80] sm:$0xf]
        %v5253 = vld [vmem:[%s254 + $0x84] sm:$0xf]
        %v5254 = vld [vmem:[%s254 + $0x88] sm:$0xf]
        %v5255 = vld [vmem:[%s254 + $0x8c] sm:$0xf]
        %v5256 = vld [vmem:[%s254 + $0x90] sm:$0xf]
        %v5257 = vld [vmem:[%s254 + $0x94] sm:$0xf]
        %v5258 = vld [vmem:[%s254 + $0x98] sm:$0xf]
        %v5259 = vld [vmem:[%s254 + $0x9c] sm:$0xf]
        %v5260 = vld [vmem:[%s254 + $0xa0] sm:$0xf]
        %v5261 = vld [vmem:[%s254 + $0xa4] sm:$0xf]
        %v5262 = vld [vmem:[%s254 + $0xa8] sm:$0xf]
        %v5263 = vld [vmem:[%s254 + $0xac] sm:$0xf]
        %v5264 = vld [vmem:[%s254 + $0xb0] sm:$0xf]
        %v5265 = vld [vmem:[%s254 + $0xb4] sm:$0xf]
        %v5266 = vld [vmem:[%s254 + $0xb8] sm:$0xf]
        %v5267 = vld [vmem:[%s254 + $0xbc] sm:$0xf]
        %v5268 = vld [vmem:[%s254 + $0xc0] sm:$0xf]
        %v5269 = vld [vmem:[%s254 + $0xc4] sm:$0xf]
        %v5270 = vld [vmem:[%s254 + $0xc8] sm:$0xf]
        %v5271 = vld [vmem:[%s254 + $0xcc] sm:$0xf]
        %v5272 = vld [vmem:[%s254 + $0xd0] sm:$0xf]
        %v5273 = vld [vmem:[%s254 + $0xd4] sm:$0xf]
        %v5274 = vld [vmem:[%s254 + $0xd8] sm:$0xf]
        %v5275 = vld [vmem:[%s254 + $0xdc] sm:$0xf]
        %v5276 = vld [vmem:[%s254 + $0xe0] sm:$0xf]
        %v5277 = vld [vmem:[%s254 + $0xe4] sm:$0xf]
        %v5278 = vld [vmem:[%s254 + $0xe8] sm:$0xf]
        %v5279 = vld [vmem:[%s254 + $0xec] sm:$0xf]
        %v5280 = vld [vmem:[%s254 + $0xf0] sm:$0x3]
        %s5281 = scalar_lea.vmem [#allocation6], 12
        %v5282 = vld [vmem:[%s5281] sm:$0x3]
        %v5339 = vunpack.c.l.b16 %v5225
        %v5340 = vunpack.c.l.b16 %v5226
        %v5341 = vunpack.c.l.b16 %v5227
        %v5342 = vunpack.c.l.b16 %v5228
        %v5343 = vunpack.c.l.b16 %v5229
        %v5344 = vunpack.c.l.b16 %v5230
        %v5345 = vunpack.c.l.b16 %v5231
        %v5346 = vunpack.c.l.b16 %v5232
        %v5347 = vunpack.c.l.b16 %v5233
        %v5348 = vunpack.c.l.b16 %v5234
        %v5349 = vunpack.c.l.b16 %v5235
        %v5350 = vunpack.c.l.b16 %v5236
        %v5351 = vunpack.c.l.b16 %v5237
        %v5352 = vunpack.c.l.b16 %v5238
        %v5353 = vunpack.c.l.b16 %v5239
        %v5354 = vunpack.c.l.b16 %v5240
        %v5355 = vunpack.c.l.b16 %v5241
        %v5356 = vunpack.c.l.b16 %v5242
        %v5357 = vunpack.c.l.b16 %v5243
        %v5358 = vunpack.c.l.b16 %v5244
        %v5359 = vunpack.c.l.b16 %v5245
        %v5360 = vunpack.c.l.b16 %v5246
        %v5361 = vunpack.c.l.b16 %v5247
        %v5362 = vunpack.c.l.b16 %v5248
        %v5363 = vunpack.c.l.b16 %v5249
        %v5364 = vunpack.c.l.b16 %v5250
        %v5365 = vunpack.c.l.b16 %v5251
        %v5366 = vunpack.c.l.b16 %v5252
        %v5367 = vunpack.c.l.b16 %v5253
        %v5368 = vunpack.c.l.b16 %v5254
        %v5369 = vunpack.c.l.b16 %v5255
        %v5370 = vunpack.c.l.b16 %v5256
        %v5371 = vunpack.c.l.b16 %v5257
        %v5372 = vunpack.c.l.b16 %v5258
        %v5373 = vunpack.c.l.b16 %v5259
        %v5374 = vunpack.c.l.b16 %v5260
        %v5375 = vunpack.c.l.b16 %v5261
        %v5376 = vunpack.c.l.b16 %v5262
        %v5377 = vunpack.c.l.b16 %v5263
        %v5378 = vunpack.c.l.b16 %v5264
        %v5379 = vunpack.c.l.b16 %v5265
        %v5380 = vunpack.c.l.b16 %v5266
        %v5381 = vunpack.c.l.b16 %v5267
        %v5382 = vunpack.c.l.b16 %v5268
        %v5383 = vunpack.c.l.b16 %v5269
        %v5384 = vunpack.c.l.b16 %v5270
        %v5385 = vunpack.c.l.b16 %v5271
        %v5386 = vunpack.c.l.b16 %v5272
        %v5387 = vunpack.c.l.b16 %v5273
        %v5388 = vunpack.c.l.b16 %v5274
        %v5389 = vunpack.c.l.b16 %v5275
        %v5390 = vunpack.c.l.b16 %v5276
        %v5391 = vunpack.c.l.b16 %v5277
        %v5392 = vunpack.c.l.b16 %v5278
        %v5393 = vunpack.c.l.b16 %v5279
        %v5394 = vunpack.c.l.b16 %v5280
        %v5395 = vpack.c.b16 %v5340, %v5339
        %v5396 = vpack.c.b16 %v5342, %v5341
        %v5397 = vpack.c.b16 %v5344, %v5343
        %v5398 = vpack.c.b16 %v5346, %v5345
        %v5399 = vpack.c.b16 %v5348, %v5347
        %v5400 = vpack.c.b16 %v5350, %v5349
        %v5401 = vpack.c.b16 %v5352, %v5351
        %v5402 = vpack.c.b16 %v5354, %v5353
        %v5403 = vpack.c.b16 %v5356, %v5355
        %v5404 = vpack.c.b16 %v5358, %v5357
        %v5405 = vpack.c.b16 %v5360, %v5359
        %v5406 = vpack.c.b16 %v5362, %v5361
        %v5407 = vpack.c.b16 %v5364, %v5363
        %v5408 = vpack.c.b16 %v5366, %v5365
        %v5409 = vpack.c.b16 %v5368, %v5367
        %v5410 = vpack.c.b16 %v5370, %v5369
        %v5411 = vpack.c.b16 %v5372, %v5371
        %v5412 = vpack.c.b16 %v5374, %v5373
        %v5413 = vpack.c.b16 %v5376, %v5375
        %v5414 = vpack.c.b16 %v5378, %v5377
        %v5415 = vpack.c.b16 %v5380, %v5379
        %v5416 = vpack.c.b16 %v5382, %v5381
        %v5417 = vpack.c.b16 %v5384, %v5383
        %v5418 = vpack.c.b16 %v5386, %v5385
        %v5419 = vpack.c.b16 %v5388, %v5387
        %v5420 = vpack.c.b16 %v5390, %v5389
        %v5421 = vpack.c.b16 %v5392, %v5391
        %v5422 = vpack.c.b16 %v5394, %v5393
        %vm5423 = vcmask 1045504
        %v5424 = vrot.slane %v5395, 2
        %v5425 = vrot.slane %v5396, 2
        %v5426 = vsel %vm5423, %v5424, %v5425
        %v5427 = vrot.slane %v5397, 2
        %v5428 = vsel %vm5423, %v5425, %v5427
        %v5429 = vrot.slane %v5398, 2
        %v5430 = vsel %vm5423, %v5427, %v5429
        %v5431 = vrot.slane %v5399, 2
        %v5432 = vsel %vm5423, %v5429, %v5431
        %v5433 = vrot.slane %v5400, 2
        %v5434 = vsel %vm5423, %v5431, %v5433
        %v5435 = vrot.slane %v5401, 2
        %v5436 = vsel %vm5423, %v5433, %v5435
        %v5437 = vrot.slane %v5402, 2
        %v5438 = vsel %vm5423, %v5435, %v5437
        %v5439 = vrot.slane %v5403, 2
        %v5440 = vsel %vm5423, %v5437, %v5439
        %v5441 = vrot.slane %v5404, 2
        %v5442 = vsel %vm5423, %v5439, %v5441
        %v5443 = vrot.slane %v5405, 2
        %v5444 = vsel %vm5423, %v5441, %v5443
        %v5445 = vrot.slane %v5406, 2
        %v5446 = vsel %vm5423, %v5443, %v5445
        %v5447 = vrot.slane %v5407, 2
        %v5448 = vsel %vm5423, %v5445, %v5447
        %v5449 = vrot.slane %v5408, 2
        %v5450 = vsel %vm5423, %v5447, %v5449
        %v5451 = vrot.slane %v5409, 2
        %v5452 = vsel %vm5423, %v5449, %v5451
        %v5453 = vrot.slane %v5410, 2
        %v5454 = vsel %vm5423, %v5451, %v5453
        %v5455 = vrot.slane %v5411, 2
        %v5456 = vsel %vm5423, %v5453, %v5455
        %v5457 = vrot.slane %v5412, 2
        %v5458 = vsel %vm5423, %v5455, %v5457
        %v5459 = vrot.slane %v5413, 2
        %v5460 = vsel %vm5423, %v5457, %v5459
        %v5461 = vrot.slane %v5414, 2
        %v5462 = vsel %vm5423, %v5459, %v5461
        %v5463 = vrot.slane %v5415, 2
        %v5464 = vsel %vm5423, %v5461, %v5463
        %v5465 = vrot.slane %v5416, 2
        %v5466 = vsel %vm5423, %v5463, %v5465
        %v5467 = vrot.slane %v5417, 2
        %v5468 = vsel %vm5423, %v5465, %v5467
        %v5469 = vrot.slane %v5418, 2
        %v5470 = vsel %vm5423, %v5467, %v5469
        %v5471 = vrot.slane %v5419, 2
        %v5472 = vsel %vm5423, %v5469, %v5471
        %v5473 = vrot.slane %v5420, 2
        %v5474 = vsel %vm5423, %v5471, %v5473
        %v5475 = vrot.slane %v5421, 2
        %v5476 = vsel %vm5423, %v5473, %v5475
        %v5477 = vrot.slane %v5422, 2
        %v5478 = vsel %vm5423, %v5475, %v5477
        %v5480 = vsel %vm597, %v5426, 0
        %v5483 = vsel %vm597, %v5428, 0
        %v5486 = vsel %vm597, %v5430, 0
        %v5489 = vsel %vm597, %v5432, 0
        %v5492 = vsel %vm597, %v5434, 0
        %v5495 = vsel %vm597, %v5436, 0
        %v5498 = vsel %vm597, %v5438, 0
        %v5501 = vsel %vm597, %v5440, 0
        %v5504 = vsel %vm597, %v5442, 0
        %v5507 = vsel %vm597, %v5444, 0
        %v5510 = vsel %vm597, %v5446, 0
        %v5513 = vsel %vm597, %v5448, 0
        %v5516 = vsel %vm597, %v5450, 0
        %v5519 = vsel %vm597, %v5452, 0
        %v5522 = vsel %vm597, %v5454, 0
        %v5525 = vsel %vm597, %v5456, 0
        %v5528 = vsel %vm597, %v5458, 0
        %v5531 = vsel %vm597, %v5460, 0
        %v5534 = vsel %vm597, %v5462, 0
        %v5537 = vsel %vm597, %v5464, 0
        %v5540 = vsel %vm597, %v5466, 0
        %v5543 = vsel %vm597, %v5468, 0
        %v5546 = vsel %vm597, %v5470, 0
        %v5549 = vsel %vm597, %v5472, 0
        %v5552 = vsel %vm597, %v5474, 0
        %v5555 = vsel %vm597, %v5476, 0
        %v5558 = vsel %vm597, %v5478, 0
        %v5561 = vsel %vm597, %v5477, 0
        %v5564 = vand.u32 %v5282, %v685
        %5566 = vmatprep.subr.bf16.mxu0 0
        %5567 = vmatpush1.bf16.msra.mxu0 %v5564
        %5568 = vmatprep.subr.bf16.mxu0 0
        %5569 = vmatpush1.bf16.msra.mxu0 0
        %5570 = vmatprep.subr.bf16.mxu0 0
        %5571 = vmatpush1.bf16.msra.mxu0 0
        %5572 = vmatprep.subr.bf16.mxu0 0
        %5573 = vmatpush1.bf16.msra.mxu0 0
        %5574 = vmatprep.subr.bf16.mxu0 0
        %5575 = vmatpush1.bf16.msra.mxu0 0
        %5576 = vmatprep.subr.bf16.mxu0 0
        %5577 = vmatpush1.bf16.msra.mxu0 0
        %5578 = vmatprep.subr.bf16.mxu0 0
        %5579 = vmatpush1.bf16.msra.mxu0 0
        %5580 = vmatprep.subr.bf16.mxu0 0
        %5581 = vmatpush1.bf16.msra.mxu0 0
        %5582 = vmatprep.subr.bf16.mxu0 0
        %5583 = vmatpush1.bf16.msra.mxu0 0
        %5584 = vmatprep.subr.bf16.mxu0 0
        %5585 = vmatpush1.bf16.msra.mxu0 0
        %5586 = vmatprep.subr.bf16.mxu0 0
        %5587 = vmatpush1.bf16.msra.mxu0 0
        %5588 = vmatprep.subr.bf16.mxu0 0
        %5589 = vmatpush1.bf16.msra.mxu0 0
        %5590 = vmatprep.subr.bf16.mxu0 0
        %5591 = vmatpush1.bf16.msra.mxu0 0
        %5592 = vmatprep.subr.bf16.mxu0 0
        %5593 = vmatpush1.bf16.msra.mxu0 0
        %5594 = vmatprep.subr.bf16.mxu0 0
        %5595 = vmatpush1.bf16.msra.mxu0 0
        %5596 = vmatprep.subr.bf16.mxu0 0
        %5597 = vmatpush1.bf16.msra.mxu0 0
        %5598 = vmatprep.mubr.bf16.mxu0 0
        %5599 = vmatmul.mubr.bf16.gmra.mrb[0].mxu0 %v5480
        %v5600 = vpop.f32.mrb[0].mxu0
        %v5601 = vadd.f32 0.0, %v5600
        %v5602 = vpop.f32.mrb[0].mxu0
        %v5603 = vpop.f32.mrb[0].mxu0
        %v5604 = vadd.f32 0.0, %v5603
        %v5605 = vpop.f32.mrb[0].mxu0
        %5606 = vmatprep.mubr.bf16.mxu0 0
        %5607 = vmatmul.mubr.bf16.gmra.mrb[0].mxu0 %v5483
        %v5608 = vpop.f32.mrb[0].mxu0
        %v5609 = vadd.f32 0.0, %v5608
        %v5610 = vpop.f32.mrb[0].mxu0
        %v5611 = vpop.f32.mrb[0].mxu0
        %v5612 = vadd.f32 0.0, %v5611
        %v5613 = vpop.f32.mrb[0].mxu0
        %5614 = vmatprep.mubr.bf16.mxu0 0
        %5615 = vmatmul.mubr.bf16.gmra.mrb[0].mxu0 %v5486
        %v5616 = vpop.f32.mrb[0].mxu0
        %v5617 = vadd.f32 0.0, %v5616
        %v5618 = vpop.f32.mrb[0].mxu0
        %v5619 = vpop.f32.mrb[0].mxu0
        %v5620 = vadd.f32 0.0, %v5619
        %v5621 = vpop.f32.mrb[0].mxu0
        %5622 = vmatprep.mubr.bf16.mxu0 0
        %5623 = vmatmul.mubr.bf16.gmra.mrb[0].mxu0 %v5489
        %v5624 = vpop.f32.mrb[0].mxu0
        %v5625 = vadd.f32 0.0, %v5624
        %v5626 = vpop.f32.mrb[0].mxu0
        %v5627 = vpop.f32.mrb[0].mxu0
        %v5628 = vadd.f32 0.0, %v5627
        %v5629 = vpop.f32.mrb[0].mxu0
        %5630 = vmatprep.mubr.bf16.mxu0 0
        %5631 = vmatmul.mubr.bf16.gmra.mrb[0].mxu0 %v5492
        %v5632 = vpop.f32.mrb[0].mxu0
        %v5633 = vadd.f32 0.0, %v5632
        %v5634 = vpop.f32.mrb[0].mxu0
        %v5635 = vpop.f32.mrb[0].mxu0
        %v5636 = vadd.f32 0.0, %v5635
        %v5637 = vpop.f32.mrb[0].mxu0
        %5638 = vmatprep.mubr.bf16.mxu0 0
        %5639 = vmatmul.mubr.bf16.gmra.mrb[0].mxu0 %v5495
        %v5640 = vpop.f32.mrb[0].mxu0
        %v5641 = vadd.f32 0.0, %v5640
        %v5642 = vpop.f32.mrb[0].mxu0
        %v5643 = vpop.f32.mrb[0].mxu0
        %v5644 = vadd.f32 0.0, %v5643
        %v5645 = vpop.f32.mrb[0].mxu0
        %5646 = vmatprep.mubr.bf16.mxu0 0
        %5647 = vmatmul.mubr.bf16.gmra.mrb[0].mxu0 %v5498
        %v5648 = vpop.f32.mrb[0].mxu0
        %v5649 = vadd.f32 0.0, %v5648
        %v5650 = vpop.f32.mrb[0].mxu0
        %v5651 = vpop.f32.mrb[0].mxu0
        %v5652 = vadd.f32 0.0, %v5651
        %v5653 = vpop.f32.mrb[0].mxu0
        %5654 = vmatprep.mubr.bf16.mxu0 0
        %5655 = vmatmul.mubr.bf16.gmra.mrb[0].mxu0 %v5501
        %v5656 = vpop.f32.mrb[0].mxu0
        %v5657 = vadd.f32 0.0, %v5656
        %v5658 = vpop.f32.mrb[0].mxu0
        %v5659 = vpop.f32.mrb[0].mxu0
        %v5660 = vadd.f32 0.0, %v5659
        %v5661 = vpop.f32.mrb[0].mxu0
        %5662 = vmatprep.mubr.bf16.mxu0 0
        %5663 = vmatmul.mubr.bf16.gmra.mrb[0].mxu0 %v5504
        %v5664 = vpop.f32.mrb[0].mxu0
        %v5665 = vadd.f32 0.0, %v5664
        %v5666 = vpop.f32.mrb[0].mxu0
        %v5667 = vpop.f32.mrb[0].mxu0
        %v5668 = vadd.f32 0.0, %v5667
        %v5669 = vpop.f32.mrb[0].mxu0
        %5670 = vmatprep.mubr.bf16.mxu0 0
        %5671 = vmatmul.mubr.bf16.gmra.mrb[0].mxu0 %v5507
        %v5672 = vpop.f32.mrb[0].mxu0
        %v5673 = vadd.f32 0.0, %v5672
        %v5674 = vpop.f32.mrb[0].mxu0
        %v5675 = vpop.f32.mrb[0].mxu0
        %v5676 = vadd.f32 0.0, %v5675
        %v5677 = vpop.f32.mrb[0].mxu0
        %5678 = vmatprep.mubr.bf16.mxu0 0
        %5679 = vmatmul.mubr.bf16.gmra.mrb[0].mxu0 %v5510
        %v5680 = vpop.f32.mrb[0].mxu0
        %v5681 = vadd.f32 0.0, %v5680
        %v5682 = vpop.f32.mrb[0].mxu0
        %v5683 = vpop.f32.mrb[0].mxu0
        %v5684 = vadd.f32 0.0, %v5683
        %v5685 = vpop.f32.mrb[0].mxu0
        %5686 = vmatprep.mubr.bf16.mxu0 0
        %5687 = vmatmul.mubr.bf16.gmra.mrb[0].mxu0 %v5513
        %v5688 = vpop.f32.mrb[0].mxu0
        %v5689 = vadd.f32 0.0, %v5688
        %v5690 = vpop.f32.mrb[0].mxu0
        %v5691 = vpop.f32.mrb[0].mxu0
        %v5692 = vadd.f32 0.0, %v5691
        %v5693 = vpop.f32.mrb[0].mxu0
        %5694 = vmatprep.mubr.bf16.mxu0 0
        %5695 = vmatmul.mubr.bf16.gmra.mrb[0].mxu0 %v5516
        %v5696 = vpop.f32.mrb[0].mxu0
        %v5697 = vadd.f32 0.0, %v5696
        %v5698 = vpop.f32.mrb[0].mxu0
        %v5699 = vpop.f32.mrb[0].mxu0
        %v5700 = vadd.f32 0.0, %v5699
        %v5701 = vpop.f32.mrb[0].mxu0
        %5702 = vmatprep.mubr.bf16.mxu0 0
        %5703 = vmatmul.mubr.bf16.gmra.mrb[0].mxu0 %v5519
        %v5704 = vpop.f32.mrb[0].mxu0
        %v5705 = vadd.f32 0.0, %v5704
        %v5706 = vpop.f32.mrb[0].mxu0
        %v5707 = vpop.f32.mrb[0].mxu0
        %v5708 = vadd.f32 0.0, %v5707
        %v5709 = vpop.f32.mrb[0].mxu0
        %5710 = vmatprep.mubr.bf16.mxu0 0
        %5711 = vmatmul.mubr.bf16.gmra.mrb[0].mxu0 %v5522
        %v5712 = vpop.f32.mrb[0].mxu0
        %v5713 = vadd.f32 0.0, %v5712
        %v5714 = vpop.f32.mrb[0].mxu0
        %v5715 = vpop.f32.mrb[0].mxu0
        %v5716 = vadd.f32 0.0, %v5715
        %v5717 = vpop.f32.mrb[0].mxu0
        %5718 = vmatprep.mubr.bf16.mxu0 0
        %5719 = vmatmul.mubr.bf16.gmra.mrb[0].mxu0 %v5525
        %v5720 = vpop.f32.mrb[0].mxu0
        %v5721 = vadd.f32 0.0, %v5720
        %v5722 = vpop.f32.mrb[0].mxu0
        %v5723 = vpop.f32.mrb[0].mxu0
        %v5724 = vadd.f32 0.0, %v5723
        %v5725 = vpop.f32.mrb[0].mxu0
        %5726 = vmatprep.mubr.bf16.mxu0 0
        %5727 = vmatmul.mubr.bf16.gmra.mrb[0].mxu0 %v5528
        %v5728 = vpop.f32.mrb[0].mxu0
        %v5729 = vadd.f32 0.0, %v5728
        %v5730 = vpop.f32.mrb[0].mxu0
        %v5731 = vpop.f32.mrb[0].mxu0
        %v5732 = vadd.f32 0.0, %v5731
        %v5733 = vpop.f32.mrb[0].mxu0
        %5734 = vmatprep.mubr.bf16.mxu0 0
        %5735 = vmatmul.mubr.bf16.gmra.mrb[0].mxu0 %v5531
        %v5736 = vpop.f32.mrb[0].mxu0
        %v5737 = vadd.f32 0.0, %v5736
        %v5738 = vpop.f32.mrb[0].mxu0
        %v5739 = vpop.f32.mrb[0].mxu0
        %v5740 = vadd.f32 0.0, %v5739
        %v5741 = vpop.f32.mrb[0].mxu0
        %5742 = vmatprep.mubr.bf16.mxu0 0
        %5743 = vmatmul.mubr.bf16.gmra.mrb[0].mxu0 %v5534
        %v5744 = vpop.f32.mrb[0].mxu0
        %v5745 = vadd.f32 0.0, %v5744
        %v5746 = vpop.f32.mrb[0].mxu0
        %v5747 = vpop.f32.mrb[0].mxu0
        %v5748 = vadd.f32 0.0, %v5747
        %v5749 = vpop.f32.mrb[0].mxu0
        %5750 = vmatprep.mubr.bf16.mxu0 0
        %5751 = vmatmul.mubr.bf16.gmra.mrb[0].mxu0 %v5537
        %v5752 = vpop.f32.mrb[0].mxu0
        %v5753 = vadd.f32 0.0, %v5752
        %v5754 = vpop.f32.mrb[0].mxu0
        %v5755 = vpop.f32.mrb[0].mxu0
        %v5756 = vadd.f32 0.0, %v5755
        %v5757 = vpop.f32.mrb[0].mxu0
        %5758 = vmatprep.mubr.bf16.mxu0 0
        %5759 = vmatmul.mubr.bf16.gmra.mrb[0].mxu0 %v5540
        %v5760 = vpop.f32.mrb[0].mxu0
        %v5761 = vadd.f32 0.0, %v5760
        %v5762 = vpop.f32.mrb[0].mxu0
        %v5763 = vpop.f32.mrb[0].mxu0
        %v5764 = vadd.f32 0.0, %v5763
        %v5765 = vpop.f32.mrb[0].mxu0
        %5766 = vmatprep.mubr.bf16.mxu0 0
        %5767 = vmatmul.mubr.bf16.gmra.mrb[0].mxu0 %v5543
        %v5768 = vpop.f32.mrb[0].mxu0
        %v5769 = vadd.f32 0.0, %v5768
        %v5770 = vpop.f32.mrb[0].mxu0
        %v5771 = vpop.f32.mrb[0].mxu0
        %v5772 = vadd.f32 0.0, %v5771
        %v5773 = vpop.f32.mrb[0].mxu0
        %5774 = vmatprep.mubr.bf16.mxu0 0
        %5775 = vmatmul.mubr.bf16.gmra.mrb[0].mxu0 %v5546
        %v5776 = vpop.f32.mrb[0].mxu0
        %v5777 = vadd.f32 0.0, %v5776
        %v5778 = vpop.f32.mrb[0].mxu0
        %v5779 = vpop.f32.mrb[0].mxu0
        %v5780 = vadd.f32 0.0, %v5779
        %v5781 = vpop.f32.mrb[0].mxu0
        %5782 = vmatprep.mubr.bf16.mxu0 0
        %5783 = vmatmul.mubr.bf16.gmra.mrb[0].mxu0 %v5549
        %v5784 = vpop.f32.mrb[0].mxu0
        %v5785 = vadd.f32 0.0, %v5784
        %v5786 = vpop.f32.mrb[0].mxu0
        %v5787 = vpop.f32.mrb[0].mxu0
        %v5788 = vadd.f32 0.0, %v5787
        %v5789 = vpop.f32.mrb[0].mxu0
        %5790 = vmatprep.mubr.bf16.mxu0 0
        %5791 = vmatmul.mubr.bf16.gmra.mrb[0].mxu0 %v5552
        %v5792 = vpop.f32.mrb[0].mxu0
        %v5793 = vadd.f32 0.0, %v5792
        %v5794 = vpop.f32.mrb[0].mxu0
        %v5795 = vpop.f32.mrb[0].mxu0
        %v5796 = vadd.f32 0.0, %v5795
        %v5797 = vpop.f32.mrb[0].mxu0
        %5798 = vmatprep.mubr.bf16.mxu0 0
        %5799 = vmatmul.mubr.bf16.gmra.mrb[0].mxu0 %v5555
        %v5800 = vpop.f32.mrb[0].mxu0
        %v5801 = vadd.f32 0.0, %v5800
        %v5802 = vpop.f32.mrb[0].mxu0
        %v5803 = vpop.f32.mrb[0].mxu0
        %v5804 = vadd.f32 0.0, %v5803
        %v5805 = vpop.f32.mrb[0].mxu0
        %5806 = vmatprep.mubr.bf16.mxu0 0
        %5807 = vmatmul.mubr.bf16.gmra.mrb[0].mxu0 %v5558
        %v5808 = vpop.f32.mrb[0].mxu0
        %v5809 = vadd.f32 0.0, %v5808
        %v5810 = vpop.f32.mrb[0].mxu0
        %v5811 = vpop.f32.mrb[0].mxu0
        %v5812 = vadd.f32 0.0, %v5811
        %v5813 = vpop.f32.mrb[0].mxu0
        %5814 = vmatprep.mubr.bf16.mxu0 0
        %5815 = vmatmul.mubr.bf16.gmra.mrb[0].mxu0 %v5561
        %v5816 = vpop.f32.mrb[0].mxu0
        %v5817 = vadd.f32 0.0, %v5816
        %v5818 = vpop.f32.mrb[0].mxu0
        %v5819 = vpop.f32.mrb[0].mxu0
        %v5820 = vpop.f32.mrb[0].mxu0
        %5821 = vdwg.mxu0
        %v5822 = vadd.f32 %v5170, %v5601
        %v5823 = vadd.f32 %v5171, %v5604
        %v5824 = vadd.f32 %v5172, %v5609
        %v5825 = vadd.f32 %v5173, %v5612
        %v5826 = vadd.f32 %v5174, %v5617
        %v5827 = vadd.f32 %v5175, %v5620
        %v5828 = vadd.f32 %v5176, %v5625
        %v5829 = vadd.f32 %v5177, %v5628
        %v5830 = vadd.f32 %v5178, %v5633
        %v5831 = vadd.f32 %v5179, %v5636
        %v5832 = vadd.f32 %v5180, %v5641
        %v5833 = vadd.f32 %v5181, %v5644
        %v5834 = vadd.f32 %v5182, %v5649
        %v5835 = vadd.f32 %v5183, %v5652
        %v5836 = vadd.f32 %v5184, %v5657
        %v5837 = vadd.f32 %v5185, %v5660
        %v5838 = vadd.f32 %v5186, %v5665
        %v5839 = vadd.f32 %v5187, %v5668
        %v5840 = vadd.f32 %v5188, %v5673
        %v5841 = vadd.f32 %v5189, %v5676
        %v5842 = vadd.f32 %v5190, %v5681
        %v5843 = vadd.f32 %v5191, %v5684
        %v5844 = vadd.f32 %v5192, %v5689
        %v5845 = vadd.f32 %v5193, %v5692
        %v5846 = vadd.f32 %v5194, %v5697
        %v5847 = vadd.f32 %v5195, %v5700
        %v5848 = vadd.f32 %v5196, %v5705
        %v5849 = vadd.f32 %v5197, %v5708
        %v5850 = vadd.f32 %v5198, %v5713
        %v5851 = vadd.f32 %v5199, %v5716
        %v5852 = vadd.f32 %v5200, %v5721
        %v5853 = vadd.f32 %v5201, %v5724
        %v5854 = vadd.f32 %v5202, %v5729
        %v5855 = vadd.f32 %v5203, %v5732
        %v5856 = vadd.f32 %v5204, %v5737
        %v5857 = vadd.f32 %v5205, %v5740
        %v5858 = vadd.f32 %v5206, %v5745
        %v5859 = vadd.f32 %v5207, %v5748
        %v5860 = vadd.f32 %v5208, %v5753
        %v5861 = vadd.f32 %v5209, %v5756
        %v5862 = vadd.f32 %v5210, %v5761
        %v5863 = vadd.f32 %v5211, %v5764
        %v5864 = vadd.f32 %v5212, %v5769
        %v5865 = vadd.f32 %v5213, %v5772
        %v5866 = vadd.f32 %v5214, %v5777
        %v5867 = vadd.f32 %v5215, %v5780
        %v5868 = vadd.f32 %v5216, %v5785
        %v5869 = vadd.f32 %v5217, %v5788
        %v5870 = vadd.f32 %v5218, %v5793
        %v5871 = vadd.f32 %v5219, %v5796
        %v5872 = vadd.f32 %v5220, %v5801
        %v5873 = vadd.f32 %v5221, %v5804
        %v5874 = vadd.f32 %v5222, %v5809
        %v5875 = vadd.f32 %v5223, %v5812
        %v5876 = vadd.f32 %v5224, %v5817
        %5877 = vst.msk [vmem:[#allocation2] sm:$0xff] %vm292, %v5822
        %5878 = vst.msk [vmem:[#allocation2 + $0x8] sm:$0xff] %vm292, %v5823
        %5879 = vst.msk [vmem:[#allocation2 + $0x10] sm:$0xff] %vm292, %v5824
        %5880 = vst.msk [vmem:[#allocation2 + $0x18] sm:$0xff] %vm292, %v5825
        %5881 = vst.msk [vmem:[#allocation2 + $0x20] sm:$0xff] %vm292, %v5826
        %5882 = vst.msk [vmem:[#allocation2 + $0x28] sm:$0xff] %vm292, %v5827
        %5883 = vst.msk [vmem:[#allocation2 + $0x30] sm:$0xff] %vm292, %v5828
        %5884 = vst.msk [vmem:[#allocation2 + $0x38] sm:$0xff] %vm292, %v5829
        %5885 = vst.msk [vmem:[#allocation2 + $0x40] sm:$0xff] %vm292, %v5830
        %5886 = vst.msk [vmem:[#allocation2 + $0x48] sm:$0xff] %vm292, %v5831
        %5887 = vst.msk [vmem:[#allocation2 + $0x50] sm:$0xff] %vm292, %v5832
        %5888 = vst.msk [vmem:[#allocation2 + $0x58] sm:$0xff] %vm292, %v5833
        %5889 = vst.msk [vmem:[#allocation2 + $0x60] sm:$0xff] %vm292, %v5834
        %5890 = vst.msk [vmem:[#allocation2 + $0x68] sm:$0xff] %vm292, %v5835
        %5891 = vst.msk [vmem:[#allocation2 + $0x70] sm:$0xff] %vm292, %v5836
        %5892 = vst.msk [vmem:[#allocation2 + $0x78] sm:$0xff] %vm292, %v5837
        %5893 = vst.msk [vmem:[#allocation2 + $0x80] sm:$0xff] %vm292, %v5838
        %5894 = vst.msk [vmem:[#allocation2 + $0x88] sm:$0xff] %vm292, %v5839
        %5895 = vst.msk [vmem:[#allocation2 + $0x90] sm:$0xff] %vm292, %v5840
        %5896 = vst.msk [vmem:[#allocation2 + $0x98] sm:$0xff] %vm292, %v5841
        %5897 = vst.msk [vmem:[#allocation2 + $0xa0] sm:$0xff] %vm292, %v5842
        %5898 = vst.msk [vmem:[#allocation2 + $0xa8] sm:$0xff] %vm292, %v5843
        %5899 = vst.msk [vmem:[#allocation2 + $0xb0] sm:$0xff] %vm292, %v5844
        %5900 = vst.msk [vmem:[#allocation2 + $0xb8] sm:$0xff] %vm292, %v5845
        %5901 = vst.msk [vmem:[#allocation2 + $0xc0] sm:$0xff] %vm292, %v5846
        %5902 = vst.msk [vmem:[#allocation2 + $0xc8] sm:$0xff] %vm292, %v5847
        %5903 = vst.msk [vmem:[#allocation2 + $0xd0] sm:$0xff] %vm292, %v5848
        %5904 = vst.msk [vmem:[#allocation2 + $0xd8] sm:$0xff] %vm292, %v5849
        %5905 = vst.msk [vmem:[#allocation2 + $0xe0] sm:$0xff] %vm292, %v5850
        %5906 = vst.msk [vmem:[#allocation2 + $0xe8] sm:$0xff] %vm292, %v5851
        %5907 = vst.msk [vmem:[#allocation2 + $0xf0] sm:$0xff] %vm292, %v5852
        %5908 = vst.msk [vmem:[#allocation2 + $0xf8] sm:$0xff] %vm292, %v5853
        %5909 = vst.msk [vmem:[#allocation2 + $0x100] sm:$0xff] %vm292, %v5854
        %5910 = vst.msk [vmem:[#allocation2 + $0x108] sm:$0xff] %vm292, %v5855
        %5911 = vst.msk [vmem:[#allocation2 + $0x110] sm:$0xff] %vm292, %v5856
        %5912 = vst.msk [vmem:[#allocation2 + $0x118] sm:$0xff] %vm292, %v5857
        %5913 = vst.msk [vmem:[#allocation2 + $0x120] sm:$0xff] %vm292, %v5858
        %5914 = vst.msk [vmem:[#allocation2 + $0x128] sm:$0xff] %vm292, %v5859
        %5915 = vst.msk [vmem:[#allocation2 + $0x130] sm:$0xff] %vm292, %v5860
        %5916 = vst.msk [vmem:[#allocation2 + $0x138] sm:$0xff] %vm292, %v5861
        %5917 = vst.msk [vmem:[#allocation2 + $0x140] sm:$0xff] %vm292, %v5862
        %5918 = vst.msk [vmem:[#allocation2 + $0x148] sm:$0xff] %vm292, %v5863
        %5919 = vst.msk [vmem:[#allocation2 + $0x150] sm:$0xff] %vm292, %v5864
        %5920 = vst.msk [vmem:[#allocation2 + $0x158] sm:$0xff] %vm292, %v5865
        %5921 = vst.msk [vmem:[#allocation2 + $0x160] sm:$0xff] %vm292, %v5866
        %5922 = vst.msk [vmem:[#allocation2 + $0x168] sm:$0xff] %vm292, %v5867
        %5923 = vst.msk [vmem:[#allocation2 + $0x170] sm:$0xff] %vm292, %v5868
        %5924 = vst.msk [vmem:[#allocation2 + $0x178] sm:$0xff] %vm292, %v5869
        %5925 = vst.msk [vmem:[#allocation2 + $0x180] sm:$0xff] %vm292, %v5870
        %5926 = vst.msk [vmem:[#allocation2 + $0x188] sm:$0xff] %vm292, %v5871
        %5927 = vst.msk [vmem:[#allocation2 + $0x190] sm:$0xff] %vm292, %v5872
        %5928 = vst.msk [vmem:[#allocation2 + $0x198] sm:$0xff] %vm292, %v5873
        %5929 = vst.msk [vmem:[#allocation2 + $0x1a0] sm:$0xff] %vm292, %v5874
        %5930 = vst.msk [vmem:[#allocation2 + $0x1a8] sm:$0xff] %vm292, %v5875
        %5931 = vst.msk [vmem:[#allocation2 + $0x1b0] sm:$0xff] %vm292, %v5876
        %v5932 = vld [vmem:[#allocation2] sm:$0xff]
        %v5933 = vld [vmem:[#allocation2 + $0x8] sm:$0xff]
        %v5934 = vld [vmem:[#allocation2 + $0x10] sm:$0xff]
        %v5935 = vld [vmem:[#allocation2 + $0x18] sm:$0xff]
        %v5936 = vld [vmem:[#allocation2 + $0x20] sm:$0xff]
        %v5937 = vld [vmem:[#allocation2 + $0x28] sm:$0xff]
        %v5938 = vld [vmem:[#allocation2 + $0x30] sm:$0xff]
        %v5939 = vld [vmem:[#allocation2 + $0x38] sm:$0xff]
        %v5940 = vld [vmem:[#allocation2 + $0x40] sm:$0xff]
        %v5941 = vld [vmem:[#allocation2 + $0x48] sm:$0xff]
        %v5942 = vld [vmem:[#allocation2 + $0x50] sm:$0xff]
        %v5943 = vld [vmem:[#allocation2 + $0x58] sm:$0xff]
        %v5944 = vld [vmem:[#allocation2 + $0x60] sm:$0xff]
        %v5945 = vld [vmem:[#allocation2 + $0x68] sm:$0xff]
        %v5946 = vld [vmem:[#allocation2 + $0x70] sm:$0xff]
        %v5947 = vld [vmem:[#allocation2 + $0x78] sm:$0xff]
        %v5948 = vld [vmem:[#allocation2 + $0x80] sm:$0xff]
        %v5949 = vld [vmem:[#allocation2 + $0x88] sm:$0xff]
        %v5950 = vld [vmem:[#allocation2 + $0x90] sm:$0xff]
        %v5951 = vld [vmem:[#allocation2 + $0x98] sm:$0xff]
        %v5952 = vld [vmem:[#allocation2 + $0xa0] sm:$0xff]
        %v5953 = vld [vmem:[#allocation2 + $0xa8] sm:$0xff]
        %v5954 = vld [vmem:[#allocation2 + $0xb0] sm:$0xff]
        %v5955 = vld [vmem:[#allocation2 + $0xb8] sm:$0xff]
        %v5956 = vld [vmem:[#allocation2 + $0xc0] sm:$0xff]
        %v5957 = vld [vmem:[#allocation2 + $0xc8] sm:$0xff]
        %v5958 = vld [vmem:[#allocation2 + $0xd0] sm:$0xff]
        %v5959 = vld [vmem:[#allocation2 + $0xd8] sm:$0xff]
        %v5960 = vld [vmem:[#allocation2 + $0xe0] sm:$0xff]
        %v5961 = vld [vmem:[#allocation2 + $0xe8] sm:$0xff]
        %v5962 = vld [vmem:[#allocation2 + $0xf0] sm:$0xff]
        %v5963 = vld [vmem:[#allocation2 + $0xf8] sm:$0xff]
        %v5964 = vld [vmem:[#allocation2 + $0x100] sm:$0xff]
        %v5965 = vld [vmem:[#allocation2 + $0x108] sm:$0xff]
        %v5966 = vld [vmem:[#allocation2 + $0x110] sm:$0xff]
        %v5967 = vld [vmem:[#allocation2 + $0x118] sm:$0xff]
        %v5968 = vld [vmem:[#allocation2 + $0x120] sm:$0xff]
        %v5969 = vld [vmem:[#allocation2 + $0x128] sm:$0xff]
        %v5970 = vld [vmem:[#allocation2 + $0x130] sm:$0xff]
        %v5971 = vld [vmem:[#allocation2 + $0x138] sm:$0xff]
        %v5972 = vld [vmem:[#allocation2 + $0x140] sm:$0xff]
        %v5973 = vld [vmem:[#allocation2 + $0x148] sm:$0xff]
        %v5974 = vld [vmem:[#allocation2 + $0x150] sm:$0xff]
        %v5975 = vld [vmem:[#allocation2 + $0x158] sm:$0xff]
        %v5976 = vld [vmem:[#allocation2 + $0x160] sm:$0xff]
        %v5977 = vld [vmem:[#allocation2 + $0x168] sm:$0xff]
        %v5978 = vld [vmem:[#allocation2 + $0x170] sm:$0xff]
        %v5979 = vld [vmem:[#allocation2 + $0x178] sm:$0xff]
        %v5980 = vld [vmem:[#allocation2 + $0x180] sm:$0xff]
        %v5981 = vld [vmem:[#allocation2 + $0x188] sm:$0xff]
        %v5982 = vld [vmem:[#allocation2 + $0x190] sm:$0xff]
        %v5983 = vld [vmem:[#allocation2 + $0x198] sm:$0xff]
        %v5984 = vld [vmem:[#allocation2 + $0x1a0] sm:$0xff]
        %v5985 = vld [vmem:[#allocation2 + $0x1a8] sm:$0xff]
        %v5986 = vld [vmem:[#allocation2 + $0x1b0] sm:$0xff]
        %v5987 = vld [vmem:[%s254 + $0x14] sm:$0xc]
        %v5988 = vld [vmem:[%s254 + $0x18] sm:$0xf]
        %v5989 = vld [vmem:[%s254 + $0x1c] sm:$0xf]
        %v5990 = vld [vmem:[%s254 + $0x20] sm:$0xf]
        %v5991 = vld [vmem:[%s254 + $0x24] sm:$0xf]
        %v5992 = vld [vmem:[%s254 + $0x28] sm:$0xf]
        %v5993 = vld [vmem:[%s254 + $0x2c] sm:$0xf]
        %v5994 = vld [vmem:[%s254 + $0x30] sm:$0xf]
        %v5995 = vld [vmem:[%s254 + $0x34] sm:$0xf]
        %v5996 = vld [vmem:[%s254 + $0x38] sm:$0xf]
        %v5997 = vld [vmem:[%s254 + $0x3c] sm:$0xf]
        %v5998 = vld [vmem:[%s254 + $0x40] sm:$0xf]
        %v5999 = vld [vmem:[%s254 + $0x44] sm:$0xf]
        %v6000 = vld [vmem:[%s254 + $0x48] sm:$0xf]
        %v6001 = vld [vmem:[%s254 + $0x4c] sm:$0xf]
        %v6002 = vld [vmem:[%s254 + $0x50] sm:$0xf]
        %v6003 = vld [vmem:[%s254 + $0x54] sm:$0xf]
        %v6004 = vld [vmem:[%s254 + $0x58] sm:$0xf]
        %v6005 = vld [vmem:[%s254 + $0x5c] sm:$0xf]
        %v6006 = vld [vmem:[%s254 + $0x60] sm:$0xf]
        %v6007 = vld [vmem:[%s254 + $0x64] sm:$0xf]
        %v6008 = vld [vmem:[%s254 + $0x68] sm:$0xf]
        %v6009 = vld [vmem:[%s254 + $0x6c] sm:$0xf]
        %v6010 = vld [vmem:[%s254 + $0x70] sm:$0xf]
        %v6011 = vld [vmem:[%s254 + $0x74] sm:$0xf]
        %v6012 = vld [vmem:[%s254 + $0x78] sm:$0xf]
        %v6013 = vld [vmem:[%s254 + $0x7c] sm:$0xf]
        %v6014 = vld [vmem:[%s254 + $0x80] sm:$0xf]
        %v6015 = vld [vmem:[%s254 + $0x84] sm:$0xf]
        %v6016 = vld [vmem:[%s254 + $0x88] sm:$0xf]
        %v6017 = vld [vmem:[%s254 + $0x8c] sm:$0xf]
        %v6018 = vld [vmem:[%s254 + $0x90] sm:$0xf]
        %v6019 = vld [vmem:[%s254 + $0x94] sm:$0xf]
        %v6020 = vld [vmem:[%s254 + $0x98] sm:$0xf]
        %v6021 = vld [vmem:[%s254 + $0x9c] sm:$0xf]
        %v6022 = vld [vmem:[%s254 + $0xa0] sm:$0xf]
        %v6023 = vld [vmem:[%s254 + $0xa4] sm:$0xf]
        %v6024 = vld [vmem:[%s254 + $0xa8] sm:$0xf]
        %v6025 = vld [vmem:[%s254 + $0xac] sm:$0xf]
        %v6026 = vld [vmem:[%s254 + $0xb0] sm:$0xf]
        %v6027 = vld [vmem:[%s254 + $0xb4] sm:$0xf]
        %v6028 = vld [vmem:[%s254 + $0xb8] sm:$0xf]
        %v6029 = vld [vmem:[%s254 + $0xbc] sm:$0xf]
        %v6030 = vld [vmem:[%s254 + $0xc0] sm:$0xf]
        %v6031 = vld [vmem:[%s254 + $0xc4] sm:$0xf]
        %v6032 = vld [vmem:[%s254 + $0xc8] sm:$0xf]
        %v6033 = vld [vmem:[%s254 + $0xcc] sm:$0xf]
        %v6034 = vld [vmem:[%s254 + $0xd0] sm:$0xf]
        %v6035 = vld [vmem:[%s254 + $0xd4] sm:$0xf]
        %v6036 = vld [vmem:[%s254 + $0xd8] sm:$0xf]
        %v6037 = vld [vmem:[%s254 + $0xdc] sm:$0xf]
        %v6038 = vld [vmem:[%s254 + $0xe0] sm:$0xf]
        %v6039 = vld [vmem:[%s254 + $0xe4] sm:$0xf]
        %v6040 = vld [vmem:[%s254 + $0xe8] sm:$0xf]
        %v6041 = vld [vmem:[%s254 + $0xec] sm:$0xf]
        %v6042 = vld [vmem:[%s254 + $0xf0] sm:$0x7]
        %s6043 = scalar_lea.vmem [#allocation6], 14
        %v6044 = vld [vmem:[%s6043] sm:$0x3]
        %v6101 = vunpack.c.l.b16 %v5987
        %v6102 = vunpack.c.l.b16 %v5988
        %v6103 = vunpack.c.l.b16 %v5989
        %v6104 = vunpack.c.l.b16 %v5990
        %v6105 = vunpack.c.l.b16 %v5991
        %v6106 = vunpack.c.l.b16 %v5992
        %v6107 = vunpack.c.l.b16 %v5993
        %v6108 = vunpack.c.l.b16 %v5994
        %v6109 = vunpack.c.l.b16 %v5995
        %v6110 = vunpack.c.l.b16 %v5996
        %v6111 = vunpack.c.l.b16 %v5997
        %v6112 = vunpack.c.l.b16 %v5998
        %v6113 = vunpack.c.l.b16 %v5999
        %v6114 = vunpack.c.l.b16 %v6000
        %v6115 = vunpack.c.l.b16 %v6001
        %v6116 = vunpack.c.l.b16 %v6002
        %v6117 = vunpack.c.l.b16 %v6003
        %v6118 = vunpack.c.l.b16 %v6004
        %v6119 = vunpack.c.l.b16 %v6005
        %v6120 = vunpack.c.l.b16 %v6006
        %v6121 = vunpack.c.l.b16 %v6007
        %v6122 = vunpack.c.l.b16 %v6008
        %v6123 = vunpack.c.l.b16 %v6009
        %v6124 = vunpack.c.l.b16 %v6010
        %v6125 = vunpack.c.l.b16 %v6011
        %v6126 = vunpack.c.l.b16 %v6012
        %v6127 = vunpack.c.l.b16 %v6013
        %v6128 = vunpack.c.l.b16 %v6014
        %v6129 = vunpack.c.l.b16 %v6015
        %v6130 = vunpack.c.l.b16 %v6016
        %v6131 = vunpack.c.l.b16 %v6017
        %v6132 = vunpack.c.l.b16 %v6018
        %v6133 = vunpack.c.l.b16 %v6019
        %v6134 = vunpack.c.l.b16 %v6020
        %v6135 = vunpack.c.l.b16 %v6021
        %v6136 = vunpack.c.l.b16 %v6022
        %v6137 = vunpack.c.l.b16 %v6023
        %v6138 = vunpack.c.l.b16 %v6024
        %v6139 = vunpack.c.l.b16 %v6025
        %v6140 = vunpack.c.l.b16 %v6026
        %v6141 = vunpack.c.l.b16 %v6027
        %v6142 = vunpack.c.l.b16 %v6028
        %v6143 = vunpack.c.l.b16 %v6029
        %v6144 = vunpack.c.l.b16 %v6030
        %v6145 = vunpack.c.l.b16 %v6031
        %v6146 = vunpack.c.l.b16 %v6032
        %v6147 = vunpack.c.l.b16 %v6033
        %v6148 = vunpack.c.l.b16 %v6034
        %v6149 = vunpack.c.l.b16 %v6035
        %v6150 = vunpack.c.l.b16 %v6036
        %v6151 = vunpack.c.l.b16 %v6037
        %v6152 = vunpack.c.l.b16 %v6038
        %v6153 = vunpack.c.l.b16 %v6039
        %v6154 = vunpack.c.l.b16 %v6040
        %v6155 = vunpack.c.l.b16 %v6041
        %v6156 = vunpack.c.l.b16 %v6042
        %v6157 = vpack.c.b16 %v6102, %v6101
        %v6158 = vpack.c.b16 %v6104, %v6103
        %v6159 = vpack.c.b16 %v6106, %v6105
        %v6160 = vpack.c.b16 %v6108, %v6107
        %v6161 = vpack.c.b16 %v6110, %v6109
        %v6162 = vpack.c.b16 %v6112, %v6111
        %v6163 = vpack.c.b16 %v6114, %v6113
        %v6164 = vpack.c.b16 %v6116, %v6115
        %v6165 = vpack.c.b16 %v6118, %v6117
        %v6166 = vpack.c.b16 %v6120, %v6119
        %v6167 = vpack.c.b16 %v6122, %v6121
        %v6168 = vpack.c.b16 %v6124, %v6123
        %v6169 = vpack.c.b16 %v6126, %v6125
        %v6170 = vpack.c.b16 %v6128, %v6127
        %v6171 = vpack.c.b16 %v6130, %v6129
        %v6172 = vpack.c.b16 %v6132, %v6131
        %v6173 = vpack.c.b16 %v6134, %v6133
        %v6174 = vpack.c.b16 %v6136, %v6135
        %v6175 = vpack.c.b16 %v6138, %v6137
        %v6176 = vpack.c.b16 %v6140, %v6139
        %v6177 = vpack.c.b16 %v6142, %v6141
        %v6178 = vpack.c.b16 %v6144, %v6143
        %v6179 = vpack.c.b16 %v6146, %v6145
        %v6180 = vpack.c.b16 %v6148, %v6147
        %v6181 = vpack.c.b16 %v6150, %v6149
        %v6182 = vpack.c.b16 %v6152, %v6151
        %v6183 = vpack.c.b16 %v6154, %v6153
        %v6184 = vpack.c.b16 %v6156, %v6155
        %vm6185 = vsmask.f32 5376
        %v6187 = vshrl.u32 %v6157, 16
        %v6189 = vrot.slane %v6187, 2
        %v6190 = vshll.u32 %v6157, 16
        %v6192 = vrot.slane %v6190, 3
        %v6193 = vor.u32 %v6189, %v6192
        %v6195 = vshrl.u32 %v6158, 16
        %v6197 = vrot.slane %v6195, 2
        %v6198 = vshll.u32 %v6158, 16
        %v6200 = vrot.slane %v6198, 3
        %v6201 = vor.u32 %v6197, %v6200
        %v6202 = vsel %vm6185, %v6193, %v6201
        %v6204 = vshrl.u32 %v6159, 16
        %v6206 = vrot.slane %v6204, 2
        %v6207 = vshll.u32 %v6159, 16
        %v6209 = vrot.slane %v6207, 3
        %v6210 = vor.u32 %v6206, %v6209
        %v6211 = vsel %vm6185, %v6201, %v6210
        %v6213 = vshrl.u32 %v6160, 16
        %v6215 = vrot.slane %v6213, 2
        %v6216 = vshll.u32 %v6160, 16
        %v6218 = vrot.slane %v6216, 3
        %v6219 = vor.u32 %v6215, %v6218
        %v6220 = vsel %vm6185, %v6210, %v6219
        %v6222 = vshrl.u32 %v6161, 16
        %v6224 = vrot.slane %v6222, 2
        %v6225 = vshll.u32 %v6161, 16
        %v6227 = vrot.slane %v6225, 3
        %v6228 = vor.u32 %v6224, %v6227
        %v6229 = vsel %vm6185, %v6219, %v6228
        %v6231 = vshrl.u32 %v6162, 16
        %v6233 = vrot.slane %v6231, 2
        %v6234 = vshll.u32 %v6162, 16
        %v6236 = vrot.slane %v6234, 3
        %v6237 = vor.u32 %v6233, %v6236
        %v6238 = vsel %vm6185, %v6228, %v6237
        %v6240 = vshrl.u32 %v6163, 16
        %v6242 = vrot.slane %v6240, 2
        %v6243 = vshll.u32 %v6163, 16
        %v6245 = vrot.slane %v6243, 3
        %v6246 = vor.u32 %v6242, %v6245
        %v6247 = vsel %vm6185, %v6237, %v6246
        %v6249 = vshrl.u32 %v6164, 16
        %v6251 = vrot.slane %v6249, 2
        %v6252 = vshll.u32 %v6164, 16
        %v6254 = vrot.slane %v6252, 3
        %v6255 = vor.u32 %v6251, %v6254
        %v6256 = vsel %vm6185, %v6246, %v6255
        %v6258 = vshrl.u32 %v6165, 16
        %v6260 = vrot.slane %v6258, 2
        %v6261 = vshll.u32 %v6165, 16
        %v6263 = vrot.slane %v6261, 3
        %v6264 = vor.u32 %v6260, %v6263
        %v6265 = vsel %vm6185, %v6255, %v6264
        %v6267 = vshrl.u32 %v6166, 16
        %v6269 = vrot.slane %v6267, 2
        %v6270 = vshll.u32 %v6166, 16
        %v6272 = vrot.slane %v6270, 3
        %v6273 = vor.u32 %v6269, %v6272
        %v6274 = vsel %vm6185, %v6264, %v6273
        %v6276 = vshrl.u32 %v6167, 16
        %v6278 = vrot.slane %v6276, 2
        %v6279 = vshll.u32 %v6167, 16
        %v6281 = vrot.slane %v6279, 3
        %v6282 = vor.u32 %v6278, %v6281
        %v6283 = vsel %vm6185, %v6273, %v6282
        %v6285 = vshrl.u32 %v6168, 16
        %v6287 = vrot.slane %v6285, 2
        %v6288 = vshll.u32 %v6168, 16
        %v6290 = vrot.slane %v6288, 3
        %v6291 = vor.u32 %v6287, %v6290
        %v6292 = vsel %vm6185, %v6282, %v6291
        %v6294 = vshrl.u32 %v6169, 16
        %v6296 = vrot.slane %v6294, 2
        %v6297 = vshll.u32 %v6169, 16
        %v6299 = vrot.slane %v6297, 3
        %v6300 = vor.u32 %v6296, %v6299
        %v6301 = vsel %vm6185, %v6291, %v6300
        %v6303 = vshrl.u32 %v6170, 16
        %v6305 = vrot.slane %v6303, 2
        %v6306 = vshll.u32 %v6170, 16
        %v6308 = vrot.slane %v6306, 3
        %v6309 = vor.u32 %v6305, %v6308
        %v6310 = vsel %vm6185, %v6300, %v6309
        %v6312 = vshrl.u32 %v6171, 16
        %v6314 = vrot.slane %v6312, 2
        %v6315 = vshll.u32 %v6171, 16
        %v6317 = vrot.slane %v6315, 3
        %v6318 = vor.u32 %v6314, %v6317
        %v6319 = vsel %vm6185, %v6309, %v6318
        %v6321 = vshrl.u32 %v6172, 16
        %v6323 = vrot.slane %v6321, 2
        %v6324 = vshll.u32 %v6172, 16
        %v6326 = vrot.slane %v6324, 3
        %v6327 = vor.u32 %v6323, %v6326
        %v6328 = vsel %vm6185, %v6318, %v6327
        %v6330 = vshrl.u32 %v6173, 16
        %v6332 = vrot.slane %v6330, 2
        %v6333 = vshll.u32 %v6173, 16
        %v6335 = vrot.slane %v6333, 3
        %v6336 = vor.u32 %v6332, %v6335
        %v6337 = vsel %vm6185, %v6327, %v6336
        %v6339 = vshrl.u32 %v6174, 16
        %v6341 = vrot.slane %v6339, 2
        %v6342 = vshll.u32 %v6174, 16
        %v6344 = vrot.slane %v6342, 3
        %v6345 = vor.u32 %v6341, %v6344
        %v6346 = vsel %vm6185, %v6336, %v6345
        %v6348 = vshrl.u32 %v6175, 16
        %v6350 = vrot.slane %v6348, 2
        %v6351 = vshll.u32 %v6175, 16
        %v6353 = vrot.slane %v6351, 3
        %v6354 = vor.u32 %v6350, %v6353
        %v6355 = vsel %vm6185, %v6345, %v6354
        %v6357 = vshrl.u32 %v6176, 16
        %v6359 = vrot.slane %v6357, 2
        %v6360 = vshll.u32 %v6176, 16
        %v6362 = vrot.slane %v6360, 3
        %v6363 = vor.u32 %v6359, %v6362
        %v6364 = vsel %vm6185, %v6354, %v6363
        %v6366 = vshrl.u32 %v6177, 16
        %v6368 = vrot.slane %v6366, 2
        %v6369 = vshll.u32 %v6177, 16
        %v6371 = vrot.slane %v6369, 3
        %v6372 = vor.u32 %v6368, %v6371
        %v6373 = vsel %vm6185, %v6363, %v6372
        %v6375 = vshrl.u32 %v6178, 16
        %v6377 = vrot.slane %v6375, 2
        %v6378 = vshll.u32 %v6178, 16
        %v6380 = vrot.slane %v6378, 3
        %v6381 = vor.u32 %v6377, %v6380
        %v6382 = vsel %vm6185, %v6372, %v6381
        %v6384 = vshrl.u32 %v6179, 16
        %v6386 = vrot.slane %v6384, 2
        %v6387 = vshll.u32 %v6179, 16
        %v6389 = vrot.slane %v6387, 3
        %v6390 = vor.u32 %v6386, %v6389
        %v6391 = vsel %vm6185, %v6381, %v6390
        %v6393 = vshrl.u32 %v6180, 16
        %v6395 = vrot.slane %v6393, 2
        %v6396 = vshll.u32 %v6180, 16
        %v6398 = vrot.slane %v6396, 3
        %v6399 = vor.u32 %v6395, %v6398
        %v6400 = vsel %vm6185, %v6390, %v6399
        %v6402 = vshrl.u32 %v6181, 16
        %v6404 = vrot.slane %v6402, 2
        %v6405 = vshll.u32 %v6181, 16
        %v6407 = vrot.slane %v6405, 3
        %v6408 = vor.u32 %v6404, %v6407
        %v6409 = vsel %vm6185, %v6399, %v6408
        %v6411 = vshrl.u32 %v6182, 16
        %v6413 = vrot.slane %v6411, 2
        %v6414 = vshll.u32 %v6182, 16
        %v6416 = vrot.slane %v6414, 3
        %v6417 = vor.u32 %v6413, %v6416
        %v6418 = vsel %vm6185, %v6408, %v6417
        %v6420 = vshrl.u32 %v6183, 16
        %v6422 = vrot.slane %v6420, 2
        %v6423 = vshll.u32 %v6183, 16
        %v6425 = vrot.slane %v6423, 3
        %v6426 = vor.u32 %v6422, %v6425
        %v6427 = vsel %vm6185, %v6417, %v6426
        %v6429 = vshrl.u32 %v6184, 16
        %v6431 = vrot.slane %v6429, 2
        %v6432 = vshll.u32 %v6184, 16
        %v6434 = vrot.slane %v6432, 3
        %v6435 = vor.u32 %v6431, %v6434
        %v6436 = vsel %vm6185, %v6426, %v6435
        %v6438 = vsel %vm597, %v6202, 0
        %v6441 = vsel %vm597, %v6211, 0
        %v6444 = vsel %vm597, %v6220, 0
        %v6447 = vsel %vm597, %v6229, 0
        %v6450 = vsel %vm597, %v6238, 0
        %v6453 = vsel %vm597, %v6247, 0
        %v6456 = vsel %vm597, %v6256, 0
        %v6459 = vsel %vm597, %v6265, 0
        %v6462 = vsel %vm597, %v6274, 0
        %v6465 = vsel %vm597, %v6283, 0
        %v6468 = vsel %vm597, %v6292, 0
        %v6471 = vsel %vm597, %v6301, 0
        %v6474 = vsel %vm597, %v6310, 0
        %v6477 = vsel %vm597, %v6319, 0
        %v6480 = vsel %vm597, %v6328, 0
        %v6483 = vsel %vm597, %v6337, 0
        %v6486 = vsel %vm597, %v6346, 0
        %v6489 = vsel %vm597, %v6355, 0
        %v6492 = vsel %vm597, %v6364, 0
        %v6495 = vsel %vm597, %v6373, 0
        %v6498 = vsel %vm597, %v6382, 0
        %v6501 = vsel %vm597, %v6391, 0
        %v6504 = vsel %vm597, %v6400, 0
        %v6507 = vsel %vm597, %v6409, 0
        %v6510 = vsel %vm597, %v6418, 0
        %v6513 = vsel %vm597, %v6427, 0
        %v6516 = vsel %vm597, %v6436, 0
        %v6519 = vsel %vm597, %v6435, 0
        %v6522 = vand.u32 %v6044, %v685
        %6524 = vmatprep.subr.bf16.mxu0 0
        %6525 = vmatpush1.bf16.msra.mxu0 %v6522
        %6526 = vmatprep.subr.bf16.mxu0 0
        %6527 = vmatpush1.bf16.msra.mxu0 0
        %6528 = vmatprep.subr.bf16.mxu0 0
        %6529 = vmatpush1.bf16.msra.mxu0 0
        %6530 = vmatprep.subr.bf16.mxu0 0
        %6531 = vmatpush1.bf16.msra.mxu0 0
        %6532 = vmatprep.subr.bf16.mxu0 0
        %6533 = vmatpush1.bf16.msra.mxu0 0
        %6534 = vmatprep.subr.bf16.mxu0 0
        %6535 = vmatpush1.bf16.msra.mxu0 0
        %6536 = vmatprep.subr.bf16.mxu0 0
        %6537 = vmatpush1.bf16.msra.mxu0 0
        %6538 = vmatprep.subr.bf16.mxu0 0
        %6539 = vmatpush1.bf16.msra.mxu0 0
        %6540 = vmatprep.subr.bf16.mxu0 0
        %6541 = vmatpush1.bf16.msra.mxu0 0
        %6542 = vmatprep.subr.bf16.mxu0 0
        %6543 = vmatpush1.bf16.msra.mxu0 0
        %6544 = vmatprep.subr.bf16.mxu0 0
        %6545 = vmatpush1.bf16.msra.mxu0 0
        %6546 = vmatprep.subr.bf16.mxu0 0
        %6547 = vmatpush1.bf16.msra.mxu0 0
        %6548 = vmatprep.subr.bf16.mxu0 0
        %6549 = vmatpush1.bf16.msra.mxu0 0
        %6550 = vmatprep.subr.bf16.mxu0 0
        %6551 = vmatpush1.bf16.msra.mxu0 0
        %6552 = vmatprep.subr.bf16.mxu0 0
        %6553 = vmatpush1.bf16.msra.mxu0 0
        %6554 = vmatprep.subr.bf16.mxu0 0
        %6555 = vmatpush1.bf16.msra.mxu0 0
        %6556 = vmatprep.mubr.bf16.mxu0 0
        %6557 = vmatmul.mubr.bf16.gmra.mrb[0].mxu0 %v6438
        %v6558 = vpop.f32.mrb[0].mxu0
        %v6559 = vadd.f32 0.0, %v6558
        %v6560 = vpop.f32.mrb[0].mxu0
        %v6561 = vpop.f32.mrb[0].mxu0
        %v6562 = vadd.f32 0.0, %v6561
        %v6563 = vpop.f32.mrb[0].mxu0
        %6564 = vmatprep.mubr.bf16.mxu0 0
        %6565 = vmatmul.mubr.bf16.gmra.mrb[0].mxu0 %v6441
        %v6566 = vpop.f32.mrb[0].mxu0
        %v6567 = vadd.f32 0.0, %v6566
        %v6568 = vpop.f32.mrb[0].mxu0
        %v6569 = vpop.f32.mrb[0].mxu0
        %v6570 = vadd.f32 0.0, %v6569
        %v6571 = vpop.f32.mrb[0].mxu0
        %6572 = vmatprep.mubr.bf16.mxu0 0
        %6573 = vmatmul.mubr.bf16.gmra.mrb[0].mxu0 %v6444
        %v6574 = vpop.f32.mrb[0].mxu0
        %v6575 = vadd.f32 0.0, %v6574
        %v6576 = vpop.f32.mrb[0].mxu0
        %v6577 = vpop.f32.mrb[0].mxu0
        %v6578 = vadd.f32 0.0, %v6577
        %v6579 = vpop.f32.mrb[0].mxu0
        %6580 = vmatprep.mubr.bf16.mxu0 0
        %6581 = vmatmul.mubr.bf16.gmra.mrb[0].mxu0 %v6447
        %v6582 = vpop.f32.mrb[0].mxu0
        %v6583 = vadd.f32 0.0, %v6582
        %v6584 = vpop.f32.mrb[0].mxu0
        %v6585 = vpop.f32.mrb[0].mxu0
        %v6586 = vadd.f32 0.0, %v6585
        %v6587 = vpop.f32.mrb[0].mxu0
        %6588 = vmatprep.mubr.bf16.mxu0 0
        %6589 = vmatmul.mubr.bf16.gmra.mrb[0].mxu0 %v6450
        %v6590 = vpop.f32.mrb[0].mxu0
        %v6591 = vadd.f32 0.0, %v6590
        %v6592 = vpop.f32.mrb[0].mxu0
        %v6593 = vpop.f32.mrb[0].mxu0
        %v6594 = vadd.f32 0.0, %v6593
        %v6595 = vpop.f32.mrb[0].mxu0
        %6596 = vmatprep.mubr.bf16.mxu0 0
        %6597 = vmatmul.mubr.bf16.gmra.mrb[0].mxu0 %v6453
        %v6598 = vpop.f32.mrb[0].mxu0
        %v6599 = vadd.f32 0.0, %v6598
        %v6600 = vpop.f32.mrb[0].mxu0
        %v6601 = vpop.f32.mrb[0].mxu0
        %v6602 = vadd.f32 0.0, %v6601
        %v6603 = vpop.f32.mrb[0].mxu0
        %6604 = vmatprep.mubr.bf16.mxu0 0
        %6605 = vmatmul.mubr.bf16.gmra.mrb[0].mxu0 %v6456
        %v6606 = vpop.f32.mrb[0].mxu0
        %v6607 = vadd.f32 0.0, %v6606
        %v6608 = vpop.f32.mrb[0].mxu0
        %v6609 = vpop.f32.mrb[0].mxu0
        %v6610 = vadd.f32 0.0, %v6609
        %v6611 = vpop.f32.mrb[0].mxu0
        %6612 = vmatprep.mubr.bf16.mxu0 0
        %6613 = vmatmul.mubr.bf16.gmra.mrb[0].mxu0 %v6459
        %v6614 = vpop.f32.mrb[0].mxu0
        %v6615 = vadd.f32 0.0, %v6614
        %v6616 = vpop.f32.mrb[0].mxu0
        %v6617 = vpop.f32.mrb[0].mxu0
        %v6618 = vadd.f32 0.0, %v6617
        %v6619 = vpop.f32.mrb[0].mxu0
        %6620 = vmatprep.mubr.bf16.mxu0 0
        %6621 = vmatmul.mubr.bf16.gmra.mrb[0].mxu0 %v6462
        %v6622 = vpop.f32.mrb[0].mxu0
        %v6623 = vadd.f32 0.0, %v6622
        %v6624 = vpop.f32.mrb[0].mxu0
        %v6625 = vpop.f32.mrb[0].mxu0
        %v6626 = vadd.f32 0.0, %v6625
        %v6627 = vpop.f32.mrb[0].mxu0
        %6628 = vmatprep.mubr.bf16.mxu0 0
        %6629 = vmatmul.mubr.bf16.gmra.mrb[0].mxu0 %v6465
        %v6630 = vpop.f32.mrb[0].mxu0
        %v6631 = vadd.f32 0.0, %v6630
        %v6632 = vpop.f32.mrb[0].mxu0
        %v6633 = vpop.f32.mrb[0].mxu0
        %v6634 = vadd.f32 0.0, %v6633
        %v6635 = vpop.f32.mrb[0].mxu0
        %6636 = vmatprep.mubr.bf16.mxu0 0
        %6637 = vmatmul.mubr.bf16.gmra.mrb[0].mxu0 %v6468
        %v6638 = vpop.f32.mrb[0].mxu0
        %v6639 = vadd.f32 0.0, %v6638
        %v6640 = vpop.f32.mrb[0].mxu0
        %v6641 = vpop.f32.mrb[0].mxu0
        %v6642 = vadd.f32 0.0, %v6641
        %v6643 = vpop.f32.mrb[0].mxu0
        %6644 = vmatprep.mubr.bf16.mxu0 0
        %6645 = vmatmul.mubr.bf16.gmra.mrb[0].mxu0 %v6471
        %v6646 = vpop.f32.mrb[0].mxu0
        %v6647 = vadd.f32 0.0, %v6646
        %v6648 = vpop.f32.mrb[0].mxu0
        %v6649 = vpop.f32.mrb[0].mxu0
        %v6650 = vadd.f32 0.0, %v6649
        %v6651 = vpop.f32.mrb[0].mxu0
        %6652 = vmatprep.mubr.bf16.mxu0 0
        %6653 = vmatmul.mubr.bf16.gmra.mrb[0].mxu0 %v6474
        %v6654 = vpop.f32.mrb[0].mxu0
        %v6655 = vadd.f32 0.0, %v6654
        %v6656 = vpop.f32.mrb[0].mxu0
        %v6657 = vpop.f32.mrb[0].mxu0
        %v6658 = vadd.f32 0.0, %v6657
        %v6659 = vpop.f32.mrb[0].mxu0
        %6660 = vmatprep.mubr.bf16.mxu0 0
        %6661 = vmatmul.mubr.bf16.gmra.mrb[0].mxu0 %v6477
        %v6662 = vpop.f32.mrb[0].mxu0
        %v6663 = vadd.f32 0.0, %v6662
        %v6664 = vpop.f32.mrb[0].mxu0
        %v6665 = vpop.f32.mrb[0].mxu0
        %v6666 = vadd.f32 0.0, %v6665
        %v6667 = vpop.f32.mrb[0].mxu0
        %6668 = vmatprep.mubr.bf16.mxu0 0
        %6669 = vmatmul.mubr.bf16.gmra.mrb[0].mxu0 %v6480
        %v6670 = vpop.f32.mrb[0].mxu0
        %v6671 = vadd.f32 0.0, %v6670
        %v6672 = vpop.f32.mrb[0].mxu0
        %v6673 = vpop.f32.mrb[0].mxu0
        %v6674 = vadd.f32 0.0, %v6673
        %v6675 = vpop.f32.mrb[0].mxu0
        %6676 = vmatprep.mubr.bf16.mxu0 0
        %6677 = vmatmul.mubr.bf16.gmra.mrb[0].mxu0 %v6483
        %v6678 = vpop.f32.mrb[0].mxu0
        %v6679 = vadd.f32 0.0, %v6678
        %v6680 = vpop.f32.mrb[0].mxu0
        %v6681 = vpop.f32.mrb[0].mxu0
        %v6682 = vadd.f32 0.0, %v6681
        %v6683 = vpop.f32.mrb[0].mxu0
        %6684 = vmatprep.mubr.bf16.mxu0 0
        %6685 = vmatmul.mubr.bf16.gmra.mrb[0].mxu0 %v6486
        %v6686 = vpop.f32.mrb[0].mxu0
        %v6687 = vadd.f32 0.0, %v6686
        %v6688 = vpop.f32.mrb[0].mxu0
        %v6689 = vpop.f32.mrb[0].mxu0
        %v6690 = vadd.f32 0.0, %v6689
        %v6691 = vpop.f32.mrb[0].mxu0
        %6692 = vmatprep.mubr.bf16.mxu0 0
        %6693 = vmatmul.mubr.bf16.gmra.mrb[0].mxu0 %v6489
        %v6694 = vpop.f32.mrb[0].mxu0
        %v6695 = vadd.f32 0.0, %v6694
        %v6696 = vpop.f32.mrb[0].mxu0
        %v6697 = vpop.f32.mrb[0].mxu0
        %v6698 = vadd.f32 0.0, %v6697
        %v6699 = vpop.f32.mrb[0].mxu0
        %6700 = vmatprep.mubr.bf16.mxu0 0
        %6701 = vmatmul.mubr.bf16.gmra.mrb[0].mxu0 %v6492
        %v6702 = vpop.f32.mrb[0].mxu0
        %v6703 = vadd.f32 0.0, %v6702
        %v6704 = vpop.f32.mrb[0].mxu0
        %v6705 = vpop.f32.mrb[0].mxu0
        %v6706 = vadd.f32 0.0, %v6705
        %v6707 = vpop.f32.mrb[0].mxu0
        %6708 = vmatprep.mubr.bf16.mxu0 0
        %6709 = vmatmul.mubr.bf16.gmra.mrb[0].mxu0 %v6495
        %v6710 = vpop.f32.mrb[0].mxu0
        %v6711 = vadd.f32 0.0, %v6710
        %v6712 = vpop.f32.mrb[0].mxu0
        %v6713 = vpop.f32.mrb[0].mxu0
        %v6714 = vadd.f32 0.0, %v6713
        %v6715 = vpop.f32.mrb[0].mxu0
        %6716 = vmatprep.mubr.bf16.mxu0 0
        %6717 = vmatmul.mubr.bf16.gmra.mrb[0].mxu0 %v6498
        %v6718 = vpop.f32.mrb[0].mxu0
        %v6719 = vadd.f32 0.0, %v6718
        %v6720 = vpop.f32.mrb[0].mxu0
        %v6721 = vpop.f32.mrb[0].mxu0
        %v6722 = vadd.f32 0.0, %v6721
        %v6723 = vpop.f32.mrb[0].mxu0
        %6724 = vmatprep.mubr.bf16.mxu0 0
        %6725 = vmatmul.mubr.bf16.gmra.mrb[0].mxu0 %v6501
        %v6726 = vpop.f32.mrb[0].mxu0
        %v6727 = vadd.f32 0.0, %v6726
        %v6728 = vpop.f32.mrb[0].mxu0
        %v6729 = vpop.f32.mrb[0].mxu0
        %v6730 = vadd.f32 0.0, %v6729
        %v6731 = vpop.f32.mrb[0].mxu0
        %6732 = vmatprep.mubr.bf16.mxu0 0
        %6733 = vmatmul.mubr.bf16.gmra.mrb[0].mxu0 %v6504
        %v6734 = vpop.f32.mrb[0].mxu0
        %v6735 = vadd.f32 0.0, %v6734
        %v6736 = vpop.f32.mrb[0].mxu0
        %v6737 = vpop.f32.mrb[0].mxu0
        %v6738 = vadd.f32 0.0, %v6737
        %v6739 = vpop.f32.mrb[0].mxu0
        %6740 = vmatprep.mubr.bf16.mxu0 0
        %6741 = vmatmul.mubr.bf16.gmra.mrb[0].mxu0 %v6507
        %v6742 = vpop.f32.mrb[0].mxu0
        %v6743 = vadd.f32 0.0, %v6742
        %v6744 = vpop.f32.mrb[0].mxu0
        %v6745 = vpop.f32.mrb[0].mxu0
        %v6746 = vadd.f32 0.0, %v6745
        %v6747 = vpop.f32.mrb[0].mxu0
        %6748 = vmatprep.mubr.bf16.mxu0 0
        %6749 = vmatmul.mubr.bf16.gmra.mrb[0].mxu0 %v6510
        %v6750 = vpop.f32.mrb[0].mxu0
        %v6751 = vadd.f32 0.0, %v6750
        %v6752 = vpop.f32.mrb[0].mxu0
        %v6753 = vpop.f32.mrb[0].mxu0
        %v6754 = vadd.f32 0.0, %v6753
        %v6755 = vpop.f32.mrb[0].mxu0
        %6756 = vmatprep.mubr.bf16.mxu0 0
        %6757 = vmatmul.mubr.bf16.gmra.mrb[0].mxu0 %v6513
        %v6758 = vpop.f32.mrb[0].mxu0
        %v6759 = vadd.f32 0.0, %v6758
        %v6760 = vpop.f32.mrb[0].mxu0
        %v6761 = vpop.f32.mrb[0].mxu0
        %v6762 = vadd.f32 0.0, %v6761
        %v6763 = vpop.f32.mrb[0].mxu0
        %6764 = vmatprep.mubr.bf16.mxu0 0
        %6765 = vmatmul.mubr.bf16.gmra.mrb[0].mxu0 %v6516
        %v6766 = vpop.f32.mrb[0].mxu0
        %v6767 = vadd.f32 0.0, %v6766
        %v6768 = vpop.f32.mrb[0].mxu0
        %v6769 = vpop.f32.mrb[0].mxu0
        %v6770 = vadd.f32 0.0, %v6769
        %v6771 = vpop.f32.mrb[0].mxu0
        %6772 = vmatprep.mubr.bf16.mxu0 0
        %6773 = vmatmul.mubr.bf16.gmra.mrb[0].mxu0 %v6519
        %v6774 = vpop.f32.mrb[0].mxu0
        %v6775 = vadd.f32 0.0, %v6774
        %v6776 = vpop.f32.mrb[0].mxu0
        %v6777 = vpop.f32.mrb[0].mxu0
        %v6778 = vpop.f32.mrb[0].mxu0
        %6779 = vdwg.mxu0
        %v6780 = vadd.f32 %v5932, %v6559
        %v6781 = vadd.f32 %v5933, %v6562
        %v6782 = vadd.f32 %v5934, %v6567
        %v6783 = vadd.f32 %v5935, %v6570
        %v6784 = vadd.f32 %v5936, %v6575
        %v6785 = vadd.f32 %v5937, %v6578
        %v6786 = vadd.f32 %v5938, %v6583
        %v6787 = vadd.f32 %v5939, %v6586
        %v6788 = vadd.f32 %v5940, %v6591
        %v6789 = vadd.f32 %v5941, %v6594
        %v6790 = vadd.f32 %v5942, %v6599
        %v6791 = vadd.f32 %v5943, %v6602
        %v6792 = vadd.f32 %v5944, %v6607
        %v6793 = vadd.f32 %v5945, %v6610
        %v6794 = vadd.f32 %v5946, %v6615
        %v6795 = vadd.f32 %v5947, %v6618
        %v6796 = vadd.f32 %v5948, %v6623
        %v6797 = vadd.f32 %v5949, %v6626
        %v6798 = vadd.f32 %v5950, %v6631
        %v6799 = vadd.f32 %v5951, %v6634
        %v6800 = vadd.f32 %v5952, %v6639
        %v6801 = vadd.f32 %v5953, %v6642
        %v6802 = vadd.f32 %v5954, %v6647
        %v6803 = vadd.f32 %v5955, %v6650
        %v6804 = vadd.f32 %v5956, %v6655
        %v6805 = vadd.f32 %v5957, %v6658
        %v6806 = vadd.f32 %v5958, %v6663
        %v6807 = vadd.f32 %v5959, %v6666
        %v6808 = vadd.f32 %v5960, %v6671
        %v6809 = vadd.f32 %v5961, %v6674
        %v6810 = vadd.f32 %v5962, %v6679
        %v6811 = vadd.f32 %v5963, %v6682
        %v6812 = vadd.f32 %v5964, %v6687
        %v6813 = vadd.f32 %v5965, %v6690
        %v6814 = vadd.f32 %v5966, %v6695
        %v6815 = vadd.f32 %v5967, %v6698
        %v6816 = vadd.f32 %v5968, %v6703
        %v6817 = vadd.f32 %v5969, %v6706
        %v6818 = vadd.f32 %v5970, %v6711
        %v6819 = vadd.f32 %v5971, %v6714
        %v6820 = vadd.f32 %v5972, %v6719
        %v6821 = vadd.f32 %v5973, %v6722
        %v6822 = vadd.f32 %v5974, %v6727
        %v6823 = vadd.f32 %v5975, %v6730
        %v6824 = vadd.f32 %v5976, %v6735
        %v6825 = vadd.f32 %v5977, %v6738
        %v6826 = vadd.f32 %v5978, %v6743
        %v6827 = vadd.f32 %v5979, %v6746
        %v6828 = vadd.f32 %v5980, %v6751
        %v6829 = vadd.f32 %v5981, %v6754
        %v6830 = vadd.f32 %v5982, %v6759
        %v6831 = vadd.f32 %v5983, %v6762
        %v6832 = vadd.f32 %v5984, %v6767
        %v6833 = vadd.f32 %v5985, %v6770
        %v6834 = vadd.f32 %v5986, %v6775
        %6835 = vst.msk [vmem:[#allocation2] sm:$0xff] %vm292, %v6780
        %6836 = vst.msk [vmem:[#allocation2 + $0x8] sm:$0xff] %vm292, %v6781
        %6837 = vst.msk [vmem:[#allocation2 + $0x10] sm:$0xff] %vm292, %v6782
        %6838 = vst.msk [vmem:[#allocation2 + $0x18] sm:$0xff] %vm292, %v6783
        %6839 = vst.msk [vmem:[#allocation2 + $0x20] sm:$0xff] %vm292, %v6784
        %6840 = vst.msk [vmem:[#allocation2 + $0x28] sm:$0xff] %vm292, %v6785
        %6841 = vst.msk [vmem:[#allocation2 + $0x30] sm:$0xff] %vm292, %v6786
        %6842 = vst.msk [vmem:[#allocation2 + $0x38] sm:$0xff] %vm292, %v6787
        %6843 = vst.msk [vmem:[#allocation2 + $0x40] sm:$0xff] %vm292, %v6788
        %6844 = vst.msk [vmem:[#allocation2 + $0x48] sm:$0xff] %vm292, %v6789
        %6845 = vst.msk [vmem:[#allocation2 + $0x50] sm:$0xff] %vm292, %v6790
        %6846 = vst.msk [vmem:[#allocation2 + $0x58] sm:$0xff] %vm292, %v6791
        %6847 = vst.msk [vmem:[#allocation2 + $0x60] sm:$0xff] %vm292, %v6792
        %6848 = vst.msk [vmem:[#allocation2 + $0x68] sm:$0xff] %vm292, %v6793
        %6849 = vst.msk [vmem:[#allocation2 + $0x70] sm:$0xff] %vm292, %v6794
        %6850 = vst.msk [vmem:[#allocation2 + $0x78] sm:$0xff] %vm292, %v6795
        %6851 = vst.msk [vmem:[#allocation2 + $0x80] sm:$0xff] %vm292, %v6796
        %6852 = vst.msk [vmem:[#allocation2 + $0x88] sm:$0xff] %vm292, %v6797
        %6853 = vst.msk [vmem:[#allocation2 + $0x90] sm:$0xff] %vm292, %v6798
        %6854 = vst.msk [vmem:[#allocation2 + $0x98] sm:$0xff] %vm292, %v6799
        %6855 = vst.msk [vmem:[#allocation2 + $0xa0] sm:$0xff] %vm292, %v6800
        %6856 = vst.msk [vmem:[#allocation2 + $0xa8] sm:$0xff] %vm292, %v6801
        %6857 = vst.msk [vmem:[#allocation2 + $0xb0] sm:$0xff] %vm292, %v6802
        %6858 = vst.msk [vmem:[#allocation2 + $0xb8] sm:$0xff] %vm292, %v6803
        %6859 = vst.msk [vmem:[#allocation2 + $0xc0] sm:$0xff] %vm292, %v6804
        %6860 = vst.msk [vmem:[#allocation2 + $0xc8] sm:$0xff] %vm292, %v6805
        %6861 = vst.msk [vmem:[#allocation2 + $0xd0] sm:$0xff] %vm292, %v6806
        %6862 = vst.msk [vmem:[#allocation2 + $0xd8] sm:$0xff] %vm292, %v6807
        %6863 = vst.msk [vmem:[#allocation2 + $0xe0] sm:$0xff] %vm292, %v6808
        %6864 = vst.msk [vmem:[#allocation2 + $0xe8] sm:$0xff] %vm292, %v6809
        %6865 = vst.msk [vmem:[#allocation2 + $0xf0] sm:$0xff] %vm292, %v6810
        %6866 = vst.msk [vmem:[#allocation2 + $0xf8] sm:$0xff] %vm292, %v6811
        %6867 = vst.msk [vmem:[#allocation2 + $0x100] sm:$0xff] %vm292, %v6812
        %6868 = vst.msk [vmem:[#allocation2 + $0x108] sm:$0xff] %vm292, %v6813
        %6869 = vst.msk [vmem:[#allocation2 + $0x110] sm:$0xff] %vm292, %v6814
        %6870 = vst.msk [vmem:[#allocation2 + $0x118] sm:$0xff] %vm292, %v6815
        %6871 = vst.msk [vmem:[#allocation2 + $0x120] sm:$0xff] %vm292, %v6816
        %6872 = vst.msk [vmem:[#allocation2 + $0x128] sm:$0xff] %vm292, %v6817
        %6873 = vst.msk [vmem:[#allocation2 + $0x130] sm:$0xff] %vm292, %v6818
        %6874 = vst.msk [vmem:[#allocation2 + $0x138] sm:$0xff] %vm292, %v6819
        %6875 = vst.msk [vmem:[#allocation2 + $0x140] sm:$0xff] %vm292, %v6820
        %6876 = vst.msk [vmem:[#allocation2 + $0x148] sm:$0xff] %vm292, %v6821
        %6877 = vst.msk [vmem:[#allocation2 + $0x150] sm:$0xff] %vm292, %v6822
        %6878 = vst.msk [vmem:[#allocation2 + $0x158] sm:$0xff] %vm292, %v6823
        %6879 = vst.msk [vmem:[#allocation2 + $0x160] sm:$0xff] %vm292, %v6824
        %6880 = vst.msk [vmem:[#allocation2 + $0x168] sm:$0xff] %vm292, %v6825
        %6881 = vst.msk [vmem:[#allocation2 + $0x170] sm:$0xff] %vm292, %v6826
        %6882 = vst.msk [vmem:[#allocation2 + $0x178] sm:$0xff] %vm292, %v6827
        %6883 = vst.msk [vmem:[#allocation2 + $0x180] sm:$0xff] %vm292, %v6828
        %6884 = vst.msk [vmem:[#allocation2 + $0x188] sm:$0xff] %vm292, %v6829
        %6885 = vst.msk [vmem:[#allocation2 + $0x190] sm:$0xff] %vm292, %v6830
        %6886 = vst.msk [vmem:[#allocation2 + $0x198] sm:$0xff] %vm292, %v6831
        %6887 = vst.msk [vmem:[#allocation2 + $0x1a0] sm:$0xff] %vm292, %v6832
        %6888 = vst.msk [vmem:[#allocation2 + $0x1a8] sm:$0xff] %vm292, %v6833
        %6889 = vst.msk [vmem:[#allocation2 + $0x1b0] sm:$0xff] %vm292, %v6834
        %v6890 = vld [vmem:[#allocation2] sm:$0xff]
        %v6891 = vld [vmem:[#allocation2 + $0x8] sm:$0xff]
        %v6892 = vld [vmem:[#allocation2 + $0x10] sm:$0xff]
        %v6893 = vld [vmem:[#allocation2 + $0x18] sm:$0xff]
        %v6894 = vld [vmem:[#allocation2 + $0x20] sm:$0xff]
        %v6895 = vld [vmem:[#allocation2 + $0x28] sm:$0xff]
        %v6896 = vld [vmem:[#allocation2 + $0x30] sm:$0xff]
        %v6897 = vld [vmem:[#allocation2 + $0x38] sm:$0xff]
        %v6898 = vld [vmem:[#allocation2 + $0x40] sm:$0xff]
        %v6899 = vld [vmem:[#allocation2 + $0x48] sm:$0xff]
        %v6900 = vld [vmem:[#allocation2 + $0x50] sm:$0xff]
        %v6901 = vld [vmem:[#allocation2 + $0x58] sm:$0xff]
        %v6902 = vld [vmem:[#allocation2 + $0x60] sm:$0xff]
        %v6903 = vld [vmem:[#allocation2 + $0x68] sm:$0xff]
        %v6904 = vld [vmem:[#allocation2 + $0x70] sm:$0xff]
        %v6905 = vld [vmem:[#allocation2 + $0x78] sm:$0xff]
        %v6906 = vld [vmem:[#allocation2 + $0x80] sm:$0xff]
        %v6907 = vld [vmem:[#allocation2 + $0x88] sm:$0xff]
        %v6908 = vld [vmem:[#allocation2 + $0x90] sm:$0xff]
        %v6909 = vld [vmem:[#allocation2 + $0x98] sm:$0xff]
        %v6910 = vld [vmem:[#allocation2 + $0xa0] sm:$0xff]
        %v6911 = vld [vmem:[#allocation2 + $0xa8] sm:$0xff]
        %v6912 = vld [vmem:[#allocation2 + $0xb0] sm:$0xff]
        %v6913 = vld [vmem:[#allocation2 + $0xb8] sm:$0xff]
        %v6914 = vld [vmem:[#allocation2 + $0xc0] sm:$0xff]
        %v6915 = vld [vmem:[#allocation2 + $0xc8] sm:$0xff]
        %v6916 = vld [vmem:[#allocation2 + $0xd0] sm:$0xff]
        %v6917 = vld [vmem:[#allocation2 + $0xd8] sm:$0xff]
        %v6918 = vld [vmem:[#allocation2 + $0xe0] sm:$0xff]
        %v6919 = vld [vmem:[#allocation2 + $0xe8] sm:$0xff]
        %v6920 = vld [vmem:[#allocation2 + $0xf0] sm:$0xff]
        %v6921 = vld [vmem:[#allocation2 + $0xf8] sm:$0xff]
        %v6922 = vld [vmem:[#allocation2 + $0x100] sm:$0xff]
        %v6923 = vld [vmem:[#allocation2 + $0x108] sm:$0xff]
        %v6924 = vld [vmem:[#allocation2 + $0x110] sm:$0xff]
        %v6925 = vld [vmem:[#allocation2 + $0x118] sm:$0xff]
        %v6926 = vld [vmem:[#allocation2 + $0x120] sm:$0xff]
        %v6927 = vld [vmem:[#allocation2 + $0x128] sm:$0xff]
        %v6928 = vld [vmem:[#allocation2 + $0x130] sm:$0xff]
        %v6929 = vld [vmem:[#allocation2 + $0x138] sm:$0xff]
        %v6930 = vld [vmem:[#allocation2 + $0x140] sm:$0xff]
        %v6931 = vld [vmem:[#allocation2 + $0x148] sm:$0xff]
        %v6932 = vld [vmem:[#allocation2 + $0x150] sm:$0xff]
        %v6933 = vld [vmem:[#allocation2 + $0x158] sm:$0xff]
        %v6934 = vld [vmem:[#allocation2 + $0x160] sm:$0xff]
        %v6935 = vld [vmem:[#allocation2 + $0x168] sm:$0xff]
        %v6936 = vld [vmem:[#allocation2 + $0x170] sm:$0xff]
        %v6937 = vld [vmem:[#allocation2 + $0x178] sm:$0xff]
        %v6938 = vld [vmem:[#allocation2 + $0x180] sm:$0xff]
        %v6939 = vld [vmem:[#allocation2 + $0x188] sm:$0xff]
        %v6940 = vld [vmem:[#allocation2 + $0x190] sm:$0xff]
        %v6941 = vld [vmem:[#allocation2 + $0x198] sm:$0xff]
        %v6942 = vld [vmem:[#allocation2 + $0x1a0] sm:$0xff]
        %v6943 = vld [vmem:[#allocation2 + $0x1a8] sm:$0xff]
        %v6944 = vld [vmem:[#allocation2 + $0x1b0] sm:$0xff]
        %v6945 = vld [vmem:[%s254 + $0x14] sm:$0x8]
        %v6946 = vld [vmem:[%s254 + $0x18] sm:$0xf]
        %v6947 = vld [vmem:[%s254 + $0x1c] sm:$0xf]
        %v6948 = vld [vmem:[%s254 + $0x20] sm:$0xf]
        %v6949 = vld [vmem:[%s254 + $0x24] sm:$0xf]
        %v6950 = vld [vmem:[%s254 + $0x28] sm:$0xf]
        %v6951 = vld [vmem:[%s254 + $0x2c] sm:$0xf]
        %v6952 = vld [vmem:[%s254 + $0x30] sm:$0xf]
        %v6953 = vld [vmem:[%s254 + $0x34] sm:$0xf]
        %v6954 = vld [vmem:[%s254 + $0x38] sm:$0xf]
        %v6955 = vld [vmem:[%s254 + $0x3c] sm:$0xf]
        %v6956 = vld [vmem:[%s254 + $0x40] sm:$0xf]
        %v6957 = vld [vmem:[%s254 + $0x44] sm:$0xf]
        %v6958 = vld [vmem:[%s254 + $0x48] sm:$0xf]
        %v6959 = vld [vmem:[%s254 + $0x4c] sm:$0xf]
        %v6960 = vld [vmem:[%s254 + $0x50] sm:$0xf]
        %v6961 = vld [vmem:[%s254 + $0x54] sm:$0xf]
        %v6962 = vld [vmem:[%s254 + $0x58] sm:$0xf]
        %v6963 = vld [vmem:[%s254 + $0x5c] sm:$0xf]
        %v6964 = vld [vmem:[%s254 + $0x60] sm:$0xf]
        %v6965 = vld [vmem:[%s254 + $0x64] sm:$0xf]
        %v6966 = vld [vmem:[%s254 + $0x68] sm:$0xf]
        %v6967 = vld [vmem:[%s254 + $0x6c] sm:$0xf]
        %v6968 = vld [vmem:[%s254 + $0x70] sm:$0xf]
        %v6969 = vld [vmem:[%s254 + $0x74] sm:$0xf]
        %v6970 = vld [vmem:[%s254 + $0x78] sm:$0xf]
        %v6971 = vld [vmem:[%s254 + $0x7c] sm:$0xf]
        %v6972 = vld [vmem:[%s254 + $0x80] sm:$0xf]
        %v6973 = vld [vmem:[%s254 + $0x84] sm:$0xf]
        %v6974 = vld [vmem:[%s254 + $0x88] sm:$0xf]
        %v6975 = vld [vmem:[%s254 + $0x8c] sm:$0xf]
        %v6976 = vld [vmem:[%s254 + $0x90] sm:$0xf]
        %v6977 = vld [vmem:[%s254 + $0x94] sm:$0xf]
        %v6978 = vld [vmem:[%s254 + $0x98] sm:$0xf]
        %v6979 = vld [vmem:[%s254 + $0x9c] sm:$0xf]
        %v6980 = vld [vmem:[%s254 + $0xa0] sm:$0xf]
        %v6981 = vld [vmem:[%s254 + $0xa4] sm:$0xf]
        %v6982 = vld [vmem:[%s254 + $0xa8] sm:$0xf]
        %v6983 = vld [vmem:[%s254 + $0xac] sm:$0xf]
        %v6984 = vld [vmem:[%s254 + $0xb0] sm:$0xf]
        %v6985 = vld [vmem:[%s254 + $0xb4] sm:$0xf]
        %v6986 = vld [vmem:[%s254 + $0xb8] sm:$0xf]
        %v6987 = vld [vmem:[%s254 + $0xbc] sm:$0xf]
        %v6988 = vld [vmem:[%s254 + $0xc0] sm:$0xf]
        %v6989 = vld [vmem:[%s254 + $0xc4] sm:$0xf]
        %v6990 = vld [vmem:[%s254 + $0xc8] sm:$0xf]
        %v6991 = vld [vmem:[%s254 + $0xcc] sm:$0xf]
        %v6992 = vld [vmem:[%s254 + $0xd0] sm:$0xf]
        %v6993 = vld [vmem:[%s254 + $0xd4] sm:$0xf]
        %v6994 = vld [vmem:[%s254 + $0xd8] sm:$0xf]
        %v6995 = vld [vmem:[%s254 + $0xdc] sm:$0xf]
        %v6996 = vld [vmem:[%s254 + $0xe0] sm:$0xf]
        %v6997 = vld [vmem:[%s254 + $0xe4] sm:$0xf]
        %v6998 = vld [vmem:[%s254 + $0xe8] sm:$0xf]
        %v6999 = vld [vmem:[%s254 + $0xec] sm:$0xf]
        %v7000 = vld [vmem:[%s254 + $0xf0] sm:$0x7]
        %s7001 = scalar_lea.vmem [#allocation6], 16
        %v7002 = vld [vmem:[%s7001] sm:$0x3]
        %v7059 = vunpack.c.l.b16 %v6945
        %v7060 = vunpack.c.l.b16 %v6946
        %v7061 = vunpack.c.l.b16 %v6947
        %v7062 = vunpack.c.l.b16 %v6948
        %v7063 = vunpack.c.l.b16 %v6949
        %v7064 = vunpack.c.l.b16 %v6950
        %v7065 = vunpack.c.l.b16 %v6951
        %v7066 = vunpack.c.l.b16 %v6952
        %v7067 = vunpack.c.l.b16 %v6953
        %v7068 = vunpack.c.l.b16 %v6954
        %v7069 = vunpack.c.l.b16 %v6955
        %v7070 = vunpack.c.l.b16 %v6956
        %v7071 = vunpack.c.l.b16 %v6957
        %v7072 = vunpack.c.l.b16 %v6958
        %v7073 = vunpack.c.l.b16 %v6959
        %v7074 = vunpack.c.l.b16 %v6960
        %v7075 = vunpack.c.l.b16 %v6961
        %v7076 = vunpack.c.l.b16 %v6962
        %v7077 = vunpack.c.l.b16 %v6963
        %v7078 = vunpack.c.l.b16 %v6964
        %v7079 = vunpack.c.l.b16 %v6965
        %v7080 = vunpack.c.l.b16 %v6966
        %v7081 = vunpack.c.l.b16 %v6967
        %v7082 = vunpack.c.l.b16 %v6968
        %v7083 = vunpack.c.l.b16 %v6969
        %v7084 = vunpack.c.l.b16 %v6970
        %v7085 = vunpack.c.l.b16 %v6971
        %v7086 = vunpack.c.l.b16 %v6972
        %v7087 = vunpack.c.l.b16 %v6973
        %v7088 = vunpack.c.l.b16 %v6974
        %v7089 = vunpack.c.l.b16 %v6975
        %v7090 = vunpack.c.l.b16 %v6976
        %v7091 = vunpack.c.l.b16 %v6977
        %v7092 = vunpack.c.l.b16 %v6978
        %v7093 = vunpack.c.l.b16 %v6979
        %v7094 = vunpack.c.l.b16 %v6980
        %v7095 = vunpack.c.l.b16 %v6981
        %v7096 = vunpack.c.l.b16 %v6982
        %v7097 = vunpack.c.l.b16 %v6983
        %v7098 = vunpack.c.l.b16 %v6984
        %v7099 = vunpack.c.l.b16 %v6985
        %v7100 = vunpack.c.l.b16 %v6986
        %v7101 = vunpack.c.l.b16 %v6987
        %v7102 = vunpack.c.l.b16 %v6988
        %v7103 = vunpack.c.l.b16 %v6989
        %v7104 = vunpack.c.l.b16 %v6990
        %v7105 = vunpack.c.l.b16 %v6991
        %v7106 = vunpack.c.l.b16 %v6992
        %v7107 = vunpack.c.l.b16 %v6993
        %v7108 = vunpack.c.l.b16 %v6994
        %v7109 = vunpack.c.l.b16 %v6995
        %v7110 = vunpack.c.l.b16 %v6996
        %v7111 = vunpack.c.l.b16 %v6997
        %v7112 = vunpack.c.l.b16 %v6998
        %v7113 = vunpack.c.l.b16 %v6999
        %v7114 = vunpack.c.l.b16 %v7000
        %v7115 = vpack.c.b16 %v7060, %v7059
        %v7116 = vpack.c.b16 %v7062, %v7061
        %v7117 = vpack.c.b16 %v7064, %v7063
        %v7118 = vpack.c.b16 %v7066, %v7065
        %v7119 = vpack.c.b16 %v7068, %v7067
        %v7120 = vpack.c.b16 %v7070, %v7069
        %v7121 = vpack.c.b16 %v7072, %v7071
        %v7122 = vpack.c.b16 %v7074, %v7073
        %v7123 = vpack.c.b16 %v7076, %v7075
        %v7124 = vpack.c.b16 %v7078, %v7077
        %v7125 = vpack.c.b16 %v7080, %v7079
        %v7126 = vpack.c.b16 %v7082, %v7081
        %v7127 = vpack.c.b16 %v7084, %v7083
        %v7128 = vpack.c.b16 %v7086, %v7085
        %v7129 = vpack.c.b16 %v7088, %v7087
        %v7130 = vpack.c.b16 %v7090, %v7089
        %v7131 = vpack.c.b16 %v7092, %v7091
        %v7132 = vpack.c.b16 %v7094, %v7093
        %v7133 = vpack.c.b16 %v7096, %v7095
        %v7134 = vpack.c.b16 %v7098, %v7097
        %v7135 = vpack.c.b16 %v7100, %v7099
        %v7136 = vpack.c.b16 %v7102, %v7101
        %v7137 = vpack.c.b16 %v7104, %v7103
        %v7138 = vpack.c.b16 %v7106, %v7105
        %v7139 = vpack.c.b16 %v7108, %v7107
        %v7140 = vpack.c.b16 %v7110, %v7109
        %v7141 = vpack.c.b16 %v7112, %v7111
        %v7142 = vpack.c.b16 %v7114, %v7113
        %v7143 = vrot.slane %v7115, 3
        %v7144 = vrot.slane %v7116, 3
        %v7145 = vsel %vm3000, %v7143, %v7144
        %v7146 = vrot.slane %v7117, 3
        %v7147 = vsel %vm3000, %v7144, %v7146
        %v7148 = vrot.slane %v7118, 3
        %v7149 = vsel %vm3000, %v7146, %v7148
        %v7150 = vrot.slane %v7119, 3
        %v7151 = vsel %vm3000, %v7148, %v7150
        %v7152 = vrot.slane %v7120, 3
        %v7153 = vsel %vm3000, %v7150, %v7152
        %v7154 = vrot.slane %v7121, 3
        %v7155 = vsel %vm3000, %v7152, %v7154
        %v7156 = vrot.slane %v7122, 3
        %v7157 = vsel %vm3000, %v7154, %v7156
        %v7158 = vrot.slane %v7123, 3
        %v7159 = vsel %vm3000, %v7156, %v7158
        %v7160 = vrot.slane %v7124, 3
        %v7161 = vsel %vm3000, %v7158, %v7160
        %v7162 = vrot.slane %v7125, 3
        %v7163 = vsel %vm3000, %v7160, %v7162
        %v7164 = vrot.slane %v7126, 3
        %v7165 = vsel %vm3000, %v7162, %v7164
        %v7166 = vrot.slane %v7127, 3
        %v7167 = vsel %vm3000, %v7164, %v7166
        %v7168 = vrot.slane %v7128, 3
        %v7169 = vsel %vm3000, %v7166, %v7168
        %v7170 = vrot.slane %v7129, 3
        %v7171 = vsel %vm3000, %v7168, %v7170
        %v7172 = vrot.slane %v7130, 3
        %v7173 = vsel %vm3000, %v7170, %v7172
        %v7174 = vrot.slane %v7131, 3
        %v7175 = vsel %vm3000, %v7172, %v7174
        %v7176 = vrot.slane %v7132, 3
        %v7177 = vsel %vm3000, %v7174, %v7176
        %v7178 = vrot.slane %v7133, 3
        %v7179 = vsel %vm3000, %v7176, %v7178
        %v7180 = vrot.slane %v7134, 3
        %v7181 = vsel %vm3000, %v7178, %v7180
        %v7182 = vrot.slane %v7135, 3
        %v7183 = vsel %vm3000, %v7180, %v7182
        %v7184 = vrot.slane %v7136, 3
        %v7185 = vsel %vm3000, %v7182, %v7184
        %v7186 = vrot.slane %v7137, 3
        %v7187 = vsel %vm3000, %v7184, %v7186
        %v7188 = vrot.slane %v7138, 3
        %v7189 = vsel %vm3000, %v7186, %v7188
        %v7190 = vrot.slane %v7139, 3
        %v7191 = vsel %vm3000, %v7188, %v7190
        %v7192 = vrot.slane %v7140, 3
        %v7193 = vsel %vm3000, %v7190, %v7192
        %v7194 = vrot.slane %v7141, 3
        %v7195 = vsel %vm3000, %v7192, %v7194
        %v7196 = vrot.slane %v7142, 3
        %v7197 = vsel %vm3000, %v7194, %v7196
        %v7199 = vsel %vm597, %v7145, 0
        %v7202 = vsel %vm597, %v7147, 0
        %v7205 = vsel %vm597, %v7149, 0
        %v7208 = vsel %vm597, %v7151, 0
        %v7211 = vsel %vm597, %v7153, 0
        %v7214 = vsel %vm597, %v7155, 0
        %v7217 = vsel %vm597, %v7157, 0
        %v7220 = vsel %vm597, %v7159, 0
        %v7223 = vsel %vm597, %v7161, 0
        %v7226 = vsel %vm597, %v7163, 0
        %v7229 = vsel %vm597, %v7165, 0
        %v7232 = vsel %vm597, %v7167, 0
        %v7235 = vsel %vm597, %v7169, 0
        %v7238 = vsel %vm597, %v7171, 0
        %v7241 = vsel %vm597, %v7173, 0
        %v7244 = vsel %vm597, %v7175, 0
        %v7247 = vsel %vm597, %v7177, 0
        %v7250 = vsel %vm597, %v7179, 0
        %v7253 = vsel %vm597, %v7181, 0
        %v7256 = vsel %vm597, %v7183, 0
        %v7259 = vsel %vm597, %v7185, 0
        %v7262 = vsel %vm597, %v7187, 0
        %v7265 = vsel %vm597, %v7189, 0
        %v7268 = vsel %vm597, %v7191, 0
        %v7271 = vsel %vm597, %v7193, 0
        %v7274 = vsel %vm597, %v7195, 0
        %v7277 = vsel %vm597, %v7197, 0
        %v7280 = vsel %vm597, %v7196, 0
        %v7283 = vand.u32 %v7002, %v685
        %7285 = vmatprep.subr.bf16.mxu0 0
        %7286 = vmatpush1.bf16.msra.mxu0 %v7283
        %7287 = vmatprep.subr.bf16.mxu0 0
        %7288 = vmatpush1.bf16.msra.mxu0 0
        %7289 = vmatprep.subr.bf16.mxu0 0
        %7290 = vmatpush1.bf16.msra.mxu0 0
        %7291 = vmatprep.subr.bf16.mxu0 0
        %7292 = vmatpush1.bf16.msra.mxu0 0
        %7293 = vmatprep.subr.bf16.mxu0 0
        %7294 = vmatpush1.bf16.msra.mxu0 0
        %7295 = vmatprep.subr.bf16.mxu0 0
        %7296 = vmatpush1.bf16.msra.mxu0 0
        %7297 = vmatprep.subr.bf16.mxu0 0
        %7298 = vmatpush1.bf16.msra.mxu0 0
        %7299 = vmatprep.subr.bf16.mxu0 0
        %7300 = vmatpush1.bf16.msra.mxu0 0
        %7301 = vmatprep.subr.bf16.mxu0 0
        %7302 = vmatpush1.bf16.msra.mxu0 0
        %7303 = vmatprep.subr.bf16.mxu0 0
        %7304 = vmatpush1.bf16.msra.mxu0 0
        %7305 = vmatprep.subr.bf16.mxu0 0
        %7306 = vmatpush1.bf16.msra.mxu0 0
        %7307 = vmatprep.subr.bf16.mxu0 0
        %7308 = vmatpush1.bf16.msra.mxu0 0
        %7309 = vmatprep.subr.bf16.mxu0 0
        %7310 = vmatpush1.bf16.msra.mxu0 0
        %7311 = vmatprep.subr.bf16.mxu0 0
        %7312 = vmatpush1.bf16.msra.mxu0 0
        %7313 = vmatprep.subr.bf16.mxu0 0
        %7314 = vmatpush1.bf16.msra.mxu0 0
        %7315 = vmatprep.subr.bf16.mxu0 0
        %7316 = vmatpush1.bf16.msra.mxu0 0
        %7317 = vmatprep.mubr.bf16.mxu0 0
        %7318 = vmatmul.mubr.bf16.gmra.mrb[0].mxu0 %v7199
        %v7319 = vpop.f32.mrb[0].mxu0
        %v7320 = vadd.f32 0.0, %v7319
        %v7321 = vpop.f32.mrb[0].mxu0
        %v7322 = vpop.f32.mrb[0].mxu0
        %v7323 = vadd.f32 0.0, %v7322
        %v7324 = vpop.f32.mrb[0].mxu0
        %7325 = vmatprep.mubr.bf16.mxu0 0
        %7326 = vmatmul.mubr.bf16.gmra.mrb[0].mxu0 %v7202
        %v7327 = vpop.f32.mrb[0].mxu0
        %v7328 = vadd.f32 0.0, %v7327
        %v7329 = vpop.f32.mrb[0].mxu0
        %v7330 = vpop.f32.mrb[0].mxu0
        %v7331 = vadd.f32 0.0, %v7330
        %v7332 = vpop.f32.mrb[0].mxu0
        %7333 = vmatprep.mubr.bf16.mxu0 0
        %7334 = vmatmul.mubr.bf16.gmra.mrb[0].mxu0 %v7205
        %v7335 = vpop.f32.mrb[0].mxu0
        %v7336 = vadd.f32 0.0, %v7335
        %v7337 = vpop.f32.mrb[0].mxu0
        %v7338 = vpop.f32.mrb[0].mxu0
        %v7339 = vadd.f32 0.0, %v7338
        %v7340 = vpop.f32.mrb[0].mxu0
        %7341 = vmatprep.mubr.bf16.mxu0 0
        %7342 = vmatmul.mubr.bf16.gmra.mrb[0].mxu0 %v7208
        %v7343 = vpop.f32.mrb[0].mxu0
        %v7344 = vadd.f32 0.0, %v7343
        %v7345 = vpop.f32.mrb[0].mxu0
        %v7346 = vpop.f32.mrb[0].mxu0
        %v7347 = vadd.f32 0.0, %v7346
        %v7348 = vpop.f32.mrb[0].mxu0
        %7349 = vmatprep.mubr.bf16.mxu0 0
        %7350 = vmatmul.mubr.bf16.gmra.mrb[0].mxu0 %v7211
        %v7351 = vpop.f32.mrb[0].mxu0
        %v7352 = vadd.f32 0.0, %v7351
        %v7353 = vpop.f32.mrb[0].mxu0
        %v7354 = vpop.f32.mrb[0].mxu0
        %v7355 = vadd.f32 0.0, %v7354
        %v7356 = vpop.f32.mrb[0].mxu0
        %7357 = vmatprep.mubr.bf16.mxu0 0
        %7358 = vmatmul.mubr.bf16.gmra.mrb[0].mxu0 %v7214
        %v7359 = vpop.f32.mrb[0].mxu0
        %v7360 = vadd.f32 0.0, %v7359
        %v7361 = vpop.f32.mrb[0].mxu0
        %v7362 = vpop.f32.mrb[0].mxu0
        %v7363 = vadd.f32 0.0, %v7362
        %v7364 = vpop.f32.mrb[0].mxu0
        %7365 = vmatprep.mubr.bf16.mxu0 0
        %7366 = vmatmul.mubr.bf16.gmra.mrb[0].mxu0 %v7217
        %v7367 = vpop.f32.mrb[0].mxu0
        %v7368 = vadd.f32 0.0, %v7367
        %v7369 = vpop.f32.mrb[0].mxu0
        %v7370 = vpop.f32.mrb[0].mxu0
        %v7371 = vadd.f32 0.0, %v7370
        %v7372 = vpop.f32.mrb[0].mxu0
        %7373 = vmatprep.mubr.bf16.mxu0 0
        %7374 = vmatmul.mubr.bf16.gmra.mrb[0].mxu0 %v7220
        %v7375 = vpop.f32.mrb[0].mxu0
        %v7376 = vadd.f32 0.0, %v7375
        %v7377 = vpop.f32.mrb[0].mxu0
        %v7378 = vpop.f32.mrb[0].mxu0
        %v7379 = vadd.f32 0.0, %v7378
        %v7380 = vpop.f32.mrb[0].mxu0
        %7381 = vmatprep.mubr.bf16.mxu0 0
        %7382 = vmatmul.mubr.bf16.gmra.mrb[0].mxu0 %v7223
        %v7383 = vpop.f32.mrb[0].mxu0
        %v7384 = vadd.f32 0.0, %v7383
        %v7385 = vpop.f32.mrb[0].mxu0
        %v7386 = vpop.f32.mrb[0].mxu0
        %v7387 = vadd.f32 0.0, %v7386
        %v7388 = vpop.f32.mrb[0].mxu0
        %7389 = vmatprep.mubr.bf16.mxu0 0
        %7390 = vmatmul.mubr.bf16.gmra.mrb[0].mxu0 %v7226
        %v7391 = vpop.f32.mrb[0].mxu0
        %v7392 = vadd.f32 0.0, %v7391
        %v7393 = vpop.f32.mrb[0].mxu0
        %v7394 = vpop.f32.mrb[0].mxu0
        %v7395 = vadd.f32 0.0, %v7394
        %v7396 = vpop.f32.mrb[0].mxu0
        %7397 = vmatprep.mubr.bf16.mxu0 0
        %7398 = vmatmul.mubr.bf16.gmra.mrb[0].mxu0 %v7229
        %v7399 = vpop.f32.mrb[0].mxu0
        %v7400 = vadd.f32 0.0, %v7399
        %v7401 = vpop.f32.mrb[0].mxu0
        %v7402 = vpop.f32.mrb[0].mxu0
        %v7403 = vadd.f32 0.0, %v7402
        %v7404 = vpop.f32.mrb[0].mxu0
        %7405 = vmatprep.mubr.bf16.mxu0 0
        %7406 = vmatmul.mubr.bf16.gmra.mrb[0].mxu0 %v7232
        %v7407 = vpop.f32.mrb[0].mxu0
        %v7408 = vadd.f32 0.0, %v7407
        %v7409 = vpop.f32.mrb[0].mxu0
        %v7410 = vpop.f32.mrb[0].mxu0
        %v7411 = vadd.f32 0.0, %v7410
        %v7412 = vpop.f32.mrb[0].mxu0
        %7413 = vmatprep.mubr.bf16.mxu0 0
        %7414 = vmatmul.mubr.bf16.gmra.mrb[0].mxu0 %v7235
        %v7415 = vpop.f32.mrb[0].mxu0
        %v7416 = vadd.f32 0.0, %v7415
        %v7417 = vpop.f32.mrb[0].mxu0
        %v7418 = vpop.f32.mrb[0].mxu0
        %v7419 = vadd.f32 0.0, %v7418
        %v7420 = vpop.f32.mrb[0].mxu0
        %7421 = vmatprep.mubr.bf16.mxu0 0
        %7422 = vmatmul.mubr.bf16.gmra.mrb[0].mxu0 %v7238
        %v7423 = vpop.f32.mrb[0].mxu0
        %v7424 = vadd.f32 0.0, %v7423
        %v7425 = vpop.f32.mrb[0].mxu0
        %v7426 = vpop.f32.mrb[0].mxu0
        %v7427 = vadd.f32 0.0, %v7426
        %v7428 = vpop.f32.mrb[0].mxu0
        %7429 = vmatprep.mubr.bf16.mxu0 0
        %7430 = vmatmul.mubr.bf16.gmra.mrb[0].mxu0 %v7241
        %v7431 = vpop.f32.mrb[0].mxu0
        %v7432 = vadd.f32 0.0, %v7431
        %v7433 = vpop.f32.mrb[0].mxu0
        %v7434 = vpop.f32.mrb[0].mxu0
        %v7435 = vadd.f32 0.0, %v7434
        %v7436 = vpop.f32.mrb[0].mxu0
        %7437 = vmatprep.mubr.bf16.mxu0 0
        %7438 = vmatmul.mubr.bf16.gmra.mrb[0].mxu0 %v7244
        %v7439 = vpop.f32.mrb[0].mxu0
        %v7440 = vadd.f32 0.0, %v7439
        %v7441 = vpop.f32.mrb[0].mxu0
        %v7442 = vpop.f32.mrb[0].mxu0
        %v7443 = vadd.f32 0.0, %v7442
        %v7444 = vpop.f32.mrb[0].mxu0
        %7445 = vmatprep.mubr.bf16.mxu0 0
        %7446 = vmatmul.mubr.bf16.gmra.mrb[0].mxu0 %v7247
        %v7447 = vpop.f32.mrb[0].mxu0
        %v7448 = vadd.f32 0.0, %v7447
        %v7449 = vpop.f32.mrb[0].mxu0
        %v7450 = vpop.f32.mrb[0].mxu0
        %v7451 = vadd.f32 0.0, %v7450
        %v7452 = vpop.f32.mrb[0].mxu0
        %7453 = vmatprep.mubr.bf16.mxu0 0
        %7454 = vmatmul.mubr.bf16.gmra.mrb[0].mxu0 %v7250
        %v7455 = vpop.f32.mrb[0].mxu0
        %v7456 = vadd.f32 0.0, %v7455
        %v7457 = vpop.f32.mrb[0].mxu0
        %v7458 = vpop.f32.mrb[0].mxu0
        %v7459 = vadd.f32 0.0, %v7458
        %v7460 = vpop.f32.mrb[0].mxu0
        %7461 = vmatprep.mubr.bf16.mxu0 0
        %7462 = vmatmul.mubr.bf16.gmra.mrb[0].mxu0 %v7253
        %v7463 = vpop.f32.mrb[0].mxu0
        %v7464 = vadd.f32 0.0, %v7463
        %v7465 = vpop.f32.mrb[0].mxu0
        %v7466 = vpop.f32.mrb[0].mxu0
        %v7467 = vadd.f32 0.0, %v7466
        %v7468 = vpop.f32.mrb[0].mxu0
        %7469 = vmatprep.mubr.bf16.mxu0 0
        %7470 = vmatmul.mubr.bf16.gmra.mrb[0].mxu0 %v7256
        %v7471 = vpop.f32.mrb[0].mxu0
        %v7472 = vadd.f32 0.0, %v7471
        %v7473 = vpop.f32.mrb[0].mxu0
        %v7474 = vpop.f32.mrb[0].mxu0
        %v7475 = vadd.f32 0.0, %v7474
        %v7476 = vpop.f32.mrb[0].mxu0
        %7477 = vmatprep.mubr.bf16.mxu0 0
        %7478 = vmatmul.mubr.bf16.gmra.mrb[0].mxu0 %v7259
        %v7479 = vpop.f32.mrb[0].mxu0
        %v7480 = vadd.f32 0.0, %v7479
        %v7481 = vpop.f32.mrb[0].mxu0
        %v7482 = vpop.f32.mrb[0].mxu0
        %v7483 = vadd.f32 0.0, %v7482
        %v7484 = vpop.f32.mrb[0].mxu0
        %7485 = vmatprep.mubr.bf16.mxu0 0
        %7486 = vmatmul.mubr.bf16.gmra.mrb[0].mxu0 %v7262
        %v7487 = vpop.f32.mrb[0].mxu0
        %v7488 = vadd.f32 0.0, %v7487
        %v7489 = vpop.f32.mrb[0].mxu0
        %v7490 = vpop.f32.mrb[0].mxu0
        %v7491 = vadd.f32 0.0, %v7490
        %v7492 = vpop.f32.mrb[0].mxu0
        %7493 = vmatprep.mubr.bf16.mxu0 0
        %7494 = vmatmul.mubr.bf16.gmra.mrb[0].mxu0 %v7265
        %v7495 = vpop.f32.mrb[0].mxu0
        %v7496 = vadd.f32 0.0, %v7495
        %v7497 = vpop.f32.mrb[0].mxu0
        %v7498 = vpop.f32.mrb[0].mxu0
        %v7499 = vadd.f32 0.0, %v7498
        %v7500 = vpop.f32.mrb[0].mxu0
        %7501 = vmatprep.mubr.bf16.mxu0 0
        %7502 = vmatmul.mubr.bf16.gmra.mrb[0].mxu0 %v7268
        %v7503 = vpop.f32.mrb[0].mxu0
        %v7504 = vadd.f32 0.0, %v7503
        %v7505 = vpop.f32.mrb[0].mxu0
        %v7506 = vpop.f32.mrb[0].mxu0
        %v7507 = vadd.f32 0.0, %v7506
        %v7508 = vpop.f32.mrb[0].mxu0
        %7509 = vmatprep.mubr.bf16.mxu0 0
        %7510 = vmatmul.mubr.bf16.gmra.mrb[0].mxu0 %v7271
        %v7511 = vpop.f32.mrb[0].mxu0
        %v7512 = vadd.f32 0.0, %v7511
        %v7513 = vpop.f32.mrb[0].mxu0
        %v7514 = vpop.f32.mrb[0].mxu0
        %v7515 = vadd.f32 0.0, %v7514
        %v7516 = vpop.f32.mrb[0].mxu0
        %7517 = vmatprep.mubr.bf16.mxu0 0
        %7518 = vmatmul.mubr.bf16.gmra.mrb[0].mxu0 %v7274
        %v7519 = vpop.f32.mrb[0].mxu0
        %v7520 = vadd.f32 0.0, %v7519
        %v7521 = vpop.f32.mrb[0].mxu0
        %v7522 = vpop.f32.mrb[0].mxu0
        %v7523 = vadd.f32 0.0, %v7522
        %v7524 = vpop.f32.mrb[0].mxu0
        %7525 = vmatprep.mubr.bf16.mxu0 0
        %7526 = vmatmul.mubr.bf16.gmra.mrb[0].mxu0 %v7277
        %v7527 = vpop.f32.mrb[0].mxu0
        %v7528 = vadd.f32 0.0, %v7527
        %v7529 = vpop.f32.mrb[0].mxu0
        %v7530 = vpop.f32.mrb[0].mxu0
        %v7531 = vadd.f32 0.0, %v7530
        %v7532 = vpop.f32.mrb[0].mxu0
        %7533 = vmatprep.mubr.bf16.mxu0 0
        %7534 = vmatmul.mubr.bf16.gmra.mrb[0].mxu0 %v7280
        %v7535 = vpop.f32.mrb[0].mxu0
        %v7536 = vadd.f32 0.0, %v7535
        %v7537 = vpop.f32.mrb[0].mxu0
        %v7538 = vpop.f32.mrb[0].mxu0
        %v7539 = vpop.f32.mrb[0].mxu0
        %7540 = vdwg.mxu0
        %v7541 = vadd.f32 %v6890, %v7320
        %v7542 = vadd.f32 %v6891, %v7323
        %v7543 = vadd.f32 %v6892, %v7328
        %v7544 = vadd.f32 %v6893, %v7331
        %v7545 = vadd.f32 %v6894, %v7336
        %v7546 = vadd.f32 %v6895, %v7339
        %v7547 = vadd.f32 %v6896, %v7344
        %v7548 = vadd.f32 %v6897, %v7347
        %v7549 = vadd.f32 %v6898, %v7352
        %v7550 = vadd.f32 %v6899, %v7355
        %v7551 = vadd.f32 %v6900, %v7360
        %v7552 = vadd.f32 %v6901, %v7363
        %v7553 = vadd.f32 %v6902, %v7368
        %v7554 = vadd.f32 %v6903, %v7371
        %v7555 = vadd.f32 %v6904, %v7376
        %v7556 = vadd.f32 %v6905, %v7379
        %v7557 = vadd.f32 %v6906, %v7384
        %v7558 = vadd.f32 %v6907, %v7387
        %v7559 = vadd.f32 %v6908, %v7392
        %v7560 = vadd.f32 %v6909, %v7395
        %v7561 = vadd.f32 %v6910, %v7400
        %v7562 = vadd.f32 %v6911, %v7403
        %v7563 = vadd.f32 %v6912, %v7408
        %v7564 = vadd.f32 %v6913, %v7411
        %v7565 = vadd.f32 %v6914, %v7416
        %v7566 = vadd.f32 %v6915, %v7419
        %v7567 = vadd.f32 %v6916, %v7424
        %v7568 = vadd.f32 %v6917, %v7427
        %v7569 = vadd.f32 %v6918, %v7432
        %v7570 = vadd.f32 %v6919, %v7435
        %v7571 = vadd.f32 %v6920, %v7440
        %v7572 = vadd.f32 %v6921, %v7443
        %v7573 = vadd.f32 %v6922, %v7448
        %v7574 = vadd.f32 %v6923, %v7451
        %v7575 = vadd.f32 %v6924, %v7456
        %v7576 = vadd.f32 %v6925, %v7459
        %v7577 = vadd.f32 %v6926, %v7464
        %v7578 = vadd.f32 %v6927, %v7467
        %v7579 = vadd.f32 %v6928, %v7472
        %v7580 = vadd.f32 %v6929, %v7475
        %v7581 = vadd.f32 %v6930, %v7480
        %v7582 = vadd.f32 %v6931, %v7483
        %v7583 = vadd.f32 %v6932, %v7488
        %v7584 = vadd.f32 %v6933, %v7491
        %v7585 = vadd.f32 %v6934, %v7496
        %v7586 = vadd.f32 %v6935, %v7499
        %v7587 = vadd.f32 %v6936, %v7504
        %v7588 = vadd.f32 %v6937, %v7507
        %v7589 = vadd.f32 %v6938, %v7512
        %v7590 = vadd.f32 %v6939, %v7515
        %v7591 = vadd.f32 %v6940, %v7520
        %v7592 = vadd.f32 %v6941, %v7523
        %v7593 = vadd.f32 %v6942, %v7528
        %v7594 = vadd.f32 %v6943, %v7531
        %v7595 = vadd.f32 %v6944, %v7536
        %7596 = vst.msk [vmem:[#allocation2] sm:$0xff] %vm292, %v7541
        %7597 = vst.msk [vmem:[#allocation2 + $0x8] sm:$0xff] %vm292, %v7542
        %7598 = vst.msk [vmem:[#allocation2 + $0x10] sm:$0xff] %vm292, %v7543
        %7599 = vst.msk [vmem:[#allocation2 + $0x18] sm:$0xff] %vm292, %v7544
        %7600 = vst.msk [vmem:[#allocation2 + $0x20] sm:$0xff] %vm292, %v7545
        %7601 = vst.msk [vmem:[#allocation2 + $0x28] sm:$0xff] %vm292, %v7546
        %7602 = vst.msk [vmem:[#allocation2 + $0x30] sm:$0xff] %vm292, %v7547
        %7603 = vst.msk [vmem:[#allocation2 + $0x38] sm:$0xff] %vm292, %v7548
        %7604 = vst.msk [vmem:[#allocation2 + $0x40] sm:$0xff] %vm292, %v7549
        %7605 = vst.msk [vmem:[#allocation2 + $0x48] sm:$0xff] %vm292, %v7550
        %7606 = vst.msk [vmem:[#allocation2 + $0x50] sm:$0xff] %vm292, %v7551
        %7607 = vst.msk [vmem:[#allocation2 + $0x58] sm:$0xff] %vm292, %v7552
        %7608 = vst.msk [vmem:[#allocation2 + $0x60] sm:$0xff] %vm292, %v7553
        %7609 = vst.msk [vmem:[#allocation2 + $0x68] sm:$0xff] %vm292, %v7554
        %7610 = vst.msk [vmem:[#allocation2 + $0x70] sm:$0xff] %vm292, %v7555
        %7611 = vst.msk [vmem:[#allocation2 + $0x78] sm:$0xff] %vm292, %v7556
        %7612 = vst.msk [vmem:[#allocation2 + $0x80] sm:$0xff] %vm292, %v7557
        %7613 = vst.msk [vmem:[#allocation2 + $0x88] sm:$0xff] %vm292, %v7558
        %7614 = vst.msk [vmem:[#allocation2 + $0x90] sm:$0xff] %vm292, %v7559
        %7615 = vst.msk [vmem:[#allocation2 + $0x98] sm:$0xff] %vm292, %v7560
        %7616 = vst.msk [vmem:[#allocation2 + $0xa0] sm:$0xff] %vm292, %v7561
        %7617 = vst.msk [vmem:[#allocation2 + $0xa8] sm:$0xff] %vm292, %v7562
        %7618 = vst.msk [vmem:[#allocation2 + $0xb0] sm:$0xff] %vm292, %v7563
        %7619 = vst.msk [vmem:[#allocation2 + $0xb8] sm:$0xff] %vm292, %v7564
        %7620 = vst.msk [vmem:[#allocation2 + $0xc0] sm:$0xff] %vm292, %v7565
        %7621 = vst.msk [vmem:[#allocation2 + $0xc8] sm:$0xff] %vm292, %v7566
        %7622 = vst.msk [vmem:[#allocation2 + $0xd0] sm:$0xff] %vm292, %v7567
        %7623 = vst.msk [vmem:[#allocation2 + $0xd8] sm:$0xff] %vm292, %v7568
        %7624 = vst.msk [vmem:[#allocation2 + $0xe0] sm:$0xff] %vm292, %v7569
        %7625 = vst.msk [vmem:[#allocation2 + $0xe8] sm:$0xff] %vm292, %v7570
        %7626 = vst.msk [vmem:[#allocation2 + $0xf0] sm:$0xff] %vm292, %v7571
        %7627 = vst.msk [vmem:[#allocation2 + $0xf8] sm:$0xff] %vm292, %v7572
        %7628 = vst.msk [vmem:[#allocation2 + $0x100] sm:$0xff] %vm292, %v7573
        %7629 = vst.msk [vmem:[#allocation2 + $0x108] sm:$0xff] %vm292, %v7574
        %7630 = vst.msk [vmem:[#allocation2 + $0x110] sm:$0xff] %vm292, %v7575
        %7631 = vst.msk [vmem:[#allocation2 + $0x118] sm:$0xff] %vm292, %v7576
        %7632 = vst.msk [vmem:[#allocation2 + $0x120] sm:$0xff] %vm292, %v7577
        %7633 = vst.msk [vmem:[#allocation2 + $0x128] sm:$0xff] %vm292, %v7578
        %7634 = vst.msk [vmem:[#allocation2 + $0x130] sm:$0xff] %vm292, %v7579
        %7635 = vst.msk [vmem:[#allocation2 + $0x138] sm:$0xff] %vm292, %v7580
        %7636 = vst.msk [vmem:[#allocation2 + $0x140] sm:$0xff] %vm292, %v7581
        %7637 = vst.msk [vmem:[#allocation2 + $0x148] sm:$0xff] %vm292, %v7582
        %7638 = vst.msk [vmem:[#allocation2 + $0x150] sm:$0xff] %vm292, %v7583
        %7639 = vst.msk [vmem:[#allocation2 + $0x158] sm:$0xff] %vm292, %v7584
        %7640 = vst.msk [vmem:[#allocation2 + $0x160] sm:$0xff] %vm292, %v7585
        %7641 = vst.msk [vmem:[#allocation2 + $0x168] sm:$0xff] %vm292, %v7586
        %7642 = vst.msk [vmem:[#allocation2 + $0x170] sm:$0xff] %vm292, %v7587
        %7643 = vst.msk [vmem:[#allocation2 + $0x178] sm:$0xff] %vm292, %v7588
        %7644 = vst.msk [vmem:[#allocation2 + $0x180] sm:$0xff] %vm292, %v7589
        %7645 = vst.msk [vmem:[#allocation2 + $0x188] sm:$0xff] %vm292, %v7590
        %7646 = vst.msk [vmem:[#allocation2 + $0x190] sm:$0xff] %vm292, %v7591
        %7647 = vst.msk [vmem:[#allocation2 + $0x198] sm:$0xff] %vm292, %v7592
        %7648 = vst.msk [vmem:[#allocation2 + $0x1a0] sm:$0xff] %vm292, %v7593
        %7649 = vst.msk [vmem:[#allocation2 + $0x1a8] sm:$0xff] %vm292, %v7594
        %7650 = vst.msk [vmem:[#allocation2 + $0x1b0] sm:$0xff] %vm292, %v7595
        %v7651 = vld [vmem:[#allocation2] sm:$0xff]
        %v7652 = vld [vmem:[#allocation2 + $0x8] sm:$0xff]
        %v7653 = vld [vmem:[#allocation2 + $0x10] sm:$0xff]
        %v7654 = vld [vmem:[#allocation2 + $0x18] sm:$0xff]
        %v7655 = vld [vmem:[#allocation2 + $0x20] sm:$0xff]
        %v7656 = vld [vmem:[#allocation2 + $0x28] sm:$0xff]
        %v7657 = vld [vmem:[#allocation2 + $0x30] sm:$0xff]
        %v7658 = vld [vmem:[#allocation2 + $0x38] sm:$0xff]
        %v7659 = vld [vmem:[#allocation2 + $0x40] sm:$0xff]
        %v7660 = vld [vmem:[#allocation2 + $0x48] sm:$0xff]
        %v7661 = vld [vmem:[#allocation2 + $0x50] sm:$0xff]
        %v7662 = vld [vmem:[#allocation2 + $0x58] sm:$0xff]
        %v7663 = vld [vmem:[#allocation2 + $0x60] sm:$0xff]
        %v7664 = vld [vmem:[#allocation2 + $0x68] sm:$0xff]
        %v7665 = vld [vmem:[#allocation2 + $0x70] sm:$0xff]
        %v7666 = vld [vmem:[#allocation2 + $0x78] sm:$0xff]
        %v7667 = vld [vmem:[#allocation2 + $0x80] sm:$0xff]
        %v7668 = vld [vmem:[#allocation2 + $0x88] sm:$0xff]
        %v7669 = vld [vmem:[#allocation2 + $0x90] sm:$0xff]
        %v7670 = vld [vmem:[#allocation2 + $0x98] sm:$0xff]
        %v7671 = vld [vmem:[#allocation2 + $0xa0] sm:$0xff]
        %v7672 = vld [vmem:[#allocation2 + $0xa8] sm:$0xff]
        %v7673 = vld [vmem:[#allocation2 + $0xb0] sm:$0xff]
        %v7674 = vld [vmem:[#allocation2 + $0xb8] sm:$0xff]
        %v7675 = vld [vmem:[#allocation2 + $0xc0] sm:$0xff]
        %v7676 = vld [vmem:[#allocation2 + $0xc8] sm:$0xff]
        %v7677 = vld [vmem:[#allocation2 + $0xd0] sm:$0xff]
        %v7678 = vld [vmem:[#allocation2 + $0xd8] sm:$0xff]
        %v7679 = vld [vmem:[#allocation2 + $0xe0] sm:$0xff]
        %v7680 = vld [vmem:[#allocation2 + $0xe8] sm:$0xff]
        %v7681 = vld [vmem:[#allocation2 + $0xf0] sm:$0xff]
        %v7682 = vld [vmem:[#allocation2 + $0xf8] sm:$0xff]
        %v7683 = vld [vmem:[#allocation2 + $0x100] sm:$0xff]
        %v7684 = vld [vmem:[#allocation2 + $0x108] sm:$0xff]
        %v7685 = vld [vmem:[#allocation2 + $0x110] sm:$0xff]
        %v7686 = vld [vmem:[#allocation2 + $0x118] sm:$0xff]
        %v7687 = vld [vmem:[#allocation2 + $0x120] sm:$0xff]
        %v7688 = vld [vmem:[#allocation2 + $0x128] sm:$0xff]
        %v7689 = vld [vmem:[#allocation2 + $0x130] sm:$0xff]
        %v7690 = vld [vmem:[#allocation2 + $0x138] sm:$0xff]
        %v7691 = vld [vmem:[#allocation2 + $0x140] sm:$0xff]
        %v7692 = vld [vmem:[#allocation2 + $0x148] sm:$0xff]
        %v7693 = vld [vmem:[#allocation2 + $0x150] sm:$0xff]
        %v7694 = vld [vmem:[#allocation2 + $0x158] sm:$0xff]
        %v7695 = vld [vmem:[#allocation2 + $0x160] sm:$0xff]
        %v7696 = vld [vmem:[#allocation2 + $0x168] sm:$0xff]
        %v7697 = vld [vmem:[#allocation2 + $0x170] sm:$0xff]
        %v7698 = vld [vmem:[#allocation2 + $0x178] sm:$0xff]
        %v7699 = vld [vmem:[#allocation2 + $0x180] sm:$0xff]
        %v7700 = vld [vmem:[#allocation2 + $0x188] sm:$0xff]
        %v7701 = vld [vmem:[#allocation2 + $0x190] sm:$0xff]
        %v7702 = vld [vmem:[#allocation2 + $0x198] sm:$0xff]
        %v7703 = vld [vmem:[#allocation2 + $0x1a0] sm:$0xff]
        %v7704 = vld [vmem:[#allocation2 + $0x1a8] sm:$0xff]
        %v7705 = vld [vmem:[#allocation2 + $0x1b0] sm:$0xff]
        %v7706 = vld [vmem:[#allocation8] sm:$0x1]
        %v7708 = vlaneseq
        %v7709 = vshrl.u32 %v7708, 7
        %v7710 = vsub.s32 0, %v7709
        %v7711 = vrot.slane %v7706, %v7710
        %v7713 = vmul.f32 %v7651, %v7711
        %v7714 = vmul.f32 %v7652, %v7711
        %v7715 = vmul.f32 %v7653, %v7711
        %v7716 = vmul.f32 %v7654, %v7711
        %v7717 = vmul.f32 %v7655, %v7711
        %v7718 = vmul.f32 %v7656, %v7711
        %v7719 = vmul.f32 %v7657, %v7711
        %v7720 = vmul.f32 %v7658, %v7711
        %v7721 = vmul.f32 %v7659, %v7711
        %v7722 = vmul.f32 %v7660, %v7711
        %v7723 = vmul.f32 %v7661, %v7711
        %v7724 = vmul.f32 %v7662, %v7711
        %v7725 = vmul.f32 %v7663, %v7711
        %v7726 = vmul.f32 %v7664, %v7711
        %v7727 = vmul.f32 %v7665, %v7711
        %v7728 = vmul.f32 %v7666, %v7711
        %v7729 = vmul.f32 %v7667, %v7711
        %v7730 = vmul.f32 %v7668, %v7711
        %v7731 = vmul.f32 %v7669, %v7711
        %v7732 = vmul.f32 %v7670, %v7711
        %v7733 = vmul.f32 %v7671, %v7711
        %v7734 = vmul.f32 %v7672, %v7711
        %v7735 = vmul.f32 %v7673, %v7711
        %v7736 = vmul.f32 %v7674, %v7711
        %v7737 = vmul.f32 %v7675, %v7711
        %v7738 = vmul.f32 %v7676, %v7711
        %v7739 = vmul.f32 %v7677, %v7711
        %v7740 = vmul.f32 %v7678, %v7711
        %v7741 = vmul.f32 %v7679, %v7711
        %v7742 = vmul.f32 %v7680, %v7711
        %v7743 = vmul.f32 %v7681, %v7711
        %v7744 = vmul.f32 %v7682, %v7711
        %v7745 = vmul.f32 %v7683, %v7711
        %v7746 = vmul.f32 %v7684, %v7711
        %v7747 = vmul.f32 %v7685, %v7711
        %v7748 = vmul.f32 %v7686, %v7711
        %v7749 = vmul.f32 %v7687, %v7711
        %v7750 = vmul.f32 %v7688, %v7711
        %v7751 = vmul.f32 %v7689, %v7711
        %v7752 = vmul.f32 %v7690, %v7711
        %v7753 = vmul.f32 %v7691, %v7711
        %v7754 = vmul.f32 %v7692, %v7711
        %v7755 = vmul.f32 %v7693, %v7711
        %v7756 = vmul.f32 %v7694, %v7711
        %v7757 = vmul.f32 %v7695, %v7711
        %v7758 = vmul.f32 %v7696, %v7711
        %v7759 = vmul.f32 %v7697, %v7711
        %v7760 = vmul.f32 %v7698, %v7711
        %v7761 = vmul.f32 %v7699, %v7711
        %v7762 = vmul.f32 %v7700, %v7711
        %v7763 = vmul.f32 %v7701, %v7711
        %v7764 = vmul.f32 %v7702, %v7711
        %v7765 = vmul.f32 %v7703, %v7711
        %v7766 = vmul.f32 %v7704, %v7711
        %v7767 = vmul.f32 %v7705, %v7711
        %v7768 = vld [vmem:[#allocation9] sm:$0x1]
        %v7770 = vlaneseq
        %v7771 = vshrl.u32 %v7770, 7
        %v7772 = vsub.s32 0, %v7771
        %v7773 = vrot.slane %v7768, %v7772
        %v7775 = vadd.f32 %v7713, %v7773
        %v7776 = vadd.f32 %v7714, %v7773
        %v7777 = vadd.f32 %v7715, %v7773
        %v7778 = vadd.f32 %v7716, %v7773
        %v7779 = vadd.f32 %v7717, %v7773
        %v7780 = vadd.f32 %v7718, %v7773
        %v7781 = vadd.f32 %v7719, %v7773
        %v7782 = vadd.f32 %v7720, %v7773
        %v7783 = vadd.f32 %v7721, %v7773
        %v7784 = vadd.f32 %v7722, %v7773
        %v7785 = vadd.f32 %v7723, %v7773
        %v7786 = vadd.f32 %v7724, %v7773
        %v7787 = vadd.f32 %v7725, %v7773
        %v7788 = vadd.f32 %v7726, %v7773
        %v7789 = vadd.f32 %v7727, %v7773
        %v7790 = vadd.f32 %v7728, %v7773
        %v7791 = vadd.f32 %v7729, %v7773
        %v7792 = vadd.f32 %v7730, %v7773
        %v7793 = vadd.f32 %v7731, %v7773
        %v7794 = vadd.f32 %v7732, %v7773
        %v7795 = vadd.f32 %v7733, %v7773
        %v7796 = vadd.f32 %v7734, %v7773
        %v7797 = vadd.f32 %v7735, %v7773
        %v7798 = vadd.f32 %v7736, %v7773
        %v7799 = vadd.f32 %v7737, %v7773
        %v7800 = vadd.f32 %v7738, %v7773
        %v7801 = vadd.f32 %v7739, %v7773
        %v7802 = vadd.f32 %v7740, %v7773
        %v7803 = vadd.f32 %v7741, %v7773
        %v7804 = vadd.f32 %v7742, %v7773
        %v7805 = vadd.f32 %v7743, %v7773
        %v7806 = vadd.f32 %v7744, %v7773
        %v7807 = vadd.f32 %v7745, %v7773
        %v7808 = vadd.f32 %v7746, %v7773
        %v7809 = vadd.f32 %v7747, %v7773
        %v7810 = vadd.f32 %v7748, %v7773
        %v7811 = vadd.f32 %v7749, %v7773
        %v7812 = vadd.f32 %v7750, %v7773
        %v7813 = vadd.f32 %v7751, %v7773
        %v7814 = vadd.f32 %v7752, %v7773
        %v7815 = vadd.f32 %v7753, %v7773
        %v7816 = vadd.f32 %v7754, %v7773
        %v7817 = vadd.f32 %v7755, %v7773
        %v7818 = vadd.f32 %v7756, %v7773
        %v7819 = vadd.f32 %v7757, %v7773
        %v7820 = vadd.f32 %v7758, %v7773
        %v7821 = vadd.f32 %v7759, %v7773
        %v7822 = vadd.f32 %v7760, %v7773
        %v7823 = vadd.f32 %v7761, %v7773
        %v7824 = vadd.f32 %v7762, %v7773
        %v7825 = vadd.f32 %v7763, %v7773
        %v7826 = vadd.f32 %v7764, %v7773
        %v7827 = vadd.f32 %v7765, %v7773
        %v7828 = vadd.f32 %v7766, %v7773
        %v7829 = vadd.f32 %v7767, %v7773
        %v7830 = vmax.f32 %v7775, 0.0
        %v7831 = vmax.f32 %v7776, 0.0
        %v7832 = vmax.f32 %v7777, 0.0
        %v7833 = vmax.f32 %v7778, 0.0
        %v7834 = vmax.f32 %v7779, 0.0
        %v7835 = vmax.f32 %v7780, 0.0
        %v7836 = vmax.f32 %v7781, 0.0
        %v7837 = vmax.f32 %v7782, 0.0
        %v7838 = vmax.f32 %v7783, 0.0
        %v7839 = vmax.f32 %v7784, 0.0
        %v7840 = vmax.f32 %v7785, 0.0
        %v7841 = vmax.f32 %v7786, 0.0
        %v7842 = vmax.f32 %v7787, 0.0
        %v7843 = vmax.f32 %v7788, 0.0
        %v7844 = vmax.f32 %v7789, 0.0
        %v7845 = vmax.f32 %v7790, 0.0
        %v7846 = vmax.f32 %v7791, 0.0
        %v7847 = vmax.f32 %v7792, 0.0
        %v7848 = vmax.f32 %v7793, 0.0
        %v7849 = vmax.f32 %v7794, 0.0
        %v7850 = vmax.f32 %v7795, 0.0
        %v7851 = vmax.f32 %v7796, 0.0
        %v7852 = vmax.f32 %v7797, 0.0
        %v7853 = vmax.f32 %v7798, 0.0
        %v7854 = vmax.f32 %v7799, 0.0
        %v7855 = vmax.f32 %v7800, 0.0
        %v7856 = vmax.f32 %v7801, 0.0
        %v7857 = vmax.f32 %v7802, 0.0
        %v7858 = vmax.f32 %v7803, 0.0
        %v7859 = vmax.f32 %v7804, 0.0
        %v7860 = vmax.f32 %v7805, 0.0
        %v7861 = vmax.f32 %v7806, 0.0
        %v7862 = vmax.f32 %v7807, 0.0
        %v7863 = vmax.f32 %v7808, 0.0
        %v7864 = vmax.f32 %v7809, 0.0
        %v7865 = vmax.f32 %v7810, 0.0
        %v7866 = vmax.f32 %v7811, 0.0
        %v7867 = vmax.f32 %v7812, 0.0
        %v7868 = vmax.f32 %v7813, 0.0
        %v7869 = vmax.f32 %v7814, 0.0
        %v7870 = vmax.f32 %v7815, 0.0
        %v7871 = vmax.f32 %v7816, 0.0
        %v7872 = vmax.f32 %v7817, 0.0
        %v7873 = vmax.f32 %v7818, 0.0
        %v7874 = vmax.f32 %v7819, 0.0
        %v7875 = vmax.f32 %v7820, 0.0
        %v7876 = vmax.f32 %v7821, 0.0
        %v7877 = vmax.f32 %v7822, 0.0
        %v7878 = vmax.f32 %v7823, 0.0
        %v7879 = vmax.f32 %v7824, 0.0
        %v7880 = vmax.f32 %v7825, 0.0
        %v7881 = vmax.f32 %v7826, 0.0
        %v7882 = vmax.f32 %v7827, 0.0
        %v7883 = vmax.f32 %v7828, 0.0
        %v7884 = vmax.f32 %v7829, 0.0
        %v7885 = vpack.c.bf16 %v7831, %v7830
        %v7886 = vpack.c.bf16 %v7833, %v7832
        %v7887 = vpack.c.bf16 %v7835, %v7834
        %v7888 = vpack.c.bf16 %v7837, %v7836
        %v7889 = vpack.c.bf16 %v7839, %v7838
        %v7890 = vpack.c.bf16 %v7841, %v7840
        %v7891 = vpack.c.bf16 %v7843, %v7842
        %v7892 = vpack.c.bf16 %v7845, %v7844
        %v7893 = vpack.c.bf16 %v7847, %v7846
        %v7894 = vpack.c.bf16 %v7849, %v7848
        %v7895 = vpack.c.bf16 %v7851, %v7850
        %v7896 = vpack.c.bf16 %v7853, %v7852
        %v7897 = vpack.c.bf16 %v7855, %v7854
        %v7898 = vpack.c.bf16 %v7857, %v7856
        %v7899 = vpack.c.bf16 %v7859, %v7858
        %v7900 = vpack.c.bf16 %v7861, %v7860
        %v7901 = vpack.c.bf16 %v7863, %v7862
        %v7902 = vpack.c.bf16 %v7865, %v7864
        %v7903 = vpack.c.bf16 %v7867, %v7866
        %v7904 = vpack.c.bf16 %v7869, %v7868
        %v7905 = vpack.c.bf16 %v7871, %v7870
        %v7906 = vpack.c.bf16 %v7873, %v7872
        %v7907 = vpack.c.bf16 %v7875, %v7874
        %v7908 = vpack.c.bf16 %v7877, %v7876
        %v7909 = vpack.c.bf16 %v7879, %v7878
        %v7910 = vpack.c.bf16 %v7881, %v7880
        %v7911 = vpack.c.bf16 %v7883, %v7882
        %v7912 = vpack.c.bf16 %v7884, %v7884
        %v7941 = vunpack.c.l.b16 %v7885
        %v7942 = vunpack.c.h.b16 %v7885
        %v7943 = vunpack.c.l.b16 %v7886
        %v7944 = vunpack.c.h.b16 %v7886
        %v7945 = vunpack.c.l.b16 %v7887
        %v7946 = vunpack.c.h.b16 %v7887
        %v7947 = vunpack.c.l.b16 %v7888
        %v7948 = vunpack.c.h.b16 %v7888
        %v7949 = vunpack.c.l.b16 %v7889
        %v7950 = vunpack.c.h.b16 %v7889
        %v7951 = vunpack.c.l.b16 %v7890
        %v7952 = vunpack.c.h.b16 %v7890
        %v7953 = vunpack.c.l.b16 %v7891
        %v7954 = vunpack.c.h.b16 %v7891
        %v7955 = vunpack.c.l.b16 %v7892
        %v7956 = vunpack.c.h.b16 %v7892
        %v7957 = vunpack.c.l.b16 %v7893
        %v7958 = vunpack.c.h.b16 %v7893
        %v7959 = vunpack.c.l.b16 %v7894
        %v7960 = vunpack.c.h.b16 %v7894
        %v7961 = vunpack.c.l.b16 %v7895
        %v7962 = vunpack.c.h.b16 %v7895
        %v7963 = vunpack.c.l.b16 %v7896
        %v7964 = vunpack.c.h.b16 %v7896
        %v7965 = vunpack.c.l.b16 %v7897
        %v7966 = vunpack.c.h.b16 %v7897
        %v7967 = vunpack.c.l.b16 %v7898
        %v7968 = vunpack.c.h.b16 %v7898
        %v7969 = vunpack.c.l.b16 %v7899
        %v7970 = vunpack.c.h.b16 %v7899
        %v7971 = vunpack.c.l.b16 %v7900
        %v7972 = vunpack.c.h.b16 %v7900
        %v7973 = vunpack.c.l.b16 %v7901
        %v7974 = vunpack.c.h.b16 %v7901
        %v7975 = vunpack.c.l.b16 %v7902
        %v7976 = vunpack.c.h.b16 %v7902
        %v7977 = vunpack.c.l.b16 %v7903
        %v7978 = vunpack.c.h.b16 %v7903
        %v7979 = vunpack.c.l.b16 %v7904
        %v7980 = vunpack.c.h.b16 %v7904
        %v7981 = vunpack.c.l.b16 %v7905
        %v7982 = vunpack.c.h.b16 %v7905
        %v7983 = vunpack.c.l.b16 %v7906
        %v7984 = vunpack.c.h.b16 %v7906
        %v7985 = vunpack.c.l.b16 %v7907
        %v7986 = vunpack.c.h.b16 %v7907
        %v7987 = vunpack.c.l.b16 %v7908
        %v7988 = vunpack.c.h.b16 %v7908
        %v7989 = vunpack.c.l.b16 %v7909
        %v7990 = vunpack.c.h.b16 %v7909
        %v7991 = vunpack.c.l.b16 %v7910
        %v7992 = vunpack.c.h.b16 %v7910
        %v7993 = vunpack.c.l.b16 %v7911
        %v7994 = vunpack.c.h.b16 %v7911
        %v7995 = vunpack.c.l.b16 %v7912
        %v7996 = vpack.c.b16 %v7941, %v7941
        %v7997 = vpack.c.b16 %v7942, %v7942
        %v7998 = vpack.c.b16 %v7943, %v7943
        %v7999 = vpack.c.b16 %v7944, %v7944
        %v8000 = vpack.c.b16 %v7945, %v7945
        %v8001 = vpack.c.b16 %v7946, %v7946
        %v8002 = vpack.c.b16 %v7947, %v7947
        %v8003 = vpack.c.b16 %v7948, %v7948
        %v8004 = vpack.c.b16 %v7949, %v7949
        %v8005 = vpack.c.b16 %v7950, %v7950
        %v8006 = vpack.c.b16 %v7951, %v7951
        %v8007 = vpack.c.b16 %v7952, %v7952
        %v8008 = vpack.c.b16 %v7953, %v7953
        %v8009 = vpack.c.b16 %v7954, %v7954
        %v8010 = vpack.c.b16 %v7955, %v7955
        %v8011 = vpack.c.b16 %v7956, %v7956
        %v8012 = vpack.c.b16 %v7957, %v7957
        %v8013 = vpack.c.b16 %v7958, %v7958
        %v8014 = vpack.c.b16 %v7959, %v7959
        %v8015 = vpack.c.b16 %v7960, %v7960
        %v8016 = vpack.c.b16 %v7961, %v7961
        %v8017 = vpack.c.b16 %v7962, %v7962
        %v8018 = vpack.c.b16 %v7963, %v7963
        %v8019 = vpack.c.b16 %v7964, %v7964
        %v8020 = vpack.c.b16 %v7965, %v7965
        %v8021 = vpack.c.b16 %v7966, %v7966
        %v8022 = vpack.c.b16 %v7967, %v7967
        %v8023 = vpack.c.b16 %v7968, %v7968
        %v8024 = vpack.c.b16 %v7969, %v7969
        %v8025 = vpack.c.b16 %v7970, %v7970
        %v8026 = vpack.c.b16 %v7971, %v7971
        %v8027 = vpack.c.b16 %v7972, %v7972
        %v8028 = vpack.c.b16 %v7973, %v7973
        %v8029 = vpack.c.b16 %v7974, %v7974
        %v8030 = vpack.c.b16 %v7975, %v7975
        %v8031 = vpack.c.b16 %v7976, %v7976
        %v8032 = vpack.c.b16 %v7977, %v7977
        %v8033 = vpack.c.b16 %v7978, %v7978
        %v8034 = vpack.c.b16 %v7979, %v7979
        %v8035 = vpack.c.b16 %v7980, %v7980
        %v8036 = vpack.c.b16 %v7981, %v7981
        %v8037 = vpack.c.b16 %v7982, %v7982
        %v8038 = vpack.c.b16 %v7983, %v7983
        %v8039 = vpack.c.b16 %v7984, %v7984
        %v8040 = vpack.c.b16 %v7985, %v7985
        %v8041 = vpack.c.b16 %v7986, %v7986
        %v8042 = vpack.c.b16 %v7987, %v7987
        %v8043 = vpack.c.b16 %v7988, %v7988
        %v8044 = vpack.c.b16 %v7989, %v7989
        %v8045 = vpack.c.b16 %v7990, %v7990
        %v8046 = vpack.c.b16 %v7991, %v7991
        %v8047 = vpack.c.b16 %v7992, %v7992
        %v8048 = vpack.c.b16 %v7993, %v7993
        %v8049 = vpack.c.b16 %v7994, %v7994
        %v8050 = vpack.c.b16 %v7995, %v7995
        %vm8106 = vcmask 60416
        %8107 = vst.msk [vmem:[%s290] sm:$0xf] %vm8106, %v7996
        %8108 = vst.msk [vmem:[%s290 + $0x4] sm:$0xf] %vm8106, %v7997
        %8109 = vst.msk [vmem:[%s290 + $0x8] sm:$0xf] %vm8106, %v7998
        %8110 = vst.msk [vmem:[%s290 + $0xc] sm:$0xf] %vm8106, %v7999
        %8111 = vst.msk [vmem:[%s290 + $0x10] sm:$0xf] %vm8106, %v8000
        %8112 = vst.msk [vmem:[%s290 + $0x14] sm:$0xf] %vm8106, %v8001
        %8113 = vst.msk [vmem:[%s290 + $0x18] sm:$0xf] %vm8106, %v8002
        %8114 = vst.msk [vmem:[%s290 + $0x1c] sm:$0xf] %vm8106, %v8003
        %8115 = vst.msk [vmem:[%s290 + $0x20] sm:$0xf] %vm8106, %v8004
        %8116 = vst.msk [vmem:[%s290 + $0x24] sm:$0xf] %vm8106, %v8005
        %8117 = vst.msk [vmem:[%s290 + $0x28] sm:$0xf] %vm8106, %v8006
        %8118 = vst.msk [vmem:[%s290 + $0x2c] sm:$0xf] %vm8106, %v8007
        %8119 = vst.msk [vmem:[%s290 + $0x30] sm:$0xf] %vm8106, %v8008
        %8120 = vst.msk [vmem:[%s290 + $0x34] sm:$0xf] %vm8106, %v8009
        %8121 = vst.msk [vmem:[%s290 + $0x38] sm:$0xf] %vm8106, %v8010
        %8122 = vst.msk [vmem:[%s290 + $0x3c] sm:$0xf] %vm8106, %v8011
        %8123 = vst.msk [vmem:[%s290 + $0x40] sm:$0xf] %vm8106, %v8012
        %8124 = vst.msk [vmem:[%s290 + $0x44] sm:$0xf] %vm8106, %v8013
        %8125 = vst.msk [vmem:[%s290 + $0x48] sm:$0xf] %vm8106, %v8014
        %8126 = vst.msk [vmem:[%s290 + $0x4c] sm:$0xf] %vm8106, %v8015
        %8127 = vst.msk [vmem:[%s290 + $0x50] sm:$0xf] %vm8106, %v8016
        %8128 = vst.msk [vmem:[%s290 + $0x54] sm:$0xf] %vm8106, %v8017
        %8129 = vst.msk [vmem:[%s290 + $0x58] sm:$0xf] %vm8106, %v8018
        %8130 = vst.msk [vmem:[%s290 + $0x5c] sm:$0xf] %vm8106, %v8019
        %8131 = vst.msk [vmem:[%s290 + $0x60] sm:$0xf] %vm8106, %v8020
        %8132 = vst.msk [vmem:[%s290 + $0x64] sm:$0xf] %vm8106, %v8021
        %8133 = vst.msk [vmem:[%s290 + $0x68] sm:$0xf] %vm8106, %v8022
        %8134 = vst.msk [vmem:[%s290 + $0x6c] sm:$0xf] %vm8106, %v8023
        %8135 = vst.msk [vmem:[%s290 + $0x70] sm:$0xf] %vm8106, %v8024
        %8136 = vst.msk [vmem:[%s290 + $0x74] sm:$0xf] %vm8106, %v8025
        %8137 = vst.msk [vmem:[%s290 + $0x78] sm:$0xf] %vm8106, %v8026
        %8138 = vst.msk [vmem:[%s290 + $0x7c] sm:$0xf] %vm8106, %v8027
        %8139 = vst.msk [vmem:[%s290 + $0x80] sm:$0xf] %vm8106, %v8028
        %8140 = vst.msk [vmem:[%s290 + $0x84] sm:$0xf] %vm8106, %v8029
        %8141 = vst.msk [vmem:[%s290 + $0x88] sm:$0xf] %vm8106, %v8030
        %8142 = vst.msk [vmem:[%s290 + $0x8c] sm:$0xf] %vm8106, %v8031
        %8143 = vst.msk [vmem:[%s290 + $0x90] sm:$0xf] %vm8106, %v8032
        %8144 = vst.msk [vmem:[%s290 + $0x94] sm:$0xf] %vm8106, %v8033
        %8145 = vst.msk [vmem:[%s290 + $0x98] sm:$0xf] %vm8106, %v8034
        %8146 = vst.msk [vmem:[%s290 + $0x9c] sm:$0xf] %vm8106, %v8035
        %8147 = vst.msk [vmem:[%s290 + $0xa0] sm:$0xf] %vm8106, %v8036
        %8148 = vst.msk [vmem:[%s290 + $0xa4] sm:$0xf] %vm8106, %v8037
        %8149 = vst.msk [vmem:[%s290 + $0xa8] sm:$0xf] %vm8106, %v8038
        %8150 = vst.msk [vmem:[%s290 + $0xac] sm:$0xf] %vm8106, %v8039
        %8151 = vst.msk [vmem:[%s290 + $0xb0] sm:$0xf] %vm8106, %v8040
        %8152 = vst.msk [vmem:[%s290 + $0xb4] sm:$0xf] %vm8106, %v8041
        %8153 = vst.msk [vmem:[%s290 + $0xb8] sm:$0xf] %vm8106, %v8042
        %8154 = vst.msk [vmem:[%s290 + $0xbc] sm:$0xf] %vm8106, %v8043
        %8155 = vst.msk [vmem:[%s290 + $0xc0] sm:$0xf] %vm8106, %v8044
        %8156 = vst.msk [vmem:[%s290 + $0xc4] sm:$0xf] %vm8106, %v8045
        %8157 = vst.msk [vmem:[%s290 + $0xc8] sm:$0xf] %vm8106, %v8046
        %8158 = vst.msk [vmem:[%s290 + $0xcc] sm:$0xf] %vm8106, %v8047
        %8159 = vst.msk [vmem:[%s290 + $0xd0] sm:$0xf] %vm8106, %v8048
        %8160 = vst.msk [vmem:[%s290 + $0xd4] sm:$0xf] %vm8106, %v8049
        %8161 = vst.msk [vmem:[%s290 + $0xd8] sm:$0xf] %vm8106, %v8050
        %s8162 = sand.u32 %s149, 1
        %s8163 = scalar_lea.sflag [#allocation5], %s8162
        %s8164 = sand.u32 %s149, 1
        %s8165 = smul.addr %s8164, 220
        %s8166 = scalar_lea.vmem [#allocation11], %s8165
        // Predicated region
        $region53: #{tpu_custom_call.1} parent=35 // pred_check
          %p8167 = pneg %p159
        $region54: #{tpu_custom_call.1} parent=35 // pred_check_branch
          %8169 = sbr.rel (%p8167) target = $region56
        $region55: #{tpu_custom_call.1} parent=35 // pred_region
          %s8171 = ssub.s32 3520, 3520
          %8172 = vsyncadd %s8163, %s8171
          %s8173 = smul.addr %s27, 55
          %s8174 = sadd.s32 %s28, %s8173
          %s8175 = smul.addr %s8174, 64
          %s8176 = scalar_lea.hbm %s4, %s8175
          %s8177 = sshll.u32 %s8166, 4
          %s8178 = int_to_ptr.vmem [resolvable:$true] %s8177
          %8183 = dma.vmem_to_hbm [thread:$0]  %s8178, 3520, %s8176, %s8163, 64, 64, 4
        $region56: #{tpu_custom_call.1} parent=35 // pred_fallthru
          _
      $region36: #{tpu_custom_call.1} parent=5 // pred_fallthru
        _
      %p8184 = scmp.le.s32.totalorder 2, %s18
      // Predicated region
      $region57: #{tpu_custom_call.1} parent=5 // pred_check
        %p8185 = pneg %p8184
      $region58: #{tpu_custom_call.1} parent=5 // pred_check_branch
        %8187 = sbr.rel (%p8185) target = $region60
      $region59: #{tpu_custom_call.1} parent=5 // pred_region
        %s8188 = ssub.s32 %s18, 2
        // Predicated region
        $region61: #{tpu_custom_call.1} parent=59 // pred_check
          %p8189 = pneg %p165
        $region62: #{tpu_custom_call.1} parent=59 // pred_check_branch
          %8191 = sbr.rel (%p8189) target = $region64
        $region63: #{tpu_custom_call.1} parent=59 // pred_region
          %s8192 = sand.u32 %s150, 1
          %s8193 = scalar_lea.sflag [#allocation5], %s8192
          %s8194 = sand.u32 %s150, 1
          %s8195 = smul.addr %s8194, 220
          %s8196 = scalar_lea.vmem [#allocation11], %s8195
          %8197 = dma.done %s8193, 3520
        $region64: #{tpu_custom_call.1} parent=59 // pred_fallthru
          _
      $region60: #{tpu_custom_call.1} parent=5 // pred_fallthru
        _
    $region6: #{tpu_custom_call.1} parent=1 // loop_footer
      %s22 = sadd.s32 1, %s18
    $region7: #{tpu_custom_call.1} parent=1 // loop_footer_branch
      %17 = sbr.rel target = $region3
    $region8: #{tpu_custom_call.1} parent=1 // loop_exit
      _
    %8198 = vsyncpa [#allocation4], 1
    %s8199 = scalar_lea.sflag [#allocation4], 1
    %8200 = vsyncpa %s8199, 1
    %8201 = vsyncpa [#allocation7], 1
    %8202 = vsyncpa [#allocation10], 1
    %8203 = vsyncpa [#allocation5], 1
    %s8204 = scalar_lea.sflag [#allocation5], 1
    %8205 = vsyncpa %s8204, 1

</llo_original>
